<compile_context>
chip_gen: v5e
topology: v5e:2x2
jax: 0.10.0
libtpu: 0.0.40
codegen_flags: <defaults>
</compile_context>

<pallas_src>
import functools

import jax
import jax.numpy as jnp
from jax.experimental import pallas as pl
from jax.experimental.pallas import tpu as pltpu

LRELU_SLOPE = 0.1

# (Cout, Cin, K, stride, groups, pad) for the 7 conv layers, then conv_post.
_CONV_CFG = [
    (128,    1, 15, 1,  1,  7),
    (128,  128, 41, 2,  4, 20),
    (256,  128, 41, 2, 16, 20),
    (512,  256, 41, 4, 16, 20),
    (1024, 512, 41, 4, 16, 20),
    (1024, 1024, 41, 1, 16, 20),
    (1024, 1024, 5, 1,  1,  2),
]
_CONV_POST_CFG = (1, 1024, 3, 1, 1, 1)


def _round_up(x, m):
    return ((x + m - 1) // m) * m


def _pick_tk(kp):
    """kp is a multiple of 128; pick a K-tile that divides it."""
    if kp <= 1536:
        return kp
    for d in (1024, 512, 384, 256, 128):
        if kp % d == 0:
            return d
    return 128  # unreachable (kp % 128 == 0)


# ---------------------------------------------------------------------------
# Pallas kernel: grouped matmul + bias + (optional) leaky-relu, K-accumulated
# in a VMEM f32 scratch, epilogue only on the last K step.
# ---------------------------------------------------------------------------
def _gmm_kernel(x_ref, w_ref, b_ref, o_ref, acc_ref, *, slope):
    @pl.when(pl.program_id(3) == 0)
    def _():
        acc_ref[...] = jnp.zeros_like(acc_ref)

    acc_ref[...] += jnp.dot(x_ref[...], w_ref[...],
                            preferred_element_type=jnp.float32)

    @pl.when(pl.program_id(3) == pl.num_programs(3) - 1)
    def _():
        r = acc_ref[...] + b_ref[...]                 # (tm, tn) + (1, tn)
        if slope is not None:
            r = jnp.where(r >= 0, r, slope * r)
        o_ref[...] = r.astype(o_ref.dtype)


def grouped_matmul_bias_act(xg, wg, bg, slope):
    """xg: (G, M, Kc) bf16, wg: (G, Kc, N) bf16, bg: (G, 1, N) f32 -> (G, M, N) f32."""
    G, M, Kc = xg.shape
    _, _, N = wg.shape

    Kp = _round_up(Kc, 128)
    tm = 256 if M >= 256 else max(8, _round_up(M, 8))
    Mp = _round_up(M, tm)
    tk = _pick_tk(Kp)
    tn = N if (N <= 256 or N % 256 != 0) else 256

    if Mp != M or Kp != Kc:
        xg = jnp.pad(xg, ((0, 0), (0, Mp - M), (0, Kp - Kc)))
    if Kp != Kc:
        wg = jnp.pad(wg, ((0, 0), (0, Kp - Kc), (0, 0)))

    grid = (G, Mp // tm, N // tn, Kp // tk)

    out = pl.pallas_call(
        functools.partial(_gmm_kernel, slope=slope),
        out_shape=jax.ShapeDtypeStruct((G, Mp, N), jnp.float32),
        grid=grid,
        in_specs=[
            pl.BlockSpec((None, tm, tk), lambda g, i, j, k: (g, i, k)),
            pl.BlockSpec((None, tk, tn), lambda g, i, j, k: (g, k, j)),
            pl.BlockSpec((None, 1, tn), lambda g, i, j, k: (g, 0, j)),
        ],
        out_specs=pl.BlockSpec((None, tm, tn), lambda g, i, j, k: (g, i, j)),
        scratch_shapes=[pltpu.VMEM((tm, tn), jnp.float32)],
        compiler_params=pltpu.CompilerParams(
            dimension_semantics=("parallel", "parallel", "parallel", "arbitrary")),
    )(xg, wg, bg)

    return out[:, :M, :]


# ---------------------------------------------------------------------------
# Conv1d (with groups) via channels-last im2col + the Pallas grouped matmul.
# x_cl: (B, T, Cin) -> (B, To, Cout), both channels-last.
# ---------------------------------------------------------------------------
def conv1d_grouped(x_cl, w, b, *, stride, pad, groups, slope):
    B, T, Cin = x_cl.shape
    Cout, Cin_g, K = w.shape
    G = groups
    assert Cin_g * G == Cin
    Cout_g = Cout // G

    x_bf = x_cl.astype(jnp.bfloat16)
    xp = jnp.pad(x_bf, ((0, 0), (pad, pad), (0, 0)))
    Tp = T + 2 * pad
    To = (Tp - K) // stride + 1

    # TODO(synk): the im2col is still materialized at the XLA level (K-fold
    # activation duplication, in bf16); the fully in-kernel tap-accumulation
    # variant needs element-offset BlockSpecs / manual DMA and is omitted for
    # compile robustness.
    idx = jnp.arange(To)[:, None] * stride + jnp.arange(K)[None, :]   # (To, K)
    patches = xp[:, idx, :]                                           # (B, To, K, Cin)
    patches = patches.reshape(B, To, K, G, Cin_g)
    patches = jnp.transpose(patches, (3, 0, 1, 4, 2))                 # (G, B, To, Cin_g, K)
    xg = patches.reshape(G, B * To, Cin_g * K)

    wg = jnp.transpose(w.reshape(G, Cout_g, Cin_g, K), (0, 2, 3, 1))  # (G, Cin_g, K, Cout_g)
    wg = wg.reshape(G, Cin_g * K, Cout_g).astype(jnp.bfloat16)
    bg = b.reshape(G, 1, Cout_g).astype(jnp.float32)

    out = grouped_matmul_bias_act(xg, wg, bg, slope)                  # (G, B*To, Cout_g) f32
    out = jnp.transpose(out, (1, 0, 2)).reshape(B, To, Cout)
    return out


# ---------------------------------------------------------------------------
# ScaleDiscriminator forward (weight_norm folded at init into plain weights).
# ---------------------------------------------------------------------------
def init_scale_disc_params(key):
    convs = []
    for (cout, cin, k, _s, g, _p) in _CONV_CFG:
        key, kw, kb = jax.random.split(key, 3)
        w = 0.05 * jax.random.normal(kw, (cout, cin // g, k), jnp.float32)
        b = 0.05 * jax.random.normal(kb, (cout,), jnp.float32)
        convs.append((w, b))
    cout, cin, k, _s, g, _p = _CONV_POST_CFG
    key, kw, kb = jax.random.split(key, 3)
    wp = 0.05 * jax.random.normal(kw, (cout, cin // g, k), jnp.float32)
    bp = 0.05 * jax.random.normal(kb, (cout,), jnp.float32)
    return {"convs": convs, "conv_post": (wp, bp)}


def scale_discriminator_forward(x, params):
    """x: (B, 1, T) waveform -> (scores (B, To), list of (B, C, T') features)."""
    B, _, _ = x.shape
    feats = []
    h = jnp.transpose(x, (0, 2, 1))                         # (B, T, 1) channels-last
    for (w, b), (_co, _ci, _k, s, g, p) in zip(params["convs"], _CONV_CFG):
        h = conv1d_grouped(h, w, b, stride=s, pad=p, groups=g, slope=LRELU_SLOPE)
        feats.append(jnp.transpose(h, (0, 2, 1)))           # PyTorch (B, C, T) layout

    wp, bp = params["conv_post"]
    # Lane-dense conv_post: pad the single output channel to 128, slice after.
    wp128 = jnp.pad(wp, ((0, 128 - wp.shape[0]), (0, 0), (0, 0)))
    bp128 = jnp.pad(bp, ((0, 128 - bp.shape[0]),))
    h = conv1d_grouped(h, wp128, bp128, stride=1, pad=1, groups=1, slope=None)
    h = h[:, :, :1]                                          # (B, To, 1)
    feats.append(jnp.transpose(h, (0, 2, 1)))                # (B, 1, To)

    score = h.reshape(B, -1)                                 # == torch.flatten(x, 1, -1)
    return score, feats


# ---------------------------------------------------------------------------
# Pure-JAX reference (f32, lax conv) for correctness checking.
# ---------------------------------------------------------------------------
def _conv1d_ref(x, w, b, stride, pad, groups):
    out = jax.lax.conv_general_dilated(
        x, w, window_strides=(stride,), padding=[(pad, pad)],
        dimension_numbers=("NCH", "OIH", "NCH"),
        feature_group_count=groups,
        precision=jax.lax.Precision.HIGHEST)
    return out + b[None, :, None]


def scale_discriminator_ref(x, params):
    feats = []
    h = x
    for (w, b), (_co, _ci, _k, s, g, p) in zip(params["convs"], _CONV_CFG):
        h = _conv1d_ref(h, w, b, s, p, g)
        h = jnp.where(h >= 0, h, LRELU_SLOPE * h)
        feats.append(h)
    wp, bp = params["conv_post"]
    h = _conv1d_ref(h, wp, bp, 1, 1, 1)
    feats.append(h)
    return h.reshape(h.shape[0], -1), feats


if __name__ == "__main__":
    key = jax.random.PRNGKey(0)
    key, kx = jax.random.split(key)
    # input waveform: batch=2, channels=1, T=256 (total stride product is 16).
    x = jax.random.normal(kx, (2, 1, 256), jnp.float32)
    params = init_scale_disc_params(key)

    fwd = jax.jit(scale_discriminator_forward)
    score, feats = fwd(x, params)
    score = jax.block_until_ready(score)
    for f in feats:
        jax.block_until_ready(f)

    # Structure checks: 7 conv features + conv_post feature, flattened score.
    assert len(feats) == 8
    assert score.shape == (2, 4)
    assert feats[0].shape == (2, 128, 256)
    assert feats[-1].shape == (2, 1, 4)
    assert bool(jnp.all(jnp.isfinite(score)))

    # Numerical check against the pure-JAX f32 reference (bf16 MXU inputs ->
    # loose relative-L2 tolerance).
    score_ref, feats_ref = jax.jit(scale_discriminator_ref)(x, params)

    def rel_err(a, b):
        a = a.astype(jnp.float32)
        b = b.astype(jnp.float32)
        return float(jnp.linalg.norm(a - b) / (jnp.linalg.norm(b) + 1e-6))

    assert rel_err(score, score_ref) < 0.15
    for f, fr in zip(feats, feats_ref):
        assert f.shape == fr.shape
        assert rel_err(f, fr) < 0.15

    print("KERNEL_OK")
</pallas_src>

<mosaic_0001>
module attributes {stable_mosaic.version = 11 : i64} {
  func.func @_gmm_kernel(%arg0: i32, %arg1: i32, %arg2: i32, %arg3: i32, %arg4: memref<1x256x128xbf16, #tpu.memory_space<vmem>>, %arg5: memref<1x128x128xbf16, #tpu.memory_space<vmem>>, %arg6: memref<1x1x128xf32, #tpu.memory_space<vmem>>, %arg7: memref<1x256x128xf32, #tpu.memory_space<vmem>>, %arg8: memref<256x128xf32, #tpu.memory_space<vmem>>) attributes {dimension_semantics = [#tpu.dimension_semantics<parallel>, #tpu.dimension_semantics<parallel>, #tpu.dimension_semantics<parallel>, #tpu.dimension_semantics<arbitrary>], iteration_bounds = array<i64: 1, 2, 1, 1>, scalar_prefetch = 0 : i64, scratch_operands = 1 : i64, tpu.core_type = #tpu.core_type<tc>, window_params = [{transform_indices = @transform_0, window_bounds = array<i64: 1, 256, 128>}, {transform_indices = @transform_1, window_bounds = array<i64: 1, 128, 128>}, {transform_indices = @transform_2, window_bounds = array<i64: 1, 1, 128>}, {transform_indices = @transform_3, window_bounds = array<i64: 1, 256, 128>}]} {
    %c0_i32 = arith.constant 0 : i32
    %0 = arith.cmpi eq, %arg3, %c0_i32 : i32
    %1 = arith.extui %0 : i1 to i32
    %c0_i32_0 = arith.constant 0 : i32
    %2 = arith.cmpi ne, %1, %c0_i32_0 : i32
    scf.if %2 {
      %cst_12 = arith.constant 0.000000e+00 : f32
      %14 = vector.broadcast %cst_12 : f32 to vector<256x128xf32>
      %c0_13 = arith.constant 0 : index
      %c0_14 = arith.constant 0 : index
      %15 = vector.load %arg8[%c0_13, %c0_14] : memref<256x128xf32, #tpu.memory_space<vmem>>, vector<256x128xf32>
      tpu.vector_store %arg8[%c0_13, %c0_14], %14 {strides = array<i32>} : memref<256x128xf32, #tpu.memory_space<vmem>>, vector<256x128xf32>,
    } else {
    }
    %c0 = arith.constant 0 : index
    %c0_1 = arith.constant 0 : index
    %3 = vector.load %arg8[%c0, %c0_1] : memref<256x128xf32, #tpu.memory_space<vmem>>, vector<256x128xf32>
    %c0_2 = arith.constant 0 : index
    %c0_3 = arith.constant 0 : index
    %c0_4 = arith.constant 0 : index
    %4 = vector.load %arg4[%c0_2, %c0_3, %c0_4] : memref<1x256x128xbf16, #tpu.memory_space<vmem>>, vector<1x256x128xbf16>
    %5 = vector.shape_cast %4 : vector<1x256x128xbf16> to vector<256x128xbf16>
    %c0_5 = arith.constant 0 : index
    %c0_6 = arith.constant 0 : index
    %c0_7 = arith.constant 0 : index
    %6 = vector.load %arg5[%c0_5, %c0_6, %c0_7] : memref<1x128x128xbf16, #tpu.memory_space<vmem>>, vector<1x128x128xbf16>
    %7 = vector.shape_cast %6 : vector<1x128x128xbf16> to vector<128x128xbf16>
    %cst = arith.constant dense<0.000000e+00> : vector<256x128xf32>
    %8 = tpu.matmul %5, %7, %cst {dimension_numbers = #tpu.dot_dimension_numbers<[1], [0], [0], [1], [0, 0, 1, 1], [], []>} : vector<256x128xbf16>, vector<128x128xbf16>, vector<256x128xf32> -> vector<256x128xf32>
    %9 = arith.addf %3, %8 : vector<256x128xf32>
    %c0_8 = arith.constant 0 : index
    %c0_9 = arith.constant 0 : index
    %10 = vector.load %arg8[%c0_8, %c0_9] : memref<256x128xf32, #tpu.memory_space<vmem>>, vector<256x128xf32>
    tpu.vector_store %arg8[%c0_8, %c0_9], %9 {strides = array<i32>} : memref<256x128xf32, #tpu.memory_space<vmem>>, vector<256x128xf32>,
    %c0_i32_10 = arith.constant 0 : i32
    %11 = arith.cmpi eq, %arg3, %c0_i32_10 : i32
    %12 = arith.extui %11 : i1 to i32
    %c0_i32_11 = arith.constant 0 : i32
    %13 = arith.cmpi ne, %12, %c0_i32_11 : i32
    scf.if %13 {
      %c0_12 = arith.constant 0 : index
      %c0_13 = arith.constant 0 : index
      %14 = vector.load %arg8[%c0_12, %c0_13] : memref<256x128xf32, #tpu.memory_space<vmem>>, vector<256x128xf32>
      %c0_14 = arith.constant 0 : index
      %c0_15 = arith.constant 0 : index
      %c0_16 = arith.constant 0 : index
      %15 = vector.load %arg6[%c0_14, %c0_15, %c0_16] : memref<1x1x128xf32, #tpu.memory_space<vmem>>, vector<1x1x128xf32>
      %16 = vector.shape_cast %15 : vector<1x1x128xf32> to vector<1x128xf32>
      %17 = vector.broadcast %16 : vector<1x128xf32> to vector<256x128xf32>
      %18 = arith.addf %14, %17 : vector<256x128xf32>
      %cst_17 = arith.constant 0.000000e+00 : f32
      %19 = vector.broadcast %cst_17 : f32 to vector<256x128xf32>
      %20 = arith.cmpf oge, %18, %19 : vector<256x128xf32>
      %cst_18 = arith.constant 1.000000e-01 : f32
      %21 = vector.broadcast %cst_18 : f32 to vector<256x128xf32>
      %22 = arith.mulf %21, %18 : vector<256x128xf32>
      %23 = arith.select %20, %18, %22 : vector<256x128xi1>, vector<256x128xf32>
      %c0_19 = arith.constant 0 : index
      %c0_20 = arith.constant 0 : index
      %c0_21 = arith.constant 0 : index
      %24 = vector.load %arg7[%c0_19, %c0_20, %c0_21] : memref<1x256x128xf32, #tpu.memory_space<vmem>>, vector<1x256x128xf32>
      %25 = vector.shape_cast %24 : vector<1x256x128xf32> to vector<256x128xf32>
      %26 = vector.shape_cast %23 : vector<256x128xf32> to vector<1x256x128xf32>
      tpu.vector_store %arg7[%c0_19, %c0_20, %c0_21], %26 {strides = array<i32>} : memref<1x256x128xf32, #tpu.memory_space<vmem>>, vector<1x256x128xf32>,
    } else {
    }
    return
  }
  func.func @transform_0(%arg0: i32, %arg1: i32, %arg2: i32, %arg3: i32) -> (i32, i32, i32) {
    %c0_i32 = arith.constant 0 : i32
    return %arg0, %arg1, %arg3 : i32, i32, i32
  }
  func.func @transform_1(%arg0: i32, %arg1: i32, %arg2: i32, %arg3: i32) -> (i32, i32, i32) {
    %c0_i32 = arith.constant 0 : i32
    return %arg0, %arg3, %arg2 : i32, i32, i32
  }
  func.func @transform_2(%arg0: i32, %arg1: i32, %arg2: i32, %arg3: i32) -> (i32, i32, i32) {
    %c0_i32 = arith.constant 0 : i32
    %c0_i32_0 = arith.constant 0 : i32
    return %arg0, %c0_i32, %arg2 : i32, i32, i32
  }
  func.func @transform_3(%arg0: i32, %arg1: i32, %arg2: i32, %arg3: i32) -> (i32, i32, i32) {
    %c0_i32 = arith.constant 0 : i32
    return %arg0, %arg1, %arg2 : i32, i32, i32
  }
}

module attributes {stable_mosaic.version = 11 : i64} {
  func.func @_gmm_kernel(%arg0: i32, %arg1: i32, %arg2: i32, %arg3: i32, %arg4: memref<1x256x1408xbf16, #tpu.memory_space<vmem>>, %arg5: memref<1x1408x32xbf16, #tpu.memory_space<vmem>>, %arg6: memref<1x1x32xf32, #tpu.memory_space<vmem>>, %arg7: memref<1x256x32xf32, #tpu.memory_space<vmem>>, %arg8: memref<256x32xf32, #tpu.memory_space<vmem>>) attributes {dimension_semantics = [#tpu.dimension_semantics<parallel>, #tpu.dimension_semantics<parallel>, #tpu.dimension_semantics<parallel>, #tpu.dimension_semantics<arbitrary>], iteration_bounds = array<i64: 4, 1, 1, 1>, scalar_prefetch = 0 : i64, scratch_operands = 1 : i64, tpu.core_type = #tpu.core_type<tc>, window_params = [{transform_indices = @transform_0, window_bounds = array<i64: 1, 256, 1408>}, {transform_indices = @transform_1, window_bounds = array<i64: 1, 1408, 32>}, {transform_indices = @transform_2, window_bounds = array<i64: 1, 1, 32>}, {transform_indices = @transform_3, window_bounds = array<i64: 1, 256, 32>}]} {
    %c0_i32 = arith.constant 0 : i32
    %0 = arith.cmpi eq, %arg3, %c0_i32 : i32
    %1 = arith.extui %0 : i1 to i32
    %c0_i32_0 = arith.constant 0 : i32
    %2 = arith.cmpi ne, %1, %c0_i32_0 : i32
    scf.if %2 {
      %cst_12 = arith.constant 0.000000e+00 : f32
      %14 = vector.broadcast %cst_12 : f32 to vector<256x32xf32>
      %c0_13 = arith.constant 0 : index
      %c0_14 = arith.constant 0 : index
      %15 = vector.load %arg8[%c0_13, %c0_14] : memref<256x32xf32, #tpu.memory_space<vmem>>, vector<256x32xf32>
      tpu.vector_store %arg8[%c0_13, %c0_14], %14 {strides = array<i32>} : memref<256x32xf32, #tpu.memory_space<vmem>>, vector<256x32xf32>,
    } else {
    }
    %c0 = arith.constant 0 : index
    %c0_1 = arith.constant 0 : index
    %3 = vector.load %arg8[%c0, %c0_1] : memref<256x32xf32, #tpu.memory_space<vmem>>, vector<256x32xf32>
    %c0_2 = arith.constant 0 : index
    %c0_3 = arith.constant 0 : index
    %c0_4 = arith.constant 0 : index
    %4 = vector.load %arg4[%c0_2, %c0_3, %c0_4] : memref<1x256x1408xbf16, #tpu.memory_space<vmem>>, vector<1x256x1408xbf16>
    %5 = vector.shape_cast %4 : vector<1x256x1408xbf16> to vector<256x1408xbf16>
    %c0_5 = arith.constant 0 : index
    %c0_6 = arith.constant 0 : index
    %c0_7 = arith.constant 0 : index
    %6 = vector.load %arg5[%c0_5, %c0_6, %c0_7] : memref<1x1408x32xbf16, #tpu.memory_space<vmem>>, vector<1x1408x32xbf16>
    %7 = vector.shape_cast %6 : vector<1x1408x32xbf16> to vector<1408x32xbf16>
    %cst = arith.constant dense<0.000000e+00> : vector<256x32xf32>
    %8 = tpu.matmul %5, %7, %cst {dimension_numbers = #tpu.dot_dimension_numbers<[1], [0], [0], [1], [0, 0, 1, 1], [], []>} : vector<256x1408xbf16>, vector<1408x32xbf16>, vector<256x32xf32> -> vector<256x32xf32>
    %9 = arith.addf %3, %8 : vector<256x32xf32>
    %c0_8 = arith.constant 0 : index
    %c0_9 = arith.constant 0 : index
    %10 = vector.load %arg8[%c0_8, %c0_9] : memref<256x32xf32, #tpu.memory_space<vmem>>, vector<256x32xf32>
    tpu.vector_store %arg8[%c0_8, %c0_9], %9 {strides = array<i32>} : memref<256x32xf32, #tpu.memory_space<vmem>>, vector<256x32xf32>,
    %c0_i32_10 = arith.constant 0 : i32
    %11 = arith.cmpi eq, %arg3, %c0_i32_10 : i32
    %12 = arith.extui %11 : i1 to i32
    %c0_i32_11 = arith.constant 0 : i32
    %13 = arith.cmpi ne, %12, %c0_i32_11 : i32
    scf.if %13 {
      %c0_12 = arith.constant 0 : index
      %c0_13 = arith.constant 0 : index
      %14 = vector.load %arg8[%c0_12, %c0_13] : memref<256x32xf32, #tpu.memory_space<vmem>>, vector<256x32xf32>
      %c0_14 = arith.constant 0 : index
      %c0_15 = arith.constant 0 : index
      %c0_16 = arith.constant 0 : index
      %15 = vector.load %arg6[%c0_14, %c0_15, %c0_16] : memref<1x1x32xf32, #tpu.memory_space<vmem>>, vector<1x1x32xf32>
      %16 = vector.shape_cast %15 : vector<1x1x32xf32> to vector<1x32xf32>
      %17 = vector.broadcast %16 : vector<1x32xf32> to vector<256x32xf32>
      %18 = arith.addf %14, %17 : vector<256x32xf32>
      %cst_17 = arith.constant 0.000000e+00 : f32
      %19 = vector.broadcast %cst_17 : f32 to vector<256x32xf32>
      %20 = arith.cmpf oge, %18, %19 : vector<256x32xf32>
      %cst_18 = arith.constant 1.000000e-01 : f32
      %21 = vector.broadcast %cst_18 : f32 to vector<256x32xf32>
      %22 = arith.mulf %21, %18 : vector<256x32xf32>
      %23 = arith.select %20, %18, %22 : vector<256x32xi1>, vector<256x32xf32>
      %c0_19 = arith.constant 0 : index
      %c0_20 = arith.constant 0 : index
      %c0_21 = arith.constant 0 : index
      %24 = vector.load %arg7[%c0_19, %c0_20, %c0_21] : memref<1x256x32xf32, #tpu.memory_space<vmem>>, vector<1x256x32xf32>
      %25 = vector.shape_cast %24 : vector<1x256x32xf32> to vector<256x32xf32>
      %26 = vector.shape_cast %23 : vector<256x32xf32> to vector<1x256x32xf32>
      tpu.vector_store %arg7[%c0_19, %c0_20, %c0_21], %26 {strides = array<i32>} : memref<1x256x32xf32, #tpu.memory_space<vmem>>, vector<1x256x32xf32>,
    } else {
    }
    return
  }
  func.func @transform_0(%arg0: i32, %arg1: i32, %arg2: i32, %arg3: i32) -> (i32, i32, i32) {
    %c0_i32 = arith.constant 0 : i32
    return %arg0, %arg1, %arg3 : i32, i32, i32
  }
  func.func @transform_1(%arg0: i32, %arg1: i32, %arg2: i32, %arg3: i32) -> (i32, i32, i32) {
    %c0_i32 = arith.constant 0 : i32
    return %arg0, %arg3, %arg2 : i32, i32, i32
  }
  func.func @transform_2(%arg0: i32, %arg1: i32, %arg2: i32, %arg3: i32) -> (i32, i32, i32) {
    %c0_i32 = arith.constant 0 : i32
    %c0_i32_0 = arith.constant 0 : i32
    return %arg0, %c0_i32, %arg2 : i32, i32, i32
  }
  func.func @transform_3(%arg0: i32, %arg1: i32, %arg2: i32, %arg3: i32) -> (i32, i32, i32) {
    %c0_i32 = arith.constant 0 : i32
    return %arg0, %arg1, %arg2 : i32, i32, i32
  }
}

module attributes {stable_mosaic.version = 11 : i64} {
  func.func @_gmm_kernel(%arg0: i32, %arg1: i32, %arg2: i32, %arg3: i32, %arg4: memref<1x128x384xbf16, #tpu.memory_space<vmem>>, %arg5: memref<1x384x16xbf16, #tpu.memory_space<vmem>>, %arg6: memref<1x1x16xf32, #tpu.memory_space<vmem>>, %arg7: memref<1x128x16xf32, #tpu.memory_space<vmem>>, %arg8: memref<128x16xf32, #tpu.memory_space<vmem>>) attributes {dimension_semantics = [#tpu.dimension_semantics<parallel>, #tpu.dimension_semantics<parallel>, #tpu.dimension_semantics<parallel>, #tpu.dimension_semantics<arbitrary>], iteration_bounds = array<i64: 16, 1, 1, 1>, scalar_prefetch = 0 : i64, scratch_operands = 1 : i64, tpu.core_type = #tpu.core_type<tc>, window_params = [{transform_indices = @transform_0, window_bounds = array<i64: 1, 128, 384>}, {transform_indices = @transform_1, window_bounds = array<i64: 1, 384, 16>}, {transform_indices = @transform_2, window_bounds = array<i64: 1, 1, 16>}, {transform_indices = @transform_3, window_bounds = array<i64: 1, 128, 16>}]} {
    %c0_i32 = arith.constant 0 : i32
    %0 = arith.cmpi eq, %arg3, %c0_i32 : i32
    %1 = arith.extui %0 : i1 to i32
    %c0_i32_0 = arith.constant 0 : i32
    %2 = arith.cmpi ne, %1, %c0_i32_0 : i32
    scf.if %2 {
      %cst_12 = arith.constant 0.000000e+00 : f32
      %14 = vector.broadcast %cst_12 : f32 to vector<128x16xf32>
      %c0_13 = arith.constant 0 : index
      %c0_14 = arith.constant 0 : index
      %15 = vector.load %arg8[%c0_13, %c0_14] : memref<128x16xf32, #tpu.memory_space<vmem>>, vector<128x16xf32>
      tpu.vector_store %arg8[%c0_13, %c0_14], %14 {strides = array<i32>} : memref<128x16xf32, #tpu.memory_space<vmem>>, vector<128x16xf32>,
    } else {
    }
    %c0 = arith.constant 0 : index
    %c0_1 = arith.constant 0 : index
    %3 = vector.load %arg8[%c0, %c0_1] : memref<128x16xf32, #tpu.memory_space<vmem>>, vector<128x16xf32>
    %c0_2 = arith.constant 0 : index
    %c0_3 = arith.constant 0 : index
    %c0_4 = arith.constant 0 : index
    %4 = vector.load %arg4[%c0_2, %c0_3, %c0_4] : memref<1x128x384xbf16, #tpu.memory_space<vmem>>, vector<1x128x384xbf16>
    %5 = vector.shape_cast %4 : vector<1x128x384xbf16> to vector<128x384xbf16>
    %c0_5 = arith.constant 0 : index
    %c0_6 = arith.constant 0 : index
    %c0_7 = arith.constant 0 : index
    %6 = vector.load %arg5[%c0_5, %c0_6, %c0_7] : memref<1x384x16xbf16, #tpu.memory_space<vmem>>, vector<1x384x16xbf16>
    %7 = vector.shape_cast %6 : vector<1x384x16xbf16> to vector<384x16xbf16>
    %cst = arith.constant dense<0.000000e+00> : vector<128x16xf32>
    %8 = tpu.matmul %5, %7, %cst {dimension_numbers = #tpu.dot_dimension_numbers<[1], [0], [0], [1], [0, 0, 1, 1], [], []>} : vector<128x384xbf16>, vector<384x16xbf16>, vector<128x16xf32> -> vector<128x16xf32>
    %9 = arith.addf %3, %8 : vector<128x16xf32>
    %c0_8 = arith.constant 0 : index
    %c0_9 = arith.constant 0 : index
    %10 = vector.load %arg8[%c0_8, %c0_9] : memref<128x16xf32, #tpu.memory_space<vmem>>, vector<128x16xf32>
    tpu.vector_store %arg8[%c0_8, %c0_9], %9 {strides = array<i32>} : memref<128x16xf32, #tpu.memory_space<vmem>>, vector<128x16xf32>,
    %c0_i32_10 = arith.constant 0 : i32
    %11 = arith.cmpi eq, %arg3, %c0_i32_10 : i32
    %12 = arith.extui %11 : i1 to i32
    %c0_i32_11 = arith.constant 0 : i32
    %13 = arith.cmpi ne, %12, %c0_i32_11 : i32
    scf.if %13 {
      %c0_12 = arith.constant 0 : index
      %c0_13 = arith.constant 0 : index
      %14 = vector.load %arg8[%c0_12, %c0_13] : memref<128x16xf32, #tpu.memory_space<vmem>>, vector<128x16xf32>
      %c0_14 = arith.constant 0 : index
      %c0_15 = arith.constant 0 : index
      %c0_16 = arith.constant 0 : index
      %15 = vector.load %arg6[%c0_14, %c0_15, %c0_16] : memref<1x1x16xf32, #tpu.memory_space<vmem>>, vector<1x1x16xf32>
      %16 = vector.shape_cast %15 : vector<1x1x16xf32> to vector<1x16xf32>
      %17 = vector.broadcast %16 : vector<1x16xf32> to vector<128x16xf32>
      %18 = arith.addf %14, %17 : vector<128x16xf32>
      %cst_17 = arith.constant 0.000000e+00 : f32
      %19 = vector.broadcast %cst_17 : f32 to vector<128x16xf32>
      %20 = arith.cmpf oge, %18, %19 : vector<128x16xf32>
      %cst_18 = arith.constant 1.000000e-01 : f32
      %21 = vector.broadcast %cst_18 : f32 to vector<128x16xf32>
      %22 = arith.mulf %21, %18 : vector<128x16xf32>
      %23 = arith.select %20, %18, %22 : vector<128x16xi1>, vector<128x16xf32>
      %c0_19 = arith.constant 0 : index
      %c0_20 = arith.constant 0 : index
      %c0_21 = arith.constant 0 : index
      %24 = vector.load %arg7[%c0_19, %c0_20, %c0_21] : memref<1x128x16xf32, #tpu.memory_space<vmem>>, vector<1x128x16xf32>
      %25 = vector.shape_cast %24 : vector<1x128x16xf32> to vector<128x16xf32>
      %26 = vector.shape_cast %23 : vector<128x16xf32> to vector<1x128x16xf32>
      tpu.vector_store %arg7[%c0_19, %c0_20, %c0_21], %26 {strides = array<i32>} : memref<1x128x16xf32, #tpu.memory_space<vmem>>, vector<1x128x16xf32>,
    } else {
    }
    return
  }
  func.func @transform_0(%arg0: i32, %arg1: i32, %arg2: i32, %arg3: i32) -> (i32, i32, i32) {
    %c0_i32 = arith.constant 0 : i32
    return %arg0, %arg1, %arg3 : i32, i32, i32
  }
  func.func @transform_1(%arg0: i32, %arg1: i32, %arg2: i32, %arg3: i32) -> (i32, i32, i32) {
    %c0_i32 = arith.constant 0 : i32
    return %arg0, %arg3, %arg2 : i32, i32, i32
  }
  func.func @transform_2(%arg0: i32, %arg1: i32, %arg2: i32, %arg3: i32) -> (i32, i32, i32) {
    %c0_i32 = arith.constant 0 : i32
    %c0_i32_0 = arith.constant 0 : i32
    return %arg0, %c0_i32, %arg2 : i32, i32, i32
  }
  func.func @transform_3(%arg0: i32, %arg1: i32, %arg2: i32, %arg3: i32) -> (i32, i32, i32) {
    %c0_i32 = arith.constant 0 : i32
    return %arg0, %arg1, %arg2 : i32, i32, i32
  }
}

module attributes {stable_mosaic.version = 11 : i64} {
  func.func @_gmm_kernel(%arg0: i32, %arg1: i32, %arg2: i32, %arg3: i32, %arg4: memref<1x32x768xbf16, #tpu.memory_space<vmem>>, %arg5: memref<1x768x32xbf16, #tpu.memory_space<vmem>>, %arg6: memref<1x1x32xf32, #tpu.memory_space<vmem>>, %arg7: memref<1x32x32xf32, #tpu.memory_space<vmem>>, %arg8: memref<32x32xf32, #tpu.memory_space<vmem>>) attributes {dimension_semantics = [#tpu.dimension_semantics<parallel>, #tpu.dimension_semantics<parallel>, #tpu.dimension_semantics<parallel>, #tpu.dimension_semantics<arbitrary>], iteration_bounds = array<i64: 16, 1, 1, 1>, scalar_prefetch = 0 : i64, scratch_operands = 1 : i64, tpu.core_type = #tpu.core_type<tc>, window_params = [{transform_indices = @transform_0, window_bounds = array<i64: 1, 32, 768>}, {transform_indices = @transform_1, window_bounds = array<i64: 1, 768, 32>}, {transform_indices = @transform_2, window_bounds = array<i64: 1, 1, 32>}, {transform_indices = @transform_3, window_bounds = array<i64: 1, 32, 32>}]} {
    %c0_i32 = arith.constant 0 : i32
    %0 = arith.cmpi eq, %arg3, %c0_i32 : i32
    %1 = arith.extui %0 : i1 to i32
    %c0_i32_0 = arith.constant 0 : i32
    %2 = arith.cmpi ne, %1, %c0_i32_0 : i32
    scf.if %2 {
      %cst_12 = arith.constant 0.000000e+00 : f32
      %14 = vector.broadcast %cst_12 : f32 to vector<32x32xf32>
      %c0_13 = arith.constant 0 : index
      %c0_14 = arith.constant 0 : index
      %15 = vector.load %arg8[%c0_13, %c0_14] : memref<32x32xf32, #tpu.memory_space<vmem>>, vector<32x32xf32>
      tpu.vector_store %arg8[%c0_13, %c0_14], %14 {strides = array<i32>} : memref<32x32xf32, #tpu.memory_space<vmem>>, vector<32x32xf32>,
    } else {
    }
    %c0 = arith.constant 0 : index
    %c0_1 = arith.constant 0 : index
    %3 = vector.load %arg8[%c0, %c0_1] : memref<32x32xf32, #tpu.memory_space<vmem>>, vector<32x32xf32>
    %c0_2 = arith.constant 0 : index
    %c0_3 = arith.constant 0 : index
    %c0_4 = arith.constant 0 : index
    %4 = vector.load %arg4[%c0_2, %c0_3, %c0_4] : memref<1x32x768xbf16, #tpu.memory_space<vmem>>, vector<1x32x768xbf16>
    %5 = vector.shape_cast %4 : vector<1x32x768xbf16> to vector<32x768xbf16>
    %c0_5 = arith.constant 0 : index
    %c0_6 = arith.constant 0 : index
    %c0_7 = arith.constant 0 : index
    %6 = vector.load %arg5[%c0_5, %c0_6, %c0_7] : memref<1x768x32xbf16, #tpu.memory_space<vmem>>, vector<1x768x32xbf16>
    %7 = vector.shape_cast %6 : vector<1x768x32xbf16> to vector<768x32xbf16>
    %cst = arith.constant dense<0.000000e+00> : vector<32x32xf32>
    %8 = tpu.matmul %5, %7, %cst {dimension_numbers = #tpu.dot_dimension_numbers<[1], [0], [0], [1], [0, 0, 1, 1], [], []>} : vector<32x768xbf16>, vector<768x32xbf16>, vector<32x32xf32> -> vector<32x32xf32>
    %9 = arith.addf %3, %8 : vector<32x32xf32>
    %c0_8 = arith.constant 0 : index
    %c0_9 = arith.constant 0 : index
    %10 = vector.load %arg8[%c0_8, %c0_9] : memref<32x32xf32, #tpu.memory_space<vmem>>, vector<32x32xf32>
    tpu.vector_store %arg8[%c0_8, %c0_9], %9 {strides = array<i32>} : memref<32x32xf32, #tpu.memory_space<vmem>>, vector<32x32xf32>,
    %c0_i32_10 = arith.constant 0 : i32
    %11 = arith.cmpi eq, %arg3, %c0_i32_10 : i32
    %12 = arith.extui %11 : i1 to i32
    %c0_i32_11 = arith.constant 0 : i32
    %13 = arith.cmpi ne, %12, %c0_i32_11 : i32
    scf.if %13 {
      %c0_12 = arith.constant 0 : index
      %c0_13 = arith.constant 0 : index
      %14 = vector.load %arg8[%c0_12, %c0_13] : memref<32x32xf32, #tpu.memory_space<vmem>>, vector<32x32xf32>
      %c0_14 = arith.constant 0 : index
      %c0_15 = arith.constant 0 : index
      %c0_16 = arith.constant 0 : index
      %15 = vector.load %arg6[%c0_14, %c0_15, %c0_16] : memref<1x1x32xf32, #tpu.memory_space<vmem>>, vector<1x1x32xf32>
      %16 = vector.shape_cast %15 : vector<1x1x32xf32> to vector<1x32xf32>
      %17 = vector.broadcast %16 : vector<1x32xf32> to vector<32x32xf32>
      %18 = arith.addf %14, %17 : vector<32x32xf32>
      %cst_17 = arith.constant 0.000000e+00 : f32
      %19 = vector.broadcast %cst_17 : f32 to vector<32x32xf32>
      %20 = arith.cmpf oge, %18, %19 : vector<32x32xf32>
      %cst_18 = arith.constant 1.000000e-01 : f32
      %21 = vector.broadcast %cst_18 : f32 to vector<32x32xf32>
      %22 = arith.mulf %21, %18 : vector<32x32xf32>
      %23 = arith.select %20, %18, %22 : vector<32x32xi1>, vector<32x32xf32>
      %c0_19 = arith.constant 0 : index
      %c0_20 = arith.constant 0 : index
      %c0_21 = arith.constant 0 : index
      %24 = vector.load %arg7[%c0_19, %c0_20, %c0_21] : memref<1x32x32xf32, #tpu.memory_space<vmem>>, vector<1x32x32xf32>
      %25 = vector.shape_cast %24 : vector<1x32x32xf32> to vector<32x32xf32>
      %26 = vector.shape_cast %23 : vector<32x32xf32> to vector<1x32x32xf32>
      tpu.vector_store %arg7[%c0_19, %c0_20, %c0_21], %26 {strides = array<i32>} : memref<1x32x32xf32, #tpu.memory_space<vmem>>, vector<1x32x32xf32>,
    } else {
    }
    return
  }
  func.func @transform_0(%arg0: i32, %arg1: i32, %arg2: i32, %arg3: i32) -> (i32, i32, i32) {
    %c0_i32 = arith.constant 0 : i32
    return %arg0, %arg1, %arg3 : i32, i32, i32
  }
  func.func @transform_1(%arg0: i32, %arg1: i32, %arg2: i32, %arg3: i32) -> (i32, i32, i32) {
    %c0_i32 = arith.constant 0 : i32
    return %arg0, %arg3, %arg2 : i32, i32, i32
  }
  func.func @transform_2(%arg0: i32, %arg1: i32, %arg2: i32, %arg3: i32) -> (i32, i32, i32) {
    %c0_i32 = arith.constant 0 : i32
    %c0_i32_0 = arith.constant 0 : i32
    return %arg0, %c0_i32, %arg2 : i32, i32, i32
  }
  func.func @transform_3(%arg0: i32, %arg1: i32, %arg2: i32, %arg3: i32) -> (i32, i32, i32) {
    %c0_i32 = arith.constant 0 : i32
    return %arg0, %arg1, %arg2 : i32, i32, i32
  }
}

module attributes {stable_mosaic.version = 11 : i64} {
  func.func @_gmm_kernel(%arg0: i32, %arg1: i32, %arg2: i32, %arg3: i32, %arg4: memref<1x8x1408xbf16, #tpu.memory_space<vmem>>, %arg5: memref<1x1408x64xbf16, #tpu.memory_space<vmem>>, %arg6: memref<1x1x64xf32, #tpu.memory_space<vmem>>, %arg7: memref<1x8x64xf32, #tpu.memory_space<vmem>>, %arg8: memref<8x64xf32, #tpu.memory_space<vmem>>) attributes {dimension_semantics = [#tpu.dimension_semantics<parallel>, #tpu.dimension_semantics<parallel>, #tpu.dimension_semantics<parallel>, #tpu.dimension_semantics<arbitrary>], iteration_bounds = array<i64: 16, 1, 1, 1>, scalar_prefetch = 0 : i64, scratch_operands = 1 : i64, tpu.core_type = #tpu.core_type<tc>, window_params = [{transform_indices = @transform_0, window_bounds = array<i64: 1, 8, 1408>}, {transform_indices = @transform_1, window_bounds = array<i64: 1, 1408, 64>}, {transform_indices = @transform_2, window_bounds = array<i64: 1, 1, 64>}, {transform_indices = @transform_3, window_bounds = array<i64: 1, 8, 64>}]} {
    %c0_i32 = arith.constant 0 : i32
    %0 = arith.cmpi eq, %arg3, %c0_i32 : i32
    %1 = arith.extui %0 : i1 to i32
    %c0_i32_0 = arith.constant 0 : i32
    %2 = arith.cmpi ne, %1, %c0_i32_0 : i32
    scf.if %2 {
      %cst_12 = arith.constant 0.000000e+00 : f32
      %14 = vector.broadcast %cst_12 : f32 to vector<8x64xf32>
      %c0_13 = arith.constant 0 : index
      %c0_14 = arith.constant 0 : index
      %15 = vector.load %arg8[%c0_13, %c0_14] : memref<8x64xf32, #tpu.memory_space<vmem>>, vector<8x64xf32>
      tpu.vector_store %arg8[%c0_13, %c0_14], %14 {strides = array<i32>} : memref<8x64xf32, #tpu.memory_space<vmem>>, vector<8x64xf32>,
    } else {
    }
    %c0 = arith.constant 0 : index
    %c0_1 = arith.constant 0 : index
    %3 = vector.load %arg8[%c0, %c0_1] : memref<8x64xf32, #tpu.memory_space<vmem>>, vector<8x64xf32>
    %c0_2 = arith.constant 0 : index
    %c0_3 = arith.constant 0 : index
    %c0_4 = arith.constant 0 : index
    %4 = vector.load %arg4[%c0_2, %c0_3, %c0_4] : memref<1x8x1408xbf16, #tpu.memory_space<vmem>>, vector<1x8x1408xbf16>
    %5 = vector.shape_cast %4 : vector<1x8x1408xbf16> to vector<8x1408xbf16>
    %c0_5 = arith.constant 0 : index
    %c0_6 = arith.constant 0 : index
    %c0_7 = arith.constant 0 : index
    %6 = vector.load %arg5[%c0_5, %c0_6, %c0_7] : memref<1x1408x64xbf16, #tpu.memory_space<vmem>>, vector<1x1408x64xbf16>
    %7 = vector.shape_cast %6 : vector<1x1408x64xbf16> to vector<1408x64xbf16>
    %cst = arith.constant dense<0.000000e+00> : vector<8x64xf32>
    %8 = tpu.matmul %5, %7, %cst {dimension_numbers = #tpu.dot_dimension_numbers<[1], [0], [0], [1], [0, 0, 1, 1], [], []>} : vector<8x1408xbf16>, vector<1408x64xbf16>, vector<8x64xf32> -> vector<8x64xf32>
    %9 = arith.addf %3, %8 : vector<8x64xf32>
    %c0_8 = arith.constant 0 : index
    %c0_9 = arith.constant 0 : index
    %10 = vector.load %arg8[%c0_8, %c0_9] : memref<8x64xf32, #tpu.memory_space<vmem>>, vector<8x64xf32>
    tpu.vector_store %arg8[%c0_8, %c0_9], %9 {strides = array<i32>} : memref<8x64xf32, #tpu.memory_space<vmem>>, vector<8x64xf32>,
    %c0_i32_10 = arith.constant 0 : i32
    %11 = arith.cmpi eq, %arg3, %c0_i32_10 : i32
    %12 = arith.extui %11 : i1 to i32
    %c0_i32_11 = arith.constant 0 : i32
    %13 = arith.cmpi ne, %12, %c0_i32_11 : i32
    scf.if %13 {
      %c0_12 = arith.constant 0 : index
      %c0_13 = arith.constant 0 : index
      %14 = vector.load %arg8[%c0_12, %c0_13] : memref<8x64xf32, #tpu.memory_space<vmem>>, vector<8x64xf32>
      %c0_14 = arith.constant 0 : index
      %c0_15 = arith.constant 0 : index
      %c0_16 = arith.constant 0 : index
      %15 = vector.load %arg6[%c0_14, %c0_15, %c0_16] : memref<1x1x64xf32, #tpu.memory_space<vmem>>, vector<1x1x64xf32>
      %16 = vector.shape_cast %15 : vector<1x1x64xf32> to vector<1x64xf32>
      %17 = vector.broadcast %16 : vector<1x64xf32> to vector<8x64xf32>
      %18 = arith.addf %14, %17 : vector<8x64xf32>
      %cst_17 = arith.constant 0.000000e+00 : f32
      %19 = vector.broadcast %cst_17 : f32 to vector<8x64xf32>
      %20 = arith.cmpf oge, %18, %19 : vector<8x64xf32>
      %cst_18 = arith.constant 1.000000e-01 : f32
      %21 = vector.broadcast %cst_18 : f32 to vector<8x64xf32>
      %22 = arith.mulf %21, %18 : vector<8x64xf32>
      %23 = arith.select %20, %18, %22 : vector<8x64xi1>, vector<8x64xf32>
      %c0_19 = arith.constant 0 : index
      %c0_20 = arith.constant 0 : index
      %c0_21 = arith.constant 0 : index
      %24 = vector.load %arg7[%c0_19, %c0_20, %c0_21] : memref<1x8x64xf32, #tpu.memory_space<vmem>>, vector<1x8x64xf32>
      %25 = vector.shape_cast %24 : vector<1x8x64xf32> to vector<8x64xf32>
      %26 = vector.shape_cast %23 : vector<8x64xf32> to vector<1x8x64xf32>
      tpu.vector_store %arg7[%c0_19, %c0_20, %c0_21], %26 {strides = array<i32>} : memref<1x8x64xf32, #tpu.memory_space<vmem>>, vector<1x8x64xf32>,
    } else {
    }
    return
  }
  func.func @transform_0(%arg0: i32, %arg1: i32, %arg2: i32, %arg3: i32) -> (i32, i32, i32) {
    %c0_i32 = arith.constant 0 : i32
    return %arg0, %arg1, %arg3 : i32, i32, i32
  }
  func.func @transform_1(%arg0: i32, %arg1: i32, %arg2: i32, %arg3: i32) -> (i32, i32, i32) {
    %c0_i32 = arith.constant 0 : i32
    return %arg0, %arg3, %arg2 : i32, i32, i32
  }
  func.func @transform_2(%arg0: i32, %arg1: i32, %arg2: i32, %arg3: i32) -> (i32, i32, i32) {
    %c0_i32 = arith.constant 0 : i32
    %c0_i32_0 = arith.constant 0 : i32
    return %arg0, %c0_i32, %arg2 : i32, i32, i32
  }
  func.func @transform_3(%arg0: i32, %arg1: i32, %arg2: i32, %arg3: i32) -> (i32, i32, i32) {
    %c0_i32 = arith.constant 0 : i32
    return %arg0, %arg1, %arg2 : i32, i32, i32
  }
}

module attributes {stable_mosaic.version = 11 : i64} {
  func.func @_gmm_kernel(%arg0: i32, %arg1: i32, %arg2: i32, %arg3: i32, %arg4: memref<1x8x384xbf16, #tpu.memory_space<vmem>>, %arg5: memref<1x384x64xbf16, #tpu.memory_space<vmem>>, %arg6: memref<1x1x64xf32, #tpu.memory_space<vmem>>, %arg7: memref<1x8x64xf32, #tpu.memory_space<vmem>>, %arg8: memref<8x64xf32, #tpu.memory_space<vmem>>) attributes {dimension_semantics = [#tpu.dimension_semantics<parallel>, #tpu.dimension_semantics<parallel>, #tpu.dimension_semantics<parallel>, #tpu.dimension_semantics<arbitrary>], iteration_bounds = array<i64: 16, 1, 1, 7>, scalar_prefetch = 0 : i64, scratch_operands = 1 : i64, tpu.core_type = #tpu.core_type<tc>, window_params = [{transform_indices = @transform_0, window_bounds = array<i64: 1, 8, 384>}, {transform_indices = @transform_1, window_bounds = array<i64: 1, 384, 64>}, {transform_indices = @transform_2, window_bounds = array<i64: 1, 1, 64>}, {transform_indices = @transform_3, window_bounds = array<i64: 1, 8, 64>}]} {
    %c0_i32 = arith.constant 0 : i32
    %0 = arith.cmpi eq, %arg3, %c0_i32 : i32
    %1 = arith.extui %0 : i1 to i32
    %c0_i32_0 = arith.constant 0 : i32
    %2 = arith.cmpi ne, %1, %c0_i32_0 : i32
    scf.if %2 {
      %cst_11 = arith.constant 0.000000e+00 : f32
      %14 = vector.broadcast %cst_11 : f32 to vector<8x64xf32>
      %c0_12 = arith.constant 0 : index
      %c0_13 = arith.constant 0 : index
      %15 = vector.load %arg8[%c0_12, %c0_13] : memref<8x64xf32, #tpu.memory_space<vmem>>, vector<8x64xf32>
      tpu.vector_store %arg8[%c0_12, %c0_13], %14 {strides = array<i32>} : memref<8x64xf32, #tpu.memory_space<vmem>>, vector<8x64xf32>,
    } else {
    }
    %c0 = arith.constant 0 : index
    %c0_1 = arith.constant 0 : index
    %3 = vector.load %arg8[%c0, %c0_1] : memref<8x64xf32, #tpu.memory_space<vmem>>, vector<8x64xf32>
    %c0_2 = arith.constant 0 : index
    %c0_3 = arith.constant 0 : index
    %c0_4 = arith.constant 0 : index
    %4 = vector.load %arg4[%c0_2, %c0_3, %c0_4] : memref<1x8x384xbf16, #tpu.memory_space<vmem>>, vector<1x8x384xbf16>
    %5 = vector.shape_cast %4 : vector<1x8x384xbf16> to vector<8x384xbf16>
    %c0_5 = arith.constant 0 : index
    %c0_6 = arith.constant 0 : index
    %c0_7 = arith.constant 0 : index
    %6 = vector.load %arg5[%c0_5, %c0_6, %c0_7] : memref<1x384x64xbf16, #tpu.memory_space<vmem>>, vector<1x384x64xbf16>
    %7 = vector.shape_cast %6 : vector<1x384x64xbf16> to vector<384x64xbf16>
    %cst = arith.constant dense<0.000000e+00> : vector<8x64xf32>
    %8 = tpu.matmul %5, %7, %cst {dimension_numbers = #tpu.dot_dimension_numbers<[1], [0], [0], [1], [0, 0, 1, 1], [], []>} : vector<8x384xbf16>, vector<384x64xbf16>, vector<8x64xf32> -> vector<8x64xf32>
    %9 = arith.addf %3, %8 : vector<8x64xf32>
    %c0_8 = arith.constant 0 : index
    %c0_9 = arith.constant 0 : index
    %10 = vector.load %arg8[%c0_8, %c0_9] : memref<8x64xf32, #tpu.memory_space<vmem>>, vector<8x64xf32>
    tpu.vector_store %arg8[%c0_8, %c0_9], %9 {strides = array<i32>} : memref<8x64xf32, #tpu.memory_space<vmem>>, vector<8x64xf32>,
    %c6_i32 = arith.constant 6 : i32
    %11 = arith.cmpi eq, %arg3, %c6_i32 : i32
    %12 = arith.extui %11 : i1 to i32
    %c0_i32_10 = arith.constant 0 : i32
    %13 = arith.cmpi ne, %12, %c0_i32_10 : i32
    scf.if %13 {
      %c0_11 = arith.constant 0 : index
      %c0_12 = arith.constant 0 : index
      %14 = vector.load %arg8[%c0_11, %c0_12] : memref<8x64xf32, #tpu.memory_space<vmem>>, vector<8x64xf32>
      %c0_13 = arith.constant 0 : index
      %c0_14 = arith.constant 0 : index
      %c0_15 = arith.constant 0 : index
      %15 = vector.load %arg6[%c0_13, %c0_14, %c0_15] : memref<1x1x64xf32, #tpu.memory_space<vmem>>, vector<1x1x64xf32>
      %16 = vector.shape_cast %15 : vector<1x1x64xf32> to vector<1x64xf32>
      %17 = vector.broadcast %16 : vector<1x64xf32> to vector<8x64xf32>
      %18 = arith.addf %14, %17 : vector<8x64xf32>
      %cst_16 = arith.constant 0.000000e+00 : f32
      %19 = vector.broadcast %cst_16 : f32 to vector<8x64xf32>
      %20 = arith.cmpf oge, %18, %19 : vector<8x64xf32>
      %cst_17 = arith.constant 1.000000e-01 : f32
      %21 = vector.broadcast %cst_17 : f32 to vector<8x64xf32>
      %22 = arith.mulf %21, %18 : vector<8x64xf32>
      %23 = arith.select %20, %18, %22 : vector<8x64xi1>, vector<8x64xf32>
      %c0_18 = arith.constant 0 : index
      %c0_19 = arith.constant 0 : index
      %c0_20 = arith.constant 0 : index
      %24 = vector.load %arg7[%c0_18, %c0_19, %c0_20] : memref<1x8x64xf32, #tpu.memory_space<vmem>>, vector<1x8x64xf32>
      %25 = vector.shape_cast %24 : vector<1x8x64xf32> to vector<8x64xf32>
      %26 = vector.shape_cast %23 : vector<8x64xf32> to vector<1x8x64xf32>
      tpu.vector_store %arg7[%c0_18, %c0_19, %c0_20], %26 {strides = array<i32>} : memref<1x8x64xf32, #tpu.memory_space<vmem>>, vector<1x8x64xf32>,
    } else {
    }
    return
  }
  func.func @transform_0(%arg0: i32, %arg1: i32, %arg2: i32, %arg3: i32) -> (i32, i32, i32) {
    %c0_i32 = arith.constant 0 : i32
    return %arg0, %arg1, %arg3 : i32, i32, i32
  }
  func.func @transform_1(%arg0: i32, %arg1: i32, %arg2: i32, %arg3: i32) -> (i32, i32, i32) {
    %c0_i32 = arith.constant 0 : i32
    return %arg0, %arg3, %arg2 : i32, i32, i32
  }
  func.func @transform_2(%arg0: i32, %arg1: i32, %arg2: i32, %arg3: i32) -> (i32, i32, i32) {
    %c0_i32 = arith.constant 0 : i32
    %c0_i32_0 = arith.constant 0 : i32
    return %arg0, %c0_i32, %arg2 : i32, i32, i32
  }
  func.func @transform_3(%arg0: i32, %arg1: i32, %arg2: i32, %arg3: i32) -> (i32, i32, i32) {
    %c0_i32 = arith.constant 0 : i32
    return %arg0, %arg1, %arg2 : i32, i32, i32
  }
}

module attributes {stable_mosaic.version = 11 : i64} {
  func.func @_gmm_kernel(%arg0: i32, %arg1: i32, %arg2: i32, %arg3: i32, %arg4: memref<1x8x1024xbf16, #tpu.memory_space<vmem>>, %arg5: memref<1x1024x256xbf16, #tpu.memory_space<vmem>>, %arg6: memref<1x1x256xf32, #tpu.memory_space<vmem>>, %arg7: memref<1x8x256xf32, #tpu.memory_space<vmem>>, %arg8: memref<8x256xf32, #tpu.memory_space<vmem>>) attributes {dimension_semantics = [#tpu.dimension_semantics<parallel>, #tpu.dimension_semantics<parallel>, #tpu.dimension_semantics<parallel>, #tpu.dimension_semantics<arbitrary>], iteration_bounds = array<i64: 1, 1, 4, 5>, scalar_prefetch = 0 : i64, scratch_operands = 1 : i64, tpu.core_type = #tpu.core_type<tc>, window_params = [{transform_indices = @transform_0, window_bounds = array<i64: 1, 8, 1024>}, {transform_indices = @transform_1, window_bounds = array<i64: 1, 1024, 256>}, {transform_indices = @transform_2, window_bounds = array<i64: 1, 1, 256>}, {transform_indices = @transform_3, window_bounds = array<i64: 1, 8, 256>}]} {
    %c0_i32 = arith.constant 0 : i32
    %0 = arith.cmpi eq, %arg3, %c0_i32 : i32
    %1 = arith.extui %0 : i1 to i32
    %c0_i32_0 = arith.constant 0 : i32
    %2 = arith.cmpi ne, %1, %c0_i32_0 : i32
    scf.if %2 {
      %cst_11 = arith.constant 0.000000e+00 : f32
      %14 = vector.broadcast %cst_11 : f32 to vector<8x256xf32>
      %c0_12 = arith.constant 0 : index
      %c0_13 = arith.constant 0 : index
      %15 = vector.load %arg8[%c0_12, %c0_13] : memref<8x256xf32, #tpu.memory_space<vmem>>, vector<8x256xf32>
      tpu.vector_store %arg8[%c0_12, %c0_13], %14 {strides = array<i32>} : memref<8x256xf32, #tpu.memory_space<vmem>>, vector<8x256xf32>,
    } else {
    }
    %c0 = arith.constant 0 : index
    %c0_1 = arith.constant 0 : index
    %3 = vector.load %arg8[%c0, %c0_1] : memref<8x256xf32, #tpu.memory_space<vmem>>, vector<8x256xf32>
    %c0_2 = arith.constant 0 : index
    %c0_3 = arith.constant 0 : index
    %c0_4 = arith.constant 0 : index
    %4 = vector.load %arg4[%c0_2, %c0_3, %c0_4] : memref<1x8x1024xbf16, #tpu.memory_space<vmem>>, vector<1x8x1024xbf16>
    %5 = vector.shape_cast %4 : vector<1x8x1024xbf16> to vector<8x1024xbf16>
    %c0_5 = arith.constant 0 : index
    %c0_6 = arith.constant 0 : index
    %c0_7 = arith.constant 0 : index
    %6 = vector.load %arg5[%c0_5, %c0_6, %c0_7] : memref<1x1024x256xbf16, #tpu.memory_space<vmem>>, vector<1x1024x256xbf16>
    %7 = vector.shape_cast %6 : vector<1x1024x256xbf16> to vector<1024x256xbf16>
    %cst = arith.constant dense<0.000000e+00> : vector<8x256xf32>
    %8 = tpu.matmul %5, %7, %cst {dimension_numbers = #tpu.dot_dimension_numbers<[1], [0], [0], [1], [0, 0, 1, 1], [], []>} : vector<8x1024xbf16>, vector<1024x256xbf16>, vector<8x256xf32> -> vector<8x256xf32>
    %9 = arith.addf %3, %8 : vector<8x256xf32>
    %c0_8 = arith.constant 0 : index
    %c0_9 = arith.constant 0 : index
    %10 = vector.load %arg8[%c0_8, %c0_9] : memref<8x256xf32, #tpu.memory_space<vmem>>, vector<8x256xf32>
    tpu.vector_store %arg8[%c0_8, %c0_9], %9 {strides = array<i32>} : memref<8x256xf32, #tpu.memory_space<vmem>>, vector<8x256xf32>,
    %c4_i32 = arith.constant 4 : i32
    %11 = arith.cmpi eq, %arg3, %c4_i32 : i32
    %12 = arith.extui %11 : i1 to i32
    %c0_i32_10 = arith.constant 0 : i32
    %13 = arith.cmpi ne, %12, %c0_i32_10 : i32
    scf.if %13 {
      %c0_11 = arith.constant 0 : index
      %c0_12 = arith.constant 0 : index
      %14 = vector.load %arg8[%c0_11, %c0_12] : memref<8x256xf32, #tpu.memory_space<vmem>>, vector<8x256xf32>
      %c0_13 = arith.constant 0 : index
      %c0_14 = arith.constant 0 : index
      %c0_15 = arith.constant 0 : index
      %15 = vector.load %arg6[%c0_13, %c0_14, %c0_15] : memref<1x1x256xf32, #tpu.memory_space<vmem>>, vector<1x1x256xf32>
      %16 = vector.shape_cast %15 : vector<1x1x256xf32> to vector<1x256xf32>
      %17 = vector.broadcast %16 : vector<1x256xf32> to vector<8x256xf32>
      %18 = arith.addf %14, %17 : vector<8x256xf32>
      %cst_16 = arith.constant 0.000000e+00 : f32
      %19 = vector.broadcast %cst_16 : f32 to vector<8x256xf32>
      %20 = arith.cmpf oge, %18, %19 : vector<8x256xf32>
      %cst_17 = arith.constant 1.000000e-01 : f32
      %21 = vector.broadcast %cst_17 : f32 to vector<8x256xf32>
      %22 = arith.mulf %21, %18 : vector<8x256xf32>
      %23 = arith.select %20, %18, %22 : vector<8x256xi1>, vector<8x256xf32>
      %c0_18 = arith.constant 0 : index
      %c0_19 = arith.constant 0 : index
      %c0_20 = arith.constant 0 : index
      %24 = vector.load %arg7[%c0_18, %c0_19, %c0_20] : memref<1x8x256xf32, #tpu.memory_space<vmem>>, vector<1x8x256xf32>
      %25 = vector.shape_cast %24 : vector<1x8x256xf32> to vector<8x256xf32>
      %26 = vector.shape_cast %23 : vector<8x256xf32> to vector<1x8x256xf32>
      tpu.vector_store %arg7[%c0_18, %c0_19, %c0_20], %26 {strides = array<i32>} : memref<1x8x256xf32, #tpu.memory_space<vmem>>, vector<1x8x256xf32>,
    } else {
    }
    return
  }
  func.func @transform_0(%arg0: i32, %arg1: i32, %arg2: i32, %arg3: i32) -> (i32, i32, i32) {
    %c0_i32 = arith.constant 0 : i32
    return %arg0, %arg1, %arg3 : i32, i32, i32
  }
  func.func @transform_1(%arg0: i32, %arg1: i32, %arg2: i32, %arg3: i32) -> (i32, i32, i32) {
    %c0_i32 = arith.constant 0 : i32
    return %arg0, %arg3, %arg2 : i32, i32, i32
  }
  func.func @transform_2(%arg0: i32, %arg1: i32, %arg2: i32, %arg3: i32) -> (i32, i32, i32) {
    %c0_i32 = arith.constant 0 : i32
    %c0_i32_0 = arith.constant 0 : i32
    return %arg0, %c0_i32, %arg2 : i32, i32, i32
  }
  func.func @transform_3(%arg0: i32, %arg1: i32, %arg2: i32, %arg3: i32) -> (i32, i32, i32) {
    %c0_i32 = arith.constant 0 : i32
    return %arg0, %arg1, %arg2 : i32, i32, i32
  }
}

module attributes {stable_mosaic.version = 11 : i64} {
  func.func @_gmm_kernel(%arg0: i32, %arg1: i32, %arg2: i32, %arg3: i32, %arg4: memref<1x8x1024xbf16, #tpu.memory_space<vmem>>, %arg5: memref<1x1024x128xbf16, #tpu.memory_space<vmem>>, %arg6: memref<1x1x128xf32, #tpu.memory_space<vmem>>, %arg7: memref<1x8x128xf32, #tpu.memory_space<vmem>>, %arg8: memref<8x128xf32, #tpu.memory_space<vmem>>) attributes {dimension_semantics = [#tpu.dimension_semantics<parallel>, #tpu.dimension_semantics<parallel>, #tpu.dimension_semantics<parallel>, #tpu.dimension_semantics<arbitrary>], iteration_bounds = array<i64: 1, 1, 1, 3>, scalar_prefetch = 0 : i64, scratch_operands = 1 : i64, tpu.core_type = #tpu.core_type<tc>, window_params = [{transform_indices = @transform_0, window_bounds = array<i64: 1, 8, 1024>}, {transform_indices = @transform_1, window_bounds = array<i64: 1, 1024, 128>}, {transform_indices = @transform_2, window_bounds = array<i64: 1, 1, 128>}, {transform_indices = @transform_3, window_bounds = array<i64: 1, 8, 128>}]} {
    %c0_i32 = arith.constant 0 : i32
    %0 = arith.cmpi eq, %arg3, %c0_i32 : i32
    %1 = arith.extui %0 : i1 to i32
    %c0_i32_0 = arith.constant 0 : i32
    %2 = arith.cmpi ne, %1, %c0_i32_0 : i32
    scf.if %2 {
      %cst_11 = arith.constant 0.000000e+00 : f32
      %14 = vector.broadcast %cst_11 : f32 to vector<8x128xf32>
      %c0_12 = arith.constant 0 : index
      %c0_13 = arith.constant 0 : index
      %15 = vector.load %arg8[%c0_12, %c0_13] : memref<8x128xf32, #tpu.memory_space<vmem>>, vector<8x128xf32>
      tpu.vector_store %arg8[%c0_12, %c0_13], %14 {strides = array<i32>} : memref<8x128xf32, #tpu.memory_space<vmem>>, vector<8x128xf32>,
    } else {
    }
    %c0 = arith.constant 0 : index
    %c0_1 = arith.constant 0 : index
    %3 = vector.load %arg8[%c0, %c0_1] : memref<8x128xf32, #tpu.memory_space<vmem>>, vector<8x128xf32>
    %c0_2 = arith.constant 0 : index
    %c0_3 = arith.constant 0 : index
    %c0_4 = arith.constant 0 : index
    %4 = vector.load %arg4[%c0_2, %c0_3, %c0_4] : memref<1x8x1024xbf16, #tpu.memory_space<vmem>>, vector<1x8x1024xbf16>
    %5 = vector.shape_cast %4 : vector<1x8x1024xbf16> to vector<8x1024xbf16>
    %c0_5 = arith.constant 0 : index
    %c0_6 = arith.constant 0 : index
    %c0_7 = arith.constant 0 : index
    %6 = vector.load %arg5[%c0_5, %c0_6, %c0_7] : memref<1x1024x128xbf16, #tpu.memory_space<vmem>>, vector<1x1024x128xbf16>
    %7 = vector.shape_cast %6 : vector<1x1024x128xbf16> to vector<1024x128xbf16>
    %cst = arith.constant dense<0.000000e+00> : vector<8x128xf32>
    %8 = tpu.matmul %5, %7, %cst {dimension_numbers = #tpu.dot_dimension_numbers<[1], [0], [0], [1], [0, 0, 1, 1], [], []>} : vector<8x1024xbf16>, vector<1024x128xbf16>, vector<8x128xf32> -> vector<8x128xf32>
    %9 = arith.addf %3, %8 : vector<8x128xf32>
    %c0_8 = arith.constant 0 : index
    %c0_9 = arith.constant 0 : index
    %10 = vector.load %arg8[%c0_8, %c0_9] : memref<8x128xf32, #tpu.memory_space<vmem>>, vector<8x128xf32>
    tpu.vector_store %arg8[%c0_8, %c0_9], %9 {strides = array<i32>} : memref<8x128xf32, #tpu.memory_space<vmem>>, vector<8x128xf32>,
    %c2_i32 = arith.constant 2 : i32
    %11 = arith.cmpi eq, %arg3, %c2_i32 : i32
    %12 = arith.extui %11 : i1 to i32
    %c0_i32_10 = arith.constant 0 : i32
    %13 = arith.cmpi ne, %12, %c0_i32_10 : i32
    scf.if %13 {
      %c0_11 = arith.constant 0 : index
      %c0_12 = arith.constant 0 : index
      %14 = vector.load %arg8[%c0_11, %c0_12] : memref<8x128xf32, #tpu.memory_space<vmem>>, vector<8x128xf32>
      %c0_13 = arith.constant 0 : index
      %c0_14 = arith.constant 0 : index
      %c0_15 = arith.constant 0 : index
      %15 = vector.load %arg6[%c0_13, %c0_14, %c0_15] : memref<1x1x128xf32, #tpu.memory_space<vmem>>, vector<1x1x128xf32>
      %16 = vector.shape_cast %15 : vector<1x1x128xf32> to vector<1x128xf32>
      %17 = vector.broadcast %16 : vector<1x128xf32> to vector<8x128xf32>
      %18 = arith.addf %14, %17 : vector<8x128xf32>
      %c0_16 = arith.constant 0 : index
      %c0_17 = arith.constant 0 : index
      %c0_18 = arith.constant 0 : index
      %19 = vector.load %arg7[%c0_16, %c0_17, %c0_18] : memref<1x8x128xf32, #tpu.memory_space<vmem>>, vector<1x8x128xf32>
      %20 = vector.shape_cast %19 : vector<1x8x128xf32> to vector<8x128xf32>
      %21 = vector.shape_cast %18 : vector<8x128xf32> to vector<1x8x128xf32>
      tpu.vector_store %arg7[%c0_16, %c0_17, %c0_18], %21 {strides = array<i32>} : memref<1x8x128xf32, #tpu.memory_space<vmem>>, vector<1x8x128xf32>,
    } else {
    }
    return
  }
  func.func @transform_0(%arg0: i32, %arg1: i32, %arg2: i32, %arg3: i32) -> (i32, i32, i32) {
    %c0_i32 = arith.constant 0 : i32
    return %arg0, %arg1, %arg3 : i32, i32, i32
  }
  func.func @transform_1(%arg0: i32, %arg1: i32, %arg2: i32, %arg3: i32) -> (i32, i32, i32) {
    %c0_i32 = arith.constant 0 : i32
    return %arg0, %arg3, %arg2 : i32, i32, i32
  }
  func.func @transform_2(%arg0: i32, %arg1: i32, %arg2: i32, %arg3: i32) -> (i32, i32, i32) {
    %c0_i32 = arith.constant 0 : i32
    %c0_i32_0 = arith.constant 0 : i32
    return %arg0, %c0_i32, %arg2 : i32, i32, i32
  }
  func.func @transform_3(%arg0: i32, %arg1: i32, %arg2: i32, %arg3: i32) -> (i32, i32, i32) {
    %c0_i32 = arith.constant 0 : i32
    return %arg0, %arg1, %arg2 : i32, i32, i32
  }
}

</mosaic_0001>

<llo_original>
// kernel: scale_discriminator_forward.8
$region0: #{scale_discriminator_forward.8}
  #allocation0 [shape = 'u32[]', space=smem, size = 0x4, offset = 0x4, fixed_abs, tag = 'smem constant byte address 0x4 - core index']
  #allocation1 [shape = 'u32[72,128]{1,0:T(1,128)}', space=vmem, size = 0x9000, scoped, tag = 'internal scratch']
  #allocation2 [shape = 'f32[256,128]{1,0:T(8,128)}', space=vmem, size = 0x20000, scoped, tag = 'scratch operand']
  %s0 = inlined_call_operand.vmem [shape: bf16[1,512,128], index: 0, kind: input, shape index: {}]
  %s1 = inlined_call_operand.vmem [shape: bf16[1,128,128], index: 1, kind: input, shape index: {}]
  %s2 = inlined_call_operand.vmem [shape: f32[1,1,128], index: 2, kind: input, shape index: {}]
  %s3 = inlined_call_operand.vmem [shape: f32[1,512,128], index: 3, kind: output, shape index: {}]
  %s4 = sld [smem:[#allocation0]]
  $region53: #{scale_discriminator_forward.8} parent=0
    _
  %s6 = ssub.s32 1, %s4
  %s7 = scalar_select 0, %s6, %s4
  loop: start=0, step=1, limit=4
  $region2: #{scale_discriminator_forward.8} parent=0 // loop_pre_header
    _
  $region3: #{scale_discriminator_forward.8} parent=0 // loop_header
    %s9 = sphi 0, %s13
    %p10 = scmp.ge.s32.totalorder %s9, 4
    %s16 = sphi 0, %s42
    %s17 = sphi 0, %s38
    %s18 = sphi 0, %s34
    %s19 = sphi 0, %s30
    %s20 = sphi 0, %s16
    %s21 = sphi 0, %s17
    %s22 = sphi 0, %s18
    %s23 = sphi 0, %s19
    %s24 = sphi 0, %s20
    %s25 = sphi 0, %s21
    %s26 = sphi 0, %s22
    %s27 = sphi 0, %s23
    %s49 = sphi 0, %s51
    %s52 = sphi 0, %s49
    %s53 = sphi 0, %s52
    %s69 = sphi 0, %s53
    %s79 = sphi 0, %s81
    %s82 = sphi 0, %s79
    %s83 = sphi 0, %s82
    %s99 = sphi 0, %s83
    %s107 = sphi 0, %s109
    %s110 = sphi 0, %s107
    %s111 = sphi 0, %s110
    %s127 = sphi 0, %s111
    %s137 = sphi 0, %s139
    %s140 = sphi 0, %s137
    %s141 = sphi 0, %s140
    %s157 = sphi 0, %s141
  $region4: #{scale_discriminator_forward.8} parent=0 // loop_header_branch
    %12 = sbr.rel (%p10) target = $region8
  $region5: #{scale_discriminator_forward.8} parent=0 // loop_body
    %s14 = ssub.s32 %s9, 1
    %s15 = ssub.s32 %s9, 2
    %s28 = sadd.s32 1, %s19
    %p29 = scmp.ge.s32.totalorder %s28, 1
    %s30 = scalar_select %p29, 0, %s28
    %s31 = sadd.s32 1, %s18
    %s32 = scalar_select %p29, %s31, %s18
    %p33 = scmp.ge.s32.totalorder %s32, 1
    %s34 = scalar_select %p33, 0, %s32
    %s35 = sadd.s32 1, %s17
    %s36 = scalar_select %p33, %s35, %s17
    %p37 = scmp.ge.s32.totalorder %s36, 2
    %s38 = scalar_select %p37, 0, %s36
    %s39 = sadd.s32 1, %s16
    %s40 = scalar_select %p37, %s39, %s16
    %p41 = scmp.ge.s32.totalorder %s40, 1
    %s42 = scalar_select %p41, 0, %s40
    %s43 = ssub.s32 %s16, %s42
    %s44 = ssub.s32 %s17, %s38
    %s45 = sor.u32 %s43, %s44
    %s46 = ssub.s32 %s19, %s30
    %s47 = sor.u32 %s45, %s46
    %p48 = scmp.eq.s32.totalorder %s47, 0
    %s50 = sadd.s32 %s49, 1
    %s51 = scalar_select %p48, %s49, %s50
    %p54 = pneg %p48
    %p55 = scmp.eq.s32.totalorder %s9, 1
    %p56 = por %p54, %p55
    %p57 = scmp.ne.s32.totalorder %s49, %s52
    %p58 = scmp.eq.s32.totalorder %s9, 0
    %p59 = por %p57, %p58
    %p60 = scmp.ne.s32.totalorder %s49, %s52
    %p61 = scmp.eq.s32.totalorder %s14, 1
    %p62 = por %p60, %p61
    %p63 = scmp.ne.s32.totalorder %s52, %s53
    %p64 = scmp.eq.s32.totalorder %s14, 0
    %p65 = por %p63, %p64
    %p66 = scmp.ne.s32.totalorder %s52, %s53
    %p67 = scmp.eq.s32.totalorder %s15, 1
    %p68 = por %p66, %p67
    %p70 = scmp.ne.s32.totalorder %s53, %s69
    %p71 = scmp.eq.s32.totalorder %s15, 0
    %p72 = por %p70, %p71
    %s73 = ssub.s32 %s16, %s42
    %s74 = ssub.s32 %s19, %s30
    %s75 = sor.u32 %s73, %s74
    %s76 = ssub.s32 %s18, %s34
    %s77 = sor.u32 %s75, %s76
    %p78 = scmp.eq.s32.totalorder %s77, 0
    %s80 = sadd.s32 %s79, 1
    %s81 = scalar_select %p78, %s79, %s80
    %p84 = pneg %p78
    %p85 = scmp.eq.s32.totalorder %s9, 1
    %p86 = por %p84, %p85
    %p87 = scmp.ne.s32.totalorder %s79, %s82
    %p88 = scmp.eq.s32.totalorder %s9, 0
    %p89 = por %p87, %p88
    %p90 = scmp.ne.s32.totalorder %s79, %s82
    %p91 = scmp.eq.s32.totalorder %s14, 1
    %p92 = por %p90, %p91
    %p93 = scmp.ne.s32.totalorder %s82, %s83
    %p94 = scmp.eq.s32.totalorder %s14, 0
    %p95 = por %p93, %p94
    %p96 = scmp.ne.s32.totalorder %s82, %s83
    %p97 = scmp.eq.s32.totalorder %s15, 1
    %p98 = por %p96, %p97
    %p100 = scmp.ne.s32.totalorder %s83, %s99
    %p101 = scmp.eq.s32.totalorder %s15, 0
    %p102 = por %p100, %p101
    %s103 = ssub.s32 %s16, %s42
    %s104 = ssub.s32 %s18, %s34
    %s105 = sor.u32 %s103, %s104
    %p106 = scmp.eq.s32.totalorder %s105, 0
    %s108 = sadd.s32 %s107, 1
    %s109 = scalar_select %p106, %s107, %s108
    %p112 = pneg %p106
    %p113 = scmp.eq.s32.totalorder %s9, 1
    %p114 = por %p112, %p113
    %p115 = scmp.ne.s32.totalorder %s107, %s110
    %p116 = scmp.eq.s32.totalorder %s9, 0
    %p117 = por %p115, %p116
    %p118 = scmp.ne.s32.totalorder %s107, %s110
    %p119 = scmp.eq.s32.totalorder %s14, 1
    %p120 = por %p118, %p119
    %p121 = scmp.ne.s32.totalorder %s110, %s111
    %p122 = scmp.eq.s32.totalorder %s14, 0
    %p123 = por %p121, %p122
    %p124 = scmp.ne.s32.totalorder %s110, %s111
    %p125 = scmp.eq.s32.totalorder %s15, 1
    %p126 = por %p124, %p125
    %p128 = scmp.ne.s32.totalorder %s111, %s127
    %p129 = scmp.eq.s32.totalorder %s15, 0
    %p130 = por %p128, %p129
    %s131 = ssub.s32 %s16, %s42
    %s132 = ssub.s32 %s17, %s38
    %s133 = sor.u32 %s131, %s132
    %s134 = ssub.s32 %s18, %s34
    %s135 = sor.u32 %s133, %s134
    %p136 = scmp.eq.s32.totalorder %s135, 0
    %s138 = sadd.s32 %s137, 1
    %s139 = scalar_select %p136, %s137, %s138
    %p142 = pneg %p136
    %p143 = scmp.eq.s32.totalorder %s9, 1
    %p144 = por %p142, %p143
    %p145 = scmp.ne.s32.totalorder %s137, %s140
    %p146 = scmp.eq.s32.totalorder %s9, 0
    %p147 = por %p145, %p146
    %p148 = scmp.ne.s32.totalorder %s137, %s140
    %p149 = scmp.eq.s32.totalorder %s14, 1
    %p150 = por %p148, %p149
    %p151 = scmp.ne.s32.totalorder %s140, %s141
    %p152 = scmp.eq.s32.totalorder %s14, 0
    %p153 = por %p151, %p152
    %p154 = scmp.ne.s32.totalorder %s140, %s141
    %p155 = scmp.eq.s32.totalorder %s15, 1
    %p156 = por %p154, %p155
    %p158 = scmp.ne.s32.totalorder %s141, %s157
    %p159 = scmp.eq.s32.totalorder %s15, 0
    %p160 = por %p158, %p159
    %p161 = scmp.le.s32.totalorder 1, %s9
    %p162 = scmp.lt.s32.totalorder %s9, 3
    %p163 = pnand %p161, %p162
    %p164 = pneg %p163
    // Predicated region
    $region9: #{scale_discriminator_forward.8} parent=5 // pred_check
      _
    $region10: #{scale_discriminator_forward.8} parent=5 // pred_check_branch
      %166 = sbr.rel (%p163) target = $region12
    $region11: #{scale_discriminator_forward.8} parent=5 // pred_region
      %s167 = ssub.s32 %s9, 1
      // Predicated region
      $region13: #{scale_discriminator_forward.8} parent=11 // pred_check
        %p168 = pneg %p95
      $region14: #{scale_discriminator_forward.8} parent=11 // pred_check_branch
        %170 = sbr.rel (%p168) target = $region16
      $region15: #{scale_discriminator_forward.8} parent=11 // pred_region
        %s171 = smul.u32 16, %s23
        %p172 = scmp.lt.s32.totalorder %s20, 0
        %s173 = scalar_select %p172, %s20, 0
        %p174 = scmp.lt.s32.totalorder %s171, 15
        %s175 = scalar_select %p174, %s171, 15
        %p176 = scmp.lt.s32.totalorder %s22, 0
        %s177 = scalar_select %p176, %s22, 0
        %s178 = sadd.s32 %s177, %s175
        %s179 = smul.addr %s173, 16
        %s180 = sadd.s32 %s178, %s179
        %s181 = smul.addr %s180, 4
        %s182 = scalar_lea.vmem %s1, %s181
        %s183 = smul.u32 16, %s23
      $region16: #{scale_discriminator_forward.8} parent=11 // pred_fallthru
        _
      // Predicated region
      $region17: #{scale_discriminator_forward.8} parent=11 // pred_check
        %p184 = pneg %p123
      $region18: #{scale_discriminator_forward.8} parent=11 // pred_check_branch
        %186 = sbr.rel (%p184) target = $region20
      $region19: #{scale_discriminator_forward.8} parent=11 // pred_region
        %p187 = scmp.lt.s32.totalorder %s20, 0
        %s188 = scalar_select %p187, %s20, 0
        %p189 = scmp.lt.s32.totalorder %s22, 0
        %s190 = scalar_select %p189, %s22, 0
        %s191 = sadd.s32 %s190, %s188
        %s192 = scalar_lea.vmem %s2, %s191
      $region20: #{scale_discriminator_forward.8} parent=11 // pred_fallthru
        _
    $region12: #{scale_discriminator_forward.8} parent=5 // pred_fallthru
      _
    %p193 = scmp.lt.s32.totalorder %s9, 2
    // Predicated region
    $region21: #{scale_discriminator_forward.8} parent=5 // pred_check
      %p194 = pneg %p193
    $region22: #{scale_discriminator_forward.8} parent=5 // pred_check_branch
      %196 = sbr.rel (%p194) target = $region24
    $region23: #{scale_discriminator_forward.8} parent=5 // pred_region
      // Predicated region
      $region25: #{scale_discriminator_forward.8} parent=23 // pred_check
        %p197 = pneg %p59
      $region26: #{scale_discriminator_forward.8} parent=23 // pred_check_branch
        %199 = sbr.rel (%p197) target = $region28
      $region27: #{scale_discriminator_forward.8} parent=23 // pred_region
        %s200 = smul.u32 32, %s17
        %p201 = scmp.lt.s32.totalorder %s16, 0
        %s202 = scalar_select %p201, %s16, 0
        %p203 = scmp.lt.s32.totalorder %s200, 63
        %s204 = scalar_select %p203, %s200, 63
        %p205 = scmp.lt.s32.totalorder %s19, 0
        %s206 = scalar_select %p205, %s19, 0
        %s207 = sadd.s32 %s206, %s204
        %s208 = smul.addr %s202, 64
        %s209 = sadd.s32 %s207, %s208
        %s210 = smul.addr %s209, 4
        %s211 = scalar_lea.vmem %s0, %s210
        %s212 = smul.u32 32, %s17
      $region28: #{scale_discriminator_forward.8} parent=23 // pred_fallthru
        _
    $region24: #{scale_discriminator_forward.8} parent=5 // pred_fallthru
      _
    %p213 = scmp.le.s32.totalorder 1, %s9
    %p214 = scmp.lt.s32.totalorder %s9, 3
    %p215 = pnand %p213, %p214
    %p216 = pneg %p215
    // Predicated region
    $region29: #{scale_discriminator_forward.8} parent=5 // pred_check
      _
    $region30: #{scale_discriminator_forward.8} parent=5 // pred_check_branch
      %218 = sbr.rel (%p215) target = $region32
    $region31: #{scale_discriminator_forward.8} parent=5 // pred_region
      %s219 = ssub.s32 %s9, 1
      %s220 = smul.u32 32, %s21
      %p221 = scmp.lt.s32.totalorder %s20, 0
      %s222 = scalar_select %p221, %s20, 0
      %p223 = scmp.lt.s32.totalorder %s220, 63
      %s224 = scalar_select %p223, %s220, 63
      %p225 = scmp.lt.s32.totalorder %s23, 0
      %s226 = scalar_select %p225, %s23, 0
      %s227 = sadd.s32 %s226, %s224
      %s228 = smul.addr %s222, 64
      %s229 = sadd.s32 %s227, %s228
      %s230 = smul.addr %s229, 4
      %s231 = scalar_lea.vmem %s0, %s230
      %p232 = pneg %p65
      %p233 = pneg %p62
      %s234 = smul.u32 16, %s23
      %p235 = scmp.lt.s32.totalorder %s20, 0
      %s236 = scalar_select %p235, %s20, 0
      %p237 = scmp.lt.s32.totalorder %s234, 15
      %s238 = scalar_select %p237, %s234, 15
      %p239 = scmp.lt.s32.totalorder %s22, 0
      %s240 = scalar_select %p239, %s22, 0
      %s241 = sadd.s32 %s240, %s238
      %s242 = smul.addr %s236, 16
      %s243 = sadd.s32 %s241, %s242
      %s244 = smul.addr %s243, 4
      %s245 = scalar_lea.vmem %s1, %s244
      %p246 = pneg %p95
      %p247 = pneg %p92
      %p248 = scmp.lt.s32.totalorder %s20, 0
      %s249 = scalar_select %p248, %s20, 0
      %p250 = scmp.lt.s32.totalorder %s22, 0
      %s251 = scalar_select %p250, %s22, 0
      %s252 = sadd.s32 %s251, %s249
      %s253 = scalar_lea.vmem %s2, %s252
      %p254 = pneg %p123
      %p255 = pneg %p120
      %p256 = pneg %p153
      %p257 = pneg %p150
      %s258 = smul.u32 32, %s21
      %p259 = scmp.lt.s32.totalorder %s20, 0
      %s260 = scalar_select %p259, %s20, 0
      %p261 = scmp.lt.s32.totalorder %s258, 63
      %s262 = scalar_select %p261, %s258, 63
      %p263 = scmp.lt.s32.totalorder %s22, 0
      %s264 = scalar_select %p263, %s22, 0
      %s265 = sadd.s32 %s264, %s262
      %s266 = smul.addr %s260, 64
      %s267 = sadd.s32 %s265, %s266
      %s268 = smul.addr %s267, 8
      %s269 = scalar_lea.vmem %s3, %s268
      %s270 = smul.u32 32, %s21
      %p271 = scmp.lt.s32.totalorder %s20, 0
      %s272 = scalar_select %p271, %s20, 0
      %p273 = scmp.lt.s32.totalorder %s270, 63
      %s274 = scalar_select %p273, %s270, 63
      %p275 = scmp.lt.s32.totalorder %s23, 0
      %s276 = scalar_select %p275, %s23, 0
      %s277 = sadd.s32 %s276, %s274
      %s278 = smul.addr %s272, 64
      %s279 = sadd.s32 %s277, %s278
      %s280 = smul.addr %s279, 4
      %s281 = scalar_lea.vmem %s0, %s280
      %s282 = smul.u32 32, %s21
      %s283 = smul.u32 16, %s23
      %p284 = scmp.lt.s32.totalorder %s20, 0
      %s285 = scalar_select %p284, %s20, 0
      %p286 = scmp.lt.s32.totalorder %s283, 15
      %s287 = scalar_select %p286, %s283, 15
      %p288 = scmp.lt.s32.totalorder %s22, 0
      %s289 = scalar_select %p288, %s22, 0
      %s290 = sadd.s32 %s289, %s287
      %s291 = smul.addr %s285, 16
      %s292 = sadd.s32 %s290, %s291
      %s293 = smul.addr %s292, 4
      %s294 = scalar_lea.vmem %s1, %s293
      %s295 = smul.u32 16, %s23
      %p296 = scmp.lt.s32.totalorder %s20, 0
      %s297 = scalar_select %p296, %s20, 0
      %p298 = scmp.lt.s32.totalorder %s22, 0
      %s299 = scalar_select %p298, %s22, 0
      %s300 = sadd.s32 %s299, %s297
      %s301 = scalar_lea.vmem %s2, %s300
      %s302 = smul.u32 32, %s21
      %p303 = scmp.lt.s32.totalorder %s20, 0
      %s304 = scalar_select %p303, %s20, 0
      %p305 = scmp.lt.s32.totalorder %s302, 63
      %s306 = scalar_select %p305, %s302, 63
      %p307 = scmp.lt.s32.totalorder %s22, 0
      %s308 = scalar_select %p307, %s22, 0
      %s309 = sadd.s32 %s308, %s306
      %s310 = smul.addr %s304, 64
      %s311 = sadd.s32 %s309, %s310
      %s312 = smul.addr %s311, 8
      %s313 = scalar_lea.vmem %s3, %s312
      %s314 = smul.u32 32, %s21
      %p315 = scmp.eq.s32.totalorder %s23, 0
      // Predicated region
      $region33: #{scale_discriminator_forward.8} parent=31 // pred_check
        %p316 = pneg %p315
      $region34: #{scale_discriminator_forward.8} parent=31 // pred_check_branch
        %318 = sbr.rel (%p316) target = $region36
      $region35: #{scale_discriminator_forward.8} parent=31 // pred_region
        %319 = vst [vmem:[#allocation2] sm:$0xff] 0.0
        %320 = vst [vmem:[#allocation2 + $0x8] sm:$0xff] 0.0
        %321 = vst [vmem:[#allocation2 + $0x10] sm:$0xff] 0.0
        %322 = vst [vmem:[#allocation2 + $0x18] sm:$0xff] 0.0
        %323 = vst [vmem:[#allocation2 + $0x20] sm:$0xff] 0.0
        %324 = vst [vmem:[#allocation2 + $0x28] sm:$0xff] 0.0
        %325 = vst [vmem:[#allocation2 + $0x30] sm:$0xff] 0.0
        %326 = vst [vmem:[#allocation2 + $0x38] sm:$0xff] 0.0
        %327 = vst [vmem:[#allocation2 + $0x40] sm:$0xff] 0.0
        %328 = vst [vmem:[#allocation2 + $0x48] sm:$0xff] 0.0
        %329 = vst [vmem:[#allocation2 + $0x50] sm:$0xff] 0.0
        %330 = vst [vmem:[#allocation2 + $0x58] sm:$0xff] 0.0
        %331 = vst [vmem:[#allocation2 + $0x60] sm:$0xff] 0.0
        %332 = vst [vmem:[#allocation2 + $0x68] sm:$0xff] 0.0
        %333 = vst [vmem:[#allocation2 + $0x70] sm:$0xff] 0.0
        %334 = vst [vmem:[#allocation2 + $0x78] sm:$0xff] 0.0
        %335 = vst [vmem:[#allocation2 + $0x80] sm:$0xff] 0.0
        %336 = vst [vmem:[#allocation2 + $0x88] sm:$0xff] 0.0
        %337 = vst [vmem:[#allocation2 + $0x90] sm:$0xff] 0.0
        %338 = vst [vmem:[#allocation2 + $0x98] sm:$0xff] 0.0
        %339 = vst [vmem:[#allocation2 + $0xa0] sm:$0xff] 0.0
        %340 = vst [vmem:[#allocation2 + $0xa8] sm:$0xff] 0.0
        %341 = vst [vmem:[#allocation2 + $0xb0] sm:$0xff] 0.0
        %342 = vst [vmem:[#allocation2 + $0xb8] sm:$0xff] 0.0
        %343 = vst [vmem:[#allocation2 + $0xc0] sm:$0xff] 0.0
        %344 = vst [vmem:[#allocation2 + $0xc8] sm:$0xff] 0.0
        %345 = vst [vmem:[#allocation2 + $0xd0] sm:$0xff] 0.0
        %346 = vst [vmem:[#allocation2 + $0xd8] sm:$0xff] 0.0
        %347 = vst [vmem:[#allocation2 + $0xe0] sm:$0xff] 0.0
        %348 = vst [vmem:[#allocation2 + $0xe8] sm:$0xff] 0.0
        %349 = vst [vmem:[#allocation2 + $0xf0] sm:$0xff] 0.0
        %350 = vst [vmem:[#allocation2 + $0xf8] sm:$0xff] 0.0
      $region36: #{scale_discriminator_forward.8} parent=31 // pred_fallthru
        _
      %v351 = vld [vmem:[#allocation2] sm:$0xff]
      %v352 = vld [vmem:[#allocation2 + $0x8] sm:$0xff]
      %v353 = vld [vmem:[#allocation2 + $0x10] sm:$0xff]
      %v354 = vld [vmem:[#allocation2 + $0x18] sm:$0xff]
      %v355 = vld [vmem:[#allocation2 + $0x20] sm:$0xff]
      %v356 = vld [vmem:[#allocation2 + $0x28] sm:$0xff]
      %v357 = vld [vmem:[#allocation2 + $0x30] sm:$0xff]
      %v358 = vld [vmem:[#allocation2 + $0x38] sm:$0xff]
      %v359 = vld [vmem:[#allocation2 + $0x40] sm:$0xff]
      %v360 = vld [vmem:[#allocation2 + $0x48] sm:$0xff]
      %v361 = vld [vmem:[#allocation2 + $0x50] sm:$0xff]
      %v362 = vld [vmem:[#allocation2 + $0x58] sm:$0xff]
      %v363 = vld [vmem:[#allocation2 + $0x60] sm:$0xff]
      %v364 = vld [vmem:[#allocation2 + $0x68] sm:$0xff]
      %v365 = vld [vmem:[#allocation2 + $0x70] sm:$0xff]
      %v366 = vld [vmem:[#allocation2 + $0x78] sm:$0xff]
      %v367 = vld [vmem:[#allocation2 + $0x80] sm:$0xff]
      %v368 = vld [vmem:[#allocation2 + $0x88] sm:$0xff]
      %v369 = vld [vmem:[#allocation2 + $0x90] sm:$0xff]
      %v370 = vld [vmem:[#allocation2 + $0x98] sm:$0xff]
      %v371 = vld [vmem:[#allocation2 + $0xa0] sm:$0xff]
      %v372 = vld [vmem:[#allocation2 + $0xa8] sm:$0xff]
      %v373 = vld [vmem:[#allocation2 + $0xb0] sm:$0xff]
      %v374 = vld [vmem:[#allocation2 + $0xb8] sm:$0xff]
      %v375 = vld [vmem:[#allocation2 + $0xc0] sm:$0xff]
      %v376 = vld [vmem:[#allocation2 + $0xc8] sm:$0xff]
      %v377 = vld [vmem:[#allocation2 + $0xd0] sm:$0xff]
      %v378 = vld [vmem:[#allocation2 + $0xd8] sm:$0xff]
      %v379 = vld [vmem:[#allocation2 + $0xe0] sm:$0xff]
      %v380 = vld [vmem:[#allocation2 + $0xe8] sm:$0xff]
      %v381 = vld [vmem:[#allocation2 + $0xf0] sm:$0xff]
      %v382 = vld [vmem:[#allocation2 + $0xf8] sm:$0xff]
      %v383 = vld [vmem:[%s281] sm:$0xf]
      %v384 = vld [vmem:[%s281 + $0x4] sm:$0xf]
      %v385 = vld [vmem:[%s281 + $0x8] sm:$0xf]
      %v386 = vld [vmem:[%s281 + $0xc] sm:$0xf]
      %v387 = vld [vmem:[%s281 + $0x10] sm:$0xf]
      %v388 = vld [vmem:[%s281 + $0x14] sm:$0xf]
      %v389 = vld [vmem:[%s281 + $0x18] sm:$0xf]
      %v390 = vld [vmem:[%s281 + $0x1c] sm:$0xf]
      %v391 = vld [vmem:[%s281 + $0x20] sm:$0xf]
      %v392 = vld [vmem:[%s281 + $0x24] sm:$0xf]
      %v393 = vld [vmem:[%s281 + $0x28] sm:$0xf]
      %v394 = vld [vmem:[%s281 + $0x2c] sm:$0xf]
      %v395 = vld [vmem:[%s281 + $0x30] sm:$0xf]
      %v396 = vld [vmem:[%s281 + $0x34] sm:$0xf]
      %v397 = vld [vmem:[%s281 + $0x38] sm:$0xf]
      %v398 = vld [vmem:[%s281 + $0x3c] sm:$0xf]
      %v399 = vld [vmem:[%s281 + $0x40] sm:$0xf]
      %v400 = vld [vmem:[%s281 + $0x44] sm:$0xf]
      %v401 = vld [vmem:[%s281 + $0x48] sm:$0xf]
      %v402 = vld [vmem:[%s281 + $0x4c] sm:$0xf]
      %v403 = vld [vmem:[%s281 + $0x50] sm:$0xf]
      %v404 = vld [vmem:[%s281 + $0x54] sm:$0xf]
      %v405 = vld [vmem:[%s281 + $0x58] sm:$0xf]
      %v406 = vld [vmem:[%s281 + $0x5c] sm:$0xf]
      %v407 = vld [vmem:[%s281 + $0x60] sm:$0xf]
      %v408 = vld [vmem:[%s281 + $0x64] sm:$0xf]
      %v409 = vld [vmem:[%s281 + $0x68] sm:$0xf]
      %v410 = vld [vmem:[%s281 + $0x6c] sm:$0xf]
      %v411 = vld [vmem:[%s281 + $0x70] sm:$0xf]
      %v412 = vld [vmem:[%s281 + $0x74] sm:$0xf]
      %v413 = vld [vmem:[%s281 + $0x78] sm:$0xf]
      %v414 = vld [vmem:[%s281 + $0x7c] sm:$0xf]
      %v415 = vld [vmem:[%s294] sm:$0xf]
      %v416 = vld [vmem:[%s294 + $0x4] sm:$0xf]
      %v417 = vld [vmem:[%s294 + $0x8] sm:$0xf]
      %v418 = vld [vmem:[%s294 + $0xc] sm:$0xf]
      %v419 = vld [vmem:[%s294 + $0x10] sm:$0xf]
      %v420 = vld [vmem:[%s294 + $0x14] sm:$0xf]
      %v421 = vld [vmem:[%s294 + $0x18] sm:$0xf]
      %v422 = vld [vmem:[%s294 + $0x1c] sm:$0xf]
      %v423 = vld [vmem:[%s294 + $0x20] sm:$0xf]
      %v424 = vld [vmem:[%s294 + $0x24] sm:$0xf]
      %v425 = vld [vmem:[%s294 + $0x28] sm:$0xf]
      %v426 = vld [vmem:[%s294 + $0x2c] sm:$0xf]
      %v427 = vld [vmem:[%s294 + $0x30] sm:$0xf]
      %v428 = vld [vmem:[%s294 + $0x34] sm:$0xf]
      %v429 = vld [vmem:[%s294 + $0x38] sm:$0xf]
      %v430 = vld [vmem:[%s294 + $0x3c] sm:$0xf]
      %v463 = vunpack.c.l.b16 %v383
      %v464 = vunpack.c.l.b16 %v384
      %v465 = vunpack.c.l.b16 %v385
      %v466 = vunpack.c.l.b16 %v386
      %v467 = vunpack.c.l.b16 %v387
      %v468 = vunpack.c.l.b16 %v388
      %v469 = vunpack.c.l.b16 %v389
      %v470 = vunpack.c.l.b16 %v390
      %v471 = vunpack.c.l.b16 %v391
      %v472 = vunpack.c.l.b16 %v392
      %v473 = vunpack.c.l.b16 %v393
      %v474 = vunpack.c.l.b16 %v394
      %v475 = vunpack.c.l.b16 %v395
      %v476 = vunpack.c.l.b16 %v396
      %v477 = vunpack.c.l.b16 %v397
      %v478 = vunpack.c.l.b16 %v398
      %v479 = vunpack.c.l.b16 %v399
      %v480 = vunpack.c.l.b16 %v400
      %v481 = vunpack.c.l.b16 %v401
      %v482 = vunpack.c.l.b16 %v402
      %v483 = vunpack.c.l.b16 %v403
      %v484 = vunpack.c.l.b16 %v404
      %v485 = vunpack.c.l.b16 %v405
      %v486 = vunpack.c.l.b16 %v406
      %v487 = vunpack.c.l.b16 %v407
      %v488 = vunpack.c.l.b16 %v408
      %v489 = vunpack.c.l.b16 %v409
      %v490 = vunpack.c.l.b16 %v410
      %v491 = vunpack.c.l.b16 %v411
      %v492 = vunpack.c.l.b16 %v412
      %v493 = vunpack.c.l.b16 %v413
      %v494 = vunpack.c.l.b16 %v414
      %v495 = vpack.c.b16 %v464, %v463
      %v496 = vpack.c.b16 %v466, %v465
      %v497 = vpack.c.b16 %v468, %v467
      %v498 = vpack.c.b16 %v470, %v469
      %v499 = vpack.c.b16 %v472, %v471
      %v500 = vpack.c.b16 %v474, %v473
      %v501 = vpack.c.b16 %v476, %v475
      %v502 = vpack.c.b16 %v478, %v477
      %v503 = vpack.c.b16 %v480, %v479
      %v504 = vpack.c.b16 %v482, %v481
      %v505 = vpack.c.b16 %v484, %v483
      %v506 = vpack.c.b16 %v486, %v485
      %v507 = vpack.c.b16 %v488, %v487
      %v508 = vpack.c.b16 %v490, %v489
      %v509 = vpack.c.b16 %v492, %v491
      %v510 = vpack.c.b16 %v494, %v493
      %v543 = vunpack.c.l.b16 %v415
      %v544 = vunpack.c.l.b16 %v416
      %v545 = vunpack.c.l.b16 %v417
      %v546 = vunpack.c.l.b16 %v418
      %v547 = vunpack.c.l.b16 %v419
      %v548 = vunpack.c.l.b16 %v420
      %v549 = vunpack.c.l.b16 %v421
      %v550 = vunpack.c.l.b16 %v422
      %v551 = vunpack.c.l.b16 %v423
      %v552 = vunpack.c.l.b16 %v424
      %v553 = vunpack.c.l.b16 %v425
      %v554 = vunpack.c.l.b16 %v426
      %v555 = vunpack.c.l.b16 %v427
      %v556 = vunpack.c.l.b16 %v428
      %v557 = vunpack.c.l.b16 %v429
      %v558 = vunpack.c.l.b16 %v430
      %v559 = vpack.c.b16 %v544, %v543
      %v560 = vpack.c.b16 %v546, %v545
      %v561 = vpack.c.b16 %v548, %v547
      %v562 = vpack.c.b16 %v550, %v549
      %v563 = vpack.c.b16 %v552, %v551
      %v564 = vpack.c.b16 %v554, %v553
      %v565 = vpack.c.b16 %v556, %v555
      %v566 = vpack.c.b16 %v558, %v557
      %575 = vmatpush.bf16.msra.mxu0 %v566
      %576 = vmatpush.bf16.msra.mxu0 %v565
      %577 = vmatpush.bf16.msra.mxu0 %v564
      %578 = vmatpush.bf16.msra.mxu0 %v563
      %579 = vmatpush.bf16.msra.mxu0 %v562
      %580 = vmatpush.bf16.msra.mxu0 %v561
      %581 = vmatpush.bf16.msra.mxu0 %v560
      %582 = vmatpush.bf16.msra.mxu0 %v559
      %583 = vmatmul.bf16.gmra.mxu0 %v495
      %v584 = vpop.f32.mrf.mxu0
      %v585 = vadd.f32 0.0, %v584
      %v586 = vpop.f32.mrf.mxu0
      %v587 = vadd.f32 0.0, %v586
      %588 = vmatmul.bf16.gmra.mxu0 %v496
      %v589 = vpop.f32.mrf.mxu0
      %v590 = vadd.f32 0.0, %v589
      %v591 = vpop.f32.mrf.mxu0
      %v592 = vadd.f32 0.0, %v591
      %593 = vmatmul.bf16.gmra.mxu0 %v497
      %v594 = vpop.f32.mrf.mxu0
      %v595 = vadd.f32 0.0, %v594
      %v596 = vpop.f32.mrf.mxu0
      %v597 = vadd.f32 0.0, %v596
      %598 = vmatmul.bf16.gmra.mxu0 %v498
      %v599 = vpop.f32.mrf.mxu0
      %v600 = vadd.f32 0.0, %v599
      %v601 = vpop.f32.mrf.mxu0
      %v602 = vadd.f32 0.0, %v601
      %603 = vmatmul.bf16.gmra.mxu0 %v499
      %v604 = vpop.f32.mrf.mxu0
      %v605 = vadd.f32 0.0, %v604
      %v606 = vpop.f32.mrf.mxu0
      %v607 = vadd.f32 0.0, %v606
      %608 = vmatmul.bf16.gmra.mxu0 %v500
      %v609 = vpop.f32.mrf.mxu0
      %v610 = vadd.f32 0.0, %v609
      %v611 = vpop.f32.mrf.mxu0
      %v612 = vadd.f32 0.0, %v611
      %613 = vmatmul.bf16.gmra.mxu0 %v501
      %v614 = vpop.f32.mrf.mxu0
      %v615 = vadd.f32 0.0, %v614
      %v616 = vpop.f32.mrf.mxu0
      %v617 = vadd.f32 0.0, %v616
      %618 = vmatmul.bf16.gmra.mxu0 %v502
      %v619 = vpop.f32.mrf.mxu0
      %v620 = vadd.f32 0.0, %v619
      %v621 = vpop.f32.mrf.mxu0
      %v622 = vadd.f32 0.0, %v621
      %623 = vmatmul.bf16.gmra.mxu0 %v503
      %v624 = vpop.f32.mrf.mxu0
      %v625 = vadd.f32 0.0, %v624
      %v626 = vpop.f32.mrf.mxu0
      %v627 = vadd.f32 0.0, %v626
      %628 = vmatmul.bf16.gmra.mxu0 %v504
      %v629 = vpop.f32.mrf.mxu0
      %v630 = vadd.f32 0.0, %v629
      %v631 = vpop.f32.mrf.mxu0
      %v632 = vadd.f32 0.0, %v631
      %633 = vmatmul.bf16.gmra.mxu0 %v505
      %v634 = vpop.f32.mrf.mxu0
      %v635 = vadd.f32 0.0, %v634
      %v636 = vpop.f32.mrf.mxu0
      %v637 = vadd.f32 0.0, %v636
      %638 = vmatmul.bf16.gmra.mxu0 %v506
      %v639 = vpop.f32.mrf.mxu0
      %v640 = vadd.f32 0.0, %v639
      %v641 = vpop.f32.mrf.mxu0
      %v642 = vadd.f32 0.0, %v641
      %643 = vmatmul.bf16.gmra.mxu0 %v507
      %v644 = vpop.f32.mrf.mxu0
      %v645 = vadd.f32 0.0, %v644
      %v646 = vpop.f32.mrf.mxu0
      %v647 = vadd.f32 0.0, %v646
      %648 = vmatmul.bf16.gmra.mxu0 %v508
      %v649 = vpop.f32.mrf.mxu0
      %v650 = vadd.f32 0.0, %v649
      %v651 = vpop.f32.mrf.mxu0
      %v652 = vadd.f32 0.0, %v651
      %653 = vmatmul.bf16.gmra.mxu0 %v509
      %v654 = vpop.f32.mrf.mxu0
      %v655 = vadd.f32 0.0, %v654
      %v656 = vpop.f32.mrf.mxu0
      %v657 = vadd.f32 0.0, %v656
      %658 = vmatmul.bf16.gmra.mxu0 %v510
      %v659 = vpop.f32.mrf.mxu0
      %v660 = vadd.f32 0.0, %v659
      %v661 = vpop.f32.mrf.mxu0
      %v662 = vadd.f32 0.0, %v661
      %663 = vdwg.mxu0
      %v664 = vadd.f32 %v351, %v585
      %v665 = vadd.f32 %v352, %v587
      %v666 = vadd.f32 %v353, %v590
      %v667 = vadd.f32 %v354, %v592
      %v668 = vadd.f32 %v355, %v595
      %v669 = vadd.f32 %v356, %v597
      %v670 = vadd.f32 %v357, %v600
      %v671 = vadd.f32 %v358, %v602
      %v672 = vadd.f32 %v359, %v605
      %v673 = vadd.f32 %v360, %v607
      %v674 = vadd.f32 %v361, %v610
      %v675 = vadd.f32 %v362, %v612
      %v676 = vadd.f32 %v363, %v615
      %v677 = vadd.f32 %v364, %v617
      %v678 = vadd.f32 %v365, %v620
      %v679 = vadd.f32 %v366, %v622
      %v680 = vadd.f32 %v367, %v625
      %v681 = vadd.f32 %v368, %v627
      %v682 = vadd.f32 %v369, %v630
      %v683 = vadd.f32 %v370, %v632
      %v684 = vadd.f32 %v371, %v635
      %v685 = vadd.f32 %v372, %v637
      %v686 = vadd.f32 %v373, %v640
      %v687 = vadd.f32 %v374, %v642
      %v688 = vadd.f32 %v375, %v645
      %v689 = vadd.f32 %v376, %v647
      %v690 = vadd.f32 %v377, %v650
      %v691 = vadd.f32 %v378, %v652
      %v692 = vadd.f32 %v379, %v655
      %v693 = vadd.f32 %v380, %v657
      %v694 = vadd.f32 %v381, %v660
      %v695 = vadd.f32 %v382, %v662
      %696 = vst [vmem:[#allocation2] sm:$0xff] %v664
      %697 = vst [vmem:[#allocation2 + $0x8] sm:$0xff] %v665
      %698 = vst [vmem:[#allocation2 + $0x10] sm:$0xff] %v666
      %699 = vst [vmem:[#allocation2 + $0x18] sm:$0xff] %v667
      %700 = vst [vmem:[#allocation2 + $0x20] sm:$0xff] %v668
      %701 = vst [vmem:[#allocation2 + $0x28] sm:$0xff] %v669
      %702 = vst [vmem:[#allocation2 + $0x30] sm:$0xff] %v670
      %703 = vst [vmem:[#allocation2 + $0x38] sm:$0xff] %v671
      %704 = vst [vmem:[#allocation2 + $0x40] sm:$0xff] %v672
      %705 = vst [vmem:[#allocation2 + $0x48] sm:$0xff] %v673
      %706 = vst [vmem:[#allocation2 + $0x50] sm:$0xff] %v674
      %707 = vst [vmem:[#allocation2 + $0x58] sm:$0xff] %v675
      %708 = vst [vmem:[#allocation2 + $0x60] sm:$0xff] %v676
      %709 = vst [vmem:[#allocation2 + $0x68] sm:$0xff] %v677
      %710 = vst [vmem:[#allocation2 + $0x70] sm:$0xff] %v678
      %711 = vst [vmem:[#allocation2 + $0x78] sm:$0xff] %v679
      %712 = vst [vmem:[#allocation2 + $0x80] sm:$0xff] %v680
      %713 = vst [vmem:[#allocation2 + $0x88] sm:$0xff] %v681
      %714 = vst [vmem:[#allocation2 + $0x90] sm:$0xff] %v682
      %715 = vst [vmem:[#allocation2 + $0x98] sm:$0xff] %v683
      %716 = vst [vmem:[#allocation2 + $0xa0] sm:$0xff] %v684
      %717 = vst [vmem:[#allocation2 + $0xa8] sm:$0xff] %v685
      %718 = vst [vmem:[#allocation2 + $0xb0] sm:$0xff] %v686
      %719 = vst [vmem:[#allocation2 + $0xb8] sm:$0xff] %v687
      %720 = vst [vmem:[#allocation2 + $0xc0] sm:$0xff] %v688
      %721 = vst [vmem:[#allocation2 + $0xc8] sm:$0xff] %v689
      %722 = vst [vmem:[#allocation2 + $0xd0] sm:$0xff] %v690
      %723 = vst [vmem:[#allocation2 + $0xd8] sm:$0xff] %v691
      %724 = vst [vmem:[#allocation2 + $0xe0] sm:$0xff] %v692
      %725 = vst [vmem:[#allocation2 + $0xe8] sm:$0xff] %v693
      %726 = vst [vmem:[#allocation2 + $0xf0] sm:$0xff] %v694
      %727 = vst [vmem:[#allocation2 + $0xf8] sm:$0xff] %v695
      // Predicated region
      $region37: #{scale_discriminator_forward.8} parent=31 // pred_check
        %p728 = pneg %p315
      $region38: #{scale_discriminator_forward.8} parent=31 // pred_check_branch
        %730 = sbr.rel (%p728) target = $region40
      $region39: #{scale_discriminator_forward.8} parent=31 // pred_region
        %v731 = vld [vmem:[#allocation2] sm:$0xff]
        %v732 = vld [vmem:[#allocation2 + $0x8] sm:$0xff]
        %v733 = vld [vmem:[#allocation2 + $0x10] sm:$0xff]
        %v734 = vld [vmem:[#allocation2 + $0x18] sm:$0xff]
        %v735 = vld [vmem:[#allocation2 + $0x20] sm:$0xff]
        %v736 = vld [vmem:[#allocation2 + $0x28] sm:$0xff]
        %v737 = vld [vmem:[#allocation2 + $0x30] sm:$0xff]
        %v738 = vld [vmem:[#allocation2 + $0x38] sm:$0xff]
        %v739 = vld [vmem:[#allocation2 + $0x40] sm:$0xff]
        %v740 = vld [vmem:[#allocation2 + $0x48] sm:$0xff]
        %v741 = vld [vmem:[#allocation2 + $0x50] sm:$0xff]
        %v742 = vld [vmem:[#allocation2 + $0x58] sm:$0xff]
        %v743 = vld [vmem:[#allocation2 + $0x60] sm:$0xff]
        %v744 = vld [vmem:[#allocation2 + $0x68] sm:$0xff]
        %v745 = vld [vmem:[#allocation2 + $0x70] sm:$0xff]
        %v746 = vld [vmem:[#allocation2 + $0x78] sm:$0xff]
        %v747 = vld [vmem:[#allocation2 + $0x80] sm:$0xff]
        %v748 = vld [vmem:[#allocation2 + $0x88] sm:$0xff]
        %v749 = vld [vmem:[#allocation2 + $0x90] sm:$0xff]
        %v750 = vld [vmem:[#allocation2 + $0x98] sm:$0xff]
        %v751 = vld [vmem:[#allocation2 + $0xa0] sm:$0xff]
        %v752 = vld [vmem:[#allocation2 + $0xa8] sm:$0xff]
        %v753 = vld [vmem:[#allocation2 + $0xb0] sm:$0xff]
        %v754 = vld [vmem:[#allocation2 + $0xb8] sm:$0xff]
        %v755 = vld [vmem:[#allocation2 + $0xc0] sm:$0xff]
        %v756 = vld [vmem:[#allocation2 + $0xc8] sm:$0xff]
        %v757 = vld [vmem:[#allocation2 + $0xd0] sm:$0xff]
        %v758 = vld [vmem:[#allocation2 + $0xd8] sm:$0xff]
        %v759 = vld [vmem:[#allocation2 + $0xe0] sm:$0xff]
        %v760 = vld [vmem:[#allocation2 + $0xe8] sm:$0xff]
        %v761 = vld [vmem:[#allocation2 + $0xf0] sm:$0xff]
        %v762 = vld [vmem:[#allocation2 + $0xf8] sm:$0xff]
        %v763 = vld [vmem:[%s301] sm:$0x1]
        %v765 = vperm.slane %v763, 0
        %v767 = vadd.f32 %v731, %v765
        %v768 = vadd.f32 %v732, %v765
        %v769 = vadd.f32 %v733, %v765
        %v770 = vadd.f32 %v734, %v765
        %v771 = vadd.f32 %v735, %v765
        %v772 = vadd.f32 %v736, %v765
        %v773 = vadd.f32 %v737, %v765
        %v774 = vadd.f32 %v738, %v765
        %v775 = vadd.f32 %v739, %v765
        %v776 = vadd.f32 %v740, %v765
        %v777 = vadd.f32 %v741, %v765
        %v778 = vadd.f32 %v742, %v765
        %v779 = vadd.f32 %v743, %v765
        %v780 = vadd.f32 %v744, %v765
        %v781 = vadd.f32 %v745, %v765
        %v782 = vadd.f32 %v746, %v765
        %v783 = vadd.f32 %v747, %v765
        %v784 = vadd.f32 %v748, %v765
        %v785 = vadd.f32 %v749, %v765
        %v786 = vadd.f32 %v750, %v765
        %v787 = vadd.f32 %v751, %v765
        %v788 = vadd.f32 %v752, %v765
        %v789 = vadd.f32 %v753, %v765
        %v790 = vadd.f32 %v754, %v765
        %v791 = vadd.f32 %v755, %v765
        %v792 = vadd.f32 %v756, %v765
        %v793 = vadd.f32 %v757, %v765
        %v794 = vadd.f32 %v758, %v765
        %v795 = vadd.f32 %v759, %v765
        %v796 = vadd.f32 %v760, %v765
        %v797 = vadd.f32 %v761, %v765
        %v798 = vadd.f32 %v762, %v765
        %vm799 = vcmp.ge.f32.partialorder %v767, 0.0
        %vm800 = vcmp.ge.f32.partialorder %v768, 0.0
        %vm801 = vcmp.ge.f32.partialorder %v769, 0.0
        %vm802 = vcmp.ge.f32.partialorder %v770, 0.0
        %vm803 = vcmp.ge.f32.partialorder %v771, 0.0
        %vm804 = vcmp.ge.f32.partialorder %v772, 0.0
        %vm805 = vcmp.ge.f32.partialorder %v773, 0.0
        %vm806 = vcmp.ge.f32.partialorder %v774, 0.0
        %vm807 = vcmp.ge.f32.partialorder %v775, 0.0
        %vm808 = vcmp.ge.f32.partialorder %v776, 0.0
        %vm809 = vcmp.ge.f32.partialorder %v777, 0.0
        %vm810 = vcmp.ge.f32.partialorder %v778, 0.0
        %vm811 = vcmp.ge.f32.partialorder %v779, 0.0
        %vm812 = vcmp.ge.f32.partialorder %v780, 0.0
        %vm813 = vcmp.ge.f32.partialorder %v781, 0.0
        %vm814 = vcmp.ge.f32.partialorder %v782, 0.0
        %vm815 = vcmp.ge.f32.partialorder %v783, 0.0
        %vm816 = vcmp.ge.f32.partialorder %v784, 0.0
        %vm817 = vcmp.ge.f32.partialorder %v785, 0.0
        %vm818 = vcmp.ge.f32.partialorder %v786, 0.0
        %vm819 = vcmp.ge.f32.partialorder %v787, 0.0
        %vm820 = vcmp.ge.f32.partialorder %v788, 0.0
        %vm821 = vcmp.ge.f32.partialorder %v789, 0.0
        %vm822 = vcmp.ge.f32.partialorder %v790, 0.0
        %vm823 = vcmp.ge.f32.partialorder %v791, 0.0
        %vm824 = vcmp.ge.f32.partialorder %v792, 0.0
        %vm825 = vcmp.ge.f32.partialorder %v793, 0.0
        %vm826 = vcmp.ge.f32.partialorder %v794, 0.0
        %vm827 = vcmp.ge.f32.partialorder %v795, 0.0
        %vm828 = vcmp.ge.f32.partialorder %v796, 0.0
        %vm829 = vcmp.ge.f32.partialorder %v797, 0.0
        %vm830 = vcmp.ge.f32.partialorder %v798, 0.0
        %v831 = vmul.f32 %v767, 0.1
        %v832 = vmul.f32 %v768, 0.1
        %v833 = vmul.f32 %v769, 0.1
        %v834 = vmul.f32 %v770, 0.1
        %v835 = vmul.f32 %v771, 0.1
        %v836 = vmul.f32 %v772, 0.1
        %v837 = vmul.f32 %v773, 0.1
        %v838 = vmul.f32 %v774, 0.1
        %v839 = vmul.f32 %v775, 0.1
        %v840 = vmul.f32 %v776, 0.1
        %v841 = vmul.f32 %v777, 0.1
        %v842 = vmul.f32 %v778, 0.1
        %v843 = vmul.f32 %v779, 0.1
        %v844 = vmul.f32 %v780, 0.1
        %v845 = vmul.f32 %v781, 0.1
        %v846 = vmul.f32 %v782, 0.1
        %v847 = vmul.f32 %v783, 0.1
        %v848 = vmul.f32 %v784, 0.1
        %v849 = vmul.f32 %v785, 0.1
        %v850 = vmul.f32 %v786, 0.1
        %v851 = vmul.f32 %v787, 0.1
        %v852 = vmul.f32 %v788, 0.1
        %v853 = vmul.f32 %v789, 0.1
        %v854 = vmul.f32 %v790, 0.1
        %v855 = vmul.f32 %v791, 0.1
        %v856 = vmul.f32 %v792, 0.1
        %v857 = vmul.f32 %v793, 0.1
        %v858 = vmul.f32 %v794, 0.1
        %v859 = vmul.f32 %v795, 0.1
        %v860 = vmul.f32 %v796, 0.1
        %v861 = vmul.f32 %v797, 0.1
        %v862 = vmul.f32 %v798, 0.1
        %v863 = vsel %vm799, %v767, %v831
        %v864 = vsel %vm800, %v768, %v832
        %v865 = vsel %vm801, %v769, %v833
        %v866 = vsel %vm802, %v770, %v834
        %v867 = vsel %vm803, %v771, %v835
        %v868 = vsel %vm804, %v772, %v836
        %v869 = vsel %vm805, %v773, %v837
        %v870 = vsel %vm806, %v774, %v838
        %v871 = vsel %vm807, %v775, %v839
        %v872 = vsel %vm808, %v776, %v840
        %v873 = vsel %vm809, %v777, %v841
        %v874 = vsel %vm810, %v778, %v842
        %v875 = vsel %vm811, %v779, %v843
        %v876 = vsel %vm812, %v780, %v844
        %v877 = vsel %vm813, %v781, %v845
        %v878 = vsel %vm814, %v782, %v846
        %v879 = vsel %vm815, %v783, %v847
        %v880 = vsel %vm816, %v784, %v848
        %v881 = vsel %vm817, %v785, %v849
        %v882 = vsel %vm818, %v786, %v850
        %v883 = vsel %vm819, %v787, %v851
        %v884 = vsel %vm820, %v788, %v852
        %v885 = vsel %vm821, %v789, %v853
        %v886 = vsel %vm822, %v790, %v854
        %v887 = vsel %vm823, %v791, %v855
        %v888 = vsel %vm824, %v792, %v856
        %v889 = vsel %vm825, %v793, %v857
        %v890 = vsel %vm826, %v794, %v858
        %v891 = vsel %vm827, %v795, %v859
        %v892 = vsel %vm828, %v796, %v860
        %v893 = vsel %vm829, %v797, %v861
        %v894 = vsel %vm830, %v798, %v862
        %895 = vst [vmem:[%s313] sm:$0xff] %v863
        %896 = vst [vmem:[%s313 + $0x8] sm:$0xff] %v864
        %897 = vst [vmem:[%s313 + $0x10] sm:$0xff] %v865
        %898 = vst [vmem:[%s313 + $0x18] sm:$0xff] %v866
        %899 = vst [vmem:[%s313 + $0x20] sm:$0xff] %v867
        %900 = vst [vmem:[%s313 + $0x28] sm:$0xff] %v868
        %901 = vst [vmem:[%s313 + $0x30] sm:$0xff] %v869
        %902 = vst [vmem:[%s313 + $0x38] sm:$0xff] %v870
        %903 = vst [vmem:[%s313 + $0x40] sm:$0xff] %v871
        %904 = vst [vmem:[%s313 + $0x48] sm:$0xff] %v872
        %905 = vst [vmem:[%s313 + $0x50] sm:$0xff] %v873
        %906 = vst [vmem:[%s313 + $0x58] sm:$0xff] %v874
        %907 = vst [vmem:[%s313 + $0x60] sm:$0xff] %v875
        %908 = vst [vmem:[%s313 + $0x68] sm:$0xff] %v876
        %909 = vst [vmem:[%s313 + $0x70] sm:$0xff] %v877
        %910 = vst [vmem:[%s313 + $0x78] sm:$0xff] %v878
        %911 = vst [vmem:[%s313 + $0x80] sm:$0xff] %v879
        %912 = vst [vmem:[%s313 + $0x88] sm:$0xff] %v880
        %913 = vst [vmem:[%s313 + $0x90] sm:$0xff] %v881
        %914 = vst [vmem:[%s313 + $0x98] sm:$0xff] %v882
        %915 = vst [vmem:[%s313 + $0xa0] sm:$0xff] %v883
        %916 = vst [vmem:[%s313 + $0xa8] sm:$0xff] %v884
        %917 = vst [vmem:[%s313 + $0xb0] sm:$0xff] %v885
        %918 = vst [vmem:[%s313 + $0xb8] sm:$0xff] %v886
        %919 = vst [vmem:[%s313 + $0xc0] sm:$0xff] %v887
        %920 = vst [vmem:[%s313 + $0xc8] sm:$0xff] %v888
        %921 = vst [vmem:[%s313 + $0xd0] sm:$0xff] %v889
        %922 = vst [vmem:[%s313 + $0xd8] sm:$0xff] %v890
        %923 = vst [vmem:[%s313 + $0xe0] sm:$0xff] %v891
        %924 = vst [vmem:[%s313 + $0xe8] sm:$0xff] %v892
        %925 = vst [vmem:[%s313 + $0xf0] sm:$0xff] %v893
        %926 = vst [vmem:[%s313 + $0xf8] sm:$0xff] %v894
      $region40: #{scale_discriminator_forward.8} parent=31 // pred_fallthru
        _
      %s927 = smul.u32 32, %s21
      %p928 = scmp.lt.s32.totalorder %s20, 0
      %s929 = scalar_select %p928, %s20, 0
      %p930 = scmp.lt.s32.totalorder %s927, 63
      %s931 = scalar_select %p930, %s927, 63
      %p932 = scmp.lt.s32.totalorder %s22, 0
      %s933 = scalar_select %p932, %s22, 0
      %s934 = sadd.s32 %s933, %s931
      %s935 = smul.addr %s929, 64
      %s936 = sadd.s32 %s934, %s935
      %s937 = smul.addr %s936, 8
      %s938 = scalar_lea.vmem %s3, %s937
      // Predicated region
      $region41: #{scale_discriminator_forward.8} parent=31 // pred_check
        %p939 = pneg %p150
      $region42: #{scale_discriminator_forward.8} parent=31 // pred_check_branch
        %941 = sbr.rel (%p939) target = $region44
      $region43: #{scale_discriminator_forward.8} parent=31 // pred_region
        %s942 = smul.u32 32, %s21
      $region44: #{scale_discriminator_forward.8} parent=31 // pred_fallthru
        _
    $region32: #{scale_discriminator_forward.8} parent=5 // pred_fallthru
      _
    %p943 = scmp.le.s32.totalorder 2, %s9
    // Predicated region
    $region45: #{scale_discriminator_forward.8} parent=5 // pred_check
      %p944 = pneg %p943
    $region46: #{scale_discriminator_forward.8} parent=5 // pred_check_branch
      %946 = sbr.rel (%p944) target = $region48
    $region47: #{scale_discriminator_forward.8} parent=5 // pred_region
      %s947 = ssub.s32 %s9, 2
      // Predicated region
      $region49: #{scale_discriminator_forward.8} parent=47 // pred_check
        %p948 = pneg %p156
      $region50: #{scale_discriminator_forward.8} parent=47 // pred_check_branch
        %950 = sbr.rel (%p948) target = $region52
      $region51: #{scale_discriminator_forward.8} parent=47 // pred_region
        %s951 = smul.u32 32, %s25
        %p952 = scmp.lt.s32.totalorder %s24, 0
        %s953 = scalar_select %p952, %s24, 0
        %p954 = scmp.lt.s32.totalorder %s951, 63
        %s955 = scalar_select %p954, %s951, 63
        %p956 = scmp.lt.s32.totalorder %s26, 0
        %s957 = scalar_select %p956, %s26, 0
        %s958 = sadd.s32 %s957, %s955
        %s959 = smul.addr %s953, 64
        %s960 = sadd.s32 %s958, %s959
        %s961 = smul.addr %s960, 8
        %s962 = scalar_lea.vmem %s3, %s961
      $region52: #{scale_discriminator_forward.8} parent=47 // pred_fallthru
        _
    $region48: #{scale_discriminator_forward.8} parent=5 // pred_fallthru
      _
  $region6: #{scale_discriminator_forward.8} parent=0 // loop_footer
    %s13 = sadd.s32 1, %s9
  $region7: #{scale_discriminator_forward.8} parent=0 // loop_footer_branch
    %8 = sbr.rel target = $region3
  $region8: #{scale_discriminator_forward.8} parent=0 // loop_exit
    _

// kernel: scale_discriminator_forward.9
$region0: #{scale_discriminator_forward.9}
  #allocation0 [shape = 'u32[]', space=smem, size = 0x4, offset = 0x4, fixed_abs, tag = 'smem constant byte address 0x4 - core index']
  #allocation1 [shape = 'u32[72,128]{1,0:T(1,128)}', space=vmem, size = 0x9000, scoped, tag = 'internal scratch']
  #allocation2 [shape = 'f32[256,32]{1,0:T(8,128)}', space=vmem, size = 0x20000, scoped, tag = 'scratch operand']
  %s0 = inlined_call_operand.vmem [shape: bf16[4,256,1408], index: 0, kind: input, shape index: {}]
  %s1 = inlined_call_operand.vmem [shape: bf16[4,1408,32], index: 1, kind: input, shape index: {}]
  %s2 = inlined_call_operand.vmem [shape: f32[4,1,32], index: 2, kind: input, shape index: {}]
  %s3 = inlined_call_operand.vmem [shape: f32[4,256,32], index: 3, kind: output, shape index: {}]
  %s4 = sld [smem:[#allocation0]]
  $region53: #{scale_discriminator_forward.9} parent=0
    _
  %s6 = ssub.s32 1, %s4
  %s7 = scalar_select 0, %s6, %s4
  loop: start=0, step=1, limit=6
  $region2: #{scale_discriminator_forward.9} parent=0 // loop_pre_header
    _
  $region3: #{scale_discriminator_forward.9} parent=0 // loop_header
    %s9 = sphi 0, %s13
    %p10 = scmp.ge.s32.totalorder %s9, 6
    %s16 = sphi 0, %s42
    %s17 = sphi 0, %s38
    %s18 = sphi 0, %s34
    %s19 = sphi 0, %s30
    %s20 = sphi 0, %s16
    %s21 = sphi 0, %s17
    %s22 = sphi 0, %s18
    %s23 = sphi 0, %s19
    %s24 = sphi 0, %s20
    %s25 = sphi 0, %s21
    %s26 = sphi 0, %s22
    %s27 = sphi 0, %s23
    %s49 = sphi 0, %s51
    %s52 = sphi 0, %s49
    %s53 = sphi 0, %s52
    %s69 = sphi 0, %s53
    %s79 = sphi 0, %s81
    %s82 = sphi 0, %s79
    %s83 = sphi 0, %s82
    %s99 = sphi 0, %s83
    %s107 = sphi 0, %s109
    %s110 = sphi 0, %s107
    %s111 = sphi 0, %s110
    %s127 = sphi 0, %s111
    %s137 = sphi 0, %s139
    %s140 = sphi 0, %s137
    %s141 = sphi 0, %s140
    %s157 = sphi 0, %s141
  $region4: #{scale_discriminator_forward.9} parent=0 // loop_header_branch
    %12 = sbr.rel (%p10) target = $region8
  $region5: #{scale_discriminator_forward.9} parent=0 // loop_body
    %s14 = ssub.s32 %s9, 1
    %s15 = ssub.s32 %s9, 2
    %s28 = sadd.s32 1, %s19
    %p29 = scmp.ge.s32.totalorder %s28, 1
    %s30 = scalar_select %p29, 0, %s28
    %s31 = sadd.s32 1, %s18
    %s32 = scalar_select %p29, %s31, %s18
    %p33 = scmp.ge.s32.totalorder %s32, 1
    %s34 = scalar_select %p33, 0, %s32
    %s35 = sadd.s32 1, %s17
    %s36 = scalar_select %p33, %s35, %s17
    %p37 = scmp.ge.s32.totalorder %s36, 1
    %s38 = scalar_select %p37, 0, %s36
    %s39 = sadd.s32 1, %s16
    %s40 = scalar_select %p37, %s39, %s16
    %p41 = scmp.ge.s32.totalorder %s40, 4
    %s42 = scalar_select %p41, 0, %s40
    %s43 = ssub.s32 %s16, %s42
    %s44 = ssub.s32 %s17, %s38
    %s45 = sor.u32 %s43, %s44
    %s46 = ssub.s32 %s19, %s30
    %s47 = sor.u32 %s45, %s46
    %p48 = scmp.eq.s32.totalorder %s47, 0
    %s50 = sadd.s32 %s49, 1
    %s51 = scalar_select %p48, %s49, %s50
    %p54 = pneg %p48
    %p55 = scmp.eq.s32.totalorder %s9, 3
    %p56 = por %p54, %p55
    %p57 = scmp.ne.s32.totalorder %s49, %s52
    %p58 = scmp.eq.s32.totalorder %s9, 0
    %p59 = por %p57, %p58
    %p60 = scmp.ne.s32.totalorder %s49, %s52
    %p61 = scmp.eq.s32.totalorder %s14, 3
    %p62 = por %p60, %p61
    %p63 = scmp.ne.s32.totalorder %s52, %s53
    %p64 = scmp.eq.s32.totalorder %s14, 0
    %p65 = por %p63, %p64
    %p66 = scmp.ne.s32.totalorder %s52, %s53
    %p67 = scmp.eq.s32.totalorder %s15, 3
    %p68 = por %p66, %p67
    %p70 = scmp.ne.s32.totalorder %s53, %s69
    %p71 = scmp.eq.s32.totalorder %s15, 0
    %p72 = por %p70, %p71
    %s73 = ssub.s32 %s16, %s42
    %s74 = ssub.s32 %s19, %s30
    %s75 = sor.u32 %s73, %s74
    %s76 = ssub.s32 %s18, %s34
    %s77 = sor.u32 %s75, %s76
    %p78 = scmp.eq.s32.totalorder %s77, 0
    %s80 = sadd.s32 %s79, 1
    %s81 = scalar_select %p78, %s79, %s80
    %p84 = pneg %p78
    %p85 = scmp.eq.s32.totalorder %s9, 3
    %p86 = por %p84, %p85
    %p87 = scmp.ne.s32.totalorder %s79, %s82
    %p88 = scmp.eq.s32.totalorder %s9, 0
    %p89 = por %p87, %p88
    %p90 = scmp.ne.s32.totalorder %s79, %s82
    %p91 = scmp.eq.s32.totalorder %s14, 3
    %p92 = por %p90, %p91
    %p93 = scmp.ne.s32.totalorder %s82, %s83
    %p94 = scmp.eq.s32.totalorder %s14, 0
    %p95 = por %p93, %p94
    %p96 = scmp.ne.s32.totalorder %s82, %s83
    %p97 = scmp.eq.s32.totalorder %s15, 3
    %p98 = por %p96, %p97
    %p100 = scmp.ne.s32.totalorder %s83, %s99
    %p101 = scmp.eq.s32.totalorder %s15, 0
    %p102 = por %p100, %p101
    %s103 = ssub.s32 %s16, %s42
    %s104 = ssub.s32 %s18, %s34
    %s105 = sor.u32 %s103, %s104
    %p106 = scmp.eq.s32.totalorder %s105, 0
    %s108 = sadd.s32 %s107, 1
    %s109 = scalar_select %p106, %s107, %s108
    %p112 = pneg %p106
    %p113 = scmp.eq.s32.totalorder %s9, 3
    %p114 = por %p112, %p113
    %p115 = scmp.ne.s32.totalorder %s107, %s110
    %p116 = scmp.eq.s32.totalorder %s9, 0
    %p117 = por %p115, %p116
    %p118 = scmp.ne.s32.totalorder %s107, %s110
    %p119 = scmp.eq.s32.totalorder %s14, 3
    %p120 = por %p118, %p119
    %p121 = scmp.ne.s32.totalorder %s110, %s111
    %p122 = scmp.eq.s32.totalorder %s14, 0
    %p123 = por %p121, %p122
    %p124 = scmp.ne.s32.totalorder %s110, %s111
    %p125 = scmp.eq.s32.totalorder %s15, 3
    %p126 = por %p124, %p125
    %p128 = scmp.ne.s32.totalorder %s111, %s127
    %p129 = scmp.eq.s32.totalorder %s15, 0
    %p130 = por %p128, %p129
    %s131 = ssub.s32 %s16, %s42
    %s132 = ssub.s32 %s17, %s38
    %s133 = sor.u32 %s131, %s132
    %s134 = ssub.s32 %s18, %s34
    %s135 = sor.u32 %s133, %s134
    %p136 = scmp.eq.s32.totalorder %s135, 0
    %s138 = sadd.s32 %s137, 1
    %s139 = scalar_select %p136, %s137, %s138
    %p142 = pneg %p136
    %p143 = scmp.eq.s32.totalorder %s9, 3
    %p144 = por %p142, %p143
    %p145 = scmp.ne.s32.totalorder %s137, %s140
    %p146 = scmp.eq.s32.totalorder %s9, 0
    %p147 = por %p145, %p146
    %p148 = scmp.ne.s32.totalorder %s137, %s140
    %p149 = scmp.eq.s32.totalorder %s14, 3
    %p150 = por %p148, %p149
    %p151 = scmp.ne.s32.totalorder %s140, %s141
    %p152 = scmp.eq.s32.totalorder %s14, 0
    %p153 = por %p151, %p152
    %p154 = scmp.ne.s32.totalorder %s140, %s141
    %p155 = scmp.eq.s32.totalorder %s15, 3
    %p156 = por %p154, %p155
    %p158 = scmp.ne.s32.totalorder %s141, %s157
    %p159 = scmp.eq.s32.totalorder %s15, 0
    %p160 = por %p158, %p159
    %p161 = scmp.le.s32.totalorder 1, %s9
    %p162 = scmp.lt.s32.totalorder %s9, 5
    %p163 = pnand %p161, %p162
    %p164 = pneg %p163
    // Predicated region
    $region9: #{scale_discriminator_forward.9} parent=5 // pred_check
      _
    $region10: #{scale_discriminator_forward.9} parent=5 // pred_check_branch
      %166 = sbr.rel (%p163) target = $region12
    $region11: #{scale_discriminator_forward.9} parent=5 // pred_region
      %s167 = ssub.s32 %s9, 1
    $region12: #{scale_discriminator_forward.9} parent=5 // pred_fallthru
      _
    %p168 = scmp.lt.s32.totalorder %s9, 4
    // Predicated region
    $region13: #{scale_discriminator_forward.9} parent=5 // pred_check
      %p169 = pneg %p168
    $region14: #{scale_discriminator_forward.9} parent=5 // pred_check_branch
      %171 = sbr.rel (%p169) target = $region16
    $region15: #{scale_discriminator_forward.9} parent=5 // pred_region
      // Predicated region
      $region17: #{scale_discriminator_forward.9} parent=15 // pred_check
        %p172 = pneg %p59
      $region18: #{scale_discriminator_forward.9} parent=15 // pred_check_branch
        %174 = sbr.rel (%p172) target = $region20
      $region19: #{scale_discriminator_forward.9} parent=15 // pred_region
        %s175 = smul.u32 32, %s17
        %s176 = smul.u32 11, %s19
        %p177 = scmp.lt.s32.totalorder %s16, 3
        %s178 = scalar_select %p177, %s16, 3
        %p179 = scmp.lt.s32.totalorder %s175, 31
        %s180 = scalar_select %p179, %s175, 31
        %p181 = scmp.lt.s32.totalorder %s176, 10
        %s182 = scalar_select %p181, %s176, 10
        %s183 = smul.addr %s180, 11
        %s184 = sadd.s32 %s182, %s183
        %s185 = smul.addr %s178, 352
        %s186 = sadd.s32 %s184, %s185
        %s187 = smul.addr %s186, 4
        %s188 = scalar_lea.vmem %s0, %s187
        %s189 = smul.u32 32, %s17
        %s190 = smul.u32 11, %s19
      $region20: #{scale_discriminator_forward.9} parent=15 // pred_fallthru
        _
      // Predicated region
      $region21: #{scale_discriminator_forward.9} parent=15 // pred_check
        %p191 = pneg %p89
      $region22: #{scale_discriminator_forward.9} parent=15 // pred_check_branch
        %193 = sbr.rel (%p191) target = $region24
      $region23: #{scale_discriminator_forward.9} parent=15 // pred_region
        %s194 = smul.u32 176, %s19
        %p195 = scmp.lt.s32.totalorder %s16, 3
        %s196 = scalar_select %p195, %s16, 3
        %p197 = scmp.lt.s32.totalorder %s194, 175
        %s198 = scalar_select %p197, %s194, 175
        %p199 = scmp.lt.s32.totalorder %s18, 0
        %s200 = scalar_select %p199, %s18, 0
        %s201 = sadd.s32 %s200, %s198
        %s202 = smul.addr %s196, 176
        %s203 = sadd.s32 %s201, %s202
        %s204 = smul.addr %s203, 4
        %s205 = scalar_lea.vmem %s1, %s204
        %s206 = smul.u32 176, %s19
      $region24: #{scale_discriminator_forward.9} parent=15 // pred_fallthru
        _
      // Predicated region
      $region25: #{scale_discriminator_forward.9} parent=15 // pred_check
        %p207 = pneg %p117
      $region26: #{scale_discriminator_forward.9} parent=15 // pred_check_branch
        %209 = sbr.rel (%p207) target = $region28
      $region27: #{scale_discriminator_forward.9} parent=15 // pred_region
        %p210 = scmp.lt.s32.totalorder %s16, 3
        %s211 = scalar_select %p210, %s16, 3
        %p212 = scmp.lt.s32.totalorder %s18, 0
        %s213 = scalar_select %p212, %s18, 0
        %s214 = sadd.s32 %s213, %s211
        %s215 = scalar_lea.vmem %s2, %s214
      $region28: #{scale_discriminator_forward.9} parent=15 // pred_fallthru
        _
    $region16: #{scale_discriminator_forward.9} parent=5 // pred_fallthru
      _
    %p216 = scmp.le.s32.totalorder 1, %s9
    %p217 = scmp.lt.s32.totalorder %s9, 5
    %p218 = pnand %p216, %p217
    %p219 = pneg %p218
    // Predicated region
    $region29: #{scale_discriminator_forward.9} parent=5 // pred_check
      _
    $region30: #{scale_discriminator_forward.9} parent=5 // pred_check_branch
      %221 = sbr.rel (%p218) target = $region32
    $region31: #{scale_discriminator_forward.9} parent=5 // pred_region
      %s222 = ssub.s32 %s9, 1
      %s223 = smul.u32 32, %s21
      %s224 = smul.u32 11, %s23
      %p225 = scmp.lt.s32.totalorder %s20, 3
      %s226 = scalar_select %p225, %s20, 3
      %p227 = scmp.lt.s32.totalorder %s223, 31
      %s228 = scalar_select %p227, %s223, 31
      %p229 = scmp.lt.s32.totalorder %s224, 10
      %s230 = scalar_select %p229, %s224, 10
      %s231 = smul.addr %s228, 11
      %s232 = sadd.s32 %s230, %s231
      %s233 = smul.addr %s226, 352
      %s234 = sadd.s32 %s232, %s233
      %s235 = smul.addr %s234, 4
      %s236 = scalar_lea.vmem %s0, %s235
      %p237 = pneg %p65
      %p238 = pneg %p62
      %s239 = smul.u32 176, %s23
      %p240 = scmp.lt.s32.totalorder %s20, 3
      %s241 = scalar_select %p240, %s20, 3
      %p242 = scmp.lt.s32.totalorder %s239, 175
      %s243 = scalar_select %p242, %s239, 175
      %p244 = scmp.lt.s32.totalorder %s22, 0
      %s245 = scalar_select %p244, %s22, 0
      %s246 = sadd.s32 %s245, %s243
      %s247 = smul.addr %s241, 176
      %s248 = sadd.s32 %s246, %s247
      %s249 = smul.addr %s248, 4
      %s250 = scalar_lea.vmem %s1, %s249
      %p251 = pneg %p95
      %p252 = pneg %p92
      %p253 = scmp.lt.s32.totalorder %s20, 3
      %s254 = scalar_select %p253, %s20, 3
      %p255 = scmp.lt.s32.totalorder %s22, 0
      %s256 = scalar_select %p255, %s22, 0
      %s257 = sadd.s32 %s256, %s254
      %s258 = scalar_lea.vmem %s2, %s257
      %p259 = pneg %p123
      %p260 = pneg %p120
      %p261 = pneg %p153
      %p262 = pneg %p150
      %s263 = smul.u32 32, %s21
      %p264 = scmp.lt.s32.totalorder %s20, 3
      %s265 = scalar_select %p264, %s20, 3
      %p266 = scmp.lt.s32.totalorder %s263, 31
      %s267 = scalar_select %p266, %s263, 31
      %p268 = scmp.lt.s32.totalorder %s22, 0
      %s269 = scalar_select %p268, %s22, 0
      %s270 = sadd.s32 %s269, %s267
      %s271 = smul.addr %s265, 32
      %s272 = sadd.s32 %s270, %s271
      %s273 = smul.addr %s272, 8
      %s274 = scalar_lea.vmem %s3, %s273
      %s275 = smul.u32 32, %s21
      %s276 = smul.u32 11, %s23
      %p277 = scmp.lt.s32.totalorder %s20, 3
      %s278 = scalar_select %p277, %s20, 3
      %p279 = scmp.lt.s32.totalorder %s275, 31
      %s280 = scalar_select %p279, %s275, 31
      %p281 = scmp.lt.s32.totalorder %s276, 10
      %s282 = scalar_select %p281, %s276, 10
      %s283 = smul.addr %s280, 11
      %s284 = sadd.s32 %s282, %s283
      %s285 = smul.addr %s278, 352
      %s286 = sadd.s32 %s284, %s285
      %s287 = smul.addr %s286, 4
      %s288 = scalar_lea.vmem %s0, %s287
      %s289 = smul.u32 32, %s21
      %s290 = smul.u32 11, %s23
      %s291 = smul.u32 176, %s23
      %p292 = scmp.lt.s32.totalorder %s20, 3
      %s293 = scalar_select %p292, %s20, 3
      %p294 = scmp.lt.s32.totalorder %s291, 175
      %s295 = scalar_select %p294, %s291, 175
      %p296 = scmp.lt.s32.totalorder %s22, 0
      %s297 = scalar_select %p296, %s22, 0
      %s298 = sadd.s32 %s297, %s295
      %s299 = smul.addr %s293, 176
      %s300 = sadd.s32 %s298, %s299
      %s301 = smul.addr %s300, 4
      %s302 = scalar_lea.vmem %s1, %s301
      %s303 = smul.u32 176, %s23
      %p304 = scmp.lt.s32.totalorder %s20, 3
      %s305 = scalar_select %p304, %s20, 3
      %p306 = scmp.lt.s32.totalorder %s22, 0
      %s307 = scalar_select %p306, %s22, 0
      %s308 = sadd.s32 %s307, %s305
      %s309 = scalar_lea.vmem %s2, %s308
      %s310 = smul.u32 32, %s21
      %p311 = scmp.lt.s32.totalorder %s20, 3
      %s312 = scalar_select %p311, %s20, 3
      %p313 = scmp.lt.s32.totalorder %s310, 31
      %s314 = scalar_select %p313, %s310, 31
      %p315 = scmp.lt.s32.totalorder %s22, 0
      %s316 = scalar_select %p315, %s22, 0
      %s317 = sadd.s32 %s316, %s314
      %s318 = smul.addr %s312, 32
      %s319 = sadd.s32 %s317, %s318
      %s320 = smul.addr %s319, 8
      %s321 = scalar_lea.vmem %s3, %s320
      %s322 = smul.u32 32, %s21
      %p323 = scmp.eq.s32.totalorder %s23, 0
      // Predicated region
      $region33: #{scale_discriminator_forward.9} parent=31 // pred_check
        %p324 = pneg %p323
      $region34: #{scale_discriminator_forward.9} parent=31 // pred_check_branch
        %326 = sbr.rel (%p324) target = $region36
      $region35: #{scale_discriminator_forward.9} parent=31 // pred_region
        %vm327 = vcmask 261120
        %328 = vst.msk [vmem:[#allocation2] sm:$0xff] %vm327, 0.0
        %329 = vst.msk [vmem:[#allocation2 + $0x8] sm:$0xff] %vm327, 0.0
        %330 = vst.msk [vmem:[#allocation2 + $0x10] sm:$0xff] %vm327, 0.0
        %331 = vst.msk [vmem:[#allocation2 + $0x18] sm:$0xff] %vm327, 0.0
        %332 = vst.msk [vmem:[#allocation2 + $0x20] sm:$0xff] %vm327, 0.0
        %333 = vst.msk [vmem:[#allocation2 + $0x28] sm:$0xff] %vm327, 0.0
        %334 = vst.msk [vmem:[#allocation2 + $0x30] sm:$0xff] %vm327, 0.0
        %335 = vst.msk [vmem:[#allocation2 + $0x38] sm:$0xff] %vm327, 0.0
        %336 = vst.msk [vmem:[#allocation2 + $0x40] sm:$0xff] %vm327, 0.0
        %337 = vst.msk [vmem:[#allocation2 + $0x48] sm:$0xff] %vm327, 0.0
        %338 = vst.msk [vmem:[#allocation2 + $0x50] sm:$0xff] %vm327, 0.0
        %339 = vst.msk [vmem:[#allocation2 + $0x58] sm:$0xff] %vm327, 0.0
        %340 = vst.msk [vmem:[#allocation2 + $0x60] sm:$0xff] %vm327, 0.0
        %341 = vst.msk [vmem:[#allocation2 + $0x68] sm:$0xff] %vm327, 0.0
        %342 = vst.msk [vmem:[#allocation2 + $0x70] sm:$0xff] %vm327, 0.0
        %343 = vst.msk [vmem:[#allocation2 + $0x78] sm:$0xff] %vm327, 0.0
        %344 = vst.msk [vmem:[#allocation2 + $0x80] sm:$0xff] %vm327, 0.0
        %345 = vst.msk [vmem:[#allocation2 + $0x88] sm:$0xff] %vm327, 0.0
        %346 = vst.msk [vmem:[#allocation2 + $0x90] sm:$0xff] %vm327, 0.0
        %347 = vst.msk [vmem:[#allocation2 + $0x98] sm:$0xff] %vm327, 0.0
        %348 = vst.msk [vmem:[#allocation2 + $0xa0] sm:$0xff] %vm327, 0.0
        %349 = vst.msk [vmem:[#allocation2 + $0xa8] sm:$0xff] %vm327, 0.0
        %350 = vst.msk [vmem:[#allocation2 + $0xb0] sm:$0xff] %vm327, 0.0
        %351 = vst.msk [vmem:[#allocation2 + $0xb8] sm:$0xff] %vm327, 0.0
        %352 = vst.msk [vmem:[#allocation2 + $0xc0] sm:$0xff] %vm327, 0.0
        %353 = vst.msk [vmem:[#allocation2 + $0xc8] sm:$0xff] %vm327, 0.0
        %354 = vst.msk [vmem:[#allocation2 + $0xd0] sm:$0xff] %vm327, 0.0
        %355 = vst.msk [vmem:[#allocation2 + $0xd8] sm:$0xff] %vm327, 0.0
        %356 = vst.msk [vmem:[#allocation2 + $0xe0] sm:$0xff] %vm327, 0.0
        %357 = vst.msk [vmem:[#allocation2 + $0xe8] sm:$0xff] %vm327, 0.0
        %358 = vst.msk [vmem:[#allocation2 + $0xf0] sm:$0xff] %vm327, 0.0
        %359 = vst.msk [vmem:[#allocation2 + $0xf8] sm:$0xff] %vm327, 0.0
      $region36: #{scale_discriminator_forward.9} parent=31 // pred_fallthru
        _
      %v360 = vld [vmem:[#allocation2] sm:$0xff]
      %v361 = vld [vmem:[#allocation2 + $0x8] sm:$0xff]
      %v362 = vld [vmem:[#allocation2 + $0x10] sm:$0xff]
      %v363 = vld [vmem:[#allocation2 + $0x18] sm:$0xff]
      %v364 = vld [vmem:[#allocation2 + $0x20] sm:$0xff]
      %v365 = vld [vmem:[#allocation2 + $0x28] sm:$0xff]
      %v366 = vld [vmem:[#allocation2 + $0x30] sm:$0xff]
      %v367 = vld [vmem:[#allocation2 + $0x38] sm:$0xff]
      %v368 = vld [vmem:[#allocation2 + $0x40] sm:$0xff]
      %v369 = vld [vmem:[#allocation2 + $0x48] sm:$0xff]
      %v370 = vld [vmem:[#allocation2 + $0x50] sm:$0xff]
      %v371 = vld [vmem:[#allocation2 + $0x58] sm:$0xff]
      %v372 = vld [vmem:[#allocation2 + $0x60] sm:$0xff]
      %v373 = vld [vmem:[#allocation2 + $0x68] sm:$0xff]
      %v374 = vld [vmem:[#allocation2 + $0x70] sm:$0xff]
      %v375 = vld [vmem:[#allocation2 + $0x78] sm:$0xff]
      %v376 = vld [vmem:[#allocation2 + $0x80] sm:$0xff]
      %v377 = vld [vmem:[#allocation2 + $0x88] sm:$0xff]
      %v378 = vld [vmem:[#allocation2 + $0x90] sm:$0xff]
      %v379 = vld [vmem:[#allocation2 + $0x98] sm:$0xff]
      %v380 = vld [vmem:[#allocation2 + $0xa0] sm:$0xff]
      %v381 = vld [vmem:[#allocation2 + $0xa8] sm:$0xff]
      %v382 = vld [vmem:[#allocation2 + $0xb0] sm:$0xff]
      %v383 = vld [vmem:[#allocation2 + $0xb8] sm:$0xff]
      %v384 = vld [vmem:[#allocation2 + $0xc0] sm:$0xff]
      %v385 = vld [vmem:[#allocation2 + $0xc8] sm:$0xff]
      %v386 = vld [vmem:[#allocation2 + $0xd0] sm:$0xff]
      %v387 = vld [vmem:[#allocation2 + $0xd8] sm:$0xff]
      %v388 = vld [vmem:[#allocation2 + $0xe0] sm:$0xff]
      %v389 = vld [vmem:[#allocation2 + $0xe8] sm:$0xff]
      %v390 = vld [vmem:[#allocation2 + $0xf0] sm:$0xff]
      %v391 = vld [vmem:[#allocation2 + $0xf8] sm:$0xff]
      %v392 = vld [vmem:[%s288] sm:$0xff]
      %v393 = vld [vmem:[%s288 + $0x8] sm:$0xff]
      %v394 = vld [vmem:[%s288 + $0x10] sm:$0xff]
      %v395 = vld [vmem:[%s288 + $0x18] sm:$0xff]
      %v396 = vld [vmem:[%s288 + $0x20] sm:$0xff]
      %v397 = vld [vmem:[%s288 + $0x28] sm:$0xf]
      %v398 = vld [vmem:[%s288 + $0x2c] sm:$0xff]
      %v399 = vld [vmem:[%s288 + $0x34] sm:$0xff]
      %v400 = vld [vmem:[%s288 + $0x3c] sm:$0xff]
      %v401 = vld [vmem:[%s288 + $0x44] sm:$0xff]
      %v402 = vld [vmem:[%s288 + $0x4c] sm:$0xff]
      %v403 = vld [vmem:[%s288 + $0x54] sm:$0xf]
      %v404 = vld [vmem:[%s288 + $0x58] sm:$0xff]
      %v405 = vld [vmem:[%s288 + $0x60] sm:$0xff]
      %v406 = vld [vmem:[%s288 + $0x68] sm:$0xff]
      %v407 = vld [vmem:[%s288 + $0x70] sm:$0xff]
      %v408 = vld [vmem:[%s288 + $0x78] sm:$0xff]
      %v409 = vld [vmem:[%s288 + $0x80] sm:$0xf]
      %v410 = vld [vmem:[%s288 + $0x84] sm:$0xff]
      %v411 = vld [vmem:[%s288 + $0x8c] sm:$0xff]
      %v412 = vld [vmem:[%s288 + $0x94] sm:$0xff]
      %v413 = vld [vmem:[%s288 + $0x9c] sm:$0xff]
      %v414 = vld [vmem:[%s288 + $0xa4] sm:$0xff]
      %v415 = vld [vmem:[%s288 + $0xac] sm:$0xf]
      %v416 = vld [vmem:[%s288 + $0xb0] sm:$0xff]
      %v417 = vld [vmem:[%s288 + $0xb8] sm:$0xff]
      %v418 = vld [vmem:[%s288 + $0xc0] sm:$0xff]
      %v419 = vld [vmem:[%s288 + $0xc8] sm:$0xff]
      %v420 = vld [vmem:[%s288 + $0xd0] sm:$0xff]
      %v421 = vld [vmem:[%s288 + $0xd8] sm:$0xf]
      %v422 = vld [vmem:[%s288 + $0xdc] sm:$0xff]
      %v423 = vld [vmem:[%s288 + $0xe4] sm:$0xff]
      %v424 = vld [vmem:[%s288 + $0xec] sm:$0xff]
      %v425 = vld [vmem:[%s288 + $0xf4] sm:$0xff]
      %v426 = vld [vmem:[%s288 + $0xfc] sm:$0xff]
      %v427 = vld [vmem:[%s288 + $0x104] sm:$0xf]
      %v428 = vld [vmem:[%s288 + $0x108] sm:$0xff]
      %v429 = vld [vmem:[%s288 + $0x110] sm:$0xff]
      %v430 = vld [vmem:[%s288 + $0x118] sm:$0xff]
      %v431 = vld [vmem:[%s288 + $0x120] sm:$0xff]
      %v432 = vld [vmem:[%s288 + $0x128] sm:$0xff]
      %v433 = vld [vmem:[%s288 + $0x130] sm:$0xf]
      %v434 = vld [vmem:[%s288 + $0x134] sm:$0xff]
      %v435 = vld [vmem:[%s288 + $0x13c] sm:$0xff]
      %v436 = vld [vmem:[%s288 + $0x144] sm:$0xff]
      %v437 = vld [vmem:[%s288 + $0x14c] sm:$0xff]
      %v438 = vld [vmem:[%s288 + $0x154] sm:$0xff]
      %v439 = vld [vmem:[%s288 + $0x15c] sm:$0xf]
      %v440 = vld [vmem:[%s288 + $0x160] sm:$0xff]
      %v441 = vld [vmem:[%s288 + $0x168] sm:$0xff]
      %v442 = vld [vmem:[%s288 + $0x170] sm:$0xff]
      %v443 = vld [vmem:[%s288 + $0x178] sm:$0xff]
      %v444 = vld [vmem:[%s288 + $0x180] sm:$0xff]
      %v445 = vld [vmem:[%s288 + $0x188] sm:$0xf]
      %v446 = vld [vmem:[%s288 + $0x18c] sm:$0xff]
      %v447 = vld [vmem:[%s288 + $0x194] sm:$0xff]
      %v448 = vld [vmem:[%s288 + $0x19c] sm:$0xff]
      %v449 = vld [vmem:[%s288 + $0x1a4] sm:$0xff]
      %v450 = vld [vmem:[%s288 + $0x1ac] sm:$0xff]
      %v451 = vld [vmem:[%s288 + $0x1b4] sm:$0xf]
      %v452 = vld [vmem:[%s288 + $0x1b8] sm:$0xff]
      %v453 = vld [vmem:[%s288 + $0x1c0] sm:$0xff]
      %v454 = vld [vmem:[%s288 + $0x1c8] sm:$0xff]
      %v455 = vld [vmem:[%s288 + $0x1d0] sm:$0xff]
      %v456 = vld [vmem:[%s288 + $0x1d8] sm:$0xff]
      %v457 = vld [vmem:[%s288 + $0x1e0] sm:$0xf]
      %v458 = vld [vmem:[%s288 + $0x1e4] sm:$0xff]
      %v459 = vld [vmem:[%s288 + $0x1ec] sm:$0xff]
      %v460 = vld [vmem:[%s288 + $0x1f4] sm:$0xff]
      %v461 = vld [vmem:[%s288 + $0x1fc] sm:$0xff]
      %v462 = vld [vmem:[%s288 + $0x204] sm:$0xff]
      %v463 = vld [vmem:[%s288 + $0x20c] sm:$0xf]
      %v464 = vld [vmem:[%s288 + $0x210] sm:$0xff]
      %v465 = vld [vmem:[%s288 + $0x218] sm:$0xff]
      %v466 = vld [vmem:[%s288 + $0x220] sm:$0xff]
      %v467 = vld [vmem:[%s288 + $0x228] sm:$0xff]
      %v468 = vld [vmem:[%s288 + $0x230] sm:$0xff]
      %v469 = vld [vmem:[%s288 + $0x238] sm:$0xf]
      %v470 = vld [vmem:[%s288 + $0x23c] sm:$0xff]
      %v471 = vld [vmem:[%s288 + $0x244] sm:$0xff]
      %v472 = vld [vmem:[%s288 + $0x24c] sm:$0xff]
      %v473 = vld [vmem:[%s288 + $0x254] sm:$0xff]
      %v474 = vld [vmem:[%s288 + $0x25c] sm:$0xff]
      %v475 = vld [vmem:[%s288 + $0x264] sm:$0xf]
      %v476 = vld [vmem:[%s288 + $0x268] sm:$0xff]
      %v477 = vld [vmem:[%s288 + $0x270] sm:$0xff]
      %v478 = vld [vmem:[%s288 + $0x278] sm:$0xff]
      %v479 = vld [vmem:[%s288 + $0x280] sm:$0xff]
      %v480 = vld [vmem:[%s288 + $0x288] sm:$0xff]
      %v481 = vld [vmem:[%s288 + $0x290] sm:$0xf]
      %v482 = vld [vmem:[%s288 + $0x294] sm:$0xff]
      %v483 = vld [vmem:[%s288 + $0x29c] sm:$0xff]
      %v484 = vld [vmem:[%s288 + $0x2a4] sm:$0xff]
      %v485 = vld [vmem:[%s288 + $0x2ac] sm:$0xff]
      %v486 = vld [vmem:[%s288 + $0x2b4] sm:$0xff]
      %v487 = vld [vmem:[%s288 + $0x2bc] sm:$0xf]
      %v488 = vld [vmem:[%s288 + $0x2c0] sm:$0xff]
      %v489 = vld [vmem:[%s288 + $0x2c8] sm:$0xff]
      %v490 = vld [vmem:[%s288 + $0x2d0] sm:$0xff]
      %v491 = vld [vmem:[%s288 + $0x2d8] sm:$0xff]
      %v492 = vld [vmem:[%s288 + $0x2e0] sm:$0xff]
      %v493 = vld [vmem:[%s288 + $0x2e8] sm:$0xf]
      %v494 = vld [vmem:[%s288 + $0x2ec] sm:$0xff]
      %v495 = vld [vmem:[%s288 + $0x2f4] sm:$0xff]
      %v496 = vld [vmem:[%s288 + $0x2fc] sm:$0xff]
      %v497 = vld [vmem:[%s288 + $0x304] sm:$0xff]
      %v498 = vld [vmem:[%s288 + $0x30c] sm:$0xff]
      %v499 = vld [vmem:[%s288 + $0x314] sm:$0xf]
      %v500 = vld [vmem:[%s288 + $0x318] sm:$0xff]
      %v501 = vld [vmem:[%s288 + $0x320] sm:$0xff]
      %v502 = vld [vmem:[%s288 + $0x328] sm:$0xff]
      %v503 = vld [vmem:[%s288 + $0x330] sm:$0xff]
      %v504 = vld [vmem:[%s288 + $0x338] sm:$0xff]
      %v505 = vld [vmem:[%s288 + $0x340] sm:$0xf]
      %v506 = vld [vmem:[%s288 + $0x344] sm:$0xff]
      %v507 = vld [vmem:[%s288 + $0x34c] sm:$0xff]
      %v508 = vld [vmem:[%s288 + $0x354] sm:$0xff]
      %v509 = vld [vmem:[%s288 + $0x35c] sm:$0xff]
      %v510 = vld [vmem:[%s288 + $0x364] sm:$0xff]
      %v511 = vld [vmem:[%s288 + $0x36c] sm:$0xf]
      %v512 = vld [vmem:[%s288 + $0x370] sm:$0xff]
      %v513 = vld [vmem:[%s288 + $0x378] sm:$0xff]
      %v514 = vld [vmem:[%s288 + $0x380] sm:$0xff]
      %v515 = vld [vmem:[%s288 + $0x388] sm:$0xff]
      %v516 = vld [vmem:[%s288 + $0x390] sm:$0xff]
      %v517 = vld [vmem:[%s288 + $0x398] sm:$0xf]
      %v518 = vld [vmem:[%s288 + $0x39c] sm:$0xff]
      %v519 = vld [vmem:[%s288 + $0x3a4] sm:$0xff]
      %v520 = vld [vmem:[%s288 + $0x3ac] sm:$0xff]
      %v521 = vld [vmem:[%s288 + $0x3b4] sm:$0xff]
      %v522 = vld [vmem:[%s288 + $0x3bc] sm:$0xff]
      %v523 = vld [vmem:[%s288 + $0x3c4] sm:$0xf]
      %v524 = vld [vmem:[%s288 + $0x3c8] sm:$0xff]
      %v525 = vld [vmem:[%s288 + $0x3d0] sm:$0xff]
      %v526 = vld [vmem:[%s288 + $0x3d8] sm:$0xff]
      %v527 = vld [vmem:[%s288 + $0x3e0] sm:$0xff]
      %v528 = vld [vmem:[%s288 + $0x3e8] sm:$0xff]
      %v529 = vld [vmem:[%s288 + $0x3f0] sm:$0xf]
      %v530 = vld [vmem:[%s288 + $0x3f4] sm:$0xff]
      %v531 = vld [vmem:[%s288 + $0x3fc] sm:$0xff]
      %v532 = vld [vmem:[%s288 + $0x404] sm:$0xff]
      %v533 = vld [vmem:[%s288 + $0x40c] sm:$0xff]
      %v534 = vld [vmem:[%s288 + $0x414] sm:$0xff]
      %v535 = vld [vmem:[%s288 + $0x41c] sm:$0xf]
      %v536 = vld [vmem:[%s288 + $0x420] sm:$0xff]
      %v537 = vld [vmem:[%s288 + $0x428] sm:$0xff]
      %v538 = vld [vmem:[%s288 + $0x430] sm:$0xff]
      %v539 = vld [vmem:[%s288 + $0x438] sm:$0xff]
      %v540 = vld [vmem:[%s288 + $0x440] sm:$0xff]
      %v541 = vld [vmem:[%s288 + $0x448] sm:$0xf]
      %v542 = vld [vmem:[%s288 + $0x44c] sm:$0xff]
      %v543 = vld [vmem:[%s288 + $0x454] sm:$0xff]
      %v544 = vld [vmem:[%s288 + $0x45c] sm:$0xff]
      %v545 = vld [vmem:[%s288 + $0x464] sm:$0xff]
      %v546 = vld [vmem:[%s288 + $0x46c] sm:$0xff]
      %v547 = vld [vmem:[%s288 + $0x474] sm:$0xf]
      %v548 = vld [vmem:[%s288 + $0x478] sm:$0xff]
      %v549 = vld [vmem:[%s288 + $0x480] sm:$0xff]
      %v550 = vld [vmem:[%s288 + $0x488] sm:$0xff]
      %v551 = vld [vmem:[%s288 + $0x490] sm:$0xff]
      %v552 = vld [vmem:[%s288 + $0x498] sm:$0xff]
      %v553 = vld [vmem:[%s288 + $0x4a0] sm:$0xf]
      %v554 = vld [vmem:[%s288 + $0x4a4] sm:$0xff]
      %v555 = vld [vmem:[%s288 + $0x4ac] sm:$0xff]
      %v556 = vld [vmem:[%s288 + $0x4b4] sm:$0xff]
      %v557 = vld [vmem:[%s288 + $0x4bc] sm:$0xff]
      %v558 = vld [vmem:[%s288 + $0x4c4] sm:$0xff]
      %v559 = vld [vmem:[%s288 + $0x4cc] sm:$0xf]
      %v560 = vld [vmem:[%s288 + $0x4d0] sm:$0xff]
      %v561 = vld [vmem:[%s288 + $0x4d8] sm:$0xff]
      %v562 = vld [vmem:[%s288 + $0x4e0] sm:$0xff]
      %v563 = vld [vmem:[%s288 + $0x4e8] sm:$0xff]
      %v564 = vld [vmem:[%s288 + $0x4f0] sm:$0xff]
      %v565 = vld [vmem:[%s288 + $0x4f8] sm:$0xf]
      %v566 = vld [vmem:[%s288 + $0x4fc] sm:$0xff]
      %v567 = vld [vmem:[%s288 + $0x504] sm:$0xff]
      %v568 = vld [vmem:[%s288 + $0x50c] sm:$0xff]
      %v569 = vld [vmem:[%s288 + $0x514] sm:$0xff]
      %v570 = vld [vmem:[%s288 + $0x51c] sm:$0xff]
      %v571 = vld [vmem:[%s288 + $0x524] sm:$0xf]
      %v572 = vld [vmem:[%s288 + $0x528] sm:$0xff]
      %v573 = vld [vmem:[%s288 + $0x530] sm:$0xff]
      %v574 = vld [vmem:[%s288 + $0x538] sm:$0xff]
      %v575 = vld [vmem:[%s288 + $0x540] sm:$0xff]
      %v576 = vld [vmem:[%s288 + $0x548] sm:$0xff]
      %v577 = vld [vmem:[%s288 + $0x550] sm:$0xf]
      %v578 = vld [vmem:[%s288 + $0x554] sm:$0xff]
      %v579 = vld [vmem:[%s288 + $0x55c] sm:$0xff]
      %v580 = vld [vmem:[%s288 + $0x564] sm:$0xff]
      %v581 = vld [vmem:[%s288 + $0x56c] sm:$0xff]
      %v582 = vld [vmem:[%s288 + $0x574] sm:$0xff]
      %v583 = vld [vmem:[%s288 + $0x57c] sm:$0xf]
      %v584 = vld [vmem:[%s302] sm:$0xf]
      %v585 = vld [vmem:[%s302 + $0x4] sm:$0xf]
      %v586 = vld [vmem:[%s302 + $0x8] sm:$0xf]
      %v587 = vld [vmem:[%s302 + $0xc] sm:$0xf]
      %v588 = vld [vmem:[%s302 + $0x10] sm:$0xf]
      %v589 = vld [vmem:[%s302 + $0x14] sm:$0xf]
      %v590 = vld [vmem:[%s302 + $0x18] sm:$0xf]
      %v591 = vld [vmem:[%s302 + $0x1c] sm:$0xf]
      %v592 = vld [vmem:[%s302 + $0x20] sm:$0xf]
      %v593 = vld [vmem:[%s302 + $0x24] sm:$0xf]
      %v594 = vld [vmem:[%s302 + $0x28] sm:$0xf]
      %v595 = vld [vmem:[%s302 + $0x2c] sm:$0xf]
      %v596 = vld [vmem:[%s302 + $0x30] sm:$0xf]
      %v597 = vld [vmem:[%s302 + $0x34] sm:$0xf]
      %v598 = vld [vmem:[%s302 + $0x38] sm:$0xf]
      %v599 = vld [vmem:[%s302 + $0x3c] sm:$0xf]
      %v600 = vld [vmem:[%s302 + $0x40] sm:$0xf]
      %v601 = vld [vmem:[%s302 + $0x44] sm:$0xf]
      %v602 = vld [vmem:[%s302 + $0x48] sm:$0xf]
      %v603 = vld [vmem:[%s302 + $0x4c] sm:$0xf]
      %v604 = vld [vmem:[%s302 + $0x50] sm:$0xf]
      %v605 = vld [vmem:[%s302 + $0x54] sm:$0xf]
      %v606 = vld [vmem:[%s302 + $0x58] sm:$0xf]
      %v607 = vld [vmem:[%s302 + $0x5c] sm:$0xf]
      %v608 = vld [vmem:[%s302 + $0x60] sm:$0xf]
      %v609 = vld [vmem:[%s302 + $0x64] sm:$0xf]
      %v610 = vld [vmem:[%s302 + $0x68] sm:$0xf]
      %v611 = vld [vmem:[%s302 + $0x6c] sm:$0xf]
      %v612 = vld [vmem:[%s302 + $0x70] sm:$0xf]
      %v613 = vld [vmem:[%s302 + $0x74] sm:$0xf]
      %v614 = vld [vmem:[%s302 + $0x78] sm:$0xf]
      %v615 = vld [vmem:[%s302 + $0x7c] sm:$0xf]
      %v616 = vld [vmem:[%s302 + $0x80] sm:$0xf]
      %v617 = vld [vmem:[%s302 + $0x84] sm:$0xf]
      %v618 = vld [vmem:[%s302 + $0x88] sm:$0xf]
      %v619 = vld [vmem:[%s302 + $0x8c] sm:$0xf]
      %v620 = vld [vmem:[%s302 + $0x90] sm:$0xf]
      %v621 = vld [vmem:[%s302 + $0x94] sm:$0xf]
      %v622 = vld [vmem:[%s302 + $0x98] sm:$0xf]
      %v623 = vld [vmem:[%s302 + $0x9c] sm:$0xf]
      %v624 = vld [vmem:[%s302 + $0xa0] sm:$0xf]
      %v625 = vld [vmem:[%s302 + $0xa4] sm:$0xf]
      %v626 = vld [vmem:[%s302 + $0xa8] sm:$0xf]
      %v627 = vld [vmem:[%s302 + $0xac] sm:$0xf]
      %v628 = vld [vmem:[%s302 + $0xb0] sm:$0xf]
      %v629 = vld [vmem:[%s302 + $0xb4] sm:$0xf]
      %v630 = vld [vmem:[%s302 + $0xb8] sm:$0xf]
      %v631 = vld [vmem:[%s302 + $0xbc] sm:$0xf]
      %v632 = vld [vmem:[%s302 + $0xc0] sm:$0xf]
      %v633 = vld [vmem:[%s302 + $0xc4] sm:$0xf]
      %v634 = vld [vmem:[%s302 + $0xc8] sm:$0xf]
      %v635 = vld [vmem:[%s302 + $0xcc] sm:$0xf]
      %v636 = vld [vmem:[%s302 + $0xd0] sm:$0xf]
      %v637 = vld [vmem:[%s302 + $0xd4] sm:$0xf]
      %v638 = vld [vmem:[%s302 + $0xd8] sm:$0xf]
      %v639 = vld [vmem:[%s302 + $0xdc] sm:$0xf]
      %v640 = vld [vmem:[%s302 + $0xe0] sm:$0xf]
      %v641 = vld [vmem:[%s302 + $0xe4] sm:$0xf]
      %v642 = vld [vmem:[%s302 + $0xe8] sm:$0xf]
      %v643 = vld [vmem:[%s302 + $0xec] sm:$0xf]
      %v644 = vld [vmem:[%s302 + $0xf0] sm:$0xf]
      %v645 = vld [vmem:[%s302 + $0xf4] sm:$0xf]
      %v646 = vld [vmem:[%s302 + $0xf8] sm:$0xf]
      %v647 = vld [vmem:[%s302 + $0xfc] sm:$0xf]
      %v648 = vld [vmem:[%s302 + $0x100] sm:$0xf]
      %v649 = vld [vmem:[%s302 + $0x104] sm:$0xf]
      %v650 = vld [vmem:[%s302 + $0x108] sm:$0xf]
      %v651 = vld [vmem:[%s302 + $0x10c] sm:$0xf]
      %v652 = vld [vmem:[%s302 + $0x110] sm:$0xf]
      %v653 = vld [vmem:[%s302 + $0x114] sm:$0xf]
      %v654 = vld [vmem:[%s302 + $0x118] sm:$0xf]
      %v655 = vld [vmem:[%s302 + $0x11c] sm:$0xf]
      %v656 = vld [vmem:[%s302 + $0x120] sm:$0xf]
      %v657 = vld [vmem:[%s302 + $0x124] sm:$0xf]
      %v658 = vld [vmem:[%s302 + $0x128] sm:$0xf]
      %v659 = vld [vmem:[%s302 + $0x12c] sm:$0xf]
      %v660 = vld [vmem:[%s302 + $0x130] sm:$0xf]
      %v661 = vld [vmem:[%s302 + $0x134] sm:$0xf]
      %v662 = vld [vmem:[%s302 + $0x138] sm:$0xf]
      %v663 = vld [vmem:[%s302 + $0x13c] sm:$0xf]
      %v664 = vld [vmem:[%s302 + $0x140] sm:$0xf]
      %v665 = vld [vmem:[%s302 + $0x144] sm:$0xf]
      %v666 = vld [vmem:[%s302 + $0x148] sm:$0xf]
      %v667 = vld [vmem:[%s302 + $0x14c] sm:$0xf]
      %v668 = vld [vmem:[%s302 + $0x150] sm:$0xf]
      %v669 = vld [vmem:[%s302 + $0x154] sm:$0xf]
      %v670 = vld [vmem:[%s302 + $0x158] sm:$0xf]
      %v671 = vld [vmem:[%s302 + $0x15c] sm:$0xf]
      %v672 = vld [vmem:[%s302 + $0x160] sm:$0xf]
      %v673 = vld [vmem:[%s302 + $0x164] sm:$0xf]
      %v674 = vld [vmem:[%s302 + $0x168] sm:$0xf]
      %v675 = vld [vmem:[%s302 + $0x16c] sm:$0xf]
      %v676 = vld [vmem:[%s302 + $0x170] sm:$0xf]
      %v677 = vld [vmem:[%s302 + $0x174] sm:$0xf]
      %v678 = vld [vmem:[%s302 + $0x178] sm:$0xf]
      %v679 = vld [vmem:[%s302 + $0x17c] sm:$0xf]
      %v680 = vld [vmem:[%s302 + $0x180] sm:$0xf]
      %v681 = vld [vmem:[%s302 + $0x184] sm:$0xf]
      %v682 = vld [vmem:[%s302 + $0x188] sm:$0xf]
      %v683 = vld [vmem:[%s302 + $0x18c] sm:$0xf]
      %v684 = vld [vmem:[%s302 + $0x190] sm:$0xf]
      %v685 = vld [vmem:[%s302 + $0x194] sm:$0xf]
      %v686 = vld [vmem:[%s302 + $0x198] sm:$0xf]
      %v687 = vld [vmem:[%s302 + $0x19c] sm:$0xf]
      %v688 = vld [vmem:[%s302 + $0x1a0] sm:$0xf]
      %v689 = vld [vmem:[%s302 + $0x1a4] sm:$0xf]
      %v690 = vld [vmem:[%s302 + $0x1a8] sm:$0xf]
      %v691 = vld [vmem:[%s302 + $0x1ac] sm:$0xf]
      %v692 = vld [vmem:[%s302 + $0x1b0] sm:$0xf]
      %v693 = vld [vmem:[%s302 + $0x1b4] sm:$0xf]
      %v694 = vld [vmem:[%s302 + $0x1b8] sm:$0xf]
      %v695 = vld [vmem:[%s302 + $0x1bc] sm:$0xf]
      %v696 = vld [vmem:[%s302 + $0x1c0] sm:$0xf]
      %v697 = vld [vmem:[%s302 + $0x1c4] sm:$0xf]
      %v698 = vld [vmem:[%s302 + $0x1c8] sm:$0xf]
      %v699 = vld [vmem:[%s302 + $0x1cc] sm:$0xf]
      %v700 = vld [vmem:[%s302 + $0x1d0] sm:$0xf]
      %v701 = vld [vmem:[%s302 + $0x1d4] sm:$0xf]
      %v702 = vld [vmem:[%s302 + $0x1d8] sm:$0xf]
      %v703 = vld [vmem:[%s302 + $0x1dc] sm:$0xf]
      %v704 = vld [vmem:[%s302 + $0x1e0] sm:$0xf]
      %v705 = vld [vmem:[%s302 + $0x1e4] sm:$0xf]
      %v706 = vld [vmem:[%s302 + $0x1e8] sm:$0xf]
      %v707 = vld [vmem:[%s302 + $0x1ec] sm:$0xf]
      %v708 = vld [vmem:[%s302 + $0x1f0] sm:$0xf]
      %v709 = vld [vmem:[%s302 + $0x1f4] sm:$0xf]
      %v710 = vld [vmem:[%s302 + $0x1f8] sm:$0xf]
      %v711 = vld [vmem:[%s302 + $0x1fc] sm:$0xf]
      %v712 = vld [vmem:[%s302 + $0x200] sm:$0xf]
      %v713 = vld [vmem:[%s302 + $0x204] sm:$0xf]
      %v714 = vld [vmem:[%s302 + $0x208] sm:$0xf]
      %v715 = vld [vmem:[%s302 + $0x20c] sm:$0xf]
      %v716 = vld [vmem:[%s302 + $0x210] sm:$0xf]
      %v717 = vld [vmem:[%s302 + $0x214] sm:$0xf]
      %v718 = vld [vmem:[%s302 + $0x218] sm:$0xf]
      %v719 = vld [vmem:[%s302 + $0x21c] sm:$0xf]
      %v720 = vld [vmem:[%s302 + $0x220] sm:$0xf]
      %v721 = vld [vmem:[%s302 + $0x224] sm:$0xf]
      %v722 = vld [vmem:[%s302 + $0x228] sm:$0xf]
      %v723 = vld [vmem:[%s302 + $0x22c] sm:$0xf]
      %v724 = vld [vmem:[%s302 + $0x230] sm:$0xf]
      %v725 = vld [vmem:[%s302 + $0x234] sm:$0xf]
      %v726 = vld [vmem:[%s302 + $0x238] sm:$0xf]
      %v727 = vld [vmem:[%s302 + $0x23c] sm:$0xf]
      %v728 = vld [vmem:[%s302 + $0x240] sm:$0xf]
      %v729 = vld [vmem:[%s302 + $0x244] sm:$0xf]
      %v730 = vld [vmem:[%s302 + $0x248] sm:$0xf]
      %v731 = vld [vmem:[%s302 + $0x24c] sm:$0xf]
      %v732 = vld [vmem:[%s302 + $0x250] sm:$0xf]
      %v733 = vld [vmem:[%s302 + $0x254] sm:$0xf]
      %v734 = vld [vmem:[%s302 + $0x258] sm:$0xf]
      %v735 = vld [vmem:[%s302 + $0x25c] sm:$0xf]
      %v736 = vld [vmem:[%s302 + $0x260] sm:$0xf]
      %v737 = vld [vmem:[%s302 + $0x264] sm:$0xf]
      %v738 = vld [vmem:[%s302 + $0x268] sm:$0xf]
      %v739 = vld [vmem:[%s302 + $0x26c] sm:$0xf]
      %v740 = vld [vmem:[%s302 + $0x270] sm:$0xf]
      %v741 = vld [vmem:[%s302 + $0x274] sm:$0xf]
      %v742 = vld [vmem:[%s302 + $0x278] sm:$0xf]
      %v743 = vld [vmem:[%s302 + $0x27c] sm:$0xf]
      %v744 = vld [vmem:[%s302 + $0x280] sm:$0xf]
      %v745 = vld [vmem:[%s302 + $0x284] sm:$0xf]
      %v746 = vld [vmem:[%s302 + $0x288] sm:$0xf]
      %v747 = vld [vmem:[%s302 + $0x28c] sm:$0xf]
      %v748 = vld [vmem:[%s302 + $0x290] sm:$0xf]
      %v749 = vld [vmem:[%s302 + $0x294] sm:$0xf]
      %v750 = vld [vmem:[%s302 + $0x298] sm:$0xf]
      %v751 = vld [vmem:[%s302 + $0x29c] sm:$0xf]
      %v752 = vld [vmem:[%s302 + $0x2a0] sm:$0xf]
      %v753 = vld [vmem:[%s302 + $0x2a4] sm:$0xf]
      %v754 = vld [vmem:[%s302 + $0x2a8] sm:$0xf]
      %v755 = vld [vmem:[%s302 + $0x2ac] sm:$0xf]
      %v756 = vld [vmem:[%s302 + $0x2b0] sm:$0xf]
      %v757 = vld [vmem:[%s302 + $0x2b4] sm:$0xf]
      %v758 = vld [vmem:[%s302 + $0x2b8] sm:$0xf]
      %v759 = vld [vmem:[%s302 + $0x2bc] sm:$0xf]
      %v952 = vunpack.c.l.b16 %v392
      %v953 = vunpack.c.h.b16 %v392
      %v954 = vunpack.c.l.b16 %v393
      %v955 = vunpack.c.h.b16 %v393
      %v956 = vunpack.c.l.b16 %v394
      %v957 = vunpack.c.h.b16 %v394
      %v958 = vunpack.c.l.b16 %v395
      %v959 = vunpack.c.h.b16 %v395
      %v960 = vunpack.c.l.b16 %v396
      %v961 = vunpack.c.h.b16 %v396
      %v962 = vunpack.c.l.b16 %v397
      %v963 = vunpack.c.l.b16 %v398
      %v964 = vunpack.c.h.b16 %v398
      %v965 = vunpack.c.l.b16 %v399
      %v966 = vunpack.c.h.b16 %v399
      %v967 = vunpack.c.l.b16 %v400
      %v968 = vunpack.c.h.b16 %v400
      %v969 = vunpack.c.l.b16 %v401
      %v970 = vunpack.c.h.b16 %v401
      %v971 = vunpack.c.l.b16 %v402
      %v972 = vunpack.c.h.b16 %v402
      %v973 = vunpack.c.l.b16 %v403
      %v974 = vunpack.c.l.b16 %v404
      %v975 = vunpack.c.h.b16 %v404
      %v976 = vunpack.c.l.b16 %v405
      %v977 = vunpack.c.h.b16 %v405
      %v978 = vunpack.c.l.b16 %v406
      %v979 = vunpack.c.h.b16 %v406
      %v980 = vunpack.c.l.b16 %v407
      %v981 = vunpack.c.h.b16 %v407
      %v982 = vunpack.c.l.b16 %v408
      %v983 = vunpack.c.h.b16 %v408
      %v984 = vunpack.c.l.b16 %v409
      %v985 = vunpack.c.l.b16 %v410
      %v986 = vunpack.c.h.b16 %v410
      %v987 = vunpack.c.l.b16 %v411
      %v988 = vunpack.c.h.b16 %v411
      %v989 = vunpack.c.l.b16 %v412
      %v990 = vunpack.c.h.b16 %v412
      %v991 = vunpack.c.l.b16 %v413
      %v992 = vunpack.c.h.b16 %v413
      %v993 = vunpack.c.l.b16 %v414
      %v994 = vunpack.c.h.b16 %v414
      %v995 = vunpack.c.l.b16 %v415
      %v996 = vunpack.c.l.b16 %v416
      %v997 = vunpack.c.h.b16 %v416
      %v998 = vunpack.c.l.b16 %v417
      %v999 = vunpack.c.h.b16 %v417
      %v1000 = vunpack.c.l.b16 %v418
      %v1001 = vunpack.c.h.b16 %v418
      %v1002 = vunpack.c.l.b16 %v419
      %v1003 = vunpack.c.h.b16 %v419
      %v1004 = vunpack.c.l.b16 %v420
      %v1005 = vunpack.c.h.b16 %v420
      %v1006 = vunpack.c.l.b16 %v421
      %v1007 = vunpack.c.l.b16 %v422
      %v1008 = vunpack.c.h.b16 %v422
      %v1009 = vunpack.c.l.b16 %v423
      %v1010 = vunpack.c.h.b16 %v423
      %v1011 = vunpack.c.l.b16 %v424
      %v1012 = vunpack.c.h.b16 %v424
      %v1013 = vunpack.c.l.b16 %v425
      %v1014 = vunpack.c.h.b16 %v425
      %v1015 = vunpack.c.l.b16 %v426
      %v1016 = vunpack.c.h.b16 %v426
      %v1017 = vunpack.c.l.b16 %v427
      %v1018 = vunpack.c.l.b16 %v428
      %v1019 = vunpack.c.h.b16 %v428
      %v1020 = vunpack.c.l.b16 %v429
      %v1021 = vunpack.c.h.b16 %v429
      %v1022 = vunpack.c.l.b16 %v430
      %v1023 = vunpack.c.h.b16 %v430
      %v1024 = vunpack.c.l.b16 %v431
      %v1025 = vunpack.c.h.b16 %v431
      %v1026 = vunpack.c.l.b16 %v432
      %v1027 = vunpack.c.h.b16 %v432
      %v1028 = vunpack.c.l.b16 %v433
      %v1029 = vunpack.c.l.b16 %v434
      %v1030 = vunpack.c.h.b16 %v434
      %v1031 = vunpack.c.l.b16 %v435
      %v1032 = vunpack.c.h.b16 %v435
      %v1033 = vunpack.c.l.b16 %v436
      %v1034 = vunpack.c.h.b16 %v436
      %v1035 = vunpack.c.l.b16 %v437
      %v1036 = vunpack.c.h.b16 %v437
      %v1037 = vunpack.c.l.b16 %v438
      %v1038 = vunpack.c.h.b16 %v438
      %v1039 = vunpack.c.l.b16 %v439
      %v1040 = vunpack.c.l.b16 %v440
      %v1041 = vunpack.c.h.b16 %v440
      %v1042 = vunpack.c.l.b16 %v441
      %v1043 = vunpack.c.h.b16 %v441
      %v1044 = vunpack.c.l.b16 %v442
      %v1045 = vunpack.c.h.b16 %v442
      %v1046 = vunpack.c.l.b16 %v443
      %v1047 = vunpack.c.h.b16 %v443
      %v1048 = vunpack.c.l.b16 %v444
      %v1049 = vunpack.c.h.b16 %v444
      %v1050 = vunpack.c.l.b16 %v445
      %v1051 = vunpack.c.l.b16 %v446
      %v1052 = vunpack.c.h.b16 %v446
      %v1053 = vunpack.c.l.b16 %v447
      %v1054 = vunpack.c.h.b16 %v447
      %v1055 = vunpack.c.l.b16 %v448
      %v1056 = vunpack.c.h.b16 %v448
      %v1057 = vunpack.c.l.b16 %v449
      %v1058 = vunpack.c.h.b16 %v449
      %v1059 = vunpack.c.l.b16 %v450
      %v1060 = vunpack.c.h.b16 %v450
      %v1061 = vunpack.c.l.b16 %v451
      %v1062 = vunpack.c.l.b16 %v452
      %v1063 = vunpack.c.h.b16 %v452
      %v1064 = vunpack.c.l.b16 %v453
      %v1065 = vunpack.c.h.b16 %v453
      %v1066 = vunpack.c.l.b16 %v454
      %v1067 = vunpack.c.h.b16 %v454
      %v1068 = vunpack.c.l.b16 %v455
      %v1069 = vunpack.c.h.b16 %v455
      %v1070 = vunpack.c.l.b16 %v456
      %v1071 = vunpack.c.h.b16 %v456
      %v1072 = vunpack.c.l.b16 %v457
      %v1073 = vunpack.c.l.b16 %v458
      %v1074 = vunpack.c.h.b16 %v458
      %v1075 = vunpack.c.l.b16 %v459
      %v1076 = vunpack.c.h.b16 %v459
      %v1077 = vunpack.c.l.b16 %v460
      %v1078 = vunpack.c.h.b16 %v460
      %v1079 = vunpack.c.l.b16 %v461
      %v1080 = vunpack.c.h.b16 %v461
      %v1081 = vunpack.c.l.b16 %v462
      %v1082 = vunpack.c.h.b16 %v462
      %v1083 = vunpack.c.l.b16 %v463
      %v1084 = vunpack.c.l.b16 %v464
      %v1085 = vunpack.c.h.b16 %v464
      %v1086 = vunpack.c.l.b16 %v465
      %v1087 = vunpack.c.h.b16 %v465
      %v1088 = vunpack.c.l.b16 %v466
      %v1089 = vunpack.c.h.b16 %v466
      %v1090 = vunpack.c.l.b16 %v467
      %v1091 = vunpack.c.h.b16 %v467
      %v1092 = vunpack.c.l.b16 %v468
      %v1093 = vunpack.c.h.b16 %v468
      %v1094 = vunpack.c.l.b16 %v469
      %v1095 = vunpack.c.l.b16 %v470
      %v1096 = vunpack.c.h.b16 %v470
      %v1097 = vunpack.c.l.b16 %v471
      %v1098 = vunpack.c.h.b16 %v471
      %v1099 = vunpack.c.l.b16 %v472
      %v1100 = vunpack.c.h.b16 %v472
      %v1101 = vunpack.c.l.b16 %v473
      %v1102 = vunpack.c.h.b16 %v473
      %v1103 = vunpack.c.l.b16 %v474
      %v1104 = vunpack.c.h.b16 %v474
      %v1105 = vunpack.c.l.b16 %v475
      %v1106 = vunpack.c.l.b16 %v476
      %v1107 = vunpack.c.h.b16 %v476
      %v1108 = vunpack.c.l.b16 %v477
      %v1109 = vunpack.c.h.b16 %v477
      %v1110 = vunpack.c.l.b16 %v478
      %v1111 = vunpack.c.h.b16 %v478
      %v1112 = vunpack.c.l.b16 %v479
      %v1113 = vunpack.c.h.b16 %v479
      %v1114 = vunpack.c.l.b16 %v480
      %v1115 = vunpack.c.h.b16 %v480
      %v1116 = vunpack.c.l.b16 %v481
      %v1117 = vunpack.c.l.b16 %v482
      %v1118 = vunpack.c.h.b16 %v482
      %v1119 = vunpack.c.l.b16 %v483
      %v1120 = vunpack.c.h.b16 %v483
      %v1121 = vunpack.c.l.b16 %v484
      %v1122 = vunpack.c.h.b16 %v484
      %v1123 = vunpack.c.l.b16 %v485
      %v1124 = vunpack.c.h.b16 %v485
      %v1125 = vunpack.c.l.b16 %v486
      %v1126 = vunpack.c.h.b16 %v486
      %v1127 = vunpack.c.l.b16 %v487
      %v1128 = vunpack.c.l.b16 %v488
      %v1129 = vunpack.c.h.b16 %v488
      %v1130 = vunpack.c.l.b16 %v489
      %v1131 = vunpack.c.h.b16 %v489
      %v1132 = vunpack.c.l.b16 %v490
      %v1133 = vunpack.c.h.b16 %v490
      %v1134 = vunpack.c.l.b16 %v491
      %v1135 = vunpack.c.h.b16 %v491
      %v1136 = vunpack.c.l.b16 %v492
      %v1137 = vunpack.c.h.b16 %v492
      %v1138 = vunpack.c.l.b16 %v493
      %v1139 = vunpack.c.l.b16 %v494
      %v1140 = vunpack.c.h.b16 %v494
      %v1141 = vunpack.c.l.b16 %v495
      %v1142 = vunpack.c.h.b16 %v495
      %v1143 = vunpack.c.l.b16 %v496
      %v1144 = vunpack.c.h.b16 %v496
      %v1145 = vunpack.c.l.b16 %v497
      %v1146 = vunpack.c.h.b16 %v497
      %v1147 = vunpack.c.l.b16 %v498
      %v1148 = vunpack.c.h.b16 %v498
      %v1149 = vunpack.c.l.b16 %v499
      %v1150 = vunpack.c.l.b16 %v500
      %v1151 = vunpack.c.h.b16 %v500
      %v1152 = vunpack.c.l.b16 %v501
      %v1153 = vunpack.c.h.b16 %v501
      %v1154 = vunpack.c.l.b16 %v502
      %v1155 = vunpack.c.h.b16 %v502
      %v1156 = vunpack.c.l.b16 %v503
      %v1157 = vunpack.c.h.b16 %v503
      %v1158 = vunpack.c.l.b16 %v504
      %v1159 = vunpack.c.h.b16 %v504
      %v1160 = vunpack.c.l.b16 %v505
      %v1161 = vunpack.c.l.b16 %v506
      %v1162 = vunpack.c.h.b16 %v506
      %v1163 = vunpack.c.l.b16 %v507
      %v1164 = vunpack.c.h.b16 %v507
      %v1165 = vunpack.c.l.b16 %v508
      %v1166 = vunpack.c.h.b16 %v508
      %v1167 = vunpack.c.l.b16 %v509
      %v1168 = vunpack.c.h.b16 %v509
      %v1169 = vunpack.c.l.b16 %v510
      %v1170 = vunpack.c.h.b16 %v510
      %v1171 = vunpack.c.l.b16 %v511
      %v1172 = vunpack.c.l.b16 %v512
      %v1173 = vunpack.c.h.b16 %v512
      %v1174 = vunpack.c.l.b16 %v513
      %v1175 = vunpack.c.h.b16 %v513
      %v1176 = vunpack.c.l.b16 %v514
      %v1177 = vunpack.c.h.b16 %v514
      %v1178 = vunpack.c.l.b16 %v515
      %v1179 = vunpack.c.h.b16 %v515
      %v1180 = vunpack.c.l.b16 %v516
      %v1181 = vunpack.c.h.b16 %v516
      %v1182 = vunpack.c.l.b16 %v517
      %v1183 = vunpack.c.l.b16 %v518
      %v1184 = vunpack.c.h.b16 %v518
      %v1185 = vunpack.c.l.b16 %v519
      %v1186 = vunpack.c.h.b16 %v519
      %v1187 = vunpack.c.l.b16 %v520
      %v1188 = vunpack.c.h.b16 %v520
      %v1189 = vunpack.c.l.b16 %v521
      %v1190 = vunpack.c.h.b16 %v521
      %v1191 = vunpack.c.l.b16 %v522
      %v1192 = vunpack.c.h.b16 %v522
      %v1193 = vunpack.c.l.b16 %v523
      %v1194 = vunpack.c.l.b16 %v524
      %v1195 = vunpack.c.h.b16 %v524
      %v1196 = vunpack.c.l.b16 %v525
      %v1197 = vunpack.c.h.b16 %v525
      %v1198 = vunpack.c.l.b16 %v526
      %v1199 = vunpack.c.h.b16 %v526
      %v1200 = vunpack.c.l.b16 %v527
      %v1201 = vunpack.c.h.b16 %v527
      %v1202 = vunpack.c.l.b16 %v528
      %v1203 = vunpack.c.h.b16 %v528
      %v1204 = vunpack.c.l.b16 %v529
      %v1205 = vunpack.c.l.b16 %v530
      %v1206 = vunpack.c.h.b16 %v530
      %v1207 = vunpack.c.l.b16 %v531
      %v1208 = vunpack.c.h.b16 %v531
      %v1209 = vunpack.c.l.b16 %v532
      %v1210 = vunpack.c.h.b16 %v532
      %v1211 = vunpack.c.l.b16 %v533
      %v1212 = vunpack.c.h.b16 %v533
      %v1213 = vunpack.c.l.b16 %v534
      %v1214 = vunpack.c.h.b16 %v534
      %v1215 = vunpack.c.l.b16 %v535
      %v1216 = vunpack.c.l.b16 %v536
      %v1217 = vunpack.c.h.b16 %v536
      %v1218 = vunpack.c.l.b16 %v537
      %v1219 = vunpack.c.h.b16 %v537
      %v1220 = vunpack.c.l.b16 %v538
      %v1221 = vunpack.c.h.b16 %v538
      %v1222 = vunpack.c.l.b16 %v539
      %v1223 = vunpack.c.h.b16 %v539
      %v1224 = vunpack.c.l.b16 %v540
      %v1225 = vunpack.c.h.b16 %v540
      %v1226 = vunpack.c.l.b16 %v541
      %v1227 = vunpack.c.l.b16 %v542
      %v1228 = vunpack.c.h.b16 %v542
      %v1229 = vunpack.c.l.b16 %v543
      %v1230 = vunpack.c.h.b16 %v543
      %v1231 = vunpack.c.l.b16 %v544
      %v1232 = vunpack.c.h.b16 %v544
      %v1233 = vunpack.c.l.b16 %v545
      %v1234 = vunpack.c.h.b16 %v545
      %v1235 = vunpack.c.l.b16 %v546
      %v1236 = vunpack.c.h.b16 %v546
      %v1237 = vunpack.c.l.b16 %v547
      %v1238 = vunpack.c.l.b16 %v548
      %v1239 = vunpack.c.h.b16 %v548
      %v1240 = vunpack.c.l.b16 %v549
      %v1241 = vunpack.c.h.b16 %v549
      %v1242 = vunpack.c.l.b16 %v550
      %v1243 = vunpack.c.h.b16 %v550
      %v1244 = vunpack.c.l.b16 %v551
      %v1245 = vunpack.c.h.b16 %v551
      %v1246 = vunpack.c.l.b16 %v552
      %v1247 = vunpack.c.h.b16 %v552
      %v1248 = vunpack.c.l.b16 %v553
      %v1249 = vunpack.c.l.b16 %v554
      %v1250 = vunpack.c.h.b16 %v554
      %v1251 = vunpack.c.l.b16 %v555
      %v1252 = vunpack.c.h.b16 %v555
      %v1253 = vunpack.c.l.b16 %v556
      %v1254 = vunpack.c.h.b16 %v556
      %v1255 = vunpack.c.l.b16 %v557
      %v1256 = vunpack.c.h.b16 %v557
      %v1257 = vunpack.c.l.b16 %v558
      %v1258 = vunpack.c.h.b16 %v558
      %v1259 = vunpack.c.l.b16 %v559
      %v1260 = vunpack.c.l.b16 %v560
      %v1261 = vunpack.c.h.b16 %v560
      %v1262 = vunpack.c.l.b16 %v561
      %v1263 = vunpack.c.h.b16 %v561
      %v1264 = vunpack.c.l.b16 %v562
      %v1265 = vunpack.c.h.b16 %v562
      %v1266 = vunpack.c.l.b16 %v563
      %v1267 = vunpack.c.h.b16 %v563
      %v1268 = vunpack.c.l.b16 %v564
      %v1269 = vunpack.c.h.b16 %v564
      %v1270 = vunpack.c.l.b16 %v565
      %v1271 = vunpack.c.l.b16 %v566
      %v1272 = vunpack.c.h.b16 %v566
      %v1273 = vunpack.c.l.b16 %v567
      %v1274 = vunpack.c.h.b16 %v567
      %v1275 = vunpack.c.l.b16 %v568
      %v1276 = vunpack.c.h.b16 %v568
      %v1277 = vunpack.c.l.b16 %v569
      %v1278 = vunpack.c.h.b16 %v569
      %v1279 = vunpack.c.l.b16 %v570
      %v1280 = vunpack.c.h.b16 %v570
      %v1281 = vunpack.c.l.b16 %v571
      %v1282 = vunpack.c.l.b16 %v572
      %v1283 = vunpack.c.h.b16 %v572
      %v1284 = vunpack.c.l.b16 %v573
      %v1285 = vunpack.c.h.b16 %v573
      %v1286 = vunpack.c.l.b16 %v574
      %v1287 = vunpack.c.h.b16 %v574
      %v1288 = vunpack.c.l.b16 %v575
      %v1289 = vunpack.c.h.b16 %v575
      %v1290 = vunpack.c.l.b16 %v576
      %v1291 = vunpack.c.h.b16 %v576
      %v1292 = vunpack.c.l.b16 %v577
      %v1293 = vunpack.c.l.b16 %v578
      %v1294 = vunpack.c.h.b16 %v578
      %v1295 = vunpack.c.l.b16 %v579
      %v1296 = vunpack.c.h.b16 %v579
      %v1297 = vunpack.c.l.b16 %v580
      %v1298 = vunpack.c.h.b16 %v580
      %v1299 = vunpack.c.l.b16 %v581
      %v1300 = vunpack.c.h.b16 %v581
      %v1301 = vunpack.c.l.b16 %v582
      %v1302 = vunpack.c.h.b16 %v582
      %v1303 = vunpack.c.l.b16 %v583
      %v1304 = vpack.c.b16 %v963, %v952
      %v1305 = vpack.c.b16 %v964, %v953
      %v1306 = vpack.c.b16 %v965, %v954
      %v1307 = vpack.c.b16 %v966, %v955
      %v1308 = vpack.c.b16 %v967, %v956
      %v1309 = vpack.c.b16 %v968, %v957
      %v1310 = vpack.c.b16 %v969, %v958
      %v1311 = vpack.c.b16 %v970, %v959
      %v1312 = vpack.c.b16 %v971, %v960
      %v1313 = vpack.c.b16 %v972, %v961
      %v1314 = vpack.c.b16 %v973, %v962
      %v1315 = vpack.c.b16 %v985, %v974
      %v1316 = vpack.c.b16 %v986, %v975
      %v1317 = vpack.c.b16 %v987, %v976
      %v1318 = vpack.c.b16 %v988, %v977
      %v1319 = vpack.c.b16 %v989, %v978
      %v1320 = vpack.c.b16 %v990, %v979
      %v1321 = vpack.c.b16 %v991, %v980
      %v1322 = vpack.c.b16 %v992, %v981
      %v1323 = vpack.c.b16 %v993, %v982
      %v1324 = vpack.c.b16 %v994, %v983
      %v1325 = vpack.c.b16 %v995, %v984
      %v1326 = vpack.c.b16 %v1007, %v996
      %v1327 = vpack.c.b16 %v1008, %v997
      %v1328 = vpack.c.b16 %v1009, %v998
      %v1329 = vpack.c.b16 %v1010, %v999
      %v1330 = vpack.c.b16 %v1011, %v1000
      %v1331 = vpack.c.b16 %v1012, %v1001
      %v1332 = vpack.c.b16 %v1013, %v1002
      %v1333 = vpack.c.b16 %v1014, %v1003
      %v1334 = vpack.c.b16 %v1015, %v1004
      %v1335 = vpack.c.b16 %v1016, %v1005
      %v1336 = vpack.c.b16 %v1017, %v1006
      %v1337 = vpack.c.b16 %v1029, %v1018
      %v1338 = vpack.c.b16 %v1030, %v1019
      %v1339 = vpack.c.b16 %v1031, %v1020
      %v1340 = vpack.c.b16 %v1032, %v1021
      %v1341 = vpack.c.b16 %v1033, %v1022
      %v1342 = vpack.c.b16 %v1034, %v1023
      %v1343 = vpack.c.b16 %v1035, %v1024
      %v1344 = vpack.c.b16 %v1036, %v1025
      %v1345 = vpack.c.b16 %v1037, %v1026
      %v1346 = vpack.c.b16 %v1038, %v1027
      %v1347 = vpack.c.b16 %v1039, %v1028
      %v1348 = vpack.c.b16 %v1051, %v1040
      %v1349 = vpack.c.b16 %v1052, %v1041
      %v1350 = vpack.c.b16 %v1053, %v1042
      %v1351 = vpack.c.b16 %v1054, %v1043
      %v1352 = vpack.c.b16 %v1055, %v1044
      %v1353 = vpack.c.b16 %v1056, %v1045
      %v1354 = vpack.c.b16 %v1057, %v1046
      %v1355 = vpack.c.b16 %v1058, %v1047
      %v1356 = vpack.c.b16 %v1059, %v1048
      %v1357 = vpack.c.b16 %v1060, %v1049
      %v1358 = vpack.c.b16 %v1061, %v1050
      %v1359 = vpack.c.b16 %v1073, %v1062
      %v1360 = vpack.c.b16 %v1074, %v1063
      %v1361 = vpack.c.b16 %v1075, %v1064
      %v1362 = vpack.c.b16 %v1076, %v1065
      %v1363 = vpack.c.b16 %v1077, %v1066
      %v1364 = vpack.c.b16 %v1078, %v1067
      %v1365 = vpack.c.b16 %v1079, %v1068
      %v1366 = vpack.c.b16 %v1080, %v1069
      %v1367 = vpack.c.b16 %v1081, %v1070
      %v1368 = vpack.c.b16 %v1082, %v1071
      %v1369 = vpack.c.b16 %v1083, %v1072
      %v1370 = vpack.c.b16 %v1095, %v1084
      %v1371 = vpack.c.b16 %v1096, %v1085
      %v1372 = vpack.c.b16 %v1097, %v1086
      %v1373 = vpack.c.b16 %v1098, %v1087
      %v1374 = vpack.c.b16 %v1099, %v1088
      %v1375 = vpack.c.b16 %v1100, %v1089
      %v1376 = vpack.c.b16 %v1101, %v1090
      %v1377 = vpack.c.b16 %v1102, %v1091
      %v1378 = vpack.c.b16 %v1103, %v1092
      %v1379 = vpack.c.b16 %v1104, %v1093
      %v1380 = vpack.c.b16 %v1105, %v1094
      %v1381 = vpack.c.b16 %v1117, %v1106
      %v1382 = vpack.c.b16 %v1118, %v1107
      %v1383 = vpack.c.b16 %v1119, %v1108
      %v1384 = vpack.c.b16 %v1120, %v1109
      %v1385 = vpack.c.b16 %v1121, %v1110
      %v1386 = vpack.c.b16 %v1122, %v1111
      %v1387 = vpack.c.b16 %v1123, %v1112
      %v1388 = vpack.c.b16 %v1124, %v1113
      %v1389 = vpack.c.b16 %v1125, %v1114
      %v1390 = vpack.c.b16 %v1126, %v1115
      %v1391 = vpack.c.b16 %v1127, %v1116
      %v1392 = vpack.c.b16 %v1139, %v1128
      %v1393 = vpack.c.b16 %v1140, %v1129
      %v1394 = vpack.c.b16 %v1141, %v1130
      %v1395 = vpack.c.b16 %v1142, %v1131
      %v1396 = vpack.c.b16 %v1143, %v1132
      %v1397 = vpack.c.b16 %v1144, %v1133
      %v1398 = vpack.c.b16 %v1145, %v1134
      %v1399 = vpack.c.b16 %v1146, %v1135
      %v1400 = vpack.c.b16 %v1147, %v1136
      %v1401 = vpack.c.b16 %v1148, %v1137
      %v1402 = vpack.c.b16 %v1149, %v1138
      %v1403 = vpack.c.b16 %v1161, %v1150
      %v1404 = vpack.c.b16 %v1162, %v1151
      %v1405 = vpack.c.b16 %v1163, %v1152
      %v1406 = vpack.c.b16 %v1164, %v1153
      %v1407 = vpack.c.b16 %v1165, %v1154
      %v1408 = vpack.c.b16 %v1166, %v1155
      %v1409 = vpack.c.b16 %v1167, %v1156
      %v1410 = vpack.c.b16 %v1168, %v1157
      %v1411 = vpack.c.b16 %v1169, %v1158
      %v1412 = vpack.c.b16 %v1170, %v1159
      %v1413 = vpack.c.b16 %v1171, %v1160
      %v1414 = vpack.c.b16 %v1183, %v1172
      %v1415 = vpack.c.b16 %v1184, %v1173
      %v1416 = vpack.c.b16 %v1185, %v1174
      %v1417 = vpack.c.b16 %v1186, %v1175
      %v1418 = vpack.c.b16 %v1187, %v1176
      %v1419 = vpack.c.b16 %v1188, %v1177
      %v1420 = vpack.c.b16 %v1189, %v1178
      %v1421 = vpack.c.b16 %v1190, %v1179
      %v1422 = vpack.c.b16 %v1191, %v1180
      %v1423 = vpack.c.b16 %v1192, %v1181
      %v1424 = vpack.c.b16 %v1193, %v1182
      %v1425 = vpack.c.b16 %v1205, %v1194
      %v1426 = vpack.c.b16 %v1206, %v1195
      %v1427 = vpack.c.b16 %v1207, %v1196
      %v1428 = vpack.c.b16 %v1208, %v1197
      %v1429 = vpack.c.b16 %v1209, %v1198
      %v1430 = vpack.c.b16 %v1210, %v1199
      %v1431 = vpack.c.b16 %v1211, %v1200
      %v1432 = vpack.c.b16 %v1212, %v1201
      %v1433 = vpack.c.b16 %v1213, %v1202
      %v1434 = vpack.c.b16 %v1214, %v1203
      %v1435 = vpack.c.b16 %v1215, %v1204
      %v1436 = vpack.c.b16 %v1227, %v1216
      %v1437 = vpack.c.b16 %v1228, %v1217
      %v1438 = vpack.c.b16 %v1229, %v1218
      %v1439 = vpack.c.b16 %v1230, %v1219
      %v1440 = vpack.c.b16 %v1231, %v1220
      %v1441 = vpack.c.b16 %v1232, %v1221
      %v1442 = vpack.c.b16 %v1233, %v1222
      %v1443 = vpack.c.b16 %v1234, %v1223
      %v1444 = vpack.c.b16 %v1235, %v1224
      %v1445 = vpack.c.b16 %v1236, %v1225
      %v1446 = vpack.c.b16 %v1237, %v1226
      %v1447 = vpack.c.b16 %v1249, %v1238
      %v1448 = vpack.c.b16 %v1250, %v1239
      %v1449 = vpack.c.b16 %v1251, %v1240
      %v1450 = vpack.c.b16 %v1252, %v1241
      %v1451 = vpack.c.b16 %v1253, %v1242
      %v1452 = vpack.c.b16 %v1254, %v1243
      %v1453 = vpack.c.b16 %v1255, %v1244
      %v1454 = vpack.c.b16 %v1256, %v1245
      %v1455 = vpack.c.b16 %v1257, %v1246
      %v1456 = vpack.c.b16 %v1258, %v1247
      %v1457 = vpack.c.b16 %v1259, %v1248
      %v1458 = vpack.c.b16 %v1271, %v1260
      %v1459 = vpack.c.b16 %v1272, %v1261
      %v1460 = vpack.c.b16 %v1273, %v1262
      %v1461 = vpack.c.b16 %v1274, %v1263
      %v1462 = vpack.c.b16 %v1275, %v1264
      %v1463 = vpack.c.b16 %v1276, %v1265
      %v1464 = vpack.c.b16 %v1277, %v1266
      %v1465 = vpack.c.b16 %v1278, %v1267
      %v1466 = vpack.c.b16 %v1279, %v1268
      %v1467 = vpack.c.b16 %v1280, %v1269
      %v1468 = vpack.c.b16 %v1281, %v1270
      %v1469 = vpack.c.b16 %v1293, %v1282
      %v1470 = vpack.c.b16 %v1294, %v1283
      %v1471 = vpack.c.b16 %v1295, %v1284
      %v1472 = vpack.c.b16 %v1296, %v1285
      %v1473 = vpack.c.b16 %v1297, %v1286
      %v1474 = vpack.c.b16 %v1298, %v1287
      %v1475 = vpack.c.b16 %v1299, %v1288
      %v1476 = vpack.c.b16 %v1300, %v1289
      %v1477 = vpack.c.b16 %v1301, %v1290
      %v1478 = vpack.c.b16 %v1302, %v1291
      %v1479 = vpack.c.b16 %v1303, %v1292
      %v1832 = vunpack.c.l.b16 %v584
      %v1833 = vunpack.c.l.b16 %v585
      %v1834 = vunpack.c.l.b16 %v586
      %v1835 = vunpack.c.l.b16 %v587
      %v1836 = vunpack.c.l.b16 %v588
      %v1837 = vunpack.c.l.b16 %v589
      %v1838 = vunpack.c.l.b16 %v590
      %v1839 = vunpack.c.l.b16 %v591
      %v1840 = vunpack.c.l.b16 %v592
      %v1841 = vunpack.c.l.b16 %v593
      %v1842 = vunpack.c.l.b16 %v594
      %v1843 = vunpack.c.l.b16 %v595
      %v1844 = vunpack.c.l.b16 %v596
      %v1845 = vunpack.c.l.b16 %v597
      %v1846 = vunpack.c.l.b16 %v598
      %v1847 = vunpack.c.l.b16 %v599
      %v1848 = vunpack.c.l.b16 %v600
      %v1849 = vunpack.c.l.b16 %v601
      %v1850 = vunpack.c.l.b16 %v602
      %v1851 = vunpack.c.l.b16 %v603
      %v1852 = vunpack.c.l.b16 %v604
      %v1853 = vunpack.c.l.b16 %v605
      %v1854 = vunpack.c.l.b16 %v606
      %v1855 = vunpack.c.l.b16 %v607
      %v1856 = vunpack.c.l.b16 %v608
      %v1857 = vunpack.c.l.b16 %v609
      %v1858 = vunpack.c.l.b16 %v610
      %v1859 = vunpack.c.l.b16 %v611
      %v1860 = vunpack.c.l.b16 %v612
      %v1861 = vunpack.c.l.b16 %v613
      %v1862 = vunpack.c.l.b16 %v614
      %v1863 = vunpack.c.l.b16 %v615
      %v1864 = vunpack.c.l.b16 %v616
      %v1865 = vunpack.c.l.b16 %v617
      %v1866 = vunpack.c.l.b16 %v618
      %v1867 = vunpack.c.l.b16 %v619
      %v1868 = vunpack.c.l.b16 %v620
      %v1869 = vunpack.c.l.b16 %v621
      %v1870 = vunpack.c.l.b16 %v622
      %v1871 = vunpack.c.l.b16 %v623
      %v1872 = vunpack.c.l.b16 %v624
      %v1873 = vunpack.c.l.b16 %v625
      %v1874 = vunpack.c.l.b16 %v626
      %v1875 = vunpack.c.l.b16 %v627
      %v1876 = vunpack.c.l.b16 %v628
      %v1877 = vunpack.c.l.b16 %v629
      %v1878 = vunpack.c.l.b16 %v630
      %v1879 = vunpack.c.l.b16 %v631
      %v1880 = vunpack.c.l.b16 %v632
      %v1881 = vunpack.c.l.b16 %v633
      %v1882 = vunpack.c.l.b16 %v634
      %v1883 = vunpack.c.l.b16 %v635
      %v1884 = vunpack.c.l.b16 %v636
      %v1885 = vunpack.c.l.b16 %v637
      %v1886 = vunpack.c.l.b16 %v638
      %v1887 = vunpack.c.l.b16 %v639
      %v1888 = vunpack.c.l.b16 %v640
      %v1889 = vunpack.c.l.b16 %v641
      %v1890 = vunpack.c.l.b16 %v642
      %v1891 = vunpack.c.l.b16 %v643
      %v1892 = vunpack.c.l.b16 %v644
      %v1893 = vunpack.c.l.b16 %v645
      %v1894 = vunpack.c.l.b16 %v646
      %v1895 = vunpack.c.l.b16 %v647
      %v1896 = vunpack.c.l.b16 %v648
      %v1897 = vunpack.c.l.b16 %v649
      %v1898 = vunpack.c.l.b16 %v650
      %v1899 = vunpack.c.l.b16 %v651
      %v1900 = vunpack.c.l.b16 %v652
      %v1901 = vunpack.c.l.b16 %v653
      %v1902 = vunpack.c.l.b16 %v654
      %v1903 = vunpack.c.l.b16 %v655
      %v1904 = vunpack.c.l.b16 %v656
      %v1905 = vunpack.c.l.b16 %v657
      %v1906 = vunpack.c.l.b16 %v658
      %v1907 = vunpack.c.l.b16 %v659
      %v1908 = vunpack.c.l.b16 %v660
      %v1909 = vunpack.c.l.b16 %v661
      %v1910 = vunpack.c.l.b16 %v662
      %v1911 = vunpack.c.l.b16 %v663
      %v1912 = vunpack.c.l.b16 %v664
      %v1913 = vunpack.c.l.b16 %v665
      %v1914 = vunpack.c.l.b16 %v666
      %v1915 = vunpack.c.l.b16 %v667
      %v1916 = vunpack.c.l.b16 %v668
      %v1917 = vunpack.c.l.b16 %v669
      %v1918 = vunpack.c.l.b16 %v670
      %v1919 = vunpack.c.l.b16 %v671
      %v1920 = vunpack.c.l.b16 %v672
      %v1921 = vunpack.c.l.b16 %v673
      %v1922 = vunpack.c.l.b16 %v674
      %v1923 = vunpack.c.l.b16 %v675
      %v1924 = vunpack.c.l.b16 %v676
      %v1925 = vunpack.c.l.b16 %v677
      %v1926 = vunpack.c.l.b16 %v678
      %v1927 = vunpack.c.l.b16 %v679
      %v1928 = vunpack.c.l.b16 %v680
      %v1929 = vunpack.c.l.b16 %v681
      %v1930 = vunpack.c.l.b16 %v682
      %v1931 = vunpack.c.l.b16 %v683
      %v1932 = vunpack.c.l.b16 %v684
      %v1933 = vunpack.c.l.b16 %v685
      %v1934 = vunpack.c.l.b16 %v686
      %v1935 = vunpack.c.l.b16 %v687
      %v1936 = vunpack.c.l.b16 %v688
      %v1937 = vunpack.c.l.b16 %v689
      %v1938 = vunpack.c.l.b16 %v690
      %v1939 = vunpack.c.l.b16 %v691
      %v1940 = vunpack.c.l.b16 %v692
      %v1941 = vunpack.c.l.b16 %v693
      %v1942 = vunpack.c.l.b16 %v694
      %v1943 = vunpack.c.l.b16 %v695
      %v1944 = vunpack.c.l.b16 %v696
      %v1945 = vunpack.c.l.b16 %v697
      %v1946 = vunpack.c.l.b16 %v698
      %v1947 = vunpack.c.l.b16 %v699
      %v1948 = vunpack.c.l.b16 %v700
      %v1949 = vunpack.c.l.b16 %v701
      %v1950 = vunpack.c.l.b16 %v702
      %v1951 = vunpack.c.l.b16 %v703
      %v1952 = vunpack.c.l.b16 %v704
      %v1953 = vunpack.c.l.b16 %v705
      %v1954 = vunpack.c.l.b16 %v706
      %v1955 = vunpack.c.l.b16 %v707
      %v1956 = vunpack.c.l.b16 %v708
      %v1957 = vunpack.c.l.b16 %v709
      %v1958 = vunpack.c.l.b16 %v710
      %v1959 = vunpack.c.l.b16 %v711
      %v1960 = vunpack.c.l.b16 %v712
      %v1961 = vunpack.c.l.b16 %v713
      %v1962 = vunpack.c.l.b16 %v714
      %v1963 = vunpack.c.l.b16 %v715
      %v1964 = vunpack.c.l.b16 %v716
      %v1965 = vunpack.c.l.b16 %v717
      %v1966 = vunpack.c.l.b16 %v718
      %v1967 = vunpack.c.l.b16 %v719
      %v1968 = vunpack.c.l.b16 %v720
      %v1969 = vunpack.c.l.b16 %v721
      %v1970 = vunpack.c.l.b16 %v722
      %v1971 = vunpack.c.l.b16 %v723
      %v1972 = vunpack.c.l.b16 %v724
      %v1973 = vunpack.c.l.b16 %v725
      %v1974 = vunpack.c.l.b16 %v726
      %v1975 = vunpack.c.l.b16 %v727
      %v1976 = vunpack.c.l.b16 %v728
      %v1977 = vunpack.c.l.b16 %v729
      %v1978 = vunpack.c.l.b16 %v730
      %v1979 = vunpack.c.l.b16 %v731
      %v1980 = vunpack.c.l.b16 %v732
      %v1981 = vunpack.c.l.b16 %v733
      %v1982 = vunpack.c.l.b16 %v734
      %v1983 = vunpack.c.l.b16 %v735
      %v1984 = vunpack.c.l.b16 %v736
      %v1985 = vunpack.c.l.b16 %v737
      %v1986 = vunpack.c.l.b16 %v738
      %v1987 = vunpack.c.l.b16 %v739
      %v1988 = vunpack.c.l.b16 %v740
      %v1989 = vunpack.c.l.b16 %v741
      %v1990 = vunpack.c.l.b16 %v742
      %v1991 = vunpack.c.l.b16 %v743
      %v1992 = vunpack.c.l.b16 %v744
      %v1993 = vunpack.c.l.b16 %v745
      %v1994 = vunpack.c.l.b16 %v746
      %v1995 = vunpack.c.l.b16 %v747
      %v1996 = vunpack.c.l.b16 %v748
      %v1997 = vunpack.c.l.b16 %v749
      %v1998 = vunpack.c.l.b16 %v750
      %v1999 = vunpack.c.l.b16 %v751
      %v2000 = vunpack.c.l.b16 %v752
      %v2001 = vunpack.c.l.b16 %v753
      %v2002 = vunpack.c.l.b16 %v754
      %v2003 = vunpack.c.l.b16 %v755
      %v2004 = vunpack.c.l.b16 %v756
      %v2005 = vunpack.c.l.b16 %v757
      %v2006 = vunpack.c.l.b16 %v758
      %v2007 = vunpack.c.l.b16 %v759
      %v2008 = vpack.c.b16 %v1833, %v1832
      %v2009 = vpack.c.b16 %v1835, %v1834
      %v2010 = vpack.c.b16 %v1837, %v1836
      %v2011 = vpack.c.b16 %v1839, %v1838
      %v2012 = vpack.c.b16 %v1841, %v1840
      %v2013 = vpack.c.b16 %v1843, %v1842
      %v2014 = vpack.c.b16 %v1845, %v1844
      %v2015 = vpack.c.b16 %v1847, %v1846
      %v2016 = vpack.c.b16 %v1849, %v1848
      %v2017 = vpack.c.b16 %v1851, %v1850
      %v2018 = vpack.c.b16 %v1853, %v1852
      %v2019 = vpack.c.b16 %v1855, %v1854
      %v2020 = vpack.c.b16 %v1857, %v1856
      %v2021 = vpack.c.b16 %v1859, %v1858
      %v2022 = vpack.c.b16 %v1861, %v1860
      %v2023 = vpack.c.b16 %v1863, %v1862
      %v2024 = vpack.c.b16 %v1865, %v1864
      %v2025 = vpack.c.b16 %v1867, %v1866
      %v2026 = vpack.c.b16 %v1869, %v1868
      %v2027 = vpack.c.b16 %v1871, %v1870
      %v2028 = vpack.c.b16 %v1873, %v1872
      %v2029 = vpack.c.b16 %v1875, %v1874
      %v2030 = vpack.c.b16 %v1877, %v1876
      %v2031 = vpack.c.b16 %v1879, %v1878
      %v2032 = vpack.c.b16 %v1881, %v1880
      %v2033 = vpack.c.b16 %v1883, %v1882
      %v2034 = vpack.c.b16 %v1885, %v1884
      %v2035 = vpack.c.b16 %v1887, %v1886
      %v2036 = vpack.c.b16 %v1889, %v1888
      %v2037 = vpack.c.b16 %v1891, %v1890
      %v2038 = vpack.c.b16 %v1893, %v1892
      %v2039 = vpack.c.b16 %v1895, %v1894
      %v2040 = vpack.c.b16 %v1897, %v1896
      %v2041 = vpack.c.b16 %v1899, %v1898
      %v2042 = vpack.c.b16 %v1901, %v1900
      %v2043 = vpack.c.b16 %v1903, %v1902
      %v2044 = vpack.c.b16 %v1905, %v1904
      %v2045 = vpack.c.b16 %v1907, %v1906
      %v2046 = vpack.c.b16 %v1909, %v1908
      %v2047 = vpack.c.b16 %v1911, %v1910
      %v2048 = vpack.c.b16 %v1913, %v1912
      %v2049 = vpack.c.b16 %v1915, %v1914
      %v2050 = vpack.c.b16 %v1917, %v1916
      %v2051 = vpack.c.b16 %v1919, %v1918
      %v2052 = vpack.c.b16 %v1921, %v1920
      %v2053 = vpack.c.b16 %v1923, %v1922
      %v2054 = vpack.c.b16 %v1925, %v1924
      %v2055 = vpack.c.b16 %v1927, %v1926
      %v2056 = vpack.c.b16 %v1929, %v1928
      %v2057 = vpack.c.b16 %v1931, %v1930
      %v2058 = vpack.c.b16 %v1933, %v1932
      %v2059 = vpack.c.b16 %v1935, %v1934
      %v2060 = vpack.c.b16 %v1937, %v1936
      %v2061 = vpack.c.b16 %v1939, %v1938
      %v2062 = vpack.c.b16 %v1941, %v1940
      %v2063 = vpack.c.b16 %v1943, %v1942
      %v2064 = vpack.c.b16 %v1945, %v1944
      %v2065 = vpack.c.b16 %v1947, %v1946
      %v2066 = vpack.c.b16 %v1949, %v1948
      %v2067 = vpack.c.b16 %v1951, %v1950
      %v2068 = vpack.c.b16 %v1953, %v1952
      %v2069 = vpack.c.b16 %v1955, %v1954
      %v2070 = vpack.c.b16 %v1957, %v1956
      %v2071 = vpack.c.b16 %v1959, %v1958
      %v2072 = vpack.c.b16 %v1961, %v1960
      %v2073 = vpack.c.b16 %v1963, %v1962
      %v2074 = vpack.c.b16 %v1965, %v1964
      %v2075 = vpack.c.b16 %v1967, %v1966
      %v2076 = vpack.c.b16 %v1969, %v1968
      %v2077 = vpack.c.b16 %v1971, %v1970
      %v2078 = vpack.c.b16 %v1973, %v1972
      %v2079 = vpack.c.b16 %v1975, %v1974
      %v2080 = vpack.c.b16 %v1977, %v1976
      %v2081 = vpack.c.b16 %v1979, %v1978
      %v2082 = vpack.c.b16 %v1981, %v1980
      %v2083 = vpack.c.b16 %v1983, %v1982
      %v2084 = vpack.c.b16 %v1985, %v1984
      %v2085 = vpack.c.b16 %v1987, %v1986
      %v2086 = vpack.c.b16 %v1989, %v1988
      %v2087 = vpack.c.b16 %v1991, %v1990
      %v2088 = vpack.c.b16 %v1993, %v1992
      %v2089 = vpack.c.b16 %v1995, %v1994
      %v2090 = vpack.c.b16 %v1997, %v1996
      %v2091 = vpack.c.b16 %v1999, %v1998
      %v2092 = vpack.c.b16 %v2001, %v2000
      %v2093 = vpack.c.b16 %v2003, %v2002
      %v2094 = vpack.c.b16 %v2005, %v2004
      %v2095 = vpack.c.b16 %v2007, %v2006
      %2184 = vmatpush.bf16.msra.mxu0 %v2015
      %2185 = vmatpush.bf16.msra.mxu0 %v2014
      %2186 = vmatpush.bf16.msra.mxu0 %v2013
      %2187 = vmatpush.bf16.msra.mxu0 %v2012
      %2188 = vmatpush.bf16.msra.mxu0 %v2011
      %2189 = vmatpush.bf16.msra.mxu0 %v2010
      %2190 = vmatpush.bf16.msra.mxu0 %v2009
      %2191 = vmatpush.bf16.msra.mxu0 %v2008
      %2192 = vmatmul.bf16.gmra.mxu0 %v1304
      %v2193 = vpop.f32.mrf.mxu0
      %v2194 = vadd.f32 0.0, %v2193
      %v2195 = vpop.f32.mrf.mxu0
      %v2196 = vadd.f32 0.0, %v2195
      %2197 = vmatmul.bf16.gmra.mxu0 %v1315
      %v2198 = vpop.f32.mrf.mxu0
      %v2199 = vadd.f32 0.0, %v2198
      %v2200 = vpop.f32.mrf.mxu0
      %v2201 = vadd.f32 0.0, %v2200
      %2202 = vmatmul.bf16.gmra.mxu0 %v1326
      %v2203 = vpop.f32.mrf.mxu0
      %v2204 = vadd.f32 0.0, %v2203
      %v2205 = vpop.f32.mrf.mxu0
      %v2206 = vadd.f32 0.0, %v2205
      %2207 = vmatmul.bf16.gmra.mxu0 %v1337
      %v2208 = vpop.f32.mrf.mxu0
      %v2209 = vadd.f32 0.0, %v2208
      %v2210 = vpop.f32.mrf.mxu0
      %v2211 = vadd.f32 0.0, %v2210
      %2212 = vmatmul.bf16.gmra.mxu0 %v1348
      %v2213 = vpop.f32.mrf.mxu0
      %v2214 = vadd.f32 0.0, %v2213
      %v2215 = vpop.f32.mrf.mxu0
      %v2216 = vadd.f32 0.0, %v2215
      %2217 = vmatmul.bf16.gmra.mxu0 %v1359
      %v2218 = vpop.f32.mrf.mxu0
      %v2219 = vadd.f32 0.0, %v2218
      %v2220 = vpop.f32.mrf.mxu0
      %v2221 = vadd.f32 0.0, %v2220
      %2222 = vmatmul.bf16.gmra.mxu0 %v1370
      %v2223 = vpop.f32.mrf.mxu0
      %v2224 = vadd.f32 0.0, %v2223
      %v2225 = vpop.f32.mrf.mxu0
      %v2226 = vadd.f32 0.0, %v2225
      %2227 = vmatmul.bf16.gmra.mxu0 %v1381
      %v2228 = vpop.f32.mrf.mxu0
      %v2229 = vadd.f32 0.0, %v2228
      %v2230 = vpop.f32.mrf.mxu0
      %v2231 = vadd.f32 0.0, %v2230
      %2232 = vmatmul.bf16.gmra.mxu0 %v1392
      %v2233 = vpop.f32.mrf.mxu0
      %v2234 = vadd.f32 0.0, %v2233
      %v2235 = vpop.f32.mrf.mxu0
      %v2236 = vadd.f32 0.0, %v2235
      %2237 = vmatmul.bf16.gmra.mxu0 %v1403
      %v2238 = vpop.f32.mrf.mxu0
      %v2239 = vadd.f32 0.0, %v2238
      %v2240 = vpop.f32.mrf.mxu0
      %v2241 = vadd.f32 0.0, %v2240
      %2242 = vmatmul.bf16.gmra.mxu0 %v1414
      %v2243 = vpop.f32.mrf.mxu0
      %v2244 = vadd.f32 0.0, %v2243
      %v2245 = vpop.f32.mrf.mxu0
      %v2246 = vadd.f32 0.0, %v2245
      %2247 = vmatmul.bf16.gmra.mxu0 %v1425
      %v2248 = vpop.f32.mrf.mxu0
      %v2249 = vadd.f32 0.0, %v2248
      %v2250 = vpop.f32.mrf.mxu0
      %v2251 = vadd.f32 0.0, %v2250
      %2252 = vmatmul.bf16.gmra.mxu0 %v1436
      %v2253 = vpop.f32.mrf.mxu0
      %v2254 = vadd.f32 0.0, %v2253
      %v2255 = vpop.f32.mrf.mxu0
      %v2256 = vadd.f32 0.0, %v2255
      %2257 = vmatmul.bf16.gmra.mxu0 %v1447
      %v2258 = vpop.f32.mrf.mxu0
      %v2259 = vadd.f32 0.0, %v2258
      %v2260 = vpop.f32.mrf.mxu0
      %v2261 = vadd.f32 0.0, %v2260
      %2262 = vmatmul.bf16.gmra.mxu0 %v1458
      %v2263 = vpop.f32.mrf.mxu0
      %v2264 = vadd.f32 0.0, %v2263
      %v2265 = vpop.f32.mrf.mxu0
      %v2266 = vadd.f32 0.0, %v2265
      %2267 = vmatmul.bf16.gmra.mxu0 %v1469
      %v2268 = vpop.f32.mrf.mxu0
      %v2269 = vadd.f32 0.0, %v2268
      %v2270 = vpop.f32.mrf.mxu0
      %v2271 = vadd.f32 0.0, %v2270
      %2272 = vdwg.mxu0
      %2273 = vmatpush.bf16.msra.mxu0 %v2023
      %2274 = vmatpush.bf16.msra.mxu0 %v2022
      %2275 = vmatpush.bf16.msra.mxu0 %v2021
      %2276 = vmatpush.bf16.msra.mxu0 %v2020
      %2277 = vmatpush.bf16.msra.mxu0 %v2019
      %2278 = vmatpush.bf16.msra.mxu0 %v2018
      %2279 = vmatpush.bf16.msra.mxu0 %v2017
      %2280 = vmatpush.bf16.msra.mxu0 %v2016
      %2281 = vmatmul.bf16.gmra.mxu0 %v1305
      %v2282 = vpop.f32.mrf.mxu0
      %v2283 = vadd.f32 %v2194, %v2282
      %v2284 = vpop.f32.mrf.mxu0
      %v2285 = vadd.f32 %v2196, %v2284
      %2286 = vmatmul.bf16.gmra.mxu0 %v1316
      %v2287 = vpop.f32.mrf.mxu0
      %v2288 = vadd.f32 %v2199, %v2287
      %v2289 = vpop.f32.mrf.mxu0
      %v2290 = vadd.f32 %v2201, %v2289
      %2291 = vmatmul.bf16.gmra.mxu0 %v1327
      %v2292 = vpop.f32.mrf.mxu0
      %v2293 = vadd.f32 %v2204, %v2292
      %v2294 = vpop.f32.mrf.mxu0
      %v2295 = vadd.f32 %v2206, %v2294
      %2296 = vmatmul.bf16.gmra.mxu0 %v1338
      %v2297 = vpop.f32.mrf.mxu0
      %v2298 = vadd.f32 %v2209, %v2297
      %v2299 = vpop.f32.mrf.mxu0
      %v2300 = vadd.f32 %v2211, %v2299
      %2301 = vmatmul.bf16.gmra.mxu0 %v1349
      %v2302 = vpop.f32.mrf.mxu0
      %v2303 = vadd.f32 %v2214, %v2302
      %v2304 = vpop.f32.mrf.mxu0
      %v2305 = vadd.f32 %v2216, %v2304
      %2306 = vmatmul.bf16.gmra.mxu0 %v1360
      %v2307 = vpop.f32.mrf.mxu0
      %v2308 = vadd.f32 %v2219, %v2307
      %v2309 = vpop.f32.mrf.mxu0
      %v2310 = vadd.f32 %v2221, %v2309
      %2311 = vmatmul.bf16.gmra.mxu0 %v1371
      %v2312 = vpop.f32.mrf.mxu0
      %v2313 = vadd.f32 %v2224, %v2312
      %v2314 = vpop.f32.mrf.mxu0
      %v2315 = vadd.f32 %v2226, %v2314
      %2316 = vmatmul.bf16.gmra.mxu0 %v1382
      %v2317 = vpop.f32.mrf.mxu0
      %v2318 = vadd.f32 %v2229, %v2317
      %v2319 = vpop.f32.mrf.mxu0
      %v2320 = vadd.f32 %v2231, %v2319
      %2321 = vmatmul.bf16.gmra.mxu0 %v1393
      %v2322 = vpop.f32.mrf.mxu0
      %v2323 = vadd.f32 %v2234, %v2322
      %v2324 = vpop.f32.mrf.mxu0
      %v2325 = vadd.f32 %v2236, %v2324
      %2326 = vmatmul.bf16.gmra.mxu0 %v1404
      %v2327 = vpop.f32.mrf.mxu0
      %v2328 = vadd.f32 %v2239, %v2327
      %v2329 = vpop.f32.mrf.mxu0
      %v2330 = vadd.f32 %v2241, %v2329
      %2331 = vmatmul.bf16.gmra.mxu0 %v1415
      %v2332 = vpop.f32.mrf.mxu0
      %v2333 = vadd.f32 %v2244, %v2332
      %v2334 = vpop.f32.mrf.mxu0
      %v2335 = vadd.f32 %v2246, %v2334
      %2336 = vmatmul.bf16.gmra.mxu0 %v1426
      %v2337 = vpop.f32.mrf.mxu0
      %v2338 = vadd.f32 %v2249, %v2337
      %v2339 = vpop.f32.mrf.mxu0
      %v2340 = vadd.f32 %v2251, %v2339
      %2341 = vmatmul.bf16.gmra.mxu0 %v1437
      %v2342 = vpop.f32.mrf.mxu0
      %v2343 = vadd.f32 %v2254, %v2342
      %v2344 = vpop.f32.mrf.mxu0
      %v2345 = vadd.f32 %v2256, %v2344
      %2346 = vmatmul.bf16.gmra.mxu0 %v1448
      %v2347 = vpop.f32.mrf.mxu0
      %v2348 = vadd.f32 %v2259, %v2347
      %v2349 = vpop.f32.mrf.mxu0
      %v2350 = vadd.f32 %v2261, %v2349
      %2351 = vmatmul.bf16.gmra.mxu0 %v1459
      %v2352 = vpop.f32.mrf.mxu0
      %v2353 = vadd.f32 %v2264, %v2352
      %v2354 = vpop.f32.mrf.mxu0
      %v2355 = vadd.f32 %v2266, %v2354
      %2356 = vmatmul.bf16.gmra.mxu0 %v1470
      %v2357 = vpop.f32.mrf.mxu0
      %v2358 = vadd.f32 %v2269, %v2357
      %v2359 = vpop.f32.mrf.mxu0
      %v2360 = vadd.f32 %v2271, %v2359
      %2361 = vdwg.mxu0
      %2362 = vmatpush.bf16.msra.mxu0 %v2031
      %2363 = vmatpush.bf16.msra.mxu0 %v2030
      %2364 = vmatpush.bf16.msra.mxu0 %v2029
      %2365 = vmatpush.bf16.msra.mxu0 %v2028
      %2366 = vmatpush.bf16.msra.mxu0 %v2027
      %2367 = vmatpush.bf16.msra.mxu0 %v2026
      %2368 = vmatpush.bf16.msra.mxu0 %v2025
      %2369 = vmatpush.bf16.msra.mxu0 %v2024
      %2370 = vmatmul.bf16.gmra.mxu0 %v1306
      %v2371 = vpop.f32.mrf.mxu0
      %v2372 = vadd.f32 %v2283, %v2371
      %v2373 = vpop.f32.mrf.mxu0
      %v2374 = vadd.f32 %v2285, %v2373
      %2375 = vmatmul.bf16.gmra.mxu0 %v1317
      %v2376 = vpop.f32.mrf.mxu0
      %v2377 = vadd.f32 %v2288, %v2376
      %v2378 = vpop.f32.mrf.mxu0
      %v2379 = vadd.f32 %v2290, %v2378
      %2380 = vmatmul.bf16.gmra.mxu0 %v1328
      %v2381 = vpop.f32.mrf.mxu0
      %v2382 = vadd.f32 %v2293, %v2381
      %v2383 = vpop.f32.mrf.mxu0
      %v2384 = vadd.f32 %v2295, %v2383
      %2385 = vmatmul.bf16.gmra.mxu0 %v1339
      %v2386 = vpop.f32.mrf.mxu0
      %v2387 = vadd.f32 %v2298, %v2386
      %v2388 = vpop.f32.mrf.mxu0
      %v2389 = vadd.f32 %v2300, %v2388
      %2390 = vmatmul.bf16.gmra.mxu0 %v1350
      %v2391 = vpop.f32.mrf.mxu0
      %v2392 = vadd.f32 %v2303, %v2391
      %v2393 = vpop.f32.mrf.mxu0
      %v2394 = vadd.f32 %v2305, %v2393
      %2395 = vmatmul.bf16.gmra.mxu0 %v1361
      %v2396 = vpop.f32.mrf.mxu0
      %v2397 = vadd.f32 %v2308, %v2396
      %v2398 = vpop.f32.mrf.mxu0
      %v2399 = vadd.f32 %v2310, %v2398
      %2400 = vmatmul.bf16.gmra.mxu0 %v1372
      %v2401 = vpop.f32.mrf.mxu0
      %v2402 = vadd.f32 %v2313, %v2401
      %v2403 = vpop.f32.mrf.mxu0
      %v2404 = vadd.f32 %v2315, %v2403
      %2405 = vmatmul.bf16.gmra.mxu0 %v1383
      %v2406 = vpop.f32.mrf.mxu0
      %v2407 = vadd.f32 %v2318, %v2406
      %v2408 = vpop.f32.mrf.mxu0
      %v2409 = vadd.f32 %v2320, %v2408
      %2410 = vmatmul.bf16.gmra.mxu0 %v1394
      %v2411 = vpop.f32.mrf.mxu0
      %v2412 = vadd.f32 %v2323, %v2411
      %v2413 = vpop.f32.mrf.mxu0
      %v2414 = vadd.f32 %v2325, %v2413
      %2415 = vmatmul.bf16.gmra.mxu0 %v1405
      %v2416 = vpop.f32.mrf.mxu0
      %v2417 = vadd.f32 %v2328, %v2416
      %v2418 = vpop.f32.mrf.mxu0
      %v2419 = vadd.f32 %v2330, %v2418
      %2420 = vmatmul.bf16.gmra.mxu0 %v1416
      %v2421 = vpop.f32.mrf.mxu0
      %v2422 = vadd.f32 %v2333, %v2421
      %v2423 = vpop.f32.mrf.mxu0
      %v2424 = vadd.f32 %v2335, %v2423
      %2425 = vmatmul.bf16.gmra.mxu0 %v1427
      %v2426 = vpop.f32.mrf.mxu0
      %v2427 = vadd.f32 %v2338, %v2426
      %v2428 = vpop.f32.mrf.mxu0
      %v2429 = vadd.f32 %v2340, %v2428
      %2430 = vmatmul.bf16.gmra.mxu0 %v1438
      %v2431 = vpop.f32.mrf.mxu0
      %v2432 = vadd.f32 %v2343, %v2431
      %v2433 = vpop.f32.mrf.mxu0
      %v2434 = vadd.f32 %v2345, %v2433
      %2435 = vmatmul.bf16.gmra.mxu0 %v1449
      %v2436 = vpop.f32.mrf.mxu0
      %v2437 = vadd.f32 %v2348, %v2436
      %v2438 = vpop.f32.mrf.mxu0
      %v2439 = vadd.f32 %v2350, %v2438
      %2440 = vmatmul.bf16.gmra.mxu0 %v1460
      %v2441 = vpop.f32.mrf.mxu0
      %v2442 = vadd.f32 %v2353, %v2441
      %v2443 = vpop.f32.mrf.mxu0
      %v2444 = vadd.f32 %v2355, %v2443
      %2445 = vmatmul.bf16.gmra.mxu0 %v1471
      %v2446 = vpop.f32.mrf.mxu0
      %v2447 = vadd.f32 %v2358, %v2446
      %v2448 = vpop.f32.mrf.mxu0
      %v2449 = vadd.f32 %v2360, %v2448
      %2450 = vdwg.mxu0
      %2451 = vmatpush.bf16.msra.mxu0 %v2039
      %2452 = vmatpush.bf16.msra.mxu0 %v2038
      %2453 = vmatpush.bf16.msra.mxu0 %v2037
      %2454 = vmatpush.bf16.msra.mxu0 %v2036
      %2455 = vmatpush.bf16.msra.mxu0 %v2035
      %2456 = vmatpush.bf16.msra.mxu0 %v2034
      %2457 = vmatpush.bf16.msra.mxu0 %v2033
      %2458 = vmatpush.bf16.msra.mxu0 %v2032
      %2459 = vmatmul.bf16.gmra.mxu0 %v1307
      %v2460 = vpop.f32.mrf.mxu0
      %v2461 = vadd.f32 %v2372, %v2460
      %v2462 = vpop.f32.mrf.mxu0
      %v2463 = vadd.f32 %v2374, %v2462
      %2464 = vmatmul.bf16.gmra.mxu0 %v1318
      %v2465 = vpop.f32.mrf.mxu0
      %v2466 = vadd.f32 %v2377, %v2465
      %v2467 = vpop.f32.mrf.mxu0
      %v2468 = vadd.f32 %v2379, %v2467
      %2469 = vmatmul.bf16.gmra.mxu0 %v1329
      %v2470 = vpop.f32.mrf.mxu0
      %v2471 = vadd.f32 %v2382, %v2470
      %v2472 = vpop.f32.mrf.mxu0
      %v2473 = vadd.f32 %v2384, %v2472
      %2474 = vmatmul.bf16.gmra.mxu0 %v1340
      %v2475 = vpop.f32.mrf.mxu0
      %v2476 = vadd.f32 %v2387, %v2475
      %v2477 = vpop.f32.mrf.mxu0
      %v2478 = vadd.f32 %v2389, %v2477
      %2479 = vmatmul.bf16.gmra.mxu0 %v1351
      %v2480 = vpop.f32.mrf.mxu0
      %v2481 = vadd.f32 %v2392, %v2480
      %v2482 = vpop.f32.mrf.mxu0
      %v2483 = vadd.f32 %v2394, %v2482
      %2484 = vmatmul.bf16.gmra.mxu0 %v1362
      %v2485 = vpop.f32.mrf.mxu0
      %v2486 = vadd.f32 %v2397, %v2485
      %v2487 = vpop.f32.mrf.mxu0
      %v2488 = vadd.f32 %v2399, %v2487
      %2489 = vmatmul.bf16.gmra.mxu0 %v1373
      %v2490 = vpop.f32.mrf.mxu0
      %v2491 = vadd.f32 %v2402, %v2490
      %v2492 = vpop.f32.mrf.mxu0
      %v2493 = vadd.f32 %v2404, %v2492
      %2494 = vmatmul.bf16.gmra.mxu0 %v1384
      %v2495 = vpop.f32.mrf.mxu0
      %v2496 = vadd.f32 %v2407, %v2495
      %v2497 = vpop.f32.mrf.mxu0
      %v2498 = vadd.f32 %v2409, %v2497
      %2499 = vmatmul.bf16.gmra.mxu0 %v1395
      %v2500 = vpop.f32.mrf.mxu0
      %v2501 = vadd.f32 %v2412, %v2500
      %v2502 = vpop.f32.mrf.mxu0
      %v2503 = vadd.f32 %v2414, %v2502
      %2504 = vmatmul.bf16.gmra.mxu0 %v1406
      %v2505 = vpop.f32.mrf.mxu0
      %v2506 = vadd.f32 %v2417, %v2505
      %v2507 = vpop.f32.mrf.mxu0
      %v2508 = vadd.f32 %v2419, %v2507
      %2509 = vmatmul.bf16.gmra.mxu0 %v1417
      %v2510 = vpop.f32.mrf.mxu0
      %v2511 = vadd.f32 %v2422, %v2510
      %v2512 = vpop.f32.mrf.mxu0
      %v2513 = vadd.f32 %v2424, %v2512
      %2514 = vmatmul.bf16.gmra.mxu0 %v1428
      %v2515 = vpop.f32.mrf.mxu0
      %v2516 = vadd.f32 %v2427, %v2515
      %v2517 = vpop.f32.mrf.mxu0
      %v2518 = vadd.f32 %v2429, %v2517
      %2519 = vmatmul.bf16.gmra.mxu0 %v1439
      %v2520 = vpop.f32.mrf.mxu0
      %v2521 = vadd.f32 %v2432, %v2520
      %v2522 = vpop.f32.mrf.mxu0
      %v2523 = vadd.f32 %v2434, %v2522
      %2524 = vmatmul.bf16.gmra.mxu0 %v1450
      %v2525 = vpop.f32.mrf.mxu0
      %v2526 = vadd.f32 %v2437, %v2525
      %v2527 = vpop.f32.mrf.mxu0
      %v2528 = vadd.f32 %v2439, %v2527
      %2529 = vmatmul.bf16.gmra.mxu0 %v1461
      %v2530 = vpop.f32.mrf.mxu0
      %v2531 = vadd.f32 %v2442, %v2530
      %v2532 = vpop.f32.mrf.mxu0
      %v2533 = vadd.f32 %v2444, %v2532
      %2534 = vmatmul.bf16.gmra.mxu0 %v1472
      %v2535 = vpop.f32.mrf.mxu0
      %v2536 = vadd.f32 %v2447, %v2535
      %v2537 = vpop.f32.mrf.mxu0
      %v2538 = vadd.f32 %v2449, %v2537
      %2539 = vdwg.mxu0
      %2540 = vmatpush.bf16.msra.mxu0 %v2047
      %2541 = vmatpush.bf16.msra.mxu0 %v2046
      %2542 = vmatpush.bf16.msra.mxu0 %v2045
      %2543 = vmatpush.bf16.msra.mxu0 %v2044
      %2544 = vmatpush.bf16.msra.mxu0 %v2043
      %2545 = vmatpush.bf16.msra.mxu0 %v2042
      %2546 = vmatpush.bf16.msra.mxu0 %v2041
      %2547 = vmatpush.bf16.msra.mxu0 %v2040
      %2548 = vmatmul.bf16.gmra.mxu0 %v1308
      %v2549 = vpop.f32.mrf.mxu0
      %v2550 = vadd.f32 %v2461, %v2549
      %v2551 = vpop.f32.mrf.mxu0
      %v2552 = vadd.f32 %v2463, %v2551
      %2553 = vmatmul.bf16.gmra.mxu0 %v1319
      %v2554 = vpop.f32.mrf.mxu0
      %v2555 = vadd.f32 %v2466, %v2554
      %v2556 = vpop.f32.mrf.mxu0
      %v2557 = vadd.f32 %v2468, %v2556
      %2558 = vmatmul.bf16.gmra.mxu0 %v1330
      %v2559 = vpop.f32.mrf.mxu0
      %v2560 = vadd.f32 %v2471, %v2559
      %v2561 = vpop.f32.mrf.mxu0
      %v2562 = vadd.f32 %v2473, %v2561
      %2563 = vmatmul.bf16.gmra.mxu0 %v1341
      %v2564 = vpop.f32.mrf.mxu0
      %v2565 = vadd.f32 %v2476, %v2564
      %v2566 = vpop.f32.mrf.mxu0
      %v2567 = vadd.f32 %v2478, %v2566
      %2568 = vmatmul.bf16.gmra.mxu0 %v1352
      %v2569 = vpop.f32.mrf.mxu0
      %v2570 = vadd.f32 %v2481, %v2569
      %v2571 = vpop.f32.mrf.mxu0
      %v2572 = vadd.f32 %v2483, %v2571
      %2573 = vmatmul.bf16.gmra.mxu0 %v1363
      %v2574 = vpop.f32.mrf.mxu0
      %v2575 = vadd.f32 %v2486, %v2574
      %v2576 = vpop.f32.mrf.mxu0
      %v2577 = vadd.f32 %v2488, %v2576
      %2578 = vmatmul.bf16.gmra.mxu0 %v1374
      %v2579 = vpop.f32.mrf.mxu0
      %v2580 = vadd.f32 %v2491, %v2579
      %v2581 = vpop.f32.mrf.mxu0
      %v2582 = vadd.f32 %v2493, %v2581
      %2583 = vmatmul.bf16.gmra.mxu0 %v1385
      %v2584 = vpop.f32.mrf.mxu0
      %v2585 = vadd.f32 %v2496, %v2584
      %v2586 = vpop.f32.mrf.mxu0
      %v2587 = vadd.f32 %v2498, %v2586
      %2588 = vmatmul.bf16.gmra.mxu0 %v1396
      %v2589 = vpop.f32.mrf.mxu0
      %v2590 = vadd.f32 %v2501, %v2589
      %v2591 = vpop.f32.mrf.mxu0
      %v2592 = vadd.f32 %v2503, %v2591
      %2593 = vmatmul.bf16.gmra.mxu0 %v1407
      %v2594 = vpop.f32.mrf.mxu0
      %v2595 = vadd.f32 %v2506, %v2594
      %v2596 = vpop.f32.mrf.mxu0
      %v2597 = vadd.f32 %v2508, %v2596
      %2598 = vmatmul.bf16.gmra.mxu0 %v1418
      %v2599 = vpop.f32.mrf.mxu0
      %v2600 = vadd.f32 %v2511, %v2599
      %v2601 = vpop.f32.mrf.mxu0
      %v2602 = vadd.f32 %v2513, %v2601
      %2603 = vmatmul.bf16.gmra.mxu0 %v1429
      %v2604 = vpop.f32.mrf.mxu0
      %v2605 = vadd.f32 %v2516, %v2604
      %v2606 = vpop.f32.mrf.mxu0
      %v2607 = vadd.f32 %v2518, %v2606
      %2608 = vmatmul.bf16.gmra.mxu0 %v1440
      %v2609 = vpop.f32.mrf.mxu0
      %v2610 = vadd.f32 %v2521, %v2609
      %v2611 = vpop.f32.mrf.mxu0
      %v2612 = vadd.f32 %v2523, %v2611
      %2613 = vmatmul.bf16.gmra.mxu0 %v1451
      %v2614 = vpop.f32.mrf.mxu0
      %v2615 = vadd.f32 %v2526, %v2614
      %v2616 = vpop.f32.mrf.mxu0
      %v2617 = vadd.f32 %v2528, %v2616
      %2618 = vmatmul.bf16.gmra.mxu0 %v1462
      %v2619 = vpop.f32.mrf.mxu0
      %v2620 = vadd.f32 %v2531, %v2619
      %v2621 = vpop.f32.mrf.mxu0
      %v2622 = vadd.f32 %v2533, %v2621
      %2623 = vmatmul.bf16.gmra.mxu0 %v1473
      %v2624 = vpop.f32.mrf.mxu0
      %v2625 = vadd.f32 %v2536, %v2624
      %v2626 = vpop.f32.mrf.mxu0
      %v2627 = vadd.f32 %v2538, %v2626
      %2628 = vdwg.mxu0
      %2629 = vmatpush.bf16.msra.mxu0 %v2055
      %2630 = vmatpush.bf16.msra.mxu0 %v2054
      %2631 = vmatpush.bf16.msra.mxu0 %v2053
      %2632 = vmatpush.bf16.msra.mxu0 %v2052
      %2633 = vmatpush.bf16.msra.mxu0 %v2051
      %2634 = vmatpush.bf16.msra.mxu0 %v2050
      %2635 = vmatpush.bf16.msra.mxu0 %v2049
      %2636 = vmatpush.bf16.msra.mxu0 %v2048
      %2637 = vmatmul.bf16.gmra.mxu0 %v1309
      %v2638 = vpop.f32.mrf.mxu0
      %v2639 = vadd.f32 %v2550, %v2638
      %v2640 = vpop.f32.mrf.mxu0
      %v2641 = vadd.f32 %v2552, %v2640
      %2642 = vmatmul.bf16.gmra.mxu0 %v1320
      %v2643 = vpop.f32.mrf.mxu0
      %v2644 = vadd.f32 %v2555, %v2643
      %v2645 = vpop.f32.mrf.mxu0
      %v2646 = vadd.f32 %v2557, %v2645
      %2647 = vmatmul.bf16.gmra.mxu0 %v1331
      %v2648 = vpop.f32.mrf.mxu0
      %v2649 = vadd.f32 %v2560, %v2648
      %v2650 = vpop.f32.mrf.mxu0
      %v2651 = vadd.f32 %v2562, %v2650
      %2652 = vmatmul.bf16.gmra.mxu0 %v1342
      %v2653 = vpop.f32.mrf.mxu0
      %v2654 = vadd.f32 %v2565, %v2653
      %v2655 = vpop.f32.mrf.mxu0
      %v2656 = vadd.f32 %v2567, %v2655
      %2657 = vmatmul.bf16.gmra.mxu0 %v1353
      %v2658 = vpop.f32.mrf.mxu0
      %v2659 = vadd.f32 %v2570, %v2658
      %v2660 = vpop.f32.mrf.mxu0
      %v2661 = vadd.f32 %v2572, %v2660
      %2662 = vmatmul.bf16.gmra.mxu0 %v1364
      %v2663 = vpop.f32.mrf.mxu0
      %v2664 = vadd.f32 %v2575, %v2663
      %v2665 = vpop.f32.mrf.mxu0
      %v2666 = vadd.f32 %v2577, %v2665
      %2667 = vmatmul.bf16.gmra.mxu0 %v1375
      %v2668 = vpop.f32.mrf.mxu0
      %v2669 = vadd.f32 %v2580, %v2668
      %v2670 = vpop.f32.mrf.mxu0
      %v2671 = vadd.f32 %v2582, %v2670
      %2672 = vmatmul.bf16.gmra.mxu0 %v1386
      %v2673 = vpop.f32.mrf.mxu0
      %v2674 = vadd.f32 %v2585, %v2673
      %v2675 = vpop.f32.mrf.mxu0
      %v2676 = vadd.f32 %v2587, %v2675
      %2677 = vmatmul.bf16.gmra.mxu0 %v1397
      %v2678 = vpop.f32.mrf.mxu0
      %v2679 = vadd.f32 %v2590, %v2678
      %v2680 = vpop.f32.mrf.mxu0
      %v2681 = vadd.f32 %v2592, %v2680
      %2682 = vmatmul.bf16.gmra.mxu0 %v1408
      %v2683 = vpop.f32.mrf.mxu0
      %v2684 = vadd.f32 %v2595, %v2683
      %v2685 = vpop.f32.mrf.mxu0
      %v2686 = vadd.f32 %v2597, %v2685
      %2687 = vmatmul.bf16.gmra.mxu0 %v1419
      %v2688 = vpop.f32.mrf.mxu0
      %v2689 = vadd.f32 %v2600, %v2688
      %v2690 = vpop.f32.mrf.mxu0
      %v2691 = vadd.f32 %v2602, %v2690
      %2692 = vmatmul.bf16.gmra.mxu0 %v1430
      %v2693 = vpop.f32.mrf.mxu0
      %v2694 = vadd.f32 %v2605, %v2693
      %v2695 = vpop.f32.mrf.mxu0
      %v2696 = vadd.f32 %v2607, %v2695
      %2697 = vmatmul.bf16.gmra.mxu0 %v1441
      %v2698 = vpop.f32.mrf.mxu0
      %v2699 = vadd.f32 %v2610, %v2698
      %v2700 = vpop.f32.mrf.mxu0
      %v2701 = vadd.f32 %v2612, %v2700
      %2702 = vmatmul.bf16.gmra.mxu0 %v1452
      %v2703 = vpop.f32.mrf.mxu0
      %v2704 = vadd.f32 %v2615, %v2703
      %v2705 = vpop.f32.mrf.mxu0
      %v2706 = vadd.f32 %v2617, %v2705
      %2707 = vmatmul.bf16.gmra.mxu0 %v1463
      %v2708 = vpop.f32.mrf.mxu0
      %v2709 = vadd.f32 %v2620, %v2708
      %v2710 = vpop.f32.mrf.mxu0
      %v2711 = vadd.f32 %v2622, %v2710
      %2712 = vmatmul.bf16.gmra.mxu0 %v1474
      %v2713 = vpop.f32.mrf.mxu0
      %v2714 = vadd.f32 %v2625, %v2713
      %v2715 = vpop.f32.mrf.mxu0
      %v2716 = vadd.f32 %v2627, %v2715
      %2717 = vdwg.mxu0
      %2718 = vmatpush.bf16.msra.mxu0 %v2063
      %2719 = vmatpush.bf16.msra.mxu0 %v2062
      %2720 = vmatpush.bf16.msra.mxu0 %v2061
      %2721 = vmatpush.bf16.msra.mxu0 %v2060
      %2722 = vmatpush.bf16.msra.mxu0 %v2059
      %2723 = vmatpush.bf16.msra.mxu0 %v2058
      %2724 = vmatpush.bf16.msra.mxu0 %v2057
      %2725 = vmatpush.bf16.msra.mxu0 %v2056
      %2726 = vmatmul.bf16.gmra.mxu0 %v1310
      %v2727 = vpop.f32.mrf.mxu0
      %v2728 = vadd.f32 %v2639, %v2727
      %v2729 = vpop.f32.mrf.mxu0
      %v2730 = vadd.f32 %v2641, %v2729
      %2731 = vmatmul.bf16.gmra.mxu0 %v1321
      %v2732 = vpop.f32.mrf.mxu0
      %v2733 = vadd.f32 %v2644, %v2732
      %v2734 = vpop.f32.mrf.mxu0
      %v2735 = vadd.f32 %v2646, %v2734
      %2736 = vmatmul.bf16.gmra.mxu0 %v1332
      %v2737 = vpop.f32.mrf.mxu0
      %v2738 = vadd.f32 %v2649, %v2737
      %v2739 = vpop.f32.mrf.mxu0
      %v2740 = vadd.f32 %v2651, %v2739
      %2741 = vmatmul.bf16.gmra.mxu0 %v1343
      %v2742 = vpop.f32.mrf.mxu0
      %v2743 = vadd.f32 %v2654, %v2742
      %v2744 = vpop.f32.mrf.mxu0
      %v2745 = vadd.f32 %v2656, %v2744
      %2746 = vmatmul.bf16.gmra.mxu0 %v1354
      %v2747 = vpop.f32.mrf.mxu0
      %v2748 = vadd.f32 %v2659, %v2747
      %v2749 = vpop.f32.mrf.mxu0
      %v2750 = vadd.f32 %v2661, %v2749
      %2751 = vmatmul.bf16.gmra.mxu0 %v1365
      %v2752 = vpop.f32.mrf.mxu0
      %v2753 = vadd.f32 %v2664, %v2752
      %v2754 = vpop.f32.mrf.mxu0
      %v2755 = vadd.f32 %v2666, %v2754
      %2756 = vmatmul.bf16.gmra.mxu0 %v1376
      %v2757 = vpop.f32.mrf.mxu0
      %v2758 = vadd.f32 %v2669, %v2757
      %v2759 = vpop.f32.mrf.mxu0
      %v2760 = vadd.f32 %v2671, %v2759
      %2761 = vmatmul.bf16.gmra.mxu0 %v1387
      %v2762 = vpop.f32.mrf.mxu0
      %v2763 = vadd.f32 %v2674, %v2762
      %v2764 = vpop.f32.mrf.mxu0
      %v2765 = vadd.f32 %v2676, %v2764
      %2766 = vmatmul.bf16.gmra.mxu0 %v1398
      %v2767 = vpop.f32.mrf.mxu0
      %v2768 = vadd.f32 %v2679, %v2767
      %v2769 = vpop.f32.mrf.mxu0
      %v2770 = vadd.f32 %v2681, %v2769
      %2771 = vmatmul.bf16.gmra.mxu0 %v1409
      %v2772 = vpop.f32.mrf.mxu0
      %v2773 = vadd.f32 %v2684, %v2772
      %v2774 = vpop.f32.mrf.mxu0
      %v2775 = vadd.f32 %v2686, %v2774
      %2776 = vmatmul.bf16.gmra.mxu0 %v1420
      %v2777 = vpop.f32.mrf.mxu0
      %v2778 = vadd.f32 %v2689, %v2777
      %v2779 = vpop.f32.mrf.mxu0
      %v2780 = vadd.f32 %v2691, %v2779
      %2781 = vmatmul.bf16.gmra.mxu0 %v1431
      %v2782 = vpop.f32.mrf.mxu0
      %v2783 = vadd.f32 %v2694, %v2782
      %v2784 = vpop.f32.mrf.mxu0
      %v2785 = vadd.f32 %v2696, %v2784
      %2786 = vmatmul.bf16.gmra.mxu0 %v1442
      %v2787 = vpop.f32.mrf.mxu0
      %v2788 = vadd.f32 %v2699, %v2787
      %v2789 = vpop.f32.mrf.mxu0
      %v2790 = vadd.f32 %v2701, %v2789
      %2791 = vmatmul.bf16.gmra.mxu0 %v1453
      %v2792 = vpop.f32.mrf.mxu0
      %v2793 = vadd.f32 %v2704, %v2792
      %v2794 = vpop.f32.mrf.mxu0
      %v2795 = vadd.f32 %v2706, %v2794
      %2796 = vmatmul.bf16.gmra.mxu0 %v1464
      %v2797 = vpop.f32.mrf.mxu0
      %v2798 = vadd.f32 %v2709, %v2797
      %v2799 = vpop.f32.mrf.mxu0
      %v2800 = vadd.f32 %v2711, %v2799
      %2801 = vmatmul.bf16.gmra.mxu0 %v1475
      %v2802 = vpop.f32.mrf.mxu0
      %v2803 = vadd.f32 %v2714, %v2802
      %v2804 = vpop.f32.mrf.mxu0
      %v2805 = vadd.f32 %v2716, %v2804
      %2806 = vdwg.mxu0
      %2807 = vmatpush.bf16.msra.mxu0 %v2071
      %2808 = vmatpush.bf16.msra.mxu0 %v2070
      %2809 = vmatpush.bf16.msra.mxu0 %v2069
      %2810 = vmatpush.bf16.msra.mxu0 %v2068
      %2811 = vmatpush.bf16.msra.mxu0 %v2067
      %2812 = vmatpush.bf16.msra.mxu0 %v2066
      %2813 = vmatpush.bf16.msra.mxu0 %v2065
      %2814 = vmatpush.bf16.msra.mxu0 %v2064
      %2815 = vmatmul.bf16.gmra.mxu0 %v1311
      %v2816 = vpop.f32.mrf.mxu0
      %v2817 = vadd.f32 %v2728, %v2816
      %v2818 = vpop.f32.mrf.mxu0
      %v2819 = vadd.f32 %v2730, %v2818
      %2820 = vmatmul.bf16.gmra.mxu0 %v1322
      %v2821 = vpop.f32.mrf.mxu0
      %v2822 = vadd.f32 %v2733, %v2821
      %v2823 = vpop.f32.mrf.mxu0
      %v2824 = vadd.f32 %v2735, %v2823
      %2825 = vmatmul.bf16.gmra.mxu0 %v1333
      %v2826 = vpop.f32.mrf.mxu0
      %v2827 = vadd.f32 %v2738, %v2826
      %v2828 = vpop.f32.mrf.mxu0
      %v2829 = vadd.f32 %v2740, %v2828
      %2830 = vmatmul.bf16.gmra.mxu0 %v1344
      %v2831 = vpop.f32.mrf.mxu0
      %v2832 = vadd.f32 %v2743, %v2831
      %v2833 = vpop.f32.mrf.mxu0
      %v2834 = vadd.f32 %v2745, %v2833
      %2835 = vmatmul.bf16.gmra.mxu0 %v1355
      %v2836 = vpop.f32.mrf.mxu0
      %v2837 = vadd.f32 %v2748, %v2836
      %v2838 = vpop.f32.mrf.mxu0
      %v2839 = vadd.f32 %v2750, %v2838
      %2840 = vmatmul.bf16.gmra.mxu0 %v1366
      %v2841 = vpop.f32.mrf.mxu0
      %v2842 = vadd.f32 %v2753, %v2841
      %v2843 = vpop.f32.mrf.mxu0
      %v2844 = vadd.f32 %v2755, %v2843
      %2845 = vmatmul.bf16.gmra.mxu0 %v1377
      %v2846 = vpop.f32.mrf.mxu0
      %v2847 = vadd.f32 %v2758, %v2846
      %v2848 = vpop.f32.mrf.mxu0
      %v2849 = vadd.f32 %v2760, %v2848
      %2850 = vmatmul.bf16.gmra.mxu0 %v1388
      %v2851 = vpop.f32.mrf.mxu0
      %v2852 = vadd.f32 %v2763, %v2851
      %v2853 = vpop.f32.mrf.mxu0
      %v2854 = vadd.f32 %v2765, %v2853
      %2855 = vmatmul.bf16.gmra.mxu0 %v1399
      %v2856 = vpop.f32.mrf.mxu0
      %v2857 = vadd.f32 %v2768, %v2856
      %v2858 = vpop.f32.mrf.mxu0
      %v2859 = vadd.f32 %v2770, %v2858
      %2860 = vmatmul.bf16.gmra.mxu0 %v1410
      %v2861 = vpop.f32.mrf.mxu0
      %v2862 = vadd.f32 %v2773, %v2861
      %v2863 = vpop.f32.mrf.mxu0
      %v2864 = vadd.f32 %v2775, %v2863
      %2865 = vmatmul.bf16.gmra.mxu0 %v1421
      %v2866 = vpop.f32.mrf.mxu0
      %v2867 = vadd.f32 %v2778, %v2866
      %v2868 = vpop.f32.mrf.mxu0
      %v2869 = vadd.f32 %v2780, %v2868
      %2870 = vmatmul.bf16.gmra.mxu0 %v1432
      %v2871 = vpop.f32.mrf.mxu0
      %v2872 = vadd.f32 %v2783, %v2871
      %v2873 = vpop.f32.mrf.mxu0
      %v2874 = vadd.f32 %v2785, %v2873
      %2875 = vmatmul.bf16.gmra.mxu0 %v1443
      %v2876 = vpop.f32.mrf.mxu0
      %v2877 = vadd.f32 %v2788, %v2876
      %v2878 = vpop.f32.mrf.mxu0
      %v2879 = vadd.f32 %v2790, %v2878
      %2880 = vmatmul.bf16.gmra.mxu0 %v1454
      %v2881 = vpop.f32.mrf.mxu0
      %v2882 = vadd.f32 %v2793, %v2881
      %v2883 = vpop.f32.mrf.mxu0
      %v2884 = vadd.f32 %v2795, %v2883
      %2885 = vmatmul.bf16.gmra.mxu0 %v1465
      %v2886 = vpop.f32.mrf.mxu0
      %v2887 = vadd.f32 %v2798, %v2886
      %v2888 = vpop.f32.mrf.mxu0
      %v2889 = vadd.f32 %v2800, %v2888
      %2890 = vmatmul.bf16.gmra.mxu0 %v1476
      %v2891 = vpop.f32.mrf.mxu0
      %v2892 = vadd.f32 %v2803, %v2891
      %v2893 = vpop.f32.mrf.mxu0
      %v2894 = vadd.f32 %v2805, %v2893
      %2895 = vdwg.mxu0
      %2896 = vmatpush.bf16.msra.mxu0 %v2079
      %2897 = vmatpush.bf16.msra.mxu0 %v2078
      %2898 = vmatpush.bf16.msra.mxu0 %v2077
      %2899 = vmatpush.bf16.msra.mxu0 %v2076
      %2900 = vmatpush.bf16.msra.mxu0 %v2075
      %2901 = vmatpush.bf16.msra.mxu0 %v2074
      %2902 = vmatpush.bf16.msra.mxu0 %v2073
      %2903 = vmatpush.bf16.msra.mxu0 %v2072
      %2904 = vmatmul.bf16.gmra.mxu0 %v1312
      %v2905 = vpop.f32.mrf.mxu0
      %v2906 = vadd.f32 %v2817, %v2905
      %v2907 = vpop.f32.mrf.mxu0
      %v2908 = vadd.f32 %v2819, %v2907
      %2909 = vmatmul.bf16.gmra.mxu0 %v1323
      %v2910 = vpop.f32.mrf.mxu0
      %v2911 = vadd.f32 %v2822, %v2910
      %v2912 = vpop.f32.mrf.mxu0
      %v2913 = vadd.f32 %v2824, %v2912
      %2914 = vmatmul.bf16.gmra.mxu0 %v1334
      %v2915 = vpop.f32.mrf.mxu0
      %v2916 = vadd.f32 %v2827, %v2915
      %v2917 = vpop.f32.mrf.mxu0
      %v2918 = vadd.f32 %v2829, %v2917
      %2919 = vmatmul.bf16.gmra.mxu0 %v1345
      %v2920 = vpop.f32.mrf.mxu0
      %v2921 = vadd.f32 %v2832, %v2920
      %v2922 = vpop.f32.mrf.mxu0
      %v2923 = vadd.f32 %v2834, %v2922
      %2924 = vmatmul.bf16.gmra.mxu0 %v1356
      %v2925 = vpop.f32.mrf.mxu0
      %v2926 = vadd.f32 %v2837, %v2925
      %v2927 = vpop.f32.mrf.mxu0
      %v2928 = vadd.f32 %v2839, %v2927
      %2929 = vmatmul.bf16.gmra.mxu0 %v1367
      %v2930 = vpop.f32.mrf.mxu0
      %v2931 = vadd.f32 %v2842, %v2930
      %v2932 = vpop.f32.mrf.mxu0
      %v2933 = vadd.f32 %v2844, %v2932
      %2934 = vmatmul.bf16.gmra.mxu0 %v1378
      %v2935 = vpop.f32.mrf.mxu0
      %v2936 = vadd.f32 %v2847, %v2935
      %v2937 = vpop.f32.mrf.mxu0
      %v2938 = vadd.f32 %v2849, %v2937
      %2939 = vmatmul.bf16.gmra.mxu0 %v1389
      %v2940 = vpop.f32.mrf.mxu0
      %v2941 = vadd.f32 %v2852, %v2940
      %v2942 = vpop.f32.mrf.mxu0
      %v2943 = vadd.f32 %v2854, %v2942
      %2944 = vmatmul.bf16.gmra.mxu0 %v1400
      %v2945 = vpop.f32.mrf.mxu0
      %v2946 = vadd.f32 %v2857, %v2945
      %v2947 = vpop.f32.mrf.mxu0
      %v2948 = vadd.f32 %v2859, %v2947
      %2949 = vmatmul.bf16.gmra.mxu0 %v1411
      %v2950 = vpop.f32.mrf.mxu0
      %v2951 = vadd.f32 %v2862, %v2950
      %v2952 = vpop.f32.mrf.mxu0
      %v2953 = vadd.f32 %v2864, %v2952
      %2954 = vmatmul.bf16.gmra.mxu0 %v1422
      %v2955 = vpop.f32.mrf.mxu0
      %v2956 = vadd.f32 %v2867, %v2955
      %v2957 = vpop.f32.mrf.mxu0
      %v2958 = vadd.f32 %v2869, %v2957
      %2959 = vmatmul.bf16.gmra.mxu0 %v1433
      %v2960 = vpop.f32.mrf.mxu0
      %v2961 = vadd.f32 %v2872, %v2960
      %v2962 = vpop.f32.mrf.mxu0
      %v2963 = vadd.f32 %v2874, %v2962
      %2964 = vmatmul.bf16.gmra.mxu0 %v1444
      %v2965 = vpop.f32.mrf.mxu0
      %v2966 = vadd.f32 %v2877, %v2965
      %v2967 = vpop.f32.mrf.mxu0
      %v2968 = vadd.f32 %v2879, %v2967
      %2969 = vmatmul.bf16.gmra.mxu0 %v1455
      %v2970 = vpop.f32.mrf.mxu0
      %v2971 = vadd.f32 %v2882, %v2970
      %v2972 = vpop.f32.mrf.mxu0
      %v2973 = vadd.f32 %v2884, %v2972
      %2974 = vmatmul.bf16.gmra.mxu0 %v1466
      %v2975 = vpop.f32.mrf.mxu0
      %v2976 = vadd.f32 %v2887, %v2975
      %v2977 = vpop.f32.mrf.mxu0
      %v2978 = vadd.f32 %v2889, %v2977
      %2979 = vmatmul.bf16.gmra.mxu0 %v1477
      %v2980 = vpop.f32.mrf.mxu0
      %v2981 = vadd.f32 %v2892, %v2980
      %v2982 = vpop.f32.mrf.mxu0
      %v2983 = vadd.f32 %v2894, %v2982
      %2984 = vdwg.mxu0
      %2985 = vmatpush.bf16.msra.mxu0 %v2087
      %2986 = vmatpush.bf16.msra.mxu0 %v2086
      %2987 = vmatpush.bf16.msra.mxu0 %v2085
      %2988 = vmatpush.bf16.msra.mxu0 %v2084
      %2989 = vmatpush.bf16.msra.mxu0 %v2083
      %2990 = vmatpush.bf16.msra.mxu0 %v2082
      %2991 = vmatpush.bf16.msra.mxu0 %v2081
      %2992 = vmatpush.bf16.msra.mxu0 %v2080
      %2993 = vmatmul.bf16.gmra.mxu0 %v1313
      %v2994 = vpop.f32.mrf.mxu0
      %v2995 = vadd.f32 %v2906, %v2994
      %v2996 = vpop.f32.mrf.mxu0
      %v2997 = vadd.f32 %v2908, %v2996
      %2998 = vmatmul.bf16.gmra.mxu0 %v1324
      %v2999 = vpop.f32.mrf.mxu0
      %v3000 = vadd.f32 %v2911, %v2999
      %v3001 = vpop.f32.mrf.mxu0
      %v3002 = vadd.f32 %v2913, %v3001
      %3003 = vmatmul.bf16.gmra.mxu0 %v1335
      %v3004 = vpop.f32.mrf.mxu0
      %v3005 = vadd.f32 %v2916, %v3004
      %v3006 = vpop.f32.mrf.mxu0
      %v3007 = vadd.f32 %v2918, %v3006
      %3008 = vmatmul.bf16.gmra.mxu0 %v1346
      %v3009 = vpop.f32.mrf.mxu0
      %v3010 = vadd.f32 %v2921, %v3009
      %v3011 = vpop.f32.mrf.mxu0
      %v3012 = vadd.f32 %v2923, %v3011
      %3013 = vmatmul.bf16.gmra.mxu0 %v1357
      %v3014 = vpop.f32.mrf.mxu0
      %v3015 = vadd.f32 %v2926, %v3014
      %v3016 = vpop.f32.mrf.mxu0
      %v3017 = vadd.f32 %v2928, %v3016
      %3018 = vmatmul.bf16.gmra.mxu0 %v1368
      %v3019 = vpop.f32.mrf.mxu0
      %v3020 = vadd.f32 %v2931, %v3019
      %v3021 = vpop.f32.mrf.mxu0
      %v3022 = vadd.f32 %v2933, %v3021
      %3023 = vmatmul.bf16.gmra.mxu0 %v1379
      %v3024 = vpop.f32.mrf.mxu0
      %v3025 = vadd.f32 %v2936, %v3024
      %v3026 = vpop.f32.mrf.mxu0
      %v3027 = vadd.f32 %v2938, %v3026
      %3028 = vmatmul.bf16.gmra.mxu0 %v1390
      %v3029 = vpop.f32.mrf.mxu0
      %v3030 = vadd.f32 %v2941, %v3029
      %v3031 = vpop.f32.mrf.mxu0
      %v3032 = vadd.f32 %v2943, %v3031
      %3033 = vmatmul.bf16.gmra.mxu0 %v1401
      %v3034 = vpop.f32.mrf.mxu0
      %v3035 = vadd.f32 %v2946, %v3034
      %v3036 = vpop.f32.mrf.mxu0
      %v3037 = vadd.f32 %v2948, %v3036
      %3038 = vmatmul.bf16.gmra.mxu0 %v1412
      %v3039 = vpop.f32.mrf.mxu0
      %v3040 = vadd.f32 %v2951, %v3039
      %v3041 = vpop.f32.mrf.mxu0
      %v3042 = vadd.f32 %v2953, %v3041
      %3043 = vmatmul.bf16.gmra.mxu0 %v1423
      %v3044 = vpop.f32.mrf.mxu0
      %v3045 = vadd.f32 %v2956, %v3044
      %v3046 = vpop.f32.mrf.mxu0
      %v3047 = vadd.f32 %v2958, %v3046
      %3048 = vmatmul.bf16.gmra.mxu0 %v1434
      %v3049 = vpop.f32.mrf.mxu0
      %v3050 = vadd.f32 %v2961, %v3049
      %v3051 = vpop.f32.mrf.mxu0
      %v3052 = vadd.f32 %v2963, %v3051
      %3053 = vmatmul.bf16.gmra.mxu0 %v1445
      %v3054 = vpop.f32.mrf.mxu0
      %v3055 = vadd.f32 %v2966, %v3054
      %v3056 = vpop.f32.mrf.mxu0
      %v3057 = vadd.f32 %v2968, %v3056
      %3058 = vmatmul.bf16.gmra.mxu0 %v1456
      %v3059 = vpop.f32.mrf.mxu0
      %v3060 = vadd.f32 %v2971, %v3059
      %v3061 = vpop.f32.mrf.mxu0
      %v3062 = vadd.f32 %v2973, %v3061
      %3063 = vmatmul.bf16.gmra.mxu0 %v1467
      %v3064 = vpop.f32.mrf.mxu0
      %v3065 = vadd.f32 %v2976, %v3064
      %v3066 = vpop.f32.mrf.mxu0
      %v3067 = vadd.f32 %v2978, %v3066
      %3068 = vmatmul.bf16.gmra.mxu0 %v1478
      %v3069 = vpop.f32.mrf.mxu0
      %v3070 = vadd.f32 %v2981, %v3069
      %v3071 = vpop.f32.mrf.mxu0
      %v3072 = vadd.f32 %v2983, %v3071
      %3073 = vdwg.mxu0
      %3074 = vmatpush.bf16.msra.mxu0 %v2095
      %3075 = vmatpush.bf16.msra.mxu0 %v2094
      %3076 = vmatpush.bf16.msra.mxu0 %v2093
      %3077 = vmatpush.bf16.msra.mxu0 %v2092
      %3078 = vmatpush.bf16.msra.mxu0 %v2091
      %3079 = vmatpush.bf16.msra.mxu0 %v2090
      %3080 = vmatpush.bf16.msra.mxu0 %v2089
      %3081 = vmatpush.bf16.msra.mxu0 %v2088
      %3082 = vmatmul.bf16.gmra.mxu0 %v1314
      %v3083 = vpop.f32.mrf.mxu0
      %v3084 = vadd.f32 %v2995, %v3083
      %v3085 = vpop.f32.mrf.mxu0
      %v3086 = vadd.f32 %v2997, %v3085
      %3087 = vmatmul.bf16.gmra.mxu0 %v1325
      %v3088 = vpop.f32.mrf.mxu0
      %v3089 = vadd.f32 %v3000, %v3088
      %v3090 = vpop.f32.mrf.mxu0
      %v3091 = vadd.f32 %v3002, %v3090
      %3092 = vmatmul.bf16.gmra.mxu0 %v1336
      %v3093 = vpop.f32.mrf.mxu0
      %v3094 = vadd.f32 %v3005, %v3093
      %v3095 = vpop.f32.mrf.mxu0
      %v3096 = vadd.f32 %v3007, %v3095
      %3097 = vmatmul.bf16.gmra.mxu0 %v1347
      %v3098 = vpop.f32.mrf.mxu0
      %v3099 = vadd.f32 %v3010, %v3098
      %v3100 = vpop.f32.mrf.mxu0
      %v3101 = vadd.f32 %v3012, %v3100
      %3102 = vmatmul.bf16.gmra.mxu0 %v1358
      %v3103 = vpop.f32.mrf.mxu0
      %v3104 = vadd.f32 %v3015, %v3103
      %v3105 = vpop.f32.mrf.mxu0
      %v3106 = vadd.f32 %v3017, %v3105
      %3107 = vmatmul.bf16.gmra.mxu0 %v1369
      %v3108 = vpop.f32.mrf.mxu0
      %v3109 = vadd.f32 %v3020, %v3108
      %v3110 = vpop.f32.mrf.mxu0
      %v3111 = vadd.f32 %v3022, %v3110
      %3112 = vmatmul.bf16.gmra.mxu0 %v1380
      %v3113 = vpop.f32.mrf.mxu0
      %v3114 = vadd.f32 %v3025, %v3113
      %v3115 = vpop.f32.mrf.mxu0
      %v3116 = vadd.f32 %v3027, %v3115
      %3117 = vmatmul.bf16.gmra.mxu0 %v1391
      %v3118 = vpop.f32.mrf.mxu0
      %v3119 = vadd.f32 %v3030, %v3118
      %v3120 = vpop.f32.mrf.mxu0
      %v3121 = vadd.f32 %v3032, %v3120
      %3122 = vmatmul.bf16.gmra.mxu0 %v1402
      %v3123 = vpop.f32.mrf.mxu0
      %v3124 = vadd.f32 %v3035, %v3123
      %v3125 = vpop.f32.mrf.mxu0
      %v3126 = vadd.f32 %v3037, %v3125
      %3127 = vmatmul.bf16.gmra.mxu0 %v1413
      %v3128 = vpop.f32.mrf.mxu0
      %v3129 = vadd.f32 %v3040, %v3128
      %v3130 = vpop.f32.mrf.mxu0
      %v3131 = vadd.f32 %v3042, %v3130
      %3132 = vmatmul.bf16.gmra.mxu0 %v1424
      %v3133 = vpop.f32.mrf.mxu0
      %v3134 = vadd.f32 %v3045, %v3133
      %v3135 = vpop.f32.mrf.mxu0
      %v3136 = vadd.f32 %v3047, %v3135
      %3137 = vmatmul.bf16.gmra.mxu0 %v1435
      %v3138 = vpop.f32.mrf.mxu0
      %v3139 = vadd.f32 %v3050, %v3138
      %v3140 = vpop.f32.mrf.mxu0
      %v3141 = vadd.f32 %v3052, %v3140
      %3142 = vmatmul.bf16.gmra.mxu0 %v1446
      %v3143 = vpop.f32.mrf.mxu0
      %v3144 = vadd.f32 %v3055, %v3143
      %v3145 = vpop.f32.mrf.mxu0
      %v3146 = vadd.f32 %v3057, %v3145
      %3147 = vmatmul.bf16.gmra.mxu0 %v1457
      %v3148 = vpop.f32.mrf.mxu0
      %v3149 = vadd.f32 %v3060, %v3148
      %v3150 = vpop.f32.mrf.mxu0
      %v3151 = vadd.f32 %v3062, %v3150
      %3152 = vmatmul.bf16.gmra.mxu0 %v1468
      %v3153 = vpop.f32.mrf.mxu0
      %v3154 = vadd.f32 %v3065, %v3153
      %v3155 = vpop.f32.mrf.mxu0
      %v3156 = vadd.f32 %v3067, %v3155
      %3157 = vmatmul.bf16.gmra.mxu0 %v1479
      %v3158 = vpop.f32.mrf.mxu0
      %v3159 = vadd.f32 %v3070, %v3158
      %v3160 = vpop.f32.mrf.mxu0
      %v3161 = vadd.f32 %v3072, %v3160
      %3162 = vdwg.mxu0
      %v3163 = vadd.f32 %v360, %v3084
      %v3164 = vadd.f32 %v361, %v3086
      %v3165 = vadd.f32 %v362, %v3089
      %v3166 = vadd.f32 %v363, %v3091
      %v3167 = vadd.f32 %v364, %v3094
      %v3168 = vadd.f32 %v365, %v3096
      %v3169 = vadd.f32 %v366, %v3099
      %v3170 = vadd.f32 %v367, %v3101
      %v3171 = vadd.f32 %v368, %v3104
      %v3172 = vadd.f32 %v369, %v3106
      %v3173 = vadd.f32 %v370, %v3109
      %v3174 = vadd.f32 %v371, %v3111
      %v3175 = vadd.f32 %v372, %v3114
      %v3176 = vadd.f32 %v373, %v3116
      %v3177 = vadd.f32 %v374, %v3119
      %v3178 = vadd.f32 %v375, %v3121
      %v3179 = vadd.f32 %v376, %v3124
      %v3180 = vadd.f32 %v377, %v3126
      %v3181 = vadd.f32 %v378, %v3129
      %v3182 = vadd.f32 %v379, %v3131
      %v3183 = vadd.f32 %v380, %v3134
      %v3184 = vadd.f32 %v381, %v3136
      %v3185 = vadd.f32 %v382, %v3139
      %v3186 = vadd.f32 %v383, %v3141
      %v3187 = vadd.f32 %v384, %v3144
      %v3188 = vadd.f32 %v385, %v3146
      %v3189 = vadd.f32 %v386, %v3149
      %v3190 = vadd.f32 %v387, %v3151
      %v3191 = vadd.f32 %v388, %v3154
      %v3192 = vadd.f32 %v389, %v3156
      %v3193 = vadd.f32 %v390, %v3159
      %v3194 = vadd.f32 %v391, %v3161
      %vm3195 = vcmask 261120
      %3196 = vst.msk [vmem:[#allocation2] sm:$0xff] %vm3195, %v3163
      %3197 = vst.msk [vmem:[#allocation2 + $0x8] sm:$0xff] %vm3195, %v3164
      %3198 = vst.msk [vmem:[#allocation2 + $0x10] sm:$0xff] %vm3195, %v3165
      %3199 = vst.msk [vmem:[#allocation2 + $0x18] sm:$0xff] %vm3195, %v3166
      %3200 = vst.msk [vmem:[#allocation2 + $0x20] sm:$0xff] %vm3195, %v3167
      %3201 = vst.msk [vmem:[#allocation2 + $0x28] sm:$0xff] %vm3195, %v3168
      %3202 = vst.msk [vmem:[#allocation2 + $0x30] sm:$0xff] %vm3195, %v3169
      %3203 = vst.msk [vmem:[#allocation2 + $0x38] sm:$0xff] %vm3195, %v3170
      %3204 = vst.msk [vmem:[#allocation2 + $0x40] sm:$0xff] %vm3195, %v3171
      %3205 = vst.msk [vmem:[#allocation2 + $0x48] sm:$0xff] %vm3195, %v3172
      %3206 = vst.msk [vmem:[#allocation2 + $0x50] sm:$0xff] %vm3195, %v3173
      %3207 = vst.msk [vmem:[#allocation2 + $0x58] sm:$0xff] %vm3195, %v3174
      %3208 = vst.msk [vmem:[#allocation2 + $0x60] sm:$0xff] %vm3195, %v3175
      %3209 = vst.msk [vmem:[#allocation2 + $0x68] sm:$0xff] %vm3195, %v3176
      %3210 = vst.msk [vmem:[#allocation2 + $0x70] sm:$0xff] %vm3195, %v3177
      %3211 = vst.msk [vmem:[#allocation2 + $0x78] sm:$0xff] %vm3195, %v3178
      %3212 = vst.msk [vmem:[#allocation2 + $0x80] sm:$0xff] %vm3195, %v3179
      %3213 = vst.msk [vmem:[#allocation2 + $0x88] sm:$0xff] %vm3195, %v3180
      %3214 = vst.msk [vmem:[#allocation2 + $0x90] sm:$0xff] %vm3195, %v3181
      %3215 = vst.msk [vmem:[#allocation2 + $0x98] sm:$0xff] %vm3195, %v3182
      %3216 = vst.msk [vmem:[#allocation2 + $0xa0] sm:$0xff] %vm3195, %v3183
      %3217 = vst.msk [vmem:[#allocation2 + $0xa8] sm:$0xff] %vm3195, %v3184
      %3218 = vst.msk [vmem:[#allocation2 + $0xb0] sm:$0xff] %vm3195, %v3185
      %3219 = vst.msk [vmem:[#allocation2 + $0xb8] sm:$0xff] %vm3195, %v3186
      %3220 = vst.msk [vmem:[#allocation2 + $0xc0] sm:$0xff] %vm3195, %v3187
      %3221 = vst.msk [vmem:[#allocation2 + $0xc8] sm:$0xff] %vm3195, %v3188
      %3222 = vst.msk [vmem:[#allocation2 + $0xd0] sm:$0xff] %vm3195, %v3189
      %3223 = vst.msk [vmem:[#allocation2 + $0xd8] sm:$0xff] %vm3195, %v3190
      %3224 = vst.msk [vmem:[#allocation2 + $0xe0] sm:$0xff] %vm3195, %v3191
      %3225 = vst.msk [vmem:[#allocation2 + $0xe8] sm:$0xff] %vm3195, %v3192
      %3226 = vst.msk [vmem:[#allocation2 + $0xf0] sm:$0xff] %vm3195, %v3193
      %3227 = vst.msk [vmem:[#allocation2 + $0xf8] sm:$0xff] %vm3195, %v3194
      // Predicated region
      $region37: #{scale_discriminator_forward.9} parent=31 // pred_check
        %p3228 = pneg %p323
      $region38: #{scale_discriminator_forward.9} parent=31 // pred_check_branch
        %3230 = sbr.rel (%p3228) target = $region40
      $region39: #{scale_discriminator_forward.9} parent=31 // pred_region
        %v3231 = vld [vmem:[#allocation2] sm:$0xff]
        %v3232 = vld [vmem:[#allocation2 + $0x8] sm:$0xff]
        %v3233 = vld [vmem:[#allocation2 + $0x10] sm:$0xff]
        %v3234 = vld [vmem:[#allocation2 + $0x18] sm:$0xff]
        %v3235 = vld [vmem:[#allocation2 + $0x20] sm:$0xff]
        %v3236 = vld [vmem:[#allocation2 + $0x28] sm:$0xff]
        %v3237 = vld [vmem:[#allocation2 + $0x30] sm:$0xff]
        %v3238 = vld [vmem:[#allocation2 + $0x38] sm:$0xff]
        %v3239 = vld [vmem:[#allocation2 + $0x40] sm:$0xff]
        %v3240 = vld [vmem:[#allocation2 + $0x48] sm:$0xff]
        %v3241 = vld [vmem:[#allocation2 + $0x50] sm:$0xff]
        %v3242 = vld [vmem:[#allocation2 + $0x58] sm:$0xff]
        %v3243 = vld [vmem:[#allocation2 + $0x60] sm:$0xff]
        %v3244 = vld [vmem:[#allocation2 + $0x68] sm:$0xff]
        %v3245 = vld [vmem:[#allocation2 + $0x70] sm:$0xff]
        %v3246 = vld [vmem:[#allocation2 + $0x78] sm:$0xff]
        %v3247 = vld [vmem:[#allocation2 + $0x80] sm:$0xff]
        %v3248 = vld [vmem:[#allocation2 + $0x88] sm:$0xff]
        %v3249 = vld [vmem:[#allocation2 + $0x90] sm:$0xff]
        %v3250 = vld [vmem:[#allocation2 + $0x98] sm:$0xff]
        %v3251 = vld [vmem:[#allocation2 + $0xa0] sm:$0xff]
        %v3252 = vld [vmem:[#allocation2 + $0xa8] sm:$0xff]
        %v3253 = vld [vmem:[#allocation2 + $0xb0] sm:$0xff]
        %v3254 = vld [vmem:[#allocation2 + $0xb8] sm:$0xff]
        %v3255 = vld [vmem:[#allocation2 + $0xc0] sm:$0xff]
        %v3256 = vld [vmem:[#allocation2 + $0xc8] sm:$0xff]
        %v3257 = vld [vmem:[#allocation2 + $0xd0] sm:$0xff]
        %v3258 = vld [vmem:[#allocation2 + $0xd8] sm:$0xff]
        %v3259 = vld [vmem:[#allocation2 + $0xe0] sm:$0xff]
        %v3260 = vld [vmem:[#allocation2 + $0xe8] sm:$0xff]
        %v3261 = vld [vmem:[#allocation2 + $0xf0] sm:$0xff]
        %v3262 = vld [vmem:[#allocation2 + $0xf8] sm:$0xff]
        %v3263 = vld [vmem:[%s309] sm:$0x1]
        %v3265 = vperm.slane %v3263, 0
        %v3267 = vadd.f32 %v3231, %v3265
        %v3268 = vadd.f32 %v3232, %v3265
        %v3269 = vadd.f32 %v3233, %v3265
        %v3270 = vadd.f32 %v3234, %v3265
        %v3271 = vadd.f32 %v3235, %v3265
        %v3272 = vadd.f32 %v3236, %v3265
        %v3273 = vadd.f32 %v3237, %v3265
        %v3274 = vadd.f32 %v3238, %v3265
        %v3275 = vadd.f32 %v3239, %v3265
        %v3276 = vadd.f32 %v3240, %v3265
        %v3277 = vadd.f32 %v3241, %v3265
        %v3278 = vadd.f32 %v3242, %v3265
        %v3279 = vadd.f32 %v3243, %v3265
        %v3280 = vadd.f32 %v3244, %v3265
        %v3281 = vadd.f32 %v3245, %v3265
        %v3282 = vadd.f32 %v3246, %v3265
        %v3283 = vadd.f32 %v3247, %v3265
        %v3284 = vadd.f32 %v3248, %v3265
        %v3285 = vadd.f32 %v3249, %v3265
        %v3286 = vadd.f32 %v3250, %v3265
        %v3287 = vadd.f32 %v3251, %v3265
        %v3288 = vadd.f32 %v3252, %v3265
        %v3289 = vadd.f32 %v3253, %v3265
        %v3290 = vadd.f32 %v3254, %v3265
        %v3291 = vadd.f32 %v3255, %v3265
        %v3292 = vadd.f32 %v3256, %v3265
        %v3293 = vadd.f32 %v3257, %v3265
        %v3294 = vadd.f32 %v3258, %v3265
        %v3295 = vadd.f32 %v3259, %v3265
        %v3296 = vadd.f32 %v3260, %v3265
        %v3297 = vadd.f32 %v3261, %v3265
        %v3298 = vadd.f32 %v3262, %v3265
        %vm3299 = vcmp.ge.f32.partialorder %v3267, 0.0
        %vm3300 = vcmp.ge.f32.partialorder %v3268, 0.0
        %vm3301 = vcmp.ge.f32.partialorder %v3269, 0.0
        %vm3302 = vcmp.ge.f32.partialorder %v3270, 0.0
        %vm3303 = vcmp.ge.f32.partialorder %v3271, 0.0
        %vm3304 = vcmp.ge.f32.partialorder %v3272, 0.0
        %vm3305 = vcmp.ge.f32.partialorder %v3273, 0.0
        %vm3306 = vcmp.ge.f32.partialorder %v3274, 0.0
        %vm3307 = vcmp.ge.f32.partialorder %v3275, 0.0
        %vm3308 = vcmp.ge.f32.partialorder %v3276, 0.0
        %vm3309 = vcmp.ge.f32.partialorder %v3277, 0.0
        %vm3310 = vcmp.ge.f32.partialorder %v3278, 0.0
        %vm3311 = vcmp.ge.f32.partialorder %v3279, 0.0
        %vm3312 = vcmp.ge.f32.partialorder %v3280, 0.0
        %vm3313 = vcmp.ge.f32.partialorder %v3281, 0.0
        %vm3314 = vcmp.ge.f32.partialorder %v3282, 0.0
        %vm3315 = vcmp.ge.f32.partialorder %v3283, 0.0
        %vm3316 = vcmp.ge.f32.partialorder %v3284, 0.0
        %vm3317 = vcmp.ge.f32.partialorder %v3285, 0.0
        %vm3318 = vcmp.ge.f32.partialorder %v3286, 0.0
        %vm3319 = vcmp.ge.f32.partialorder %v3287, 0.0
        %vm3320 = vcmp.ge.f32.partialorder %v3288, 0.0
        %vm3321 = vcmp.ge.f32.partialorder %v3289, 0.0
        %vm3322 = vcmp.ge.f32.partialorder %v3290, 0.0
        %vm3323 = vcmp.ge.f32.partialorder %v3291, 0.0
        %vm3324 = vcmp.ge.f32.partialorder %v3292, 0.0
        %vm3325 = vcmp.ge.f32.partialorder %v3293, 0.0
        %vm3326 = vcmp.ge.f32.partialorder %v3294, 0.0
        %vm3327 = vcmp.ge.f32.partialorder %v3295, 0.0
        %vm3328 = vcmp.ge.f32.partialorder %v3296, 0.0
        %vm3329 = vcmp.ge.f32.partialorder %v3297, 0.0
        %vm3330 = vcmp.ge.f32.partialorder %v3298, 0.0
        %v3331 = vmul.f32 %v3267, 0.1
        %v3332 = vmul.f32 %v3268, 0.1
        %v3333 = vmul.f32 %v3269, 0.1
        %v3334 = vmul.f32 %v3270, 0.1
        %v3335 = vmul.f32 %v3271, 0.1
        %v3336 = vmul.f32 %v3272, 0.1
        %v3337 = vmul.f32 %v3273, 0.1
        %v3338 = vmul.f32 %v3274, 0.1
        %v3339 = vmul.f32 %v3275, 0.1
        %v3340 = vmul.f32 %v3276, 0.1
        %v3341 = vmul.f32 %v3277, 0.1
        %v3342 = vmul.f32 %v3278, 0.1
        %v3343 = vmul.f32 %v3279, 0.1
        %v3344 = vmul.f32 %v3280, 0.1
        %v3345 = vmul.f32 %v3281, 0.1
        %v3346 = vmul.f32 %v3282, 0.1
        %v3347 = vmul.f32 %v3283, 0.1
        %v3348 = vmul.f32 %v3284, 0.1
        %v3349 = vmul.f32 %v3285, 0.1
        %v3350 = vmul.f32 %v3286, 0.1
        %v3351 = vmul.f32 %v3287, 0.1
        %v3352 = vmul.f32 %v3288, 0.1
        %v3353 = vmul.f32 %v3289, 0.1
        %v3354 = vmul.f32 %v3290, 0.1
        %v3355 = vmul.f32 %v3291, 0.1
        %v3356 = vmul.f32 %v3292, 0.1
        %v3357 = vmul.f32 %v3293, 0.1
        %v3358 = vmul.f32 %v3294, 0.1
        %v3359 = vmul.f32 %v3295, 0.1
        %v3360 = vmul.f32 %v3296, 0.1
        %v3361 = vmul.f32 %v3297, 0.1
        %v3362 = vmul.f32 %v3298, 0.1
        %v3363 = vsel %vm3299, %v3267, %v3331
        %v3364 = vsel %vm3300, %v3268, %v3332
        %v3365 = vsel %vm3301, %v3269, %v3333
        %v3366 = vsel %vm3302, %v3270, %v3334
        %v3367 = vsel %vm3303, %v3271, %v3335
        %v3368 = vsel %vm3304, %v3272, %v3336
        %v3369 = vsel %vm3305, %v3273, %v3337
        %v3370 = vsel %vm3306, %v3274, %v3338
        %v3371 = vsel %vm3307, %v3275, %v3339
        %v3372 = vsel %vm3308, %v3276, %v3340
        %v3373 = vsel %vm3309, %v3277, %v3341
        %v3374 = vsel %vm3310, %v3278, %v3342
        %v3375 = vsel %vm3311, %v3279, %v3343
        %v3376 = vsel %vm3312, %v3280, %v3344
        %v3377 = vsel %vm3313, %v3281, %v3345
        %v3378 = vsel %vm3314, %v3282, %v3346
        %v3379 = vsel %vm3315, %v3283, %v3347
        %v3380 = vsel %vm3316, %v3284, %v3348
        %v3381 = vsel %vm3317, %v3285, %v3349
        %v3382 = vsel %vm3318, %v3286, %v3350
        %v3383 = vsel %vm3319, %v3287, %v3351
        %v3384 = vsel %vm3320, %v3288, %v3352
        %v3385 = vsel %vm3321, %v3289, %v3353
        %v3386 = vsel %vm3322, %v3290, %v3354
        %v3387 = vsel %vm3323, %v3291, %v3355
        %v3388 = vsel %vm3324, %v3292, %v3356
        %v3389 = vsel %vm3325, %v3293, %v3357
        %v3390 = vsel %vm3326, %v3294, %v3358
        %v3391 = vsel %vm3327, %v3295, %v3359
        %v3392 = vsel %vm3328, %v3296, %v3360
        %v3393 = vsel %vm3329, %v3297, %v3361
        %v3394 = vsel %vm3330, %v3298, %v3362
        %3395 = vst.msk [vmem:[%s321] sm:$0xff] %vm3195, %v3363
        %3396 = vst.msk [vmem:[%s321 + $0x8] sm:$0xff] %vm3195, %v3364
        %3397 = vst.msk [vmem:[%s321 + $0x10] sm:$0xff] %vm3195, %v3365
        %3398 = vst.msk [vmem:[%s321 + $0x18] sm:$0xff] %vm3195, %v3366
        %3399 = vst.msk [vmem:[%s321 + $0x20] sm:$0xff] %vm3195, %v3367
        %3400 = vst.msk [vmem:[%s321 + $0x28] sm:$0xff] %vm3195, %v3368
        %3401 = vst.msk [vmem:[%s321 + $0x30] sm:$0xff] %vm3195, %v3369
        %3402 = vst.msk [vmem:[%s321 + $0x38] sm:$0xff] %vm3195, %v3370
        %3403 = vst.msk [vmem:[%s321 + $0x40] sm:$0xff] %vm3195, %v3371
        %3404 = vst.msk [vmem:[%s321 + $0x48] sm:$0xff] %vm3195, %v3372
        %3405 = vst.msk [vmem:[%s321 + $0x50] sm:$0xff] %vm3195, %v3373
        %3406 = vst.msk [vmem:[%s321 + $0x58] sm:$0xff] %vm3195, %v3374
        %3407 = vst.msk [vmem:[%s321 + $0x60] sm:$0xff] %vm3195, %v3375
        %3408 = vst.msk [vmem:[%s321 + $0x68] sm:$0xff] %vm3195, %v3376
        %3409 = vst.msk [vmem:[%s321 + $0x70] sm:$0xff] %vm3195, %v3377
        %3410 = vst.msk [vmem:[%s321 + $0x78] sm:$0xff] %vm3195, %v3378
        %3411 = vst.msk [vmem:[%s321 + $0x80] sm:$0xff] %vm3195, %v3379
        %3412 = vst.msk [vmem:[%s321 + $0x88] sm:$0xff] %vm3195, %v3380
        %3413 = vst.msk [vmem:[%s321 + $0x90] sm:$0xff] %vm3195, %v3381
        %3414 = vst.msk [vmem:[%s321 + $0x98] sm:$0xff] %vm3195, %v3382
        %3415 = vst.msk [vmem:[%s321 + $0xa0] sm:$0xff] %vm3195, %v3383
        %3416 = vst.msk [vmem:[%s321 + $0xa8] sm:$0xff] %vm3195, %v3384
        %3417 = vst.msk [vmem:[%s321 + $0xb0] sm:$0xff] %vm3195, %v3385
        %3418 = vst.msk [vmem:[%s321 + $0xb8] sm:$0xff] %vm3195, %v3386
        %3419 = vst.msk [vmem:[%s321 + $0xc0] sm:$0xff] %vm3195, %v3387
        %3420 = vst.msk [vmem:[%s321 + $0xc8] sm:$0xff] %vm3195, %v3388
        %3421 = vst.msk [vmem:[%s321 + $0xd0] sm:$0xff] %vm3195, %v3389
        %3422 = vst.msk [vmem:[%s321 + $0xd8] sm:$0xff] %vm3195, %v3390
        %3423 = vst.msk [vmem:[%s321 + $0xe0] sm:$0xff] %vm3195, %v3391
        %3424 = vst.msk [vmem:[%s321 + $0xe8] sm:$0xff] %vm3195, %v3392
        %3425 = vst.msk [vmem:[%s321 + $0xf0] sm:$0xff] %vm3195, %v3393
        %3426 = vst.msk [vmem:[%s321 + $0xf8] sm:$0xff] %vm3195, %v3394
      $region40: #{scale_discriminator_forward.9} parent=31 // pred_fallthru
        _
      %s3427 = smul.u32 32, %s21
      %p3428 = scmp.lt.s32.totalorder %s20, 3
      %s3429 = scalar_select %p3428, %s20, 3
      %p3430 = scmp.lt.s32.totalorder %s3427, 31
      %s3431 = scalar_select %p3430, %s3427, 31
      %p3432 = scmp.lt.s32.totalorder %s22, 0
      %s3433 = scalar_select %p3432, %s22, 0
      %s3434 = sadd.s32 %s3433, %s3431
      %s3435 = smul.addr %s3429, 32
      %s3436 = sadd.s32 %s3434, %s3435
      %s3437 = smul.addr %s3436, 8
      %s3438 = scalar_lea.vmem %s3, %s3437
      // Predicated region
      $region41: #{scale_discriminator_forward.9} parent=31 // pred_check
        %p3439 = pneg %p150
      $region42: #{scale_discriminator_forward.9} parent=31 // pred_check_branch
        %3441 = sbr.rel (%p3439) target = $region44
      $region43: #{scale_discriminator_forward.9} parent=31 // pred_region
        %s3442 = smul.u32 32, %s21
      $region44: #{scale_discriminator_forward.9} parent=31 // pred_fallthru
        _
    $region32: #{scale_discriminator_forward.9} parent=5 // pred_fallthru
      _
    %p3443 = scmp.le.s32.totalorder 2, %s9
    // Predicated region
    $region45: #{scale_discriminator_forward.9} parent=5 // pred_check
      %p3444 = pneg %p3443
    $region46: #{scale_discriminator_forward.9} parent=5 // pred_check_branch
      %3446 = sbr.rel (%p3444) target = $region48
    $region47: #{scale_discriminator_forward.9} parent=5 // pred_region
      %s3447 = ssub.s32 %s9, 2
      // Predicated region
      $region49: #{scale_discriminator_forward.9} parent=47 // pred_check
        %p3448 = pneg %p156
      $region50: #{scale_discriminator_forward.9} parent=47 // pred_check_branch
        %3450 = sbr.rel (%p3448) target = $region52
      $region51: #{scale_discriminator_forward.9} parent=47 // pred_region
        %s3451 = smul.u32 32, %s25
        %p3452 = scmp.lt.s32.totalorder %s24, 3
        %s3453 = scalar_select %p3452, %s24, 3
        %p3454 = scmp.lt.s32.totalorder %s3451, 31
        %s3455 = scalar_select %p3454, %s3451, 31
        %p3456 = scmp.lt.s32.totalorder %s26, 0
        %s3457 = scalar_select %p3456, %s26, 0
        %s3458 = sadd.s32 %s3457, %s3455
        %s3459 = smul.addr %s3453, 32
        %s3460 = sadd.s32 %s3458, %s3459
        %s3461 = smul.addr %s3460, 8
        %s3462 = scalar_lea.vmem %s3, %s3461
      $region52: #{scale_discriminator_forward.9} parent=47 // pred_fallthru
        _
    $region48: #{scale_discriminator_forward.9} parent=5 // pred_fallthru
      _
  $region6: #{scale_discriminator_forward.9} parent=0 // loop_footer
    %s13 = sadd.s32 1, %s9
  $region7: #{scale_discriminator_forward.9} parent=0 // loop_footer_branch
    %8 = sbr.rel target = $region3
  $region8: #{scale_discriminator_forward.9} parent=0 // loop_exit
    _

// kernel: scale_discriminator_forward.10
$region0: #{scale_discriminator_forward.10}
  #allocation0 [shape = 'u32[]', space=smem, size = 0x4, offset = 0x4, fixed_abs, tag = 'smem constant byte address 0x4 - core index']
  #allocation1 [shape = 'u32[72,128]{1,0:T(1,128)}', space=vmem, size = 0x9000, scoped, tag = 'internal scratch']
  #allocation2 [shape = 'f32[128,16]{1,0:T(8,128)}', space=vmem, size = 0x10000, scoped, tag = 'scratch operand']
  %s0 = inlined_call_operand.vmem [shape: bf16[16,128,384], index: 0, kind: input, shape index: {}]
  %s1 = inlined_call_operand.vmem [shape: bf16[16,384,16], index: 1, kind: input, shape index: {}]
  %s2 = inlined_call_operand.vmem [shape: f32[16,1,16], index: 2, kind: input, shape index: {}]
  %s3 = inlined_call_operand.vmem [shape: f32[16,128,16], index: 3, kind: output, shape index: {}]
  %s4 = sld [smem:[#allocation0]]
  $region53: #{scale_discriminator_forward.10} parent=0
    _
  %s6 = ssub.s32 1, %s4
  %s7 = scalar_select 0, %s6, %s4
  loop: start=0, step=1, limit=18
  $region2: #{scale_discriminator_forward.10} parent=0 // loop_pre_header
    _
  $region3: #{scale_discriminator_forward.10} parent=0 // loop_header
    %s9 = sphi 0, %s13
    %p10 = scmp.ge.s32.totalorder %s9, 18
    %s16 = sphi 0, %s42
    %s17 = sphi 0, %s38
    %s18 = sphi 0, %s34
    %s19 = sphi 0, %s30
    %s20 = sphi 0, %s16
    %s21 = sphi 0, %s17
    %s22 = sphi 0, %s18
    %s23 = sphi 0, %s19
    %s24 = sphi 0, %s20
    %s25 = sphi 0, %s21
    %s26 = sphi 0, %s22
    %s27 = sphi 0, %s23
    %s49 = sphi 0, %s51
    %s52 = sphi 0, %s49
    %s53 = sphi 0, %s52
    %s69 = sphi 0, %s53
    %s79 = sphi 0, %s81
    %s82 = sphi 0, %s79
    %s83 = sphi 0, %s82
    %s99 = sphi 0, %s83
    %s107 = sphi 0, %s109
    %s110 = sphi 0, %s107
    %s111 = sphi 0, %s110
    %s127 = sphi 0, %s111
    %s137 = sphi 0, %s139
    %s140 = sphi 0, %s137
    %s141 = sphi 0, %s140
    %s157 = sphi 0, %s141
  $region4: #{scale_discriminator_forward.10} parent=0 // loop_header_branch
    %12 = sbr.rel (%p10) target = $region8
  $region5: #{scale_discriminator_forward.10} parent=0 // loop_body
    %s14 = ssub.s32 %s9, 1
    %s15 = ssub.s32 %s9, 2
    %s28 = sadd.s32 1, %s19
    %p29 = scmp.ge.s32.totalorder %s28, 1
    %s30 = scalar_select %p29, 0, %s28
    %s31 = sadd.s32 1, %s18
    %s32 = scalar_select %p29, %s31, %s18
    %p33 = scmp.ge.s32.totalorder %s32, 1
    %s34 = scalar_select %p33, 0, %s32
    %s35 = sadd.s32 1, %s17
    %s36 = scalar_select %p33, %s35, %s17
    %p37 = scmp.ge.s32.totalorder %s36, 1
    %s38 = scalar_select %p37, 0, %s36
    %s39 = sadd.s32 1, %s16
    %s40 = scalar_select %p37, %s39, %s16
    %p41 = scmp.ge.s32.totalorder %s40, 16
    %s42 = scalar_select %p41, 0, %s40
    %s43 = ssub.s32 %s16, %s42
    %s44 = ssub.s32 %s17, %s38
    %s45 = sor.u32 %s43, %s44
    %s46 = ssub.s32 %s19, %s30
    %s47 = sor.u32 %s45, %s46
    %p48 = scmp.eq.s32.totalorder %s47, 0
    %s50 = sadd.s32 %s49, 1
    %s51 = scalar_select %p48, %s49, %s50
    %p54 = pneg %p48
    %p55 = scmp.eq.s32.totalorder %s9, 15
    %p56 = por %p54, %p55
    %p57 = scmp.ne.s32.totalorder %s49, %s52
    %p58 = scmp.eq.s32.totalorder %s9, 0
    %p59 = por %p57, %p58
    %p60 = scmp.ne.s32.totalorder %s49, %s52
    %p61 = scmp.eq.s32.totalorder %s14, 15
    %p62 = por %p60, %p61
    %p63 = scmp.ne.s32.totalorder %s52, %s53
    %p64 = scmp.eq.s32.totalorder %s14, 0
    %p65 = por %p63, %p64
    %p66 = scmp.ne.s32.totalorder %s52, %s53
    %p67 = scmp.eq.s32.totalorder %s15, 15
    %p68 = por %p66, %p67
    %p70 = scmp.ne.s32.totalorder %s53, %s69
    %p71 = scmp.eq.s32.totalorder %s15, 0
    %p72 = por %p70, %p71
    %s73 = ssub.s32 %s16, %s42
    %s74 = ssub.s32 %s19, %s30
    %s75 = sor.u32 %s73, %s74
    %s76 = ssub.s32 %s18, %s34
    %s77 = sor.u32 %s75, %s76
    %p78 = scmp.eq.s32.totalorder %s77, 0
    %s80 = sadd.s32 %s79, 1
    %s81 = scalar_select %p78, %s79, %s80
    %p84 = pneg %p78
    %p85 = scmp.eq.s32.totalorder %s9, 15
    %p86 = por %p84, %p85
    %p87 = scmp.ne.s32.totalorder %s79, %s82
    %p88 = scmp.eq.s32.totalorder %s9, 0
    %p89 = por %p87, %p88
    %p90 = scmp.ne.s32.totalorder %s79, %s82
    %p91 = scmp.eq.s32.totalorder %s14, 15
    %p92 = por %p90, %p91
    %p93 = scmp.ne.s32.totalorder %s82, %s83
    %p94 = scmp.eq.s32.totalorder %s14, 0
    %p95 = por %p93, %p94
    %p96 = scmp.ne.s32.totalorder %s82, %s83
    %p97 = scmp.eq.s32.totalorder %s15, 15
    %p98 = por %p96, %p97
    %p100 = scmp.ne.s32.totalorder %s83, %s99
    %p101 = scmp.eq.s32.totalorder %s15, 0
    %p102 = por %p100, %p101
    %s103 = ssub.s32 %s16, %s42
    %s104 = ssub.s32 %s18, %s34
    %s105 = sor.u32 %s103, %s104
    %p106 = scmp.eq.s32.totalorder %s105, 0
    %s108 = sadd.s32 %s107, 1
    %s109 = scalar_select %p106, %s107, %s108
    %p112 = pneg %p106
    %p113 = scmp.eq.s32.totalorder %s9, 15
    %p114 = por %p112, %p113
    %p115 = scmp.ne.s32.totalorder %s107, %s110
    %p116 = scmp.eq.s32.totalorder %s9, 0
    %p117 = por %p115, %p116
    %p118 = scmp.ne.s32.totalorder %s107, %s110
    %p119 = scmp.eq.s32.totalorder %s14, 15
    %p120 = por %p118, %p119
    %p121 = scmp.ne.s32.totalorder %s110, %s111
    %p122 = scmp.eq.s32.totalorder %s14, 0
    %p123 = por %p121, %p122
    %p124 = scmp.ne.s32.totalorder %s110, %s111
    %p125 = scmp.eq.s32.totalorder %s15, 15
    %p126 = por %p124, %p125
    %p128 = scmp.ne.s32.totalorder %s111, %s127
    %p129 = scmp.eq.s32.totalorder %s15, 0
    %p130 = por %p128, %p129
    %s131 = ssub.s32 %s16, %s42
    %s132 = ssub.s32 %s17, %s38
    %s133 = sor.u32 %s131, %s132
    %s134 = ssub.s32 %s18, %s34
    %s135 = sor.u32 %s133, %s134
    %p136 = scmp.eq.s32.totalorder %s135, 0
    %s138 = sadd.s32 %s137, 1
    %s139 = scalar_select %p136, %s137, %s138
    %p142 = pneg %p136
    %p143 = scmp.eq.s32.totalorder %s9, 15
    %p144 = por %p142, %p143
    %p145 = scmp.ne.s32.totalorder %s137, %s140
    %p146 = scmp.eq.s32.totalorder %s9, 0
    %p147 = por %p145, %p146
    %p148 = scmp.ne.s32.totalorder %s137, %s140
    %p149 = scmp.eq.s32.totalorder %s14, 15
    %p150 = por %p148, %p149
    %p151 = scmp.ne.s32.totalorder %s140, %s141
    %p152 = scmp.eq.s32.totalorder %s14, 0
    %p153 = por %p151, %p152
    %p154 = scmp.ne.s32.totalorder %s140, %s141
    %p155 = scmp.eq.s32.totalorder %s15, 15
    %p156 = por %p154, %p155
    %p158 = scmp.ne.s32.totalorder %s141, %s157
    %p159 = scmp.eq.s32.totalorder %s15, 0
    %p160 = por %p158, %p159
    %p161 = scmp.le.s32.totalorder 1, %s9
    %p162 = scmp.lt.s32.totalorder %s9, 17
    %p163 = pnand %p161, %p162
    %p164 = pneg %p163
    // Predicated region
    $region9: #{scale_discriminator_forward.10} parent=5 // pred_check
      _
    $region10: #{scale_discriminator_forward.10} parent=5 // pred_check_branch
      %166 = sbr.rel (%p163) target = $region12
    $region11: #{scale_discriminator_forward.10} parent=5 // pred_region
      %s167 = ssub.s32 %s9, 1
    $region12: #{scale_discriminator_forward.10} parent=5 // pred_fallthru
      _
    %p168 = scmp.lt.s32.totalorder %s9, 16
    // Predicated region
    $region13: #{scale_discriminator_forward.10} parent=5 // pred_check
      %p169 = pneg %p168
    $region14: #{scale_discriminator_forward.10} parent=5 // pred_check_branch
      %171 = sbr.rel (%p169) target = $region16
    $region15: #{scale_discriminator_forward.10} parent=5 // pred_region
      // Predicated region
      $region17: #{scale_discriminator_forward.10} parent=15 // pred_check
        %p172 = pneg %p59
      $region18: #{scale_discriminator_forward.10} parent=15 // pred_check_branch
        %174 = sbr.rel (%p172) target = $region20
      $region19: #{scale_discriminator_forward.10} parent=15 // pred_region
        %s175 = smul.u32 16, %s17
        %s176 = smul.u32 3, %s19
        %p177 = scmp.lt.s32.totalorder %s16, 15
        %s178 = scalar_select %p177, %s16, 15
        %p179 = scmp.lt.s32.totalorder %s175, 15
        %s180 = scalar_select %p179, %s175, 15
        %p181 = scmp.lt.s32.totalorder %s176, 2
        %s182 = scalar_select %p181, %s176, 2
        %s183 = smul.addr %s180, 3
        %s184 = sadd.s32 %s182, %s183
        %s185 = smul.addr %s178, 48
        %s186 = sadd.s32 %s184, %s185
        %s187 = smul.addr %s186, 4
        %s188 = scalar_lea.vmem %s0, %s187
        %s189 = smul.u32 16, %s17
        %s190 = smul.u32 3, %s19
      $region20: #{scale_discriminator_forward.10} parent=15 // pred_fallthru
        _
      // Predicated region
      $region21: #{scale_discriminator_forward.10} parent=15 // pred_check
        %p191 = pneg %p89
      $region22: #{scale_discriminator_forward.10} parent=15 // pred_check_branch
        %193 = sbr.rel (%p191) target = $region24
      $region23: #{scale_discriminator_forward.10} parent=15 // pred_region
        %s194 = smul.u32 48, %s19
        %p195 = scmp.lt.s32.totalorder %s16, 15
        %s196 = scalar_select %p195, %s16, 15
        %p197 = scmp.lt.s32.totalorder %s194, 47
        %s198 = scalar_select %p197, %s194, 47
        %p199 = scmp.lt.s32.totalorder %s18, 0
        %s200 = scalar_select %p199, %s18, 0
        %s201 = sadd.s32 %s200, %s198
        %s202 = smul.addr %s196, 48
        %s203 = sadd.s32 %s201, %s202
        %s204 = smul.addr %s203, 4
        %s205 = scalar_lea.vmem %s1, %s204
        %s206 = smul.u32 48, %s19
      $region24: #{scale_discriminator_forward.10} parent=15 // pred_fallthru
        _
      // Predicated region
      $region25: #{scale_discriminator_forward.10} parent=15 // pred_check
        %p207 = pneg %p117
      $region26: #{scale_discriminator_forward.10} parent=15 // pred_check_branch
        %209 = sbr.rel (%p207) target = $region28
      $region27: #{scale_discriminator_forward.10} parent=15 // pred_region
        %p210 = scmp.lt.s32.totalorder %s16, 15
        %s211 = scalar_select %p210, %s16, 15
        %p212 = scmp.lt.s32.totalorder %s18, 0
        %s213 = scalar_select %p212, %s18, 0
        %s214 = sadd.s32 %s213, %s211
        %s215 = scalar_lea.vmem %s2, %s214
      $region28: #{scale_discriminator_forward.10} parent=15 // pred_fallthru
        _
    $region16: #{scale_discriminator_forward.10} parent=5 // pred_fallthru
      _
    %p216 = scmp.le.s32.totalorder 1, %s9
    %p217 = scmp.lt.s32.totalorder %s9, 17
    %p218 = pnand %p216, %p217
    %p219 = pneg %p218
    // Predicated region
    $region29: #{scale_discriminator_forward.10} parent=5 // pred_check
      _
    $region30: #{scale_discriminator_forward.10} parent=5 // pred_check_branch
      %221 = sbr.rel (%p218) target = $region32
    $region31: #{scale_discriminator_forward.10} parent=5 // pred_region
      %s222 = ssub.s32 %s9, 1
      %s223 = smul.u32 16, %s21
      %s224 = smul.u32 3, %s23
      %p225 = scmp.lt.s32.totalorder %s20, 15
      %s226 = scalar_select %p225, %s20, 15
      %p227 = scmp.lt.s32.totalorder %s223, 15
      %s228 = scalar_select %p227, %s223, 15
      %p229 = scmp.lt.s32.totalorder %s224, 2
      %s230 = scalar_select %p229, %s224, 2
      %s231 = smul.addr %s228, 3
      %s232 = sadd.s32 %s230, %s231
      %s233 = smul.addr %s226, 48
      %s234 = sadd.s32 %s232, %s233
      %s235 = smul.addr %s234, 4
      %s236 = scalar_lea.vmem %s0, %s235
      %p237 = pneg %p65
      %p238 = pneg %p62
      %s239 = smul.u32 48, %s23
      %p240 = scmp.lt.s32.totalorder %s20, 15
      %s241 = scalar_select %p240, %s20, 15
      %p242 = scmp.lt.s32.totalorder %s239, 47
      %s243 = scalar_select %p242, %s239, 47
      %p244 = scmp.lt.s32.totalorder %s22, 0
      %s245 = scalar_select %p244, %s22, 0
      %s246 = sadd.s32 %s245, %s243
      %s247 = smul.addr %s241, 48
      %s248 = sadd.s32 %s246, %s247
      %s249 = smul.addr %s248, 4
      %s250 = scalar_lea.vmem %s1, %s249
      %p251 = pneg %p95
      %p252 = pneg %p92
      %p253 = scmp.lt.s32.totalorder %s20, 15
      %s254 = scalar_select %p253, %s20, 15
      %p255 = scmp.lt.s32.totalorder %s22, 0
      %s256 = scalar_select %p255, %s22, 0
      %s257 = sadd.s32 %s256, %s254
      %s258 = scalar_lea.vmem %s2, %s257
      %p259 = pneg %p123
      %p260 = pneg %p120
      %p261 = pneg %p153
      %p262 = pneg %p150
      %s263 = smul.u32 16, %s21
      %p264 = scmp.lt.s32.totalorder %s20, 15
      %s265 = scalar_select %p264, %s20, 15
      %p266 = scmp.lt.s32.totalorder %s263, 15
      %s267 = scalar_select %p266, %s263, 15
      %p268 = scmp.lt.s32.totalorder %s22, 0
      %s269 = scalar_select %p268, %s22, 0
      %s270 = sadd.s32 %s269, %s267
      %s271 = smul.addr %s265, 16
      %s272 = sadd.s32 %s270, %s271
      %s273 = smul.addr %s272, 8
      %s274 = scalar_lea.vmem %s3, %s273
      %s275 = smul.u32 16, %s21
      %s276 = smul.u32 3, %s23
      %p277 = scmp.lt.s32.totalorder %s20, 15
      %s278 = scalar_select %p277, %s20, 15
      %p279 = scmp.lt.s32.totalorder %s275, 15
      %s280 = scalar_select %p279, %s275, 15
      %p281 = scmp.lt.s32.totalorder %s276, 2
      %s282 = scalar_select %p281, %s276, 2
      %s283 = smul.addr %s280, 3
      %s284 = sadd.s32 %s282, %s283
      %s285 = smul.addr %s278, 48
      %s286 = sadd.s32 %s284, %s285
      %s287 = smul.addr %s286, 4
      %s288 = scalar_lea.vmem %s0, %s287
      %s289 = smul.u32 16, %s21
      %s290 = smul.u32 3, %s23
      %s291 = smul.u32 48, %s23
      %p292 = scmp.lt.s32.totalorder %s20, 15
      %s293 = scalar_select %p292, %s20, 15
      %p294 = scmp.lt.s32.totalorder %s291, 47
      %s295 = scalar_select %p294, %s291, 47
      %p296 = scmp.lt.s32.totalorder %s22, 0
      %s297 = scalar_select %p296, %s22, 0
      %s298 = sadd.s32 %s297, %s295
      %s299 = smul.addr %s293, 48
      %s300 = sadd.s32 %s298, %s299
      %s301 = smul.addr %s300, 4
      %s302 = scalar_lea.vmem %s1, %s301
      %s303 = smul.u32 48, %s23
      %p304 = scmp.lt.s32.totalorder %s20, 15
      %s305 = scalar_select %p304, %s20, 15
      %p306 = scmp.lt.s32.totalorder %s22, 0
      %s307 = scalar_select %p306, %s22, 0
      %s308 = sadd.s32 %s307, %s305
      %s309 = scalar_lea.vmem %s2, %s308
      %s310 = smul.u32 16, %s21
      %p311 = scmp.lt.s32.totalorder %s20, 15
      %s312 = scalar_select %p311, %s20, 15
      %p313 = scmp.lt.s32.totalorder %s310, 15
      %s314 = scalar_select %p313, %s310, 15
      %p315 = scmp.lt.s32.totalorder %s22, 0
      %s316 = scalar_select %p315, %s22, 0
      %s317 = sadd.s32 %s316, %s314
      %s318 = smul.addr %s312, 16
      %s319 = sadd.s32 %s317, %s318
      %s320 = smul.addr %s319, 8
      %s321 = scalar_lea.vmem %s3, %s320
      %s322 = smul.u32 16, %s21
      %p323 = scmp.eq.s32.totalorder %s23, 0
      // Predicated region
      $region33: #{scale_discriminator_forward.10} parent=31 // pred_check
        %p324 = pneg %p323
      $region34: #{scale_discriminator_forward.10} parent=31 // pred_check_branch
        %326 = sbr.rel (%p324) target = $region36
      $region35: #{scale_discriminator_forward.10} parent=31 // pred_region
        %vm327 = vcmask 130048
        %328 = vst.msk [vmem:[#allocation2] sm:$0xff] %vm327, 0.0
        %329 = vst.msk [vmem:[#allocation2 + $0x8] sm:$0xff] %vm327, 0.0
        %330 = vst.msk [vmem:[#allocation2 + $0x10] sm:$0xff] %vm327, 0.0
        %331 = vst.msk [vmem:[#allocation2 + $0x18] sm:$0xff] %vm327, 0.0
        %332 = vst.msk [vmem:[#allocation2 + $0x20] sm:$0xff] %vm327, 0.0
        %333 = vst.msk [vmem:[#allocation2 + $0x28] sm:$0xff] %vm327, 0.0
        %334 = vst.msk [vmem:[#allocation2 + $0x30] sm:$0xff] %vm327, 0.0
        %335 = vst.msk [vmem:[#allocation2 + $0x38] sm:$0xff] %vm327, 0.0
        %336 = vst.msk [vmem:[#allocation2 + $0x40] sm:$0xff] %vm327, 0.0
        %337 = vst.msk [vmem:[#allocation2 + $0x48] sm:$0xff] %vm327, 0.0
        %338 = vst.msk [vmem:[#allocation2 + $0x50] sm:$0xff] %vm327, 0.0
        %339 = vst.msk [vmem:[#allocation2 + $0x58] sm:$0xff] %vm327, 0.0
        %340 = vst.msk [vmem:[#allocation2 + $0x60] sm:$0xff] %vm327, 0.0
        %341 = vst.msk [vmem:[#allocation2 + $0x68] sm:$0xff] %vm327, 0.0
        %342 = vst.msk [vmem:[#allocation2 + $0x70] sm:$0xff] %vm327, 0.0
        %343 = vst.msk [vmem:[#allocation2 + $0x78] sm:$0xff] %vm327, 0.0
      $region36: #{scale_discriminator_forward.10} parent=31 // pred_fallthru
        _
      %v344 = vld [vmem:[#allocation2] sm:$0xff]
      %v345 = vld [vmem:[#allocation2 + $0x8] sm:$0xff]
      %v346 = vld [vmem:[#allocation2 + $0x10] sm:$0xff]
      %v347 = vld [vmem:[#allocation2 + $0x18] sm:$0xff]
      %v348 = vld [vmem:[#allocation2 + $0x20] sm:$0xff]
      %v349 = vld [vmem:[#allocation2 + $0x28] sm:$0xff]
      %v350 = vld [vmem:[#allocation2 + $0x30] sm:$0xff]
      %v351 = vld [vmem:[#allocation2 + $0x38] sm:$0xff]
      %v352 = vld [vmem:[#allocation2 + $0x40] sm:$0xff]
      %v353 = vld [vmem:[#allocation2 + $0x48] sm:$0xff]
      %v354 = vld [vmem:[#allocation2 + $0x50] sm:$0xff]
      %v355 = vld [vmem:[#allocation2 + $0x58] sm:$0xff]
      %v356 = vld [vmem:[#allocation2 + $0x60] sm:$0xff]
      %v357 = vld [vmem:[#allocation2 + $0x68] sm:$0xff]
      %v358 = vld [vmem:[#allocation2 + $0x70] sm:$0xff]
      %v359 = vld [vmem:[#allocation2 + $0x78] sm:$0xff]
      %v360 = vld [vmem:[%s288] sm:$0xff]
      %v361 = vld [vmem:[%s288 + $0x8] sm:$0xf]
      %v362 = vld [vmem:[%s288 + $0xc] sm:$0xff]
      %v363 = vld [vmem:[%s288 + $0x14] sm:$0xf]
      %v364 = vld [vmem:[%s288 + $0x18] sm:$0xff]
      %v365 = vld [vmem:[%s288 + $0x20] sm:$0xf]
      %v366 = vld [vmem:[%s288 + $0x24] sm:$0xff]
      %v367 = vld [vmem:[%s288 + $0x2c] sm:$0xf]
      %v368 = vld [vmem:[%s288 + $0x30] sm:$0xff]
      %v369 = vld [vmem:[%s288 + $0x38] sm:$0xf]
      %v370 = vld [vmem:[%s288 + $0x3c] sm:$0xff]
      %v371 = vld [vmem:[%s288 + $0x44] sm:$0xf]
      %v372 = vld [vmem:[%s288 + $0x48] sm:$0xff]
      %v373 = vld [vmem:[%s288 + $0x50] sm:$0xf]
      %v374 = vld [vmem:[%s288 + $0x54] sm:$0xff]
      %v375 = vld [vmem:[%s288 + $0x5c] sm:$0xf]
      %v376 = vld [vmem:[%s288 + $0x60] sm:$0xff]
      %v377 = vld [vmem:[%s288 + $0x68] sm:$0xf]
      %v378 = vld [vmem:[%s288 + $0x6c] sm:$0xff]
      %v379 = vld [vmem:[%s288 + $0x74] sm:$0xf]
      %v380 = vld [vmem:[%s288 + $0x78] sm:$0xff]
      %v381 = vld [vmem:[%s288 + $0x80] sm:$0xf]
      %v382 = vld [vmem:[%s288 + $0x84] sm:$0xff]
      %v383 = vld [vmem:[%s288 + $0x8c] sm:$0xf]
      %v384 = vld [vmem:[%s288 + $0x90] sm:$0xff]
      %v385 = vld [vmem:[%s288 + $0x98] sm:$0xf]
      %v386 = vld [vmem:[%s288 + $0x9c] sm:$0xff]
      %v387 = vld [vmem:[%s288 + $0xa4] sm:$0xf]
      %v388 = vld [vmem:[%s288 + $0xa8] sm:$0xff]
      %v389 = vld [vmem:[%s288 + $0xb0] sm:$0xf]
      %v390 = vld [vmem:[%s288 + $0xb4] sm:$0xff]
      %v391 = vld [vmem:[%s288 + $0xbc] sm:$0xf]
      %v392 = vld [vmem:[%s302] sm:$0xf]
      %v393 = vld [vmem:[%s302 + $0x4] sm:$0xf]
      %v394 = vld [vmem:[%s302 + $0x8] sm:$0xf]
      %v395 = vld [vmem:[%s302 + $0xc] sm:$0xf]
      %v396 = vld [vmem:[%s302 + $0x10] sm:$0xf]
      %v397 = vld [vmem:[%s302 + $0x14] sm:$0xf]
      %v398 = vld [vmem:[%s302 + $0x18] sm:$0xf]
      %v399 = vld [vmem:[%s302 + $0x1c] sm:$0xf]
      %v400 = vld [vmem:[%s302 + $0x20] sm:$0xf]
      %v401 = vld [vmem:[%s302 + $0x24] sm:$0xf]
      %v402 = vld [vmem:[%s302 + $0x28] sm:$0xf]
      %v403 = vld [vmem:[%s302 + $0x2c] sm:$0xf]
      %v404 = vld [vmem:[%s302 + $0x30] sm:$0xf]
      %v405 = vld [vmem:[%s302 + $0x34] sm:$0xf]
      %v406 = vld [vmem:[%s302 + $0x38] sm:$0xf]
      %v407 = vld [vmem:[%s302 + $0x3c] sm:$0xf]
      %v408 = vld [vmem:[%s302 + $0x40] sm:$0xf]
      %v409 = vld [vmem:[%s302 + $0x44] sm:$0xf]
      %v410 = vld [vmem:[%s302 + $0x48] sm:$0xf]
      %v411 = vld [vmem:[%s302 + $0x4c] sm:$0xf]
      %v412 = vld [vmem:[%s302 + $0x50] sm:$0xf]
      %v413 = vld [vmem:[%s302 + $0x54] sm:$0xf]
      %v414 = vld [vmem:[%s302 + $0x58] sm:$0xf]
      %v415 = vld [vmem:[%s302 + $0x5c] sm:$0xf]
      %v416 = vld [vmem:[%s302 + $0x60] sm:$0xf]
      %v417 = vld [vmem:[%s302 + $0x64] sm:$0xf]
      %v418 = vld [vmem:[%s302 + $0x68] sm:$0xf]
      %v419 = vld [vmem:[%s302 + $0x6c] sm:$0xf]
      %v420 = vld [vmem:[%s302 + $0x70] sm:$0xf]
      %v421 = vld [vmem:[%s302 + $0x74] sm:$0xf]
      %v422 = vld [vmem:[%s302 + $0x78] sm:$0xf]
      %v423 = vld [vmem:[%s302 + $0x7c] sm:$0xf]
      %v424 = vld [vmem:[%s302 + $0x80] sm:$0xf]
      %v425 = vld [vmem:[%s302 + $0x84] sm:$0xf]
      %v426 = vld [vmem:[%s302 + $0x88] sm:$0xf]
      %v427 = vld [vmem:[%s302 + $0x8c] sm:$0xf]
      %v428 = vld [vmem:[%s302 + $0x90] sm:$0xf]
      %v429 = vld [vmem:[%s302 + $0x94] sm:$0xf]
      %v430 = vld [vmem:[%s302 + $0x98] sm:$0xf]
      %v431 = vld [vmem:[%s302 + $0x9c] sm:$0xf]
      %v432 = vld [vmem:[%s302 + $0xa0] sm:$0xf]
      %v433 = vld [vmem:[%s302 + $0xa4] sm:$0xf]
      %v434 = vld [vmem:[%s302 + $0xa8] sm:$0xf]
      %v435 = vld [vmem:[%s302 + $0xac] sm:$0xf]
      %v436 = vld [vmem:[%s302 + $0xb0] sm:$0xf]
      %v437 = vld [vmem:[%s302 + $0xb4] sm:$0xf]
      %v438 = vld [vmem:[%s302 + $0xb8] sm:$0xf]
      %v439 = vld [vmem:[%s302 + $0xbc] sm:$0xf]
      %v472 = vunpack.c.l.b16 %v360
      %v473 = vunpack.c.h.b16 %v360
      %v474 = vunpack.c.l.b16 %v361
      %v475 = vunpack.c.l.b16 %v362
      %v476 = vunpack.c.h.b16 %v362
      %v477 = vunpack.c.l.b16 %v363
      %v478 = vunpack.c.l.b16 %v364
      %v479 = vunpack.c.h.b16 %v364
      %v480 = vunpack.c.l.b16 %v365
      %v481 = vunpack.c.l.b16 %v366
      %v482 = vunpack.c.h.b16 %v366
      %v483 = vunpack.c.l.b16 %v367
      %v484 = vunpack.c.l.b16 %v368
      %v485 = vunpack.c.h.b16 %v368
      %v486 = vunpack.c.l.b16 %v369
      %v487 = vunpack.c.l.b16 %v370
      %v488 = vunpack.c.h.b16 %v370
      %v489 = vunpack.c.l.b16 %v371
      %v490 = vunpack.c.l.b16 %v372
      %v491 = vunpack.c.h.b16 %v372
      %v492 = vunpack.c.l.b16 %v373
      %v493 = vunpack.c.l.b16 %v374
      %v494 = vunpack.c.h.b16 %v374
      %v495 = vunpack.c.l.b16 %v375
      %v496 = vunpack.c.l.b16 %v376
      %v497 = vunpack.c.h.b16 %v376
      %v498 = vunpack.c.l.b16 %v377
      %v499 = vunpack.c.l.b16 %v378
      %v500 = vunpack.c.h.b16 %v378
      %v501 = vunpack.c.l.b16 %v379
      %v502 = vunpack.c.l.b16 %v380
      %v503 = vunpack.c.h.b16 %v380
      %v504 = vunpack.c.l.b16 %v381
      %v505 = vunpack.c.l.b16 %v382
      %v506 = vunpack.c.h.b16 %v382
      %v507 = vunpack.c.l.b16 %v383
      %v508 = vunpack.c.l.b16 %v384
      %v509 = vunpack.c.h.b16 %v384
      %v510 = vunpack.c.l.b16 %v385
      %v511 = vunpack.c.l.b16 %v386
      %v512 = vunpack.c.h.b16 %v386
      %v513 = vunpack.c.l.b16 %v387
      %v514 = vunpack.c.l.b16 %v388
      %v515 = vunpack.c.h.b16 %v388
      %v516 = vunpack.c.l.b16 %v389
      %v517 = vunpack.c.l.b16 %v390
      %v518 = vunpack.c.h.b16 %v390
      %v519 = vunpack.c.l.b16 %v391
      %v520 = vpack.c.b16 %v475, %v472
      %v521 = vpack.c.b16 %v476, %v473
      %v522 = vpack.c.b16 %v477, %v474
      %v523 = vpack.c.b16 %v481, %v478
      %v524 = vpack.c.b16 %v482, %v479
      %v525 = vpack.c.b16 %v483, %v480
      %v526 = vpack.c.b16 %v487, %v484
      %v527 = vpack.c.b16 %v488, %v485
      %v528 = vpack.c.b16 %v489, %v486
      %v529 = vpack.c.b16 %v493, %v490
      %v530 = vpack.c.b16 %v494, %v491
      %v531 = vpack.c.b16 %v495, %v492
      %v532 = vpack.c.b16 %v499, %v496
      %v533 = vpack.c.b16 %v500, %v497
      %v534 = vpack.c.b16 %v501, %v498
      %v535 = vpack.c.b16 %v505, %v502
      %v536 = vpack.c.b16 %v506, %v503
      %v537 = vpack.c.b16 %v507, %v504
      %v538 = vpack.c.b16 %v511, %v508
      %v539 = vpack.c.b16 %v512, %v509
      %v540 = vpack.c.b16 %v513, %v510
      %v541 = vpack.c.b16 %v517, %v514
      %v542 = vpack.c.b16 %v518, %v515
      %v543 = vpack.c.b16 %v519, %v516
      %v616 = vunpack.c.l.b16 %v392
      %v617 = vunpack.c.l.b16 %v393
      %v618 = vunpack.c.l.b16 %v394
      %v619 = vunpack.c.l.b16 %v395
      %v620 = vunpack.c.l.b16 %v396
      %v621 = vunpack.c.l.b16 %v397
      %v622 = vunpack.c.l.b16 %v398
      %v623 = vunpack.c.l.b16 %v399
      %v624 = vunpack.c.l.b16 %v400
      %v625 = vunpack.c.l.b16 %v401
      %v626 = vunpack.c.l.b16 %v402
      %v627 = vunpack.c.l.b16 %v403
      %v628 = vunpack.c.l.b16 %v404
      %v629 = vunpack.c.l.b16 %v405
      %v630 = vunpack.c.l.b16 %v406
      %v631 = vunpack.c.l.b16 %v407
      %v632 = vunpack.c.l.b16 %v408
      %v633 = vunpack.c.l.b16 %v409
      %v634 = vunpack.c.l.b16 %v410
      %v635 = vunpack.c.l.b16 %v411
      %v636 = vunpack.c.l.b16 %v412
      %v637 = vunpack.c.l.b16 %v413
      %v638 = vunpack.c.l.b16 %v414
      %v639 = vunpack.c.l.b16 %v415
      %v640 = vunpack.c.l.b16 %v416
      %v641 = vunpack.c.l.b16 %v417
      %v642 = vunpack.c.l.b16 %v418
      %v643 = vunpack.c.l.b16 %v419
      %v644 = vunpack.c.l.b16 %v420
      %v645 = vunpack.c.l.b16 %v421
      %v646 = vunpack.c.l.b16 %v422
      %v647 = vunpack.c.l.b16 %v423
      %v648 = vunpack.c.l.b16 %v424
      %v649 = vunpack.c.l.b16 %v425
      %v650 = vunpack.c.l.b16 %v426
      %v651 = vunpack.c.l.b16 %v427
      %v652 = vunpack.c.l.b16 %v428
      %v653 = vunpack.c.l.b16 %v429
      %v654 = vunpack.c.l.b16 %v430
      %v655 = vunpack.c.l.b16 %v431
      %v656 = vunpack.c.l.b16 %v432
      %v657 = vunpack.c.l.b16 %v433
      %v658 = vunpack.c.l.b16 %v434
      %v659 = vunpack.c.l.b16 %v435
      %v660 = vunpack.c.l.b16 %v436
      %v661 = vunpack.c.l.b16 %v437
      %v662 = vunpack.c.l.b16 %v438
      %v663 = vunpack.c.l.b16 %v439
      %v664 = vpack.c.b16 %v617, %v616
      %v665 = vpack.c.b16 %v619, %v618
      %v666 = vpack.c.b16 %v621, %v620
      %v667 = vpack.c.b16 %v623, %v622
      %v668 = vpack.c.b16 %v625, %v624
      %v669 = vpack.c.b16 %v627, %v626
      %v670 = vpack.c.b16 %v629, %v628
      %v671 = vpack.c.b16 %v631, %v630
      %v672 = vpack.c.b16 %v633, %v632
      %v673 = vpack.c.b16 %v635, %v634
      %v674 = vpack.c.b16 %v637, %v636
      %v675 = vpack.c.b16 %v639, %v638
      %v676 = vpack.c.b16 %v641, %v640
      %v677 = vpack.c.b16 %v643, %v642
      %v678 = vpack.c.b16 %v645, %v644
      %v679 = vpack.c.b16 %v647, %v646
      %v680 = vpack.c.b16 %v649, %v648
      %v681 = vpack.c.b16 %v651, %v650
      %v682 = vpack.c.b16 %v653, %v652
      %v683 = vpack.c.b16 %v655, %v654
      %v684 = vpack.c.b16 %v657, %v656
      %v685 = vpack.c.b16 %v659, %v658
      %v686 = vpack.c.b16 %v661, %v660
      %v687 = vpack.c.b16 %v663, %v662
      %712 = vmatpush.bf16.msra.mxu0 %v671
      %713 = vmatpush.bf16.msra.mxu0 %v670
      %714 = vmatpush.bf16.msra.mxu0 %v669
      %715 = vmatpush.bf16.msra.mxu0 %v668
      %716 = vmatpush.bf16.msra.mxu0 %v667
      %717 = vmatpush.bf16.msra.mxu0 %v666
      %718 = vmatpush.bf16.msra.mxu0 %v665
      %719 = vmatpush.bf16.msra.mxu0 %v664
      %720 = vmatmul.bf16.gmra.mxu0 %v520
      %v721 = vpop.f32.mrf.mxu0
      %v722 = vadd.f32 0.0, %v721
      %v723 = vpop.f32.mrf.mxu0
      %v724 = vadd.f32 0.0, %v723
      %725 = vmatmul.bf16.gmra.mxu0 %v523
      %v726 = vpop.f32.mrf.mxu0
      %v727 = vadd.f32 0.0, %v726
      %v728 = vpop.f32.mrf.mxu0
      %v729 = vadd.f32 0.0, %v728
      %730 = vmatmul.bf16.gmra.mxu0 %v526
      %v731 = vpop.f32.mrf.mxu0
      %v732 = vadd.f32 0.0, %v731
      %v733 = vpop.f32.mrf.mxu0
      %v734 = vadd.f32 0.0, %v733
      %735 = vmatmul.bf16.gmra.mxu0 %v529
      %v736 = vpop.f32.mrf.mxu0
      %v737 = vadd.f32 0.0, %v736
      %v738 = vpop.f32.mrf.mxu0
      %v739 = vadd.f32 0.0, %v738
      %740 = vmatmul.bf16.gmra.mxu0 %v532
      %v741 = vpop.f32.mrf.mxu0
      %v742 = vadd.f32 0.0, %v741
      %v743 = vpop.f32.mrf.mxu0
      %v744 = vadd.f32 0.0, %v743
      %745 = vmatmul.bf16.gmra.mxu0 %v535
      %v746 = vpop.f32.mrf.mxu0
      %v747 = vadd.f32 0.0, %v746
      %v748 = vpop.f32.mrf.mxu0
      %v749 = vadd.f32 0.0, %v748
      %750 = vmatmul.bf16.gmra.mxu0 %v538
      %v751 = vpop.f32.mrf.mxu0
      %v752 = vadd.f32 0.0, %v751
      %v753 = vpop.f32.mrf.mxu0
      %v754 = vadd.f32 0.0, %v753
      %755 = vmatmul.bf16.gmra.mxu0 %v541
      %v756 = vpop.f32.mrf.mxu0
      %v757 = vadd.f32 0.0, %v756
      %v758 = vpop.f32.mrf.mxu0
      %v759 = vadd.f32 0.0, %v758
      %760 = vdwg.mxu0
      %761 = vmatpush.bf16.msra.mxu0 %v679
      %762 = vmatpush.bf16.msra.mxu0 %v678
      %763 = vmatpush.bf16.msra.mxu0 %v677
      %764 = vmatpush.bf16.msra.mxu0 %v676
      %765 = vmatpush.bf16.msra.mxu0 %v675
      %766 = vmatpush.bf16.msra.mxu0 %v674
      %767 = vmatpush.bf16.msra.mxu0 %v673
      %768 = vmatpush.bf16.msra.mxu0 %v672
      %769 = vmatmul.bf16.gmra.mxu0 %v521
      %v770 = vpop.f32.mrf.mxu0
      %v771 = vadd.f32 %v722, %v770
      %v772 = vpop.f32.mrf.mxu0
      %v773 = vadd.f32 %v724, %v772
      %774 = vmatmul.bf16.gmra.mxu0 %v524
      %v775 = vpop.f32.mrf.mxu0
      %v776 = vadd.f32 %v727, %v775
      %v777 = vpop.f32.mrf.mxu0
      %v778 = vadd.f32 %v729, %v777
      %779 = vmatmul.bf16.gmra.mxu0 %v527
      %v780 = vpop.f32.mrf.mxu0
      %v781 = vadd.f32 %v732, %v780
      %v782 = vpop.f32.mrf.mxu0
      %v783 = vadd.f32 %v734, %v782
      %784 = vmatmul.bf16.gmra.mxu0 %v530
      %v785 = vpop.f32.mrf.mxu0
      %v786 = vadd.f32 %v737, %v785
      %v787 = vpop.f32.mrf.mxu0
      %v788 = vadd.f32 %v739, %v787
      %789 = vmatmul.bf16.gmra.mxu0 %v533
      %v790 = vpop.f32.mrf.mxu0
      %v791 = vadd.f32 %v742, %v790
      %v792 = vpop.f32.mrf.mxu0
      %v793 = vadd.f32 %v744, %v792
      %794 = vmatmul.bf16.gmra.mxu0 %v536
      %v795 = vpop.f32.mrf.mxu0
      %v796 = vadd.f32 %v747, %v795
      %v797 = vpop.f32.mrf.mxu0
      %v798 = vadd.f32 %v749, %v797
      %799 = vmatmul.bf16.gmra.mxu0 %v539
      %v800 = vpop.f32.mrf.mxu0
      %v801 = vadd.f32 %v752, %v800
      %v802 = vpop.f32.mrf.mxu0
      %v803 = vadd.f32 %v754, %v802
      %804 = vmatmul.bf16.gmra.mxu0 %v542
      %v805 = vpop.f32.mrf.mxu0
      %v806 = vadd.f32 %v757, %v805
      %v807 = vpop.f32.mrf.mxu0
      %v808 = vadd.f32 %v759, %v807
      %809 = vdwg.mxu0
      %810 = vmatpush.bf16.msra.mxu0 %v687
      %811 = vmatpush.bf16.msra.mxu0 %v686
      %812 = vmatpush.bf16.msra.mxu0 %v685
      %813 = vmatpush.bf16.msra.mxu0 %v684
      %814 = vmatpush.bf16.msra.mxu0 %v683
      %815 = vmatpush.bf16.msra.mxu0 %v682
      %816 = vmatpush.bf16.msra.mxu0 %v681
      %817 = vmatpush.bf16.msra.mxu0 %v680
      %818 = vmatmul.bf16.gmra.mxu0 %v522
      %v819 = vpop.f32.mrf.mxu0
      %v820 = vadd.f32 %v771, %v819
      %v821 = vpop.f32.mrf.mxu0
      %v822 = vadd.f32 %v773, %v821
      %823 = vmatmul.bf16.gmra.mxu0 %v525
      %v824 = vpop.f32.mrf.mxu0
      %v825 = vadd.f32 %v776, %v824
      %v826 = vpop.f32.mrf.mxu0
      %v827 = vadd.f32 %v778, %v826
      %828 = vmatmul.bf16.gmra.mxu0 %v528
      %v829 = vpop.f32.mrf.mxu0
      %v830 = vadd.f32 %v781, %v829
      %v831 = vpop.f32.mrf.mxu0
      %v832 = vadd.f32 %v783, %v831
      %833 = vmatmul.bf16.gmra.mxu0 %v531
      %v834 = vpop.f32.mrf.mxu0
      %v835 = vadd.f32 %v786, %v834
      %v836 = vpop.f32.mrf.mxu0
      %v837 = vadd.f32 %v788, %v836
      %838 = vmatmul.bf16.gmra.mxu0 %v534
      %v839 = vpop.f32.mrf.mxu0
      %v840 = vadd.f32 %v791, %v839
      %v841 = vpop.f32.mrf.mxu0
      %v842 = vadd.f32 %v793, %v841
      %843 = vmatmul.bf16.gmra.mxu0 %v537
      %v844 = vpop.f32.mrf.mxu0
      %v845 = vadd.f32 %v796, %v844
      %v846 = vpop.f32.mrf.mxu0
      %v847 = vadd.f32 %v798, %v846
      %848 = vmatmul.bf16.gmra.mxu0 %v540
      %v849 = vpop.f32.mrf.mxu0
      %v850 = vadd.f32 %v801, %v849
      %v851 = vpop.f32.mrf.mxu0
      %v852 = vadd.f32 %v803, %v851
      %853 = vmatmul.bf16.gmra.mxu0 %v543
      %v854 = vpop.f32.mrf.mxu0
      %v855 = vadd.f32 %v806, %v854
      %v856 = vpop.f32.mrf.mxu0
      %v857 = vadd.f32 %v808, %v856
      %858 = vdwg.mxu0
      %v859 = vadd.f32 %v344, %v820
      %v860 = vadd.f32 %v345, %v822
      %v861 = vadd.f32 %v346, %v825
      %v862 = vadd.f32 %v347, %v827
      %v863 = vadd.f32 %v348, %v830
      %v864 = vadd.f32 %v349, %v832
      %v865 = vadd.f32 %v350, %v835
      %v866 = vadd.f32 %v351, %v837
      %v867 = vadd.f32 %v352, %v840
      %v868 = vadd.f32 %v353, %v842
      %v869 = vadd.f32 %v354, %v845
      %v870 = vadd.f32 %v355, %v847
      %v871 = vadd.f32 %v356, %v850
      %v872 = vadd.f32 %v357, %v852
      %v873 = vadd.f32 %v358, %v855
      %v874 = vadd.f32 %v359, %v857
      %vm875 = vcmask 130048
      %876 = vst.msk [vmem:[#allocation2] sm:$0xff] %vm875, %v859
      %877 = vst.msk [vmem:[#allocation2 + $0x8] sm:$0xff] %vm875, %v860
      %878 = vst.msk [vmem:[#allocation2 + $0x10] sm:$0xff] %vm875, %v861
      %879 = vst.msk [vmem:[#allocation2 + $0x18] sm:$0xff] %vm875, %v862
      %880 = vst.msk [vmem:[#allocation2 + $0x20] sm:$0xff] %vm875, %v863
      %881 = vst.msk [vmem:[#allocation2 + $0x28] sm:$0xff] %vm875, %v864
      %882 = vst.msk [vmem:[#allocation2 + $0x30] sm:$0xff] %vm875, %v865
      %883 = vst.msk [vmem:[#allocation2 + $0x38] sm:$0xff] %vm875, %v866
      %884 = vst.msk [vmem:[#allocation2 + $0x40] sm:$0xff] %vm875, %v867
      %885 = vst.msk [vmem:[#allocation2 + $0x48] sm:$0xff] %vm875, %v868
      %886 = vst.msk [vmem:[#allocation2 + $0x50] sm:$0xff] %vm875, %v869
      %887 = vst.msk [vmem:[#allocation2 + $0x58] sm:$0xff] %vm875, %v870
      %888 = vst.msk [vmem:[#allocation2 + $0x60] sm:$0xff] %vm875, %v871
      %889 = vst.msk [vmem:[#allocation2 + $0x68] sm:$0xff] %vm875, %v872
      %890 = vst.msk [vmem:[#allocation2 + $0x70] sm:$0xff] %vm875, %v873
      %891 = vst.msk [vmem:[#allocation2 + $0x78] sm:$0xff] %vm875, %v874
      // Predicated region
      $region37: #{scale_discriminator_forward.10} parent=31 // pred_check
        %p892 = pneg %p323
      $region38: #{scale_discriminator_forward.10} parent=31 // pred_check_branch
        %894 = sbr.rel (%p892) target = $region40
      $region39: #{scale_discriminator_forward.10} parent=31 // pred_region
        %v895 = vld [vmem:[#allocation2] sm:$0xff]
        %v896 = vld [vmem:[#allocation2 + $0x8] sm:$0xff]
        %v897 = vld [vmem:[#allocation2 + $0x10] sm:$0xff]
        %v898 = vld [vmem:[#allocation2 + $0x18] sm:$0xff]
        %v899 = vld [vmem:[#allocation2 + $0x20] sm:$0xff]
        %v900 = vld [vmem:[#allocation2 + $0x28] sm:$0xff]
        %v901 = vld [vmem:[#allocation2 + $0x30] sm:$0xff]
        %v902 = vld [vmem:[#allocation2 + $0x38] sm:$0xff]
        %v903 = vld [vmem:[#allocation2 + $0x40] sm:$0xff]
        %v904 = vld [vmem:[#allocation2 + $0x48] sm:$0xff]
        %v905 = vld [vmem:[#allocation2 + $0x50] sm:$0xff]
        %v906 = vld [vmem:[#allocation2 + $0x58] sm:$0xff]
        %v907 = vld [vmem:[#allocation2 + $0x60] sm:$0xff]
        %v908 = vld [vmem:[#allocation2 + $0x68] sm:$0xff]
        %v909 = vld [vmem:[#allocation2 + $0x70] sm:$0xff]
        %v910 = vld [vmem:[#allocation2 + $0x78] sm:$0xff]
        %v911 = vld [vmem:[%s309] sm:$0x1]
        %v913 = vperm.slane %v911, 0
        %v915 = vadd.f32 %v895, %v913
        %v916 = vadd.f32 %v896, %v913
        %v917 = vadd.f32 %v897, %v913
        %v918 = vadd.f32 %v898, %v913
        %v919 = vadd.f32 %v899, %v913
        %v920 = vadd.f32 %v900, %v913
        %v921 = vadd.f32 %v901, %v913
        %v922 = vadd.f32 %v902, %v913
        %v923 = vadd.f32 %v903, %v913
        %v924 = vadd.f32 %v904, %v913
        %v925 = vadd.f32 %v905, %v913
        %v926 = vadd.f32 %v906, %v913
        %v927 = vadd.f32 %v907, %v913
        %v928 = vadd.f32 %v908, %v913
        %v929 = vadd.f32 %v909, %v913
        %v930 = vadd.f32 %v910, %v913
        %vm931 = vcmp.ge.f32.partialorder %v915, 0.0
        %vm932 = vcmp.ge.f32.partialorder %v916, 0.0
        %vm933 = vcmp.ge.f32.partialorder %v917, 0.0
        %vm934 = vcmp.ge.f32.partialorder %v918, 0.0
        %vm935 = vcmp.ge.f32.partialorder %v919, 0.0
        %vm936 = vcmp.ge.f32.partialorder %v920, 0.0
        %vm937 = vcmp.ge.f32.partialorder %v921, 0.0
        %vm938 = vcmp.ge.f32.partialorder %v922, 0.0
        %vm939 = vcmp.ge.f32.partialorder %v923, 0.0
        %vm940 = vcmp.ge.f32.partialorder %v924, 0.0
        %vm941 = vcmp.ge.f32.partialorder %v925, 0.0
        %vm942 = vcmp.ge.f32.partialorder %v926, 0.0
        %vm943 = vcmp.ge.f32.partialorder %v927, 0.0
        %vm944 = vcmp.ge.f32.partialorder %v928, 0.0
        %vm945 = vcmp.ge.f32.partialorder %v929, 0.0
        %vm946 = vcmp.ge.f32.partialorder %v930, 0.0
        %v947 = vmul.f32 %v915, 0.1
        %v948 = vmul.f32 %v916, 0.1
        %v949 = vmul.f32 %v917, 0.1
        %v950 = vmul.f32 %v918, 0.1
        %v951 = vmul.f32 %v919, 0.1
        %v952 = vmul.f32 %v920, 0.1
        %v953 = vmul.f32 %v921, 0.1
        %v954 = vmul.f32 %v922, 0.1
        %v955 = vmul.f32 %v923, 0.1
        %v956 = vmul.f32 %v924, 0.1
        %v957 = vmul.f32 %v925, 0.1
        %v958 = vmul.f32 %v926, 0.1
        %v959 = vmul.f32 %v927, 0.1
        %v960 = vmul.f32 %v928, 0.1
        %v961 = vmul.f32 %v929, 0.1
        %v962 = vmul.f32 %v930, 0.1
        %v963 = vsel %vm931, %v915, %v947
        %v964 = vsel %vm932, %v916, %v948
        %v965 = vsel %vm933, %v917, %v949
        %v966 = vsel %vm934, %v918, %v950
        %v967 = vsel %vm935, %v919, %v951
        %v968 = vsel %vm936, %v920, %v952
        %v969 = vsel %vm937, %v921, %v953
        %v970 = vsel %vm938, %v922, %v954
        %v971 = vsel %vm939, %v923, %v955
        %v972 = vsel %vm940, %v924, %v956
        %v973 = vsel %vm941, %v925, %v957
        %v974 = vsel %vm942, %v926, %v958
        %v975 = vsel %vm943, %v927, %v959
        %v976 = vsel %vm944, %v928, %v960
        %v977 = vsel %vm945, %v929, %v961
        %v978 = vsel %vm946, %v930, %v962
        %979 = vst.msk [vmem:[%s321] sm:$0xff] %vm875, %v963
        %980 = vst.msk [vmem:[%s321 + $0x8] sm:$0xff] %vm875, %v964
        %981 = vst.msk [vmem:[%s321 + $0x10] sm:$0xff] %vm875, %v965
        %982 = vst.msk [vmem:[%s321 + $0x18] sm:$0xff] %vm875, %v966
        %983 = vst.msk [vmem:[%s321 + $0x20] sm:$0xff] %vm875, %v967
        %984 = vst.msk [vmem:[%s321 + $0x28] sm:$0xff] %vm875, %v968
        %985 = vst.msk [vmem:[%s321 + $0x30] sm:$0xff] %vm875, %v969
        %986 = vst.msk [vmem:[%s321 + $0x38] sm:$0xff] %vm875, %v970
        %987 = vst.msk [vmem:[%s321 + $0x40] sm:$0xff] %vm875, %v971
        %988 = vst.msk [vmem:[%s321 + $0x48] sm:$0xff] %vm875, %v972
        %989 = vst.msk [vmem:[%s321 + $0x50] sm:$0xff] %vm875, %v973
        %990 = vst.msk [vmem:[%s321 + $0x58] sm:$0xff] %vm875, %v974
        %991 = vst.msk [vmem:[%s321 + $0x60] sm:$0xff] %vm875, %v975
        %992 = vst.msk [vmem:[%s321 + $0x68] sm:$0xff] %vm875, %v976
        %993 = vst.msk [vmem:[%s321 + $0x70] sm:$0xff] %vm875, %v977
        %994 = vst.msk [vmem:[%s321 + $0x78] sm:$0xff] %vm875, %v978
      $region40: #{scale_discriminator_forward.10} parent=31 // pred_fallthru
        _
      %s995 = smul.u32 16, %s21
      %p996 = scmp.lt.s32.totalorder %s20, 15
      %s997 = scalar_select %p996, %s20, 15
      %p998 = scmp.lt.s32.totalorder %s995, 15
      %s999 = scalar_select %p998, %s995, 15
      %p1000 = scmp.lt.s32.totalorder %s22, 0
      %s1001 = scalar_select %p1000, %s22, 0
      %s1002 = sadd.s32 %s1001, %s999
      %s1003 = smul.addr %s997, 16
      %s1004 = sadd.s32 %s1002, %s1003
      %s1005 = smul.addr %s1004, 8
      %s1006 = scalar_lea.vmem %s3, %s1005
      // Predicated region
      $region41: #{scale_discriminator_forward.10} parent=31 // pred_check
        %p1007 = pneg %p150
      $region42: #{scale_discriminator_forward.10} parent=31 // pred_check_branch
        %1009 = sbr.rel (%p1007) target = $region44
      $region43: #{scale_discriminator_forward.10} parent=31 // pred_region
        %s1010 = smul.u32 16, %s21
      $region44: #{scale_discriminator_forward.10} parent=31 // pred_fallthru
        _
    $region32: #{scale_discriminator_forward.10} parent=5 // pred_fallthru
      _
    %p1011 = scmp.le.s32.totalorder 2, %s9
    // Predicated region
    $region45: #{scale_discriminator_forward.10} parent=5 // pred_check
      %p1012 = pneg %p1011
    $region46: #{scale_discriminator_forward.10} parent=5 // pred_check_branch
      %1014 = sbr.rel (%p1012) target = $region48
    $region47: #{scale_discriminator_forward.10} parent=5 // pred_region
      %s1015 = ssub.s32 %s9, 2
      // Predicated region
      $region49: #{scale_discriminator_forward.10} parent=47 // pred_check
        %p1016 = pneg %p156
      $region50: #{scale_discriminator_forward.10} parent=47 // pred_check_branch
        %1018 = sbr.rel (%p1016) target = $region52
      $region51: #{scale_discriminator_forward.10} parent=47 // pred_region
        %s1019 = smul.u32 16, %s25
        %p1020 = scmp.lt.s32.totalorder %s24, 15
        %s1021 = scalar_select %p1020, %s24, 15
        %p1022 = scmp.lt.s32.totalorder %s1019, 15
        %s1023 = scalar_select %p1022, %s1019, 15
        %p1024 = scmp.lt.s32.totalorder %s26, 0
        %s1025 = scalar_select %p1024, %s26, 0
        %s1026 = sadd.s32 %s1025, %s1023
        %s1027 = smul.addr %s1021, 16
        %s1028 = sadd.s32 %s1026, %s1027
        %s1029 = smul.addr %s1028, 8
        %s1030 = scalar_lea.vmem %s3, %s1029
      $region52: #{scale_discriminator_forward.10} parent=47 // pred_fallthru
        _
    $region48: #{scale_discriminator_forward.10} parent=5 // pred_fallthru
      _
  $region6: #{scale_discriminator_forward.10} parent=0 // loop_footer
    %s13 = sadd.s32 1, %s9
  $region7: #{scale_discriminator_forward.10} parent=0 // loop_footer_branch
    %8 = sbr.rel target = $region3
  $region8: #{scale_discriminator_forward.10} parent=0 // loop_exit
    _

// kernel: scale_discriminator_forward.11
$region0: #{scale_discriminator_forward.11}
  #allocation0 [shape = 'u32[]', space=smem, size = 0x4, offset = 0x4, fixed_abs, tag = 'smem constant byte address 0x4 - core index']
  #allocation1 [shape = 'u32[72,128]{1,0:T(1,128)}', space=vmem, size = 0x9000, scoped, tag = 'internal scratch']
  #allocation2 [shape = 'f32[32,32]{1,0:T(8,128)}', space=vmem, size = 0x4000, scoped, tag = 'scratch operand']
  %s0 = inlined_call_operand.vmem [shape: bf16[16,32,768], index: 0, kind: input, shape index: {}]
  %s1 = inlined_call_operand.vmem [shape: bf16[16,768,32], index: 1, kind: input, shape index: {}]
  %s2 = inlined_call_operand.vmem [shape: f32[16,1,32], index: 2, kind: input, shape index: {}]
  %s3 = inlined_call_operand.vmem [shape: f32[16,32,32], index: 3, kind: output, shape index: {}]
  %s4 = sld [smem:[#allocation0]]
  $region53: #{scale_discriminator_forward.11} parent=0
    _
  %s6 = ssub.s32 1, %s4
  %s7 = scalar_select 0, %s6, %s4
  loop: start=0, step=1, limit=18
  $region2: #{scale_discriminator_forward.11} parent=0 // loop_pre_header
    _
  $region3: #{scale_discriminator_forward.11} parent=0 // loop_header
    %s9 = sphi 0, %s13
    %p10 = scmp.ge.s32.totalorder %s9, 18
    %s16 = sphi 0, %s42
    %s17 = sphi 0, %s38
    %s18 = sphi 0, %s34
    %s19 = sphi 0, %s30
    %s20 = sphi 0, %s16
    %s21 = sphi 0, %s17
    %s22 = sphi 0, %s18
    %s23 = sphi 0, %s19
    %s24 = sphi 0, %s20
    %s25 = sphi 0, %s21
    %s26 = sphi 0, %s22
    %s27 = sphi 0, %s23
    %s49 = sphi 0, %s51
    %s52 = sphi 0, %s49
    %s53 = sphi 0, %s52
    %s69 = sphi 0, %s53
    %s79 = sphi 0, %s81
    %s82 = sphi 0, %s79
    %s83 = sphi 0, %s82
    %s99 = sphi 0, %s83
    %s107 = sphi 0, %s109
    %s110 = sphi 0, %s107
    %s111 = sphi 0, %s110
    %s127 = sphi 0, %s111
    %s137 = sphi 0, %s139
    %s140 = sphi 0, %s137
    %s141 = sphi 0, %s140
    %s157 = sphi 0, %s141
  $region4: #{scale_discriminator_forward.11} parent=0 // loop_header_branch
    %12 = sbr.rel (%p10) target = $region8
  $region5: #{scale_discriminator_forward.11} parent=0 // loop_body
    %s14 = ssub.s32 %s9, 1
    %s15 = ssub.s32 %s9, 2
    %s28 = sadd.s32 1, %s19
    %p29 = scmp.ge.s32.totalorder %s28, 1
    %s30 = scalar_select %p29, 0, %s28
    %s31 = sadd.s32 1, %s18
    %s32 = scalar_select %p29, %s31, %s18
    %p33 = scmp.ge.s32.totalorder %s32, 1
    %s34 = scalar_select %p33, 0, %s32
    %s35 = sadd.s32 1, %s17
    %s36 = scalar_select %p33, %s35, %s17
    %p37 = scmp.ge.s32.totalorder %s36, 1
    %s38 = scalar_select %p37, 0, %s36
    %s39 = sadd.s32 1, %s16
    %s40 = scalar_select %p37, %s39, %s16
    %p41 = scmp.ge.s32.totalorder %s40, 16
    %s42 = scalar_select %p41, 0, %s40
    %s43 = ssub.s32 %s16, %s42
    %s44 = ssub.s32 %s17, %s38
    %s45 = sor.u32 %s43, %s44
    %s46 = ssub.s32 %s19, %s30
    %s47 = sor.u32 %s45, %s46
    %p48 = scmp.eq.s32.totalorder %s47, 0
    %s50 = sadd.s32 %s49, 1
    %s51 = scalar_select %p48, %s49, %s50
    %p54 = pneg %p48
    %p55 = scmp.eq.s32.totalorder %s9, 15
    %p56 = por %p54, %p55
    %p57 = scmp.ne.s32.totalorder %s49, %s52
    %p58 = scmp.eq.s32.totalorder %s9, 0
    %p59 = por %p57, %p58
    %p60 = scmp.ne.s32.totalorder %s49, %s52
    %p61 = scmp.eq.s32.totalorder %s14, 15
    %p62 = por %p60, %p61
    %p63 = scmp.ne.s32.totalorder %s52, %s53
    %p64 = scmp.eq.s32.totalorder %s14, 0
    %p65 = por %p63, %p64
    %p66 = scmp.ne.s32.totalorder %s52, %s53
    %p67 = scmp.eq.s32.totalorder %s15, 15
    %p68 = por %p66, %p67
    %p70 = scmp.ne.s32.totalorder %s53, %s69
    %p71 = scmp.eq.s32.totalorder %s15, 0
    %p72 = por %p70, %p71
    %s73 = ssub.s32 %s16, %s42
    %s74 = ssub.s32 %s19, %s30
    %s75 = sor.u32 %s73, %s74
    %s76 = ssub.s32 %s18, %s34
    %s77 = sor.u32 %s75, %s76
    %p78 = scmp.eq.s32.totalorder %s77, 0
    %s80 = sadd.s32 %s79, 1
    %s81 = scalar_select %p78, %s79, %s80
    %p84 = pneg %p78
    %p85 = scmp.eq.s32.totalorder %s9, 15
    %p86 = por %p84, %p85
    %p87 = scmp.ne.s32.totalorder %s79, %s82
    %p88 = scmp.eq.s32.totalorder %s9, 0
    %p89 = por %p87, %p88
    %p90 = scmp.ne.s32.totalorder %s79, %s82
    %p91 = scmp.eq.s32.totalorder %s14, 15
    %p92 = por %p90, %p91
    %p93 = scmp.ne.s32.totalorder %s82, %s83
    %p94 = scmp.eq.s32.totalorder %s14, 0
    %p95 = por %p93, %p94
    %p96 = scmp.ne.s32.totalorder %s82, %s83
    %p97 = scmp.eq.s32.totalorder %s15, 15
    %p98 = por %p96, %p97
    %p100 = scmp.ne.s32.totalorder %s83, %s99
    %p101 = scmp.eq.s32.totalorder %s15, 0
    %p102 = por %p100, %p101
    %s103 = ssub.s32 %s16, %s42
    %s104 = ssub.s32 %s18, %s34
    %s105 = sor.u32 %s103, %s104
    %p106 = scmp.eq.s32.totalorder %s105, 0
    %s108 = sadd.s32 %s107, 1
    %s109 = scalar_select %p106, %s107, %s108
    %p112 = pneg %p106
    %p113 = scmp.eq.s32.totalorder %s9, 15
    %p114 = por %p112, %p113
    %p115 = scmp.ne.s32.totalorder %s107, %s110
    %p116 = scmp.eq.s32.totalorder %s9, 0
    %p117 = por %p115, %p116
    %p118 = scmp.ne.s32.totalorder %s107, %s110
    %p119 = scmp.eq.s32.totalorder %s14, 15
    %p120 = por %p118, %p119
    %p121 = scmp.ne.s32.totalorder %s110, %s111
    %p122 = scmp.eq.s32.totalorder %s14, 0
    %p123 = por %p121, %p122
    %p124 = scmp.ne.s32.totalorder %s110, %s111
    %p125 = scmp.eq.s32.totalorder %s15, 15
    %p126 = por %p124, %p125
    %p128 = scmp.ne.s32.totalorder %s111, %s127
    %p129 = scmp.eq.s32.totalorder %s15, 0
    %p130 = por %p128, %p129
    %s131 = ssub.s32 %s16, %s42
    %s132 = ssub.s32 %s17, %s38
    %s133 = sor.u32 %s131, %s132
    %s134 = ssub.s32 %s18, %s34
    %s135 = sor.u32 %s133, %s134
    %p136 = scmp.eq.s32.totalorder %s135, 0
    %s138 = sadd.s32 %s137, 1
    %s139 = scalar_select %p136, %s137, %s138
    %p142 = pneg %p136
    %p143 = scmp.eq.s32.totalorder %s9, 15
    %p144 = por %p142, %p143
    %p145 = scmp.ne.s32.totalorder %s137, %s140
    %p146 = scmp.eq.s32.totalorder %s9, 0
    %p147 = por %p145, %p146
    %p148 = scmp.ne.s32.totalorder %s137, %s140
    %p149 = scmp.eq.s32.totalorder %s14, 15
    %p150 = por %p148, %p149
    %p151 = scmp.ne.s32.totalorder %s140, %s141
    %p152 = scmp.eq.s32.totalorder %s14, 0
    %p153 = por %p151, %p152
    %p154 = scmp.ne.s32.totalorder %s140, %s141
    %p155 = scmp.eq.s32.totalorder %s15, 15
    %p156 = por %p154, %p155
    %p158 = scmp.ne.s32.totalorder %s141, %s157
    %p159 = scmp.eq.s32.totalorder %s15, 0
    %p160 = por %p158, %p159
    %p161 = scmp.le.s32.totalorder 1, %s9
    %p162 = scmp.lt.s32.totalorder %s9, 17
    %p163 = pnand %p161, %p162
    %p164 = pneg %p163
    // Predicated region
    $region9: #{scale_discriminator_forward.11} parent=5 // pred_check
      _
    $region10: #{scale_discriminator_forward.11} parent=5 // pred_check_branch
      %166 = sbr.rel (%p163) target = $region12
    $region11: #{scale_discriminator_forward.11} parent=5 // pred_region
      %s167 = ssub.s32 %s9, 1
    $region12: #{scale_discriminator_forward.11} parent=5 // pred_fallthru
      _
    %p168 = scmp.lt.s32.totalorder %s9, 16
    // Predicated region
    $region13: #{scale_discriminator_forward.11} parent=5 // pred_check
      %p169 = pneg %p168
    $region14: #{scale_discriminator_forward.11} parent=5 // pred_check_branch
      %171 = sbr.rel (%p169) target = $region16
    $region15: #{scale_discriminator_forward.11} parent=5 // pred_region
      // Predicated region
      $region17: #{scale_discriminator_forward.11} parent=15 // pred_check
        %p172 = pneg %p59
      $region18: #{scale_discriminator_forward.11} parent=15 // pred_check_branch
        %174 = sbr.rel (%p172) target = $region20
      $region19: #{scale_discriminator_forward.11} parent=15 // pred_region
        %s175 = smul.u32 4, %s17
        %s176 = smul.u32 6, %s19
        %p177 = scmp.lt.s32.totalorder %s16, 15
        %s178 = scalar_select %p177, %s16, 15
        %p179 = scmp.lt.s32.totalorder %s175, 3
        %s180 = scalar_select %p179, %s175, 3
        %p181 = scmp.lt.s32.totalorder %s176, 5
        %s182 = scalar_select %p181, %s176, 5
        %s183 = smul.addr %s180, 6
        %s184 = sadd.s32 %s182, %s183
        %s185 = smul.addr %s178, 24
        %s186 = sadd.s32 %s184, %s185
        %s187 = smul.addr %s186, 4
        %s188 = scalar_lea.vmem %s0, %s187
        %s189 = smul.u32 4, %s17
        %s190 = smul.u32 6, %s19
      $region20: #{scale_discriminator_forward.11} parent=15 // pred_fallthru
        _
      // Predicated region
      $region21: #{scale_discriminator_forward.11} parent=15 // pred_check
        %p191 = pneg %p89
      $region22: #{scale_discriminator_forward.11} parent=15 // pred_check_branch
        %193 = sbr.rel (%p191) target = $region24
      $region23: #{scale_discriminator_forward.11} parent=15 // pred_region
        %s194 = smul.u32 96, %s19
        %p195 = scmp.lt.s32.totalorder %s16, 15
        %s196 = scalar_select %p195, %s16, 15
        %p197 = scmp.lt.s32.totalorder %s194, 95
        %s198 = scalar_select %p197, %s194, 95
        %p199 = scmp.lt.s32.totalorder %s18, 0
        %s200 = scalar_select %p199, %s18, 0
        %s201 = sadd.s32 %s200, %s198
        %s202 = smul.addr %s196, 96
        %s203 = sadd.s32 %s201, %s202
        %s204 = smul.addr %s203, 4
        %s205 = scalar_lea.vmem %s1, %s204
        %s206 = smul.u32 96, %s19
      $region24: #{scale_discriminator_forward.11} parent=15 // pred_fallthru
        _
      // Predicated region
      $region25: #{scale_discriminator_forward.11} parent=15 // pred_check
        %p207 = pneg %p117
      $region26: #{scale_discriminator_forward.11} parent=15 // pred_check_branch
        %209 = sbr.rel (%p207) target = $region28
      $region27: #{scale_discriminator_forward.11} parent=15 // pred_region
        %p210 = scmp.lt.s32.totalorder %s16, 15
        %s211 = scalar_select %p210, %s16, 15
        %p212 = scmp.lt.s32.totalorder %s18, 0
        %s213 = scalar_select %p212, %s18, 0
        %s214 = sadd.s32 %s213, %s211
        %s215 = scalar_lea.vmem %s2, %s214
      $region28: #{scale_discriminator_forward.11} parent=15 // pred_fallthru
        _
    $region16: #{scale_discriminator_forward.11} parent=5 // pred_fallthru
      _
    %p216 = scmp.le.s32.totalorder 1, %s9
    %p217 = scmp.lt.s32.totalorder %s9, 17
    %p218 = pnand %p216, %p217
    %p219 = pneg %p218
    // Predicated region
    $region29: #{scale_discriminator_forward.11} parent=5 // pred_check
      _
    $region30: #{scale_discriminator_forward.11} parent=5 // pred_check_branch
      %221 = sbr.rel (%p218) target = $region32
    $region31: #{scale_discriminator_forward.11} parent=5 // pred_region
      %s222 = ssub.s32 %s9, 1
      %s223 = smul.u32 4, %s21
      %s224 = smul.u32 6, %s23
      %p225 = scmp.lt.s32.totalorder %s20, 15
      %s226 = scalar_select %p225, %s20, 15
      %p227 = scmp.lt.s32.totalorder %s223, 3
      %s228 = scalar_select %p227, %s223, 3
      %p229 = scmp.lt.s32.totalorder %s224, 5
      %s230 = scalar_select %p229, %s224, 5
      %s231 = smul.addr %s228, 6
      %s232 = sadd.s32 %s230, %s231
      %s233 = smul.addr %s226, 24
      %s234 = sadd.s32 %s232, %s233
      %s235 = smul.addr %s234, 4
      %s236 = scalar_lea.vmem %s0, %s235
      %p237 = pneg %p65
      %p238 = pneg %p62
      %s239 = smul.u32 96, %s23
      %p240 = scmp.lt.s32.totalorder %s20, 15
      %s241 = scalar_select %p240, %s20, 15
      %p242 = scmp.lt.s32.totalorder %s239, 95
      %s243 = scalar_select %p242, %s239, 95
      %p244 = scmp.lt.s32.totalorder %s22, 0
      %s245 = scalar_select %p244, %s22, 0
      %s246 = sadd.s32 %s245, %s243
      %s247 = smul.addr %s241, 96
      %s248 = sadd.s32 %s246, %s247
      %s249 = smul.addr %s248, 4
      %s250 = scalar_lea.vmem %s1, %s249
      %p251 = pneg %p95
      %p252 = pneg %p92
      %p253 = scmp.lt.s32.totalorder %s20, 15
      %s254 = scalar_select %p253, %s20, 15
      %p255 = scmp.lt.s32.totalorder %s22, 0
      %s256 = scalar_select %p255, %s22, 0
      %s257 = sadd.s32 %s256, %s254
      %s258 = scalar_lea.vmem %s2, %s257
      %p259 = pneg %p123
      %p260 = pneg %p120
      %p261 = pneg %p153
      %p262 = pneg %p150
      %s263 = smul.u32 4, %s21
      %p264 = scmp.lt.s32.totalorder %s20, 15
      %s265 = scalar_select %p264, %s20, 15
      %p266 = scmp.lt.s32.totalorder %s263, 3
      %s267 = scalar_select %p266, %s263, 3
      %p268 = scmp.lt.s32.totalorder %s22, 0
      %s269 = scalar_select %p268, %s22, 0
      %s270 = sadd.s32 %s269, %s267
      %s271 = smul.addr %s265, 4
      %s272 = sadd.s32 %s270, %s271
      %s273 = smul.addr %s272, 8
      %s274 = scalar_lea.vmem %s3, %s273
      %s275 = smul.u32 4, %s21
      %s276 = smul.u32 6, %s23
      %p277 = scmp.lt.s32.totalorder %s20, 15
      %s278 = scalar_select %p277, %s20, 15
      %p279 = scmp.lt.s32.totalorder %s275, 3
      %s280 = scalar_select %p279, %s275, 3
      %p281 = scmp.lt.s32.totalorder %s276, 5
      %s282 = scalar_select %p281, %s276, 5
      %s283 = smul.addr %s280, 6
      %s284 = sadd.s32 %s282, %s283
      %s285 = smul.addr %s278, 24
      %s286 = sadd.s32 %s284, %s285
      %s287 = smul.addr %s286, 4
      %s288 = scalar_lea.vmem %s0, %s287
      %s289 = smul.u32 4, %s21
      %s290 = smul.u32 6, %s23
      %s291 = smul.u32 96, %s23
      %p292 = scmp.lt.s32.totalorder %s20, 15
      %s293 = scalar_select %p292, %s20, 15
      %p294 = scmp.lt.s32.totalorder %s291, 95
      %s295 = scalar_select %p294, %s291, 95
      %p296 = scmp.lt.s32.totalorder %s22, 0
      %s297 = scalar_select %p296, %s22, 0
      %s298 = sadd.s32 %s297, %s295
      %s299 = smul.addr %s293, 96
      %s300 = sadd.s32 %s298, %s299
      %s301 = smul.addr %s300, 4
      %s302 = scalar_lea.vmem %s1, %s301
      %s303 = smul.u32 96, %s23
      %p304 = scmp.lt.s32.totalorder %s20, 15
      %s305 = scalar_select %p304, %s20, 15
      %p306 = scmp.lt.s32.totalorder %s22, 0
      %s307 = scalar_select %p306, %s22, 0
      %s308 = sadd.s32 %s307, %s305
      %s309 = scalar_lea.vmem %s2, %s308
      %s310 = smul.u32 4, %s21
      %p311 = scmp.lt.s32.totalorder %s20, 15
      %s312 = scalar_select %p311, %s20, 15
      %p313 = scmp.lt.s32.totalorder %s310, 3
      %s314 = scalar_select %p313, %s310, 3
      %p315 = scmp.lt.s32.totalorder %s22, 0
      %s316 = scalar_select %p315, %s22, 0
      %s317 = sadd.s32 %s316, %s314
      %s318 = smul.addr %s312, 4
      %s319 = sadd.s32 %s317, %s318
      %s320 = smul.addr %s319, 8
      %s321 = scalar_lea.vmem %s3, %s320
      %s322 = smul.u32 4, %s21
      %p323 = scmp.eq.s32.totalorder %s23, 0
      // Predicated region
      $region33: #{scale_discriminator_forward.11} parent=31 // pred_check
        %p324 = pneg %p323
      $region34: #{scale_discriminator_forward.11} parent=31 // pred_check_branch
        %326 = sbr.rel (%p324) target = $region36
      $region35: #{scale_discriminator_forward.11} parent=31 // pred_region
        %vm327 = vcmask 261120
        %328 = vst.msk [vmem:[#allocation2] sm:$0xff] %vm327, 0.0
        %329 = vst.msk [vmem:[#allocation2 + $0x8] sm:$0xff] %vm327, 0.0
        %330 = vst.msk [vmem:[#allocation2 + $0x10] sm:$0xff] %vm327, 0.0
        %331 = vst.msk [vmem:[#allocation2 + $0x18] sm:$0xff] %vm327, 0.0
      $region36: #{scale_discriminator_forward.11} parent=31 // pred_fallthru
        _
      %v332 = vld [vmem:[#allocation2] sm:$0xff]
      %v333 = vld [vmem:[#allocation2 + $0x8] sm:$0xff]
      %v334 = vld [vmem:[#allocation2 + $0x10] sm:$0xff]
      %v335 = vld [vmem:[#allocation2 + $0x18] sm:$0xff]
      %v336 = vld [vmem:[%s288] sm:$0xff]
      %v337 = vld [vmem:[%s288 + $0x8] sm:$0xff]
      %v338 = vld [vmem:[%s288 + $0x10] sm:$0xff]
      %v339 = vld [vmem:[%s288 + $0x18] sm:$0xff]
      %v340 = vld [vmem:[%s288 + $0x20] sm:$0xff]
      %v341 = vld [vmem:[%s288 + $0x28] sm:$0xff]
      %v342 = vld [vmem:[%s288 + $0x30] sm:$0xff]
      %v343 = vld [vmem:[%s288 + $0x38] sm:$0xff]
      %v344 = vld [vmem:[%s288 + $0x40] sm:$0xff]
      %v345 = vld [vmem:[%s288 + $0x48] sm:$0xff]
      %v346 = vld [vmem:[%s288 + $0x50] sm:$0xff]
      %v347 = vld [vmem:[%s288 + $0x58] sm:$0xff]
      %v348 = vld [vmem:[%s302] sm:$0xf]
      %v349 = vld [vmem:[%s302 + $0x4] sm:$0xf]
      %v350 = vld [vmem:[%s302 + $0x8] sm:$0xf]
      %v351 = vld [vmem:[%s302 + $0xc] sm:$0xf]
      %v352 = vld [vmem:[%s302 + $0x10] sm:$0xf]
      %v353 = vld [vmem:[%s302 + $0x14] sm:$0xf]
      %v354 = vld [vmem:[%s302 + $0x18] sm:$0xf]
      %v355 = vld [vmem:[%s302 + $0x1c] sm:$0xf]
      %v356 = vld [vmem:[%s302 + $0x20] sm:$0xf]
      %v357 = vld [vmem:[%s302 + $0x24] sm:$0xf]
      %v358 = vld [vmem:[%s302 + $0x28] sm:$0xf]
      %v359 = vld [vmem:[%s302 + $0x2c] sm:$0xf]
      %v360 = vld [vmem:[%s302 + $0x30] sm:$0xf]
      %v361 = vld [vmem:[%s302 + $0x34] sm:$0xf]
      %v362 = vld [vmem:[%s302 + $0x38] sm:$0xf]
      %v363 = vld [vmem:[%s302 + $0x3c] sm:$0xf]
      %v364 = vld [vmem:[%s302 + $0x40] sm:$0xf]
      %v365 = vld [vmem:[%s302 + $0x44] sm:$0xf]
      %v366 = vld [vmem:[%s302 + $0x48] sm:$0xf]
      %v367 = vld [vmem:[%s302 + $0x4c] sm:$0xf]
      %v368 = vld [vmem:[%s302 + $0x50] sm:$0xf]
      %v369 = vld [vmem:[%s302 + $0x54] sm:$0xf]
      %v370 = vld [vmem:[%s302 + $0x58] sm:$0xf]
      %v371 = vld [vmem:[%s302 + $0x5c] sm:$0xf]
      %v372 = vld [vmem:[%s302 + $0x60] sm:$0xf]
      %v373 = vld [vmem:[%s302 + $0x64] sm:$0xf]
      %v374 = vld [vmem:[%s302 + $0x68] sm:$0xf]
      %v375 = vld [vmem:[%s302 + $0x6c] sm:$0xf]
      %v376 = vld [vmem:[%s302 + $0x70] sm:$0xf]
      %v377 = vld [vmem:[%s302 + $0x74] sm:$0xf]
      %v378 = vld [vmem:[%s302 + $0x78] sm:$0xf]
      %v379 = vld [vmem:[%s302 + $0x7c] sm:$0xf]
      %v380 = vld [vmem:[%s302 + $0x80] sm:$0xf]
      %v381 = vld [vmem:[%s302 + $0x84] sm:$0xf]
      %v382 = vld [vmem:[%s302 + $0x88] sm:$0xf]
      %v383 = vld [vmem:[%s302 + $0x8c] sm:$0xf]
      %v384 = vld [vmem:[%s302 + $0x90] sm:$0xf]
      %v385 = vld [vmem:[%s302 + $0x94] sm:$0xf]
      %v386 = vld [vmem:[%s302 + $0x98] sm:$0xf]
      %v387 = vld [vmem:[%s302 + $0x9c] sm:$0xf]
      %v388 = vld [vmem:[%s302 + $0xa0] sm:$0xf]
      %v389 = vld [vmem:[%s302 + $0xa4] sm:$0xf]
      %v390 = vld [vmem:[%s302 + $0xa8] sm:$0xf]
      %v391 = vld [vmem:[%s302 + $0xac] sm:$0xf]
      %v392 = vld [vmem:[%s302 + $0xb0] sm:$0xf]
      %v393 = vld [vmem:[%s302 + $0xb4] sm:$0xf]
      %v394 = vld [vmem:[%s302 + $0xb8] sm:$0xf]
      %v395 = vld [vmem:[%s302 + $0xbc] sm:$0xf]
      %v396 = vld [vmem:[%s302 + $0xc0] sm:$0xf]
      %v397 = vld [vmem:[%s302 + $0xc4] sm:$0xf]
      %v398 = vld [vmem:[%s302 + $0xc8] sm:$0xf]
      %v399 = vld [vmem:[%s302 + $0xcc] sm:$0xf]
      %v400 = vld [vmem:[%s302 + $0xd0] sm:$0xf]
      %v401 = vld [vmem:[%s302 + $0xd4] sm:$0xf]
      %v402 = vld [vmem:[%s302 + $0xd8] sm:$0xf]
      %v403 = vld [vmem:[%s302 + $0xdc] sm:$0xf]
      %v404 = vld [vmem:[%s302 + $0xe0] sm:$0xf]
      %v405 = vld [vmem:[%s302 + $0xe4] sm:$0xf]
      %v406 = vld [vmem:[%s302 + $0xe8] sm:$0xf]
      %v407 = vld [vmem:[%s302 + $0xec] sm:$0xf]
      %v408 = vld [vmem:[%s302 + $0xf0] sm:$0xf]
      %v409 = vld [vmem:[%s302 + $0xf4] sm:$0xf]
      %v410 = vld [vmem:[%s302 + $0xf8] sm:$0xf]
      %v411 = vld [vmem:[%s302 + $0xfc] sm:$0xf]
      %v412 = vld [vmem:[%s302 + $0x100] sm:$0xf]
      %v413 = vld [vmem:[%s302 + $0x104] sm:$0xf]
      %v414 = vld [vmem:[%s302 + $0x108] sm:$0xf]
      %v415 = vld [vmem:[%s302 + $0x10c] sm:$0xf]
      %v416 = vld [vmem:[%s302 + $0x110] sm:$0xf]
      %v417 = vld [vmem:[%s302 + $0x114] sm:$0xf]
      %v418 = vld [vmem:[%s302 + $0x118] sm:$0xf]
      %v419 = vld [vmem:[%s302 + $0x11c] sm:$0xf]
      %v420 = vld [vmem:[%s302 + $0x120] sm:$0xf]
      %v421 = vld [vmem:[%s302 + $0x124] sm:$0xf]
      %v422 = vld [vmem:[%s302 + $0x128] sm:$0xf]
      %v423 = vld [vmem:[%s302 + $0x12c] sm:$0xf]
      %v424 = vld [vmem:[%s302 + $0x130] sm:$0xf]
      %v425 = vld [vmem:[%s302 + $0x134] sm:$0xf]
      %v426 = vld [vmem:[%s302 + $0x138] sm:$0xf]
      %v427 = vld [vmem:[%s302 + $0x13c] sm:$0xf]
      %v428 = vld [vmem:[%s302 + $0x140] sm:$0xf]
      %v429 = vld [vmem:[%s302 + $0x144] sm:$0xf]
      %v430 = vld [vmem:[%s302 + $0x148] sm:$0xf]
      %v431 = vld [vmem:[%s302 + $0x14c] sm:$0xf]
      %v432 = vld [vmem:[%s302 + $0x150] sm:$0xf]
      %v433 = vld [vmem:[%s302 + $0x154] sm:$0xf]
      %v434 = vld [vmem:[%s302 + $0x158] sm:$0xf]
      %v435 = vld [vmem:[%s302 + $0x15c] sm:$0xf]
      %v436 = vld [vmem:[%s302 + $0x160] sm:$0xf]
      %v437 = vld [vmem:[%s302 + $0x164] sm:$0xf]
      %v438 = vld [vmem:[%s302 + $0x168] sm:$0xf]
      %v439 = vld [vmem:[%s302 + $0x16c] sm:$0xf]
      %v440 = vld [vmem:[%s302 + $0x170] sm:$0xf]
      %v441 = vld [vmem:[%s302 + $0x174] sm:$0xf]
      %v442 = vld [vmem:[%s302 + $0x178] sm:$0xf]
      %v443 = vld [vmem:[%s302 + $0x17c] sm:$0xf]
      %v456 = vunpack.c.l.b16 %v336
      %v457 = vunpack.c.h.b16 %v336
      %v458 = vunpack.c.l.b16 %v337
      %v459 = vunpack.c.h.b16 %v337
      %v460 = vunpack.c.l.b16 %v338
      %v461 = vunpack.c.h.b16 %v338
      %v462 = vunpack.c.l.b16 %v339
      %v463 = vunpack.c.h.b16 %v339
      %v464 = vunpack.c.l.b16 %v340
      %v465 = vunpack.c.h.b16 %v340
      %v466 = vunpack.c.l.b16 %v341
      %v467 = vunpack.c.h.b16 %v341
      %v468 = vunpack.c.l.b16 %v342
      %v469 = vunpack.c.h.b16 %v342
      %v470 = vunpack.c.l.b16 %v343
      %v471 = vunpack.c.h.b16 %v343
      %v472 = vunpack.c.l.b16 %v344
      %v473 = vunpack.c.h.b16 %v344
      %v474 = vunpack.c.l.b16 %v345
      %v475 = vunpack.c.h.b16 %v345
      %v476 = vunpack.c.l.b16 %v346
      %v477 = vunpack.c.h.b16 %v346
      %v478 = vunpack.c.l.b16 %v347
      %v479 = vunpack.c.h.b16 %v347
      %v480 = vpack.c.b16 %v462, %v456
      %v481 = vpack.c.b16 %v463, %v457
      %v482 = vpack.c.b16 %v464, %v458
      %v483 = vpack.c.b16 %v465, %v459
      %v484 = vpack.c.b16 %v466, %v460
      %v485 = vpack.c.b16 %v467, %v461
      %v486 = vpack.c.b16 %v474, %v468
      %v487 = vpack.c.b16 %v475, %v469
      %v488 = vpack.c.b16 %v476, %v470
      %v489 = vpack.c.b16 %v477, %v471
      %v490 = vpack.c.b16 %v478, %v472
      %v491 = vpack.c.b16 %v479, %v473
      %v600 = vunpack.c.l.b16 %v348
      %v601 = vunpack.c.l.b16 %v349
      %v602 = vunpack.c.l.b16 %v350
      %v603 = vunpack.c.l.b16 %v351
      %v604 = vunpack.c.l.b16 %v352
      %v605 = vunpack.c.l.b16 %v353
      %v606 = vunpack.c.l.b16 %v354
      %v607 = vunpack.c.l.b16 %v355
      %v608 = vunpack.c.l.b16 %v356
      %v609 = vunpack.c.l.b16 %v357
      %v610 = vunpack.c.l.b16 %v358
      %v611 = vunpack.c.l.b16 %v359
      %v612 = vunpack.c.l.b16 %v360
      %v613 = vunpack.c.l.b16 %v361
      %v614 = vunpack.c.l.b16 %v362
      %v615 = vunpack.c.l.b16 %v363
      %v616 = vunpack.c.l.b16 %v364
      %v617 = vunpack.c.l.b16 %v365
      %v618 = vunpack.c.l.b16 %v366
      %v619 = vunpack.c.l.b16 %v367
      %v620 = vunpack.c.l.b16 %v368
      %v621 = vunpack.c.l.b16 %v369
      %v622 = vunpack.c.l.b16 %v370
      %v623 = vunpack.c.l.b16 %v371
      %v624 = vunpack.c.l.b16 %v372
      %v625 = vunpack.c.l.b16 %v373
      %v626 = vunpack.c.l.b16 %v374
      %v627 = vunpack.c.l.b16 %v375
      %v628 = vunpack.c.l.b16 %v376
      %v629 = vunpack.c.l.b16 %v377
      %v630 = vunpack.c.l.b16 %v378
      %v631 = vunpack.c.l.b16 %v379
      %v632 = vunpack.c.l.b16 %v380
      %v633 = vunpack.c.l.b16 %v381
      %v634 = vunpack.c.l.b16 %v382
      %v635 = vunpack.c.l.b16 %v383
      %v636 = vunpack.c.l.b16 %v384
      %v637 = vunpack.c.l.b16 %v385
      %v638 = vunpack.c.l.b16 %v386
      %v639 = vunpack.c.l.b16 %v387
      %v640 = vunpack.c.l.b16 %v388
      %v641 = vunpack.c.l.b16 %v389
      %v642 = vunpack.c.l.b16 %v390
      %v643 = vunpack.c.l.b16 %v391
      %v644 = vunpack.c.l.b16 %v392
      %v645 = vunpack.c.l.b16 %v393
      %v646 = vunpack.c.l.b16 %v394
      %v647 = vunpack.c.l.b16 %v395
      %v648 = vunpack.c.l.b16 %v396
      %v649 = vunpack.c.l.b16 %v397
      %v650 = vunpack.c.l.b16 %v398
      %v651 = vunpack.c.l.b16 %v399
      %v652 = vunpack.c.l.b16 %v400
      %v653 = vunpack.c.l.b16 %v401
      %v654 = vunpack.c.l.b16 %v402
      %v655 = vunpack.c.l.b16 %v403
      %v656 = vunpack.c.l.b16 %v404
      %v657 = vunpack.c.l.b16 %v405
      %v658 = vunpack.c.l.b16 %v406
      %v659 = vunpack.c.l.b16 %v407
      %v660 = vunpack.c.l.b16 %v408
      %v661 = vunpack.c.l.b16 %v409
      %v662 = vunpack.c.l.b16 %v410
      %v663 = vunpack.c.l.b16 %v411
      %v664 = vunpack.c.l.b16 %v412
      %v665 = vunpack.c.l.b16 %v413
      %v666 = vunpack.c.l.b16 %v414
      %v667 = vunpack.c.l.b16 %v415
      %v668 = vunpack.c.l.b16 %v416
      %v669 = vunpack.c.l.b16 %v417
      %v670 = vunpack.c.l.b16 %v418
      %v671 = vunpack.c.l.b16 %v419
      %v672 = vunpack.c.l.b16 %v420
      %v673 = vunpack.c.l.b16 %v421
      %v674 = vunpack.c.l.b16 %v422
      %v675 = vunpack.c.l.b16 %v423
      %v676 = vunpack.c.l.b16 %v424
      %v677 = vunpack.c.l.b16 %v425
      %v678 = vunpack.c.l.b16 %v426
      %v679 = vunpack.c.l.b16 %v427
      %v680 = vunpack.c.l.b16 %v428
      %v681 = vunpack.c.l.b16 %v429
      %v682 = vunpack.c.l.b16 %v430
      %v683 = vunpack.c.l.b16 %v431
      %v684 = vunpack.c.l.b16 %v432
      %v685 = vunpack.c.l.b16 %v433
      %v686 = vunpack.c.l.b16 %v434
      %v687 = vunpack.c.l.b16 %v435
      %v688 = vunpack.c.l.b16 %v436
      %v689 = vunpack.c.l.b16 %v437
      %v690 = vunpack.c.l.b16 %v438
      %v691 = vunpack.c.l.b16 %v439
      %v692 = vunpack.c.l.b16 %v440
      %v693 = vunpack.c.l.b16 %v441
      %v694 = vunpack.c.l.b16 %v442
      %v695 = vunpack.c.l.b16 %v443
      %v696 = vpack.c.b16 %v601, %v600
      %v697 = vpack.c.b16 %v603, %v602
      %v698 = vpack.c.b16 %v605, %v604
      %v699 = vpack.c.b16 %v607, %v606
      %v700 = vpack.c.b16 %v609, %v608
      %v701 = vpack.c.b16 %v611, %v610
      %v702 = vpack.c.b16 %v613, %v612
      %v703 = vpack.c.b16 %v615, %v614
      %v704 = vpack.c.b16 %v617, %v616
      %v705 = vpack.c.b16 %v619, %v618
      %v706 = vpack.c.b16 %v621, %v620
      %v707 = vpack.c.b16 %v623, %v622
      %v708 = vpack.c.b16 %v625, %v624
      %v709 = vpack.c.b16 %v627, %v626
      %v710 = vpack.c.b16 %v629, %v628
      %v711 = vpack.c.b16 %v631, %v630
      %v712 = vpack.c.b16 %v633, %v632
      %v713 = vpack.c.b16 %v635, %v634
      %v714 = vpack.c.b16 %v637, %v636
      %v715 = vpack.c.b16 %v639, %v638
      %v716 = vpack.c.b16 %v641, %v640
      %v717 = vpack.c.b16 %v643, %v642
      %v718 = vpack.c.b16 %v645, %v644
      %v719 = vpack.c.b16 %v647, %v646
      %v720 = vpack.c.b16 %v649, %v648
      %v721 = vpack.c.b16 %v651, %v650
      %v722 = vpack.c.b16 %v653, %v652
      %v723 = vpack.c.b16 %v655, %v654
      %v724 = vpack.c.b16 %v657, %v656
      %v725 = vpack.c.b16 %v659, %v658
      %v726 = vpack.c.b16 %v661, %v660
      %v727 = vpack.c.b16 %v663, %v662
      %v728 = vpack.c.b16 %v665, %v664
      %v729 = vpack.c.b16 %v667, %v666
      %v730 = vpack.c.b16 %v669, %v668
      %v731 = vpack.c.b16 %v671, %v670
      %v732 = vpack.c.b16 %v673, %v672
      %v733 = vpack.c.b16 %v675, %v674
      %v734 = vpack.c.b16 %v677, %v676
      %v735 = vpack.c.b16 %v679, %v678
      %v736 = vpack.c.b16 %v681, %v680
      %v737 = vpack.c.b16 %v683, %v682
      %v738 = vpack.c.b16 %v685, %v684
      %v739 = vpack.c.b16 %v687, %v686
      %v740 = vpack.c.b16 %v689, %v688
      %v741 = vpack.c.b16 %v691, %v690
      %v742 = vpack.c.b16 %v693, %v692
      %v743 = vpack.c.b16 %v695, %v694
      %792 = vmatpush.bf16.msra.mxu0 %v703
      %793 = vmatpush.bf16.msra.mxu0 %v702
      %794 = vmatpush.bf16.msra.mxu0 %v701
      %795 = vmatpush.bf16.msra.mxu0 %v700
      %796 = vmatpush.bf16.msra.mxu0 %v699
      %797 = vmatpush.bf16.msra.mxu0 %v698
      %798 = vmatpush.bf16.msra.mxu0 %v697
      %799 = vmatpush.bf16.msra.mxu0 %v696
      %800 = vmatmul.bf16.gmra.mxu0 %v480
      %v801 = vpop.f32.mrf.mxu0
      %v802 = vadd.f32 0.0, %v801
      %v803 = vpop.f32.mrf.mxu0
      %v804 = vadd.f32 0.0, %v803
      %805 = vmatmul.bf16.gmra.mxu0 %v486
      %v806 = vpop.f32.mrf.mxu0
      %v807 = vadd.f32 0.0, %v806
      %v808 = vpop.f32.mrf.mxu0
      %v809 = vadd.f32 0.0, %v808
      %810 = vdwg.mxu0
      %811 = vmatpush.bf16.msra.mxu0 %v711
      %812 = vmatpush.bf16.msra.mxu0 %v710
      %813 = vmatpush.bf16.msra.mxu0 %v709
      %814 = vmatpush.bf16.msra.mxu0 %v708
      %815 = vmatpush.bf16.msra.mxu0 %v707
      %816 = vmatpush.bf16.msra.mxu0 %v706
      %817 = vmatpush.bf16.msra.mxu0 %v705
      %818 = vmatpush.bf16.msra.mxu0 %v704
      %819 = vmatmul.bf16.gmra.mxu0 %v481
      %v820 = vpop.f32.mrf.mxu0
      %v821 = vadd.f32 %v802, %v820
      %v822 = vpop.f32.mrf.mxu0
      %v823 = vadd.f32 %v804, %v822
      %824 = vmatmul.bf16.gmra.mxu0 %v487
      %v825 = vpop.f32.mrf.mxu0
      %v826 = vadd.f32 %v807, %v825
      %v827 = vpop.f32.mrf.mxu0
      %v828 = vadd.f32 %v809, %v827
      %829 = vdwg.mxu0
      %830 = vmatpush.bf16.msra.mxu0 %v719
      %831 = vmatpush.bf16.msra.mxu0 %v718
      %832 = vmatpush.bf16.msra.mxu0 %v717
      %833 = vmatpush.bf16.msra.mxu0 %v716
      %834 = vmatpush.bf16.msra.mxu0 %v715
      %835 = vmatpush.bf16.msra.mxu0 %v714
      %836 = vmatpush.bf16.msra.mxu0 %v713
      %837 = vmatpush.bf16.msra.mxu0 %v712
      %838 = vmatmul.bf16.gmra.mxu0 %v482
      %v839 = vpop.f32.mrf.mxu0
      %v840 = vadd.f32 %v821, %v839
      %v841 = vpop.f32.mrf.mxu0
      %v842 = vadd.f32 %v823, %v841
      %843 = vmatmul.bf16.gmra.mxu0 %v488
      %v844 = vpop.f32.mrf.mxu0
      %v845 = vadd.f32 %v826, %v844
      %v846 = vpop.f32.mrf.mxu0
      %v847 = vadd.f32 %v828, %v846
      %848 = vdwg.mxu0
      %849 = vmatpush.bf16.msra.mxu0 %v727
      %850 = vmatpush.bf16.msra.mxu0 %v726
      %851 = vmatpush.bf16.msra.mxu0 %v725
      %852 = vmatpush.bf16.msra.mxu0 %v724
      %853 = vmatpush.bf16.msra.mxu0 %v723
      %854 = vmatpush.bf16.msra.mxu0 %v722
      %855 = vmatpush.bf16.msra.mxu0 %v721
      %856 = vmatpush.bf16.msra.mxu0 %v720
      %857 = vmatmul.bf16.gmra.mxu0 %v483
      %v858 = vpop.f32.mrf.mxu0
      %v859 = vadd.f32 %v840, %v858
      %v860 = vpop.f32.mrf.mxu0
      %v861 = vadd.f32 %v842, %v860
      %862 = vmatmul.bf16.gmra.mxu0 %v489
      %v863 = vpop.f32.mrf.mxu0
      %v864 = vadd.f32 %v845, %v863
      %v865 = vpop.f32.mrf.mxu0
      %v866 = vadd.f32 %v847, %v865
      %867 = vdwg.mxu0
      %868 = vmatpush.bf16.msra.mxu0 %v735
      %869 = vmatpush.bf16.msra.mxu0 %v734
      %870 = vmatpush.bf16.msra.mxu0 %v733
      %871 = vmatpush.bf16.msra.mxu0 %v732
      %872 = vmatpush.bf16.msra.mxu0 %v731
      %873 = vmatpush.bf16.msra.mxu0 %v730
      %874 = vmatpush.bf16.msra.mxu0 %v729
      %875 = vmatpush.bf16.msra.mxu0 %v728
      %876 = vmatmul.bf16.gmra.mxu0 %v484
      %v877 = vpop.f32.mrf.mxu0
      %v878 = vadd.f32 %v859, %v877
      %v879 = vpop.f32.mrf.mxu0
      %v880 = vadd.f32 %v861, %v879
      %881 = vmatmul.bf16.gmra.mxu0 %v490
      %v882 = vpop.f32.mrf.mxu0
      %v883 = vadd.f32 %v864, %v882
      %v884 = vpop.f32.mrf.mxu0
      %v885 = vadd.f32 %v866, %v884
      %886 = vdwg.mxu0
      %887 = vmatpush.bf16.msra.mxu0 %v743
      %888 = vmatpush.bf16.msra.mxu0 %v742
      %889 = vmatpush.bf16.msra.mxu0 %v741
      %890 = vmatpush.bf16.msra.mxu0 %v740
      %891 = vmatpush.bf16.msra.mxu0 %v739
      %892 = vmatpush.bf16.msra.mxu0 %v738
      %893 = vmatpush.bf16.msra.mxu0 %v737
      %894 = vmatpush.bf16.msra.mxu0 %v736
      %895 = vmatmul.bf16.gmra.mxu0 %v485
      %v896 = vpop.f32.mrf.mxu0
      %v897 = vadd.f32 %v878, %v896
      %v898 = vpop.f32.mrf.mxu0
      %v899 = vadd.f32 %v880, %v898
      %900 = vmatmul.bf16.gmra.mxu0 %v491
      %v901 = vpop.f32.mrf.mxu0
      %v902 = vadd.f32 %v883, %v901
      %v903 = vpop.f32.mrf.mxu0
      %v904 = vadd.f32 %v885, %v903
      %905 = vdwg.mxu0
      %v906 = vadd.f32 %v332, %v897
      %v907 = vadd.f32 %v333, %v899
      %v908 = vadd.f32 %v334, %v902
      %v909 = vadd.f32 %v335, %v904
      %vm910 = vcmask 261120
      %911 = vst.msk [vmem:[#allocation2] sm:$0xff] %vm910, %v906
      %912 = vst.msk [vmem:[#allocation2 + $0x8] sm:$0xff] %vm910, %v907
      %913 = vst.msk [vmem:[#allocation2 + $0x10] sm:$0xff] %vm910, %v908
      %914 = vst.msk [vmem:[#allocation2 + $0x18] sm:$0xff] %vm910, %v909
      // Predicated region
      $region37: #{scale_discriminator_forward.11} parent=31 // pred_check
        %p915 = pneg %p323
      $region38: #{scale_discriminator_forward.11} parent=31 // pred_check_branch
        %917 = sbr.rel (%p915) target = $region40
      $region39: #{scale_discriminator_forward.11} parent=31 // pred_region
        %v918 = vld [vmem:[#allocation2] sm:$0xff]
        %v919 = vld [vmem:[#allocation2 + $0x8] sm:$0xff]
        %v920 = vld [vmem:[#allocation2 + $0x10] sm:$0xff]
        %v921 = vld [vmem:[#allocation2 + $0x18] sm:$0xff]
        %v922 = vld [vmem:[%s309] sm:$0x1]
        %v924 = vperm.slane %v922, 0
        %v926 = vadd.f32 %v918, %v924
        %v927 = vadd.f32 %v919, %v924
        %v928 = vadd.f32 %v920, %v924
        %v929 = vadd.f32 %v921, %v924
        %vm930 = vcmp.ge.f32.partialorder %v926, 0.0
        %vm931 = vcmp.ge.f32.partialorder %v927, 0.0
        %vm932 = vcmp.ge.f32.partialorder %v928, 0.0
        %vm933 = vcmp.ge.f32.partialorder %v929, 0.0
        %v934 = vmul.f32 %v926, 0.1
        %v935 = vmul.f32 %v927, 0.1
        %v936 = vmul.f32 %v928, 0.1
        %v937 = vmul.f32 %v929, 0.1
        %v938 = vsel %vm930, %v926, %v934
        %v939 = vsel %vm931, %v927, %v935
        %v940 = vsel %vm932, %v928, %v936
        %v941 = vsel %vm933, %v929, %v937
        %942 = vst.msk [vmem:[%s321] sm:$0xff] %vm910, %v938
        %943 = vst.msk [vmem:[%s321 + $0x8] sm:$0xff] %vm910, %v939
        %944 = vst.msk [vmem:[%s321 + $0x10] sm:$0xff] %vm910, %v940
        %945 = vst.msk [vmem:[%s321 + $0x18] sm:$0xff] %vm910, %v941
      $region40: #{scale_discriminator_forward.11} parent=31 // pred_fallthru
        _
      %s946 = smul.u32 4, %s21
      %p947 = scmp.lt.s32.totalorder %s20, 15
      %s948 = scalar_select %p947, %s20, 15
      %p949 = scmp.lt.s32.totalorder %s946, 3
      %s950 = scalar_select %p949, %s946, 3
      %p951 = scmp.lt.s32.totalorder %s22, 0
      %s952 = scalar_select %p951, %s22, 0
      %s953 = sadd.s32 %s952, %s950
      %s954 = smul.addr %s948, 4
      %s955 = sadd.s32 %s953, %s954
      %s956 = smul.addr %s955, 8
      %s957 = scalar_lea.vmem %s3, %s956
      // Predicated region
      $region41: #{scale_discriminator_forward.11} parent=31 // pred_check
        %p958 = pneg %p150
      $region42: #{scale_discriminator_forward.11} parent=31 // pred_check_branch
        %960 = sbr.rel (%p958) target = $region44
      $region43: #{scale_discriminator_forward.11} parent=31 // pred_region
        %s961 = smul.u32 4, %s21
      $region44: #{scale_discriminator_forward.11} parent=31 // pred_fallthru
        _
    $region32: #{scale_discriminator_forward.11} parent=5 // pred_fallthru
      _
    %p962 = scmp.le.s32.totalorder 2, %s9
    // Predicated region
    $region45: #{scale_discriminator_forward.11} parent=5 // pred_check
      %p963 = pneg %p962
    $region46: #{scale_discriminator_forward.11} parent=5 // pred_check_branch
      %965 = sbr.rel (%p963) target = $region48
    $region47: #{scale_discriminator_forward.11} parent=5 // pred_region
      %s966 = ssub.s32 %s9, 2
      // Predicated region
      $region49: #{scale_discriminator_forward.11} parent=47 // pred_check
        %p967 = pneg %p156
      $region50: #{scale_discriminator_forward.11} parent=47 // pred_check_branch
        %969 = sbr.rel (%p967) target = $region52
      $region51: #{scale_discriminator_forward.11} parent=47 // pred_region
        %s970 = smul.u32 4, %s25
        %p971 = scmp.lt.s32.totalorder %s24, 15
        %s972 = scalar_select %p971, %s24, 15
        %p973 = scmp.lt.s32.totalorder %s970, 3
        %s974 = scalar_select %p973, %s970, 3
        %p975 = scmp.lt.s32.totalorder %s26, 0
        %s976 = scalar_select %p975, %s26, 0
        %s977 = sadd.s32 %s976, %s974
        %s978 = smul.addr %s972, 4
        %s979 = sadd.s32 %s977, %s978
        %s980 = smul.addr %s979, 8
        %s981 = scalar_lea.vmem %s3, %s980
      $region52: #{scale_discriminator_forward.11} parent=47 // pred_fallthru
        _
    $region48: #{scale_discriminator_forward.11} parent=5 // pred_fallthru
      _
  $region6: #{scale_discriminator_forward.11} parent=0 // loop_footer
    %s13 = sadd.s32 1, %s9
  $region7: #{scale_discriminator_forward.11} parent=0 // loop_footer_branch
    %8 = sbr.rel target = $region3
  $region8: #{scale_discriminator_forward.11} parent=0 // loop_exit
    _

// kernel: scale_discriminator_forward.12
$region0: #{scale_discriminator_forward.12}
  #allocation0 [shape = 'u32[]', space=smem, size = 0x4, offset = 0x4, fixed_abs, tag = 'smem constant byte address 0x4 - core index']
  #allocation1 [shape = 'u32[72,128]{1,0:T(1,128)}', space=vmem, size = 0x9000, scoped, tag = 'internal scratch']
  #allocation2 [shape = 'f32[8,64]{1,0:T(8,128)}', space=vmem, size = 0x1000, scoped, tag = 'scratch operand']
  %s0 = inlined_call_operand.vmem [shape: bf16[16,8,1408], index: 0, kind: input, shape index: {}]
  %s1 = inlined_call_operand.vmem [shape: bf16[16,1408,64], index: 1, kind: input, shape index: {}]
  %s2 = inlined_call_operand.vmem [shape: f32[16,1,64], index: 2, kind: input, shape index: {}]
  %s3 = inlined_call_operand.vmem [shape: f32[16,8,64], index: 3, kind: output, shape index: {}]
  %s4 = sld [smem:[#allocation0]]
  $region53: #{scale_discriminator_forward.12} parent=0
    _
  %s6 = ssub.s32 1, %s4
  %s7 = scalar_select 0, %s6, %s4
  loop: start=0, step=1, limit=18
  $region2: #{scale_discriminator_forward.12} parent=0 // loop_pre_header
    _
  $region3: #{scale_discriminator_forward.12} parent=0 // loop_header
    %s9 = sphi 0, %s13
    %p10 = scmp.ge.s32.totalorder %s9, 18
    %s16 = sphi 0, %s42
    %s17 = sphi 0, %s38
    %s18 = sphi 0, %s34
    %s19 = sphi 0, %s30
    %s20 = sphi 0, %s16
    %s21 = sphi 0, %s17
    %s22 = sphi 0, %s18
    %s23 = sphi 0, %s19
    %s24 = sphi 0, %s20
    %s25 = sphi 0, %s21
    %s26 = sphi 0, %s22
    %s27 = sphi 0, %s23
    %s49 = sphi 0, %s51
    %s52 = sphi 0, %s49
    %s53 = sphi 0, %s52
    %s69 = sphi 0, %s53
    %s79 = sphi 0, %s81
    %s82 = sphi 0, %s79
    %s83 = sphi 0, %s82
    %s99 = sphi 0, %s83
    %s107 = sphi 0, %s109
    %s110 = sphi 0, %s107
    %s111 = sphi 0, %s110
    %s127 = sphi 0, %s111
    %s137 = sphi 0, %s139
    %s140 = sphi 0, %s137
    %s141 = sphi 0, %s140
    %s157 = sphi 0, %s141
  $region4: #{scale_discriminator_forward.12} parent=0 // loop_header_branch
    %12 = sbr.rel (%p10) target = $region8
  $region5: #{scale_discriminator_forward.12} parent=0 // loop_body
    %s14 = ssub.s32 %s9, 1
    %s15 = ssub.s32 %s9, 2
    %s28 = sadd.s32 1, %s19
    %p29 = scmp.ge.s32.totalorder %s28, 1
    %s30 = scalar_select %p29, 0, %s28
    %s31 = sadd.s32 1, %s18
    %s32 = scalar_select %p29, %s31, %s18
    %p33 = scmp.ge.s32.totalorder %s32, 1
    %s34 = scalar_select %p33, 0, %s32
    %s35 = sadd.s32 1, %s17
    %s36 = scalar_select %p33, %s35, %s17
    %p37 = scmp.ge.s32.totalorder %s36, 1
    %s38 = scalar_select %p37, 0, %s36
    %s39 = sadd.s32 1, %s16
    %s40 = scalar_select %p37, %s39, %s16
    %p41 = scmp.ge.s32.totalorder %s40, 16
    %s42 = scalar_select %p41, 0, %s40
    %s43 = ssub.s32 %s16, %s42
    %s44 = ssub.s32 %s17, %s38
    %s45 = sor.u32 %s43, %s44
    %s46 = ssub.s32 %s19, %s30
    %s47 = sor.u32 %s45, %s46
    %p48 = scmp.eq.s32.totalorder %s47, 0
    %s50 = sadd.s32 %s49, 1
    %s51 = scalar_select %p48, %s49, %s50
    %p54 = pneg %p48
    %p55 = scmp.eq.s32.totalorder %s9, 15
    %p56 = por %p54, %p55
    %p57 = scmp.ne.s32.totalorder %s49, %s52
    %p58 = scmp.eq.s32.totalorder %s9, 0
    %p59 = por %p57, %p58
    %p60 = scmp.ne.s32.totalorder %s49, %s52
    %p61 = scmp.eq.s32.totalorder %s14, 15
    %p62 = por %p60, %p61
    %p63 = scmp.ne.s32.totalorder %s52, %s53
    %p64 = scmp.eq.s32.totalorder %s14, 0
    %p65 = por %p63, %p64
    %p66 = scmp.ne.s32.totalorder %s52, %s53
    %p67 = scmp.eq.s32.totalorder %s15, 15
    %p68 = por %p66, %p67
    %p70 = scmp.ne.s32.totalorder %s53, %s69
    %p71 = scmp.eq.s32.totalorder %s15, 0
    %p72 = por %p70, %p71
    %s73 = ssub.s32 %s16, %s42
    %s74 = ssub.s32 %s19, %s30
    %s75 = sor.u32 %s73, %s74
    %s76 = ssub.s32 %s18, %s34
    %s77 = sor.u32 %s75, %s76
    %p78 = scmp.eq.s32.totalorder %s77, 0
    %s80 = sadd.s32 %s79, 1
    %s81 = scalar_select %p78, %s79, %s80
    %p84 = pneg %p78
    %p85 = scmp.eq.s32.totalorder %s9, 15
    %p86 = por %p84, %p85
    %p87 = scmp.ne.s32.totalorder %s79, %s82
    %p88 = scmp.eq.s32.totalorder %s9, 0
    %p89 = por %p87, %p88
    %p90 = scmp.ne.s32.totalorder %s79, %s82
    %p91 = scmp.eq.s32.totalorder %s14, 15
    %p92 = por %p90, %p91
    %p93 = scmp.ne.s32.totalorder %s82, %s83
    %p94 = scmp.eq.s32.totalorder %s14, 0
    %p95 = por %p93, %p94
    %p96 = scmp.ne.s32.totalorder %s82, %s83
    %p97 = scmp.eq.s32.totalorder %s15, 15
    %p98 = por %p96, %p97
    %p100 = scmp.ne.s32.totalorder %s83, %s99
    %p101 = scmp.eq.s32.totalorder %s15, 0
    %p102 = por %p100, %p101
    %s103 = ssub.s32 %s16, %s42
    %s104 = ssub.s32 %s18, %s34
    %s105 = sor.u32 %s103, %s104
    %p106 = scmp.eq.s32.totalorder %s105, 0
    %s108 = sadd.s32 %s107, 1
    %s109 = scalar_select %p106, %s107, %s108
    %p112 = pneg %p106
    %p113 = scmp.eq.s32.totalorder %s9, 15
    %p114 = por %p112, %p113
    %p115 = scmp.ne.s32.totalorder %s107, %s110
    %p116 = scmp.eq.s32.totalorder %s9, 0
    %p117 = por %p115, %p116
    %p118 = scmp.ne.s32.totalorder %s107, %s110
    %p119 = scmp.eq.s32.totalorder %s14, 15
    %p120 = por %p118, %p119
    %p121 = scmp.ne.s32.totalorder %s110, %s111
    %p122 = scmp.eq.s32.totalorder %s14, 0
    %p123 = por %p121, %p122
    %p124 = scmp.ne.s32.totalorder %s110, %s111
    %p125 = scmp.eq.s32.totalorder %s15, 15
    %p126 = por %p124, %p125
    %p128 = scmp.ne.s32.totalorder %s111, %s127
    %p129 = scmp.eq.s32.totalorder %s15, 0
    %p130 = por %p128, %p129
    %s131 = ssub.s32 %s16, %s42
    %s132 = ssub.s32 %s17, %s38
    %s133 = sor.u32 %s131, %s132
    %s134 = ssub.s32 %s18, %s34
    %s135 = sor.u32 %s133, %s134
    %p136 = scmp.eq.s32.totalorder %s135, 0
    %s138 = sadd.s32 %s137, 1
    %s139 = scalar_select %p136, %s137, %s138
    %p142 = pneg %p136
    %p143 = scmp.eq.s32.totalorder %s9, 15
    %p144 = por %p142, %p143
    %p145 = scmp.ne.s32.totalorder %s137, %s140
    %p146 = scmp.eq.s32.totalorder %s9, 0
    %p147 = por %p145, %p146
    %p148 = scmp.ne.s32.totalorder %s137, %s140
    %p149 = scmp.eq.s32.totalorder %s14, 15
    %p150 = por %p148, %p149
    %p151 = scmp.ne.s32.totalorder %s140, %s141
    %p152 = scmp.eq.s32.totalorder %s14, 0
    %p153 = por %p151, %p152
    %p154 = scmp.ne.s32.totalorder %s140, %s141
    %p155 = scmp.eq.s32.totalorder %s15, 15
    %p156 = por %p154, %p155
    %p158 = scmp.ne.s32.totalorder %s141, %s157
    %p159 = scmp.eq.s32.totalorder %s15, 0
    %p160 = por %p158, %p159
    %p161 = scmp.le.s32.totalorder 1, %s9
    %p162 = scmp.lt.s32.totalorder %s9, 17
    %p163 = pnand %p161, %p162
    %p164 = pneg %p163
    // Predicated region
    $region9: #{scale_discriminator_forward.12} parent=5 // pred_check
      _
    $region10: #{scale_discriminator_forward.12} parent=5 // pred_check_branch
      %166 = sbr.rel (%p163) target = $region12
    $region11: #{scale_discriminator_forward.12} parent=5 // pred_region
      %s167 = ssub.s32 %s9, 1
    $region12: #{scale_discriminator_forward.12} parent=5 // pred_fallthru
      _
    %p168 = scmp.lt.s32.totalorder %s9, 16
    // Predicated region
    $region13: #{scale_discriminator_forward.12} parent=5 // pred_check
      %p169 = pneg %p168
    $region14: #{scale_discriminator_forward.12} parent=5 // pred_check_branch
      %171 = sbr.rel (%p169) target = $region16
    $region15: #{scale_discriminator_forward.12} parent=5 // pred_region
      // Predicated region
      $region17: #{scale_discriminator_forward.12} parent=15 // pred_check
        %p172 = pneg %p59
      $region18: #{scale_discriminator_forward.12} parent=15 // pred_check_branch
        %174 = sbr.rel (%p172) target = $region20
      $region19: #{scale_discriminator_forward.12} parent=15 // pred_region
        %s175 = smul.u32 11, %s19
        %p176 = scmp.lt.s32.totalorder %s16, 15
        %s177 = scalar_select %p176, %s16, 15
        %p178 = scmp.lt.s32.totalorder %s17, 0
        %s179 = scalar_select %p178, %s17, 0
        %p180 = scmp.lt.s32.totalorder %s175, 10
        %s181 = scalar_select %p180, %s175, 10
        %s182 = smul.addr %s179, 11
        %s183 = sadd.s32 %s181, %s182
        %s184 = smul.addr %s177, 11
        %s185 = sadd.s32 %s183, %s184
        %s186 = smul.addr %s185, 4
        %s187 = scalar_lea.vmem %s0, %s186
        %s188 = smul.u32 11, %s19
      $region20: #{scale_discriminator_forward.12} parent=15 // pred_fallthru
        _
      // Predicated region
      $region21: #{scale_discriminator_forward.12} parent=15 // pred_check
        %p189 = pneg %p89
      $region22: #{scale_discriminator_forward.12} parent=15 // pred_check_branch
        %191 = sbr.rel (%p189) target = $region24
      $region23: #{scale_discriminator_forward.12} parent=15 // pred_region
        %s192 = smul.u32 176, %s19
        %p193 = scmp.lt.s32.totalorder %s16, 15
        %s194 = scalar_select %p193, %s16, 15
        %p195 = scmp.lt.s32.totalorder %s192, 175
        %s196 = scalar_select %p195, %s192, 175
        %p197 = scmp.lt.s32.totalorder %s18, 0
        %s198 = scalar_select %p197, %s18, 0
        %s199 = sadd.s32 %s198, %s196
        %s200 = smul.addr %s194, 176
        %s201 = sadd.s32 %s199, %s200
        %s202 = smul.addr %s201, 4
        %s203 = scalar_lea.vmem %s1, %s202
        %s204 = smul.u32 176, %s19
      $region24: #{scale_discriminator_forward.12} parent=15 // pred_fallthru
        _
      // Predicated region
      $region25: #{scale_discriminator_forward.12} parent=15 // pred_check
        %p205 = pneg %p117
      $region26: #{scale_discriminator_forward.12} parent=15 // pred_check_branch
        %207 = sbr.rel (%p205) target = $region28
      $region27: #{scale_discriminator_forward.12} parent=15 // pred_region
        %p208 = scmp.lt.s32.totalorder %s16, 15
        %s209 = scalar_select %p208, %s16, 15
        %p210 = scmp.lt.s32.totalorder %s18, 0
        %s211 = scalar_select %p210, %s18, 0
        %s212 = sadd.s32 %s211, %s209
        %s213 = scalar_lea.vmem %s2, %s212
      $region28: #{scale_discriminator_forward.12} parent=15 // pred_fallthru
        _
    $region16: #{scale_discriminator_forward.12} parent=5 // pred_fallthru
      _
    %p214 = scmp.le.s32.totalorder 1, %s9
    %p215 = scmp.lt.s32.totalorder %s9, 17
    %p216 = pnand %p214, %p215
    %p217 = pneg %p216
    // Predicated region
    $region29: #{scale_discriminator_forward.12} parent=5 // pred_check
      _
    $region30: #{scale_discriminator_forward.12} parent=5 // pred_check_branch
      %219 = sbr.rel (%p216) target = $region32
    $region31: #{scale_discriminator_forward.12} parent=5 // pred_region
      %s220 = ssub.s32 %s9, 1
      %s221 = smul.u32 11, %s23
      %p222 = scmp.lt.s32.totalorder %s20, 15
      %s223 = scalar_select %p222, %s20, 15
      %p224 = scmp.lt.s32.totalorder %s21, 0
      %s225 = scalar_select %p224, %s21, 0
      %p226 = scmp.lt.s32.totalorder %s221, 10
      %s227 = scalar_select %p226, %s221, 10
      %s228 = smul.addr %s225, 11
      %s229 = sadd.s32 %s227, %s228
      %s230 = smul.addr %s223, 11
      %s231 = sadd.s32 %s229, %s230
      %s232 = smul.addr %s231, 4
      %s233 = scalar_lea.vmem %s0, %s232
      %p234 = pneg %p65
      %p235 = pneg %p62
      %s236 = smul.u32 176, %s23
      %p237 = scmp.lt.s32.totalorder %s20, 15
      %s238 = scalar_select %p237, %s20, 15
      %p239 = scmp.lt.s32.totalorder %s236, 175
      %s240 = scalar_select %p239, %s236, 175
      %p241 = scmp.lt.s32.totalorder %s22, 0
      %s242 = scalar_select %p241, %s22, 0
      %s243 = sadd.s32 %s242, %s240
      %s244 = smul.addr %s238, 176
      %s245 = sadd.s32 %s243, %s244
      %s246 = smul.addr %s245, 4
      %s247 = scalar_lea.vmem %s1, %s246
      %p248 = pneg %p95
      %p249 = pneg %p92
      %p250 = scmp.lt.s32.totalorder %s20, 15
      %s251 = scalar_select %p250, %s20, 15
      %p252 = scmp.lt.s32.totalorder %s22, 0
      %s253 = scalar_select %p252, %s22, 0
      %s254 = sadd.s32 %s253, %s251
      %s255 = scalar_lea.vmem %s2, %s254
      %p256 = pneg %p123
      %p257 = pneg %p120
      %p258 = pneg %p153
      %p259 = pneg %p150
      %p260 = scmp.lt.s32.totalorder %s20, 15
      %s261 = scalar_select %p260, %s20, 15
      %p262 = scmp.lt.s32.totalorder %s21, 0
      %s263 = scalar_select %p262, %s21, 0
      %p264 = scmp.lt.s32.totalorder %s22, 0
      %s265 = scalar_select %p264, %s22, 0
      %s266 = sadd.s32 %s265, %s263
      %s267 = sadd.s32 %s266, %s261
      %s268 = smul.addr %s267, 8
      %s269 = scalar_lea.vmem %s3, %s268
      %s270 = smul.u32 11, %s23
      %p271 = scmp.lt.s32.totalorder %s20, 15
      %s272 = scalar_select %p271, %s20, 15
      %p273 = scmp.lt.s32.totalorder %s21, 0
      %s274 = scalar_select %p273, %s21, 0
      %p275 = scmp.lt.s32.totalorder %s270, 10
      %s276 = scalar_select %p275, %s270, 10
      %s277 = smul.addr %s274, 11
      %s278 = sadd.s32 %s276, %s277
      %s279 = smul.addr %s272, 11
      %s280 = sadd.s32 %s278, %s279
      %s281 = smul.addr %s280, 4
      %s282 = scalar_lea.vmem %s0, %s281
      %s283 = smul.u32 11, %s23
      %s284 = smul.u32 176, %s23
      %p285 = scmp.lt.s32.totalorder %s20, 15
      %s286 = scalar_select %p285, %s20, 15
      %p287 = scmp.lt.s32.totalorder %s284, 175
      %s288 = scalar_select %p287, %s284, 175
      %p289 = scmp.lt.s32.totalorder %s22, 0
      %s290 = scalar_select %p289, %s22, 0
      %s291 = sadd.s32 %s290, %s288
      %s292 = smul.addr %s286, 176
      %s293 = sadd.s32 %s291, %s292
      %s294 = smul.addr %s293, 4
      %s295 = scalar_lea.vmem %s1, %s294
      %s296 = smul.u32 176, %s23
      %p297 = scmp.lt.s32.totalorder %s20, 15
      %s298 = scalar_select %p297, %s20, 15
      %p299 = scmp.lt.s32.totalorder %s22, 0
      %s300 = scalar_select %p299, %s22, 0
      %s301 = sadd.s32 %s300, %s298
      %s302 = scalar_lea.vmem %s2, %s301
      %p303 = scmp.lt.s32.totalorder %s20, 15
      %s304 = scalar_select %p303, %s20, 15
      %p305 = scmp.lt.s32.totalorder %s21, 0
      %s306 = scalar_select %p305, %s21, 0
      %p307 = scmp.lt.s32.totalorder %s22, 0
      %s308 = scalar_select %p307, %s22, 0
      %s309 = sadd.s32 %s308, %s306
      %s310 = sadd.s32 %s309, %s304
      %s311 = smul.addr %s310, 8
      %s312 = scalar_lea.vmem %s3, %s311
      %p313 = scmp.eq.s32.totalorder %s23, 0
      // Predicated region
      $region33: #{scale_discriminator_forward.12} parent=31 // pred_check
        %p314 = pneg %p313
      $region34: #{scale_discriminator_forward.12} parent=31 // pred_check_branch
        %316 = sbr.rel (%p314) target = $region36
      $region35: #{scale_discriminator_forward.12} parent=31 // pred_region
        %vm317 = vcmask 523264
        %318 = vst.msk [vmem:[#allocation2] sm:$0xff] %vm317, 0.0
      $region36: #{scale_discriminator_forward.12} parent=31 // pred_fallthru
        _
      %v319 = vld [vmem:[#allocation2] sm:$0xff]
      %v320 = vld [vmem:[%s282] sm:$0xff]
      %v321 = vld [vmem:[%s282 + $0x8] sm:$0xff]
      %v322 = vld [vmem:[%s282 + $0x10] sm:$0xff]
      %v323 = vld [vmem:[%s282 + $0x18] sm:$0xff]
      %v324 = vld [vmem:[%s282 + $0x20] sm:$0xff]
      %v325 = vld [vmem:[%s282 + $0x28] sm:$0xf]
      %v326 = vld [vmem:[%s295] sm:$0xf]
      %v327 = vld [vmem:[%s295 + $0x4] sm:$0xf]
      %v328 = vld [vmem:[%s295 + $0x8] sm:$0xf]
      %v329 = vld [vmem:[%s295 + $0xc] sm:$0xf]
      %v330 = vld [vmem:[%s295 + $0x10] sm:$0xf]
      %v331 = vld [vmem:[%s295 + $0x14] sm:$0xf]
      %v332 = vld [vmem:[%s295 + $0x18] sm:$0xf]
      %v333 = vld [vmem:[%s295 + $0x1c] sm:$0xf]
      %v334 = vld [vmem:[%s295 + $0x20] sm:$0xf]
      %v335 = vld [vmem:[%s295 + $0x24] sm:$0xf]
      %v336 = vld [vmem:[%s295 + $0x28] sm:$0xf]
      %v337 = vld [vmem:[%s295 + $0x2c] sm:$0xf]
      %v338 = vld [vmem:[%s295 + $0x30] sm:$0xf]
      %v339 = vld [vmem:[%s295 + $0x34] sm:$0xf]
      %v340 = vld [vmem:[%s295 + $0x38] sm:$0xf]
      %v341 = vld [vmem:[%s295 + $0x3c] sm:$0xf]
      %v342 = vld [vmem:[%s295 + $0x40] sm:$0xf]
      %v343 = vld [vmem:[%s295 + $0x44] sm:$0xf]
      %v344 = vld [vmem:[%s295 + $0x48] sm:$0xf]
      %v345 = vld [vmem:[%s295 + $0x4c] sm:$0xf]
      %v346 = vld [vmem:[%s295 + $0x50] sm:$0xf]
      %v347 = vld [vmem:[%s295 + $0x54] sm:$0xf]
      %v348 = vld [vmem:[%s295 + $0x58] sm:$0xf]
      %v349 = vld [vmem:[%s295 + $0x5c] sm:$0xf]
      %v350 = vld [vmem:[%s295 + $0x60] sm:$0xf]
      %v351 = vld [vmem:[%s295 + $0x64] sm:$0xf]
      %v352 = vld [vmem:[%s295 + $0x68] sm:$0xf]
      %v353 = vld [vmem:[%s295 + $0x6c] sm:$0xf]
      %v354 = vld [vmem:[%s295 + $0x70] sm:$0xf]
      %v355 = vld [vmem:[%s295 + $0x74] sm:$0xf]
      %v356 = vld [vmem:[%s295 + $0x78] sm:$0xf]
      %v357 = vld [vmem:[%s295 + $0x7c] sm:$0xf]
      %v358 = vld [vmem:[%s295 + $0x80] sm:$0xf]
      %v359 = vld [vmem:[%s295 + $0x84] sm:$0xf]
      %v360 = vld [vmem:[%s295 + $0x88] sm:$0xf]
      %v361 = vld [vmem:[%s295 + $0x8c] sm:$0xf]
      %v362 = vld [vmem:[%s295 + $0x90] sm:$0xf]
      %v363 = vld [vmem:[%s295 + $0x94] sm:$0xf]
      %v364 = vld [vmem:[%s295 + $0x98] sm:$0xf]
      %v365 = vld [vmem:[%s295 + $0x9c] sm:$0xf]
      %v366 = vld [vmem:[%s295 + $0xa0] sm:$0xf]
      %v367 = vld [vmem:[%s295 + $0xa4] sm:$0xf]
      %v368 = vld [vmem:[%s295 + $0xa8] sm:$0xf]
      %v369 = vld [vmem:[%s295 + $0xac] sm:$0xf]
      %v370 = vld [vmem:[%s295 + $0xb0] sm:$0xf]
      %v371 = vld [vmem:[%s295 + $0xb4] sm:$0xf]
      %v372 = vld [vmem:[%s295 + $0xb8] sm:$0xf]
      %v373 = vld [vmem:[%s295 + $0xbc] sm:$0xf]
      %v374 = vld [vmem:[%s295 + $0xc0] sm:$0xf]
      %v375 = vld [vmem:[%s295 + $0xc4] sm:$0xf]
      %v376 = vld [vmem:[%s295 + $0xc8] sm:$0xf]
      %v377 = vld [vmem:[%s295 + $0xcc] sm:$0xf]
      %v378 = vld [vmem:[%s295 + $0xd0] sm:$0xf]
      %v379 = vld [vmem:[%s295 + $0xd4] sm:$0xf]
      %v380 = vld [vmem:[%s295 + $0xd8] sm:$0xf]
      %v381 = vld [vmem:[%s295 + $0xdc] sm:$0xf]
      %v382 = vld [vmem:[%s295 + $0xe0] sm:$0xf]
      %v383 = vld [vmem:[%s295 + $0xe4] sm:$0xf]
      %v384 = vld [vmem:[%s295 + $0xe8] sm:$0xf]
      %v385 = vld [vmem:[%s295 + $0xec] sm:$0xf]
      %v386 = vld [vmem:[%s295 + $0xf0] sm:$0xf]
      %v387 = vld [vmem:[%s295 + $0xf4] sm:$0xf]
      %v388 = vld [vmem:[%s295 + $0xf8] sm:$0xf]
      %v389 = vld [vmem:[%s295 + $0xfc] sm:$0xf]
      %v390 = vld [vmem:[%s295 + $0x100] sm:$0xf]
      %v391 = vld [vmem:[%s295 + $0x104] sm:$0xf]
      %v392 = vld [vmem:[%s295 + $0x108] sm:$0xf]
      %v393 = vld [vmem:[%s295 + $0x10c] sm:$0xf]
      %v394 = vld [vmem:[%s295 + $0x110] sm:$0xf]
      %v395 = vld [vmem:[%s295 + $0x114] sm:$0xf]
      %v396 = vld [vmem:[%s295 + $0x118] sm:$0xf]
      %v397 = vld [vmem:[%s295 + $0x11c] sm:$0xf]
      %v398 = vld [vmem:[%s295 + $0x120] sm:$0xf]
      %v399 = vld [vmem:[%s295 + $0x124] sm:$0xf]
      %v400 = vld [vmem:[%s295 + $0x128] sm:$0xf]
      %v401 = vld [vmem:[%s295 + $0x12c] sm:$0xf]
      %v402 = vld [vmem:[%s295 + $0x130] sm:$0xf]
      %v403 = vld [vmem:[%s295 + $0x134] sm:$0xf]
      %v404 = vld [vmem:[%s295 + $0x138] sm:$0xf]
      %v405 = vld [vmem:[%s295 + $0x13c] sm:$0xf]
      %v406 = vld [vmem:[%s295 + $0x140] sm:$0xf]
      %v407 = vld [vmem:[%s295 + $0x144] sm:$0xf]
      %v408 = vld [vmem:[%s295 + $0x148] sm:$0xf]
      %v409 = vld [vmem:[%s295 + $0x14c] sm:$0xf]
      %v410 = vld [vmem:[%s295 + $0x150] sm:$0xf]
      %v411 = vld [vmem:[%s295 + $0x154] sm:$0xf]
      %v412 = vld [vmem:[%s295 + $0x158] sm:$0xf]
      %v413 = vld [vmem:[%s295 + $0x15c] sm:$0xf]
      %v414 = vld [vmem:[%s295 + $0x160] sm:$0xf]
      %v415 = vld [vmem:[%s295 + $0x164] sm:$0xf]
      %v416 = vld [vmem:[%s295 + $0x168] sm:$0xf]
      %v417 = vld [vmem:[%s295 + $0x16c] sm:$0xf]
      %v418 = vld [vmem:[%s295 + $0x170] sm:$0xf]
      %v419 = vld [vmem:[%s295 + $0x174] sm:$0xf]
      %v420 = vld [vmem:[%s295 + $0x178] sm:$0xf]
      %v421 = vld [vmem:[%s295 + $0x17c] sm:$0xf]
      %v422 = vld [vmem:[%s295 + $0x180] sm:$0xf]
      %v423 = vld [vmem:[%s295 + $0x184] sm:$0xf]
      %v424 = vld [vmem:[%s295 + $0x188] sm:$0xf]
      %v425 = vld [vmem:[%s295 + $0x18c] sm:$0xf]
      %v426 = vld [vmem:[%s295 + $0x190] sm:$0xf]
      %v427 = vld [vmem:[%s295 + $0x194] sm:$0xf]
      %v428 = vld [vmem:[%s295 + $0x198] sm:$0xf]
      %v429 = vld [vmem:[%s295 + $0x19c] sm:$0xf]
      %v430 = vld [vmem:[%s295 + $0x1a0] sm:$0xf]
      %v431 = vld [vmem:[%s295 + $0x1a4] sm:$0xf]
      %v432 = vld [vmem:[%s295 + $0x1a8] sm:$0xf]
      %v433 = vld [vmem:[%s295 + $0x1ac] sm:$0xf]
      %v434 = vld [vmem:[%s295 + $0x1b0] sm:$0xf]
      %v435 = vld [vmem:[%s295 + $0x1b4] sm:$0xf]
      %v436 = vld [vmem:[%s295 + $0x1b8] sm:$0xf]
      %v437 = vld [vmem:[%s295 + $0x1bc] sm:$0xf]
      %v438 = vld [vmem:[%s295 + $0x1c0] sm:$0xf]
      %v439 = vld [vmem:[%s295 + $0x1c4] sm:$0xf]
      %v440 = vld [vmem:[%s295 + $0x1c8] sm:$0xf]
      %v441 = vld [vmem:[%s295 + $0x1cc] sm:$0xf]
      %v442 = vld [vmem:[%s295 + $0x1d0] sm:$0xf]
      %v443 = vld [vmem:[%s295 + $0x1d4] sm:$0xf]
      %v444 = vld [vmem:[%s295 + $0x1d8] sm:$0xf]
      %v445 = vld [vmem:[%s295 + $0x1dc] sm:$0xf]
      %v446 = vld [vmem:[%s295 + $0x1e0] sm:$0xf]
      %v447 = vld [vmem:[%s295 + $0x1e4] sm:$0xf]
      %v448 = vld [vmem:[%s295 + $0x1e8] sm:$0xf]
      %v449 = vld [vmem:[%s295 + $0x1ec] sm:$0xf]
      %v450 = vld [vmem:[%s295 + $0x1f0] sm:$0xf]
      %v451 = vld [vmem:[%s295 + $0x1f4] sm:$0xf]
      %v452 = vld [vmem:[%s295 + $0x1f8] sm:$0xf]
      %v453 = vld [vmem:[%s295 + $0x1fc] sm:$0xf]
      %v454 = vld [vmem:[%s295 + $0x200] sm:$0xf]
      %v455 = vld [vmem:[%s295 + $0x204] sm:$0xf]
      %v456 = vld [vmem:[%s295 + $0x208] sm:$0xf]
      %v457 = vld [vmem:[%s295 + $0x20c] sm:$0xf]
      %v458 = vld [vmem:[%s295 + $0x210] sm:$0xf]
      %v459 = vld [vmem:[%s295 + $0x214] sm:$0xf]
      %v460 = vld [vmem:[%s295 + $0x218] sm:$0xf]
      %v461 = vld [vmem:[%s295 + $0x21c] sm:$0xf]
      %v462 = vld [vmem:[%s295 + $0x220] sm:$0xf]
      %v463 = vld [vmem:[%s295 + $0x224] sm:$0xf]
      %v464 = vld [vmem:[%s295 + $0x228] sm:$0xf]
      %v465 = vld [vmem:[%s295 + $0x22c] sm:$0xf]
      %v466 = vld [vmem:[%s295 + $0x230] sm:$0xf]
      %v467 = vld [vmem:[%s295 + $0x234] sm:$0xf]
      %v468 = vld [vmem:[%s295 + $0x238] sm:$0xf]
      %v469 = vld [vmem:[%s295 + $0x23c] sm:$0xf]
      %v470 = vld [vmem:[%s295 + $0x240] sm:$0xf]
      %v471 = vld [vmem:[%s295 + $0x244] sm:$0xf]
      %v472 = vld [vmem:[%s295 + $0x248] sm:$0xf]
      %v473 = vld [vmem:[%s295 + $0x24c] sm:$0xf]
      %v474 = vld [vmem:[%s295 + $0x250] sm:$0xf]
      %v475 = vld [vmem:[%s295 + $0x254] sm:$0xf]
      %v476 = vld [vmem:[%s295 + $0x258] sm:$0xf]
      %v477 = vld [vmem:[%s295 + $0x25c] sm:$0xf]
      %v478 = vld [vmem:[%s295 + $0x260] sm:$0xf]
      %v479 = vld [vmem:[%s295 + $0x264] sm:$0xf]
      %v480 = vld [vmem:[%s295 + $0x268] sm:$0xf]
      %v481 = vld [vmem:[%s295 + $0x26c] sm:$0xf]
      %v482 = vld [vmem:[%s295 + $0x270] sm:$0xf]
      %v483 = vld [vmem:[%s295 + $0x274] sm:$0xf]
      %v484 = vld [vmem:[%s295 + $0x278] sm:$0xf]
      %v485 = vld [vmem:[%s295 + $0x27c] sm:$0xf]
      %v486 = vld [vmem:[%s295 + $0x280] sm:$0xf]
      %v487 = vld [vmem:[%s295 + $0x284] sm:$0xf]
      %v488 = vld [vmem:[%s295 + $0x288] sm:$0xf]
      %v489 = vld [vmem:[%s295 + $0x28c] sm:$0xf]
      %v490 = vld [vmem:[%s295 + $0x290] sm:$0xf]
      %v491 = vld [vmem:[%s295 + $0x294] sm:$0xf]
      %v492 = vld [vmem:[%s295 + $0x298] sm:$0xf]
      %v493 = vld [vmem:[%s295 + $0x29c] sm:$0xf]
      %v494 = vld [vmem:[%s295 + $0x2a0] sm:$0xf]
      %v495 = vld [vmem:[%s295 + $0x2a4] sm:$0xf]
      %v496 = vld [vmem:[%s295 + $0x2a8] sm:$0xf]
      %v497 = vld [vmem:[%s295 + $0x2ac] sm:$0xf]
      %v498 = vld [vmem:[%s295 + $0x2b0] sm:$0xf]
      %v499 = vld [vmem:[%s295 + $0x2b4] sm:$0xf]
      %v500 = vld [vmem:[%s295 + $0x2b8] sm:$0xf]
      %v501 = vld [vmem:[%s295 + $0x2bc] sm:$0xf]
      %v508 = vunpack.c.l.b16 %v320
      %v509 = vunpack.c.h.b16 %v320
      %v510 = vunpack.c.l.b16 %v321
      %v511 = vunpack.c.h.b16 %v321
      %v512 = vunpack.c.l.b16 %v322
      %v513 = vunpack.c.h.b16 %v322
      %v514 = vunpack.c.l.b16 %v323
      %v515 = vunpack.c.h.b16 %v323
      %v516 = vunpack.c.l.b16 %v324
      %v517 = vunpack.c.h.b16 %v324
      %v518 = vunpack.c.l.b16 %v325
      %v519 = vpack.c.b16 %v508, %v508
      %v520 = vpack.c.b16 %v509, %v509
      %v521 = vpack.c.b16 %v510, %v510
      %v522 = vpack.c.b16 %v511, %v511
      %v523 = vpack.c.b16 %v512, %v512
      %v524 = vpack.c.b16 %v513, %v513
      %v525 = vpack.c.b16 %v514, %v514
      %v526 = vpack.c.b16 %v515, %v515
      %v527 = vpack.c.b16 %v516, %v516
      %v528 = vpack.c.b16 %v517, %v517
      %v529 = vpack.c.b16 %v518, %v518
      %v717 = vunpack.c.l.b16 %v326
      %v718 = vunpack.c.l.b16 %v327
      %v719 = vunpack.c.l.b16 %v328
      %v720 = vunpack.c.l.b16 %v329
      %v721 = vunpack.c.l.b16 %v330
      %v722 = vunpack.c.l.b16 %v331
      %v723 = vunpack.c.l.b16 %v332
      %v724 = vunpack.c.l.b16 %v333
      %v725 = vunpack.c.l.b16 %v334
      %v726 = vunpack.c.l.b16 %v335
      %v727 = vunpack.c.l.b16 %v336
      %v728 = vunpack.c.l.b16 %v337
      %v729 = vunpack.c.l.b16 %v338
      %v730 = vunpack.c.l.b16 %v339
      %v731 = vunpack.c.l.b16 %v340
      %v732 = vunpack.c.l.b16 %v341
      %v733 = vunpack.c.l.b16 %v342
      %v734 = vunpack.c.l.b16 %v343
      %v735 = vunpack.c.l.b16 %v344
      %v736 = vunpack.c.l.b16 %v345
      %v737 = vunpack.c.l.b16 %v346
      %v738 = vunpack.c.l.b16 %v347
      %v739 = vunpack.c.l.b16 %v348
      %v740 = vunpack.c.l.b16 %v349
      %v741 = vunpack.c.l.b16 %v350
      %v742 = vunpack.c.l.b16 %v351
      %v743 = vunpack.c.l.b16 %v352
      %v744 = vunpack.c.l.b16 %v353
      %v745 = vunpack.c.l.b16 %v354
      %v746 = vunpack.c.l.b16 %v355
      %v747 = vunpack.c.l.b16 %v356
      %v748 = vunpack.c.l.b16 %v357
      %v749 = vunpack.c.l.b16 %v358
      %v750 = vunpack.c.l.b16 %v359
      %v751 = vunpack.c.l.b16 %v360
      %v752 = vunpack.c.l.b16 %v361
      %v753 = vunpack.c.l.b16 %v362
      %v754 = vunpack.c.l.b16 %v363
      %v755 = vunpack.c.l.b16 %v364
      %v756 = vunpack.c.l.b16 %v365
      %v757 = vunpack.c.l.b16 %v366
      %v758 = vunpack.c.l.b16 %v367
      %v759 = vunpack.c.l.b16 %v368
      %v760 = vunpack.c.l.b16 %v369
      %v761 = vunpack.c.l.b16 %v370
      %v762 = vunpack.c.l.b16 %v371
      %v763 = vunpack.c.l.b16 %v372
      %v764 = vunpack.c.l.b16 %v373
      %v765 = vunpack.c.l.b16 %v374
      %v766 = vunpack.c.l.b16 %v375
      %v767 = vunpack.c.l.b16 %v376
      %v768 = vunpack.c.l.b16 %v377
      %v769 = vunpack.c.l.b16 %v378
      %v770 = vunpack.c.l.b16 %v379
      %v771 = vunpack.c.l.b16 %v380
      %v772 = vunpack.c.l.b16 %v381
      %v773 = vunpack.c.l.b16 %v382
      %v774 = vunpack.c.l.b16 %v383
      %v775 = vunpack.c.l.b16 %v384
      %v776 = vunpack.c.l.b16 %v385
      %v777 = vunpack.c.l.b16 %v386
      %v778 = vunpack.c.l.b16 %v387
      %v779 = vunpack.c.l.b16 %v388
      %v780 = vunpack.c.l.b16 %v389
      %v781 = vunpack.c.l.b16 %v390
      %v782 = vunpack.c.l.b16 %v391
      %v783 = vunpack.c.l.b16 %v392
      %v784 = vunpack.c.l.b16 %v393
      %v785 = vunpack.c.l.b16 %v394
      %v786 = vunpack.c.l.b16 %v395
      %v787 = vunpack.c.l.b16 %v396
      %v788 = vunpack.c.l.b16 %v397
      %v789 = vunpack.c.l.b16 %v398
      %v790 = vunpack.c.l.b16 %v399
      %v791 = vunpack.c.l.b16 %v400
      %v792 = vunpack.c.l.b16 %v401
      %v793 = vunpack.c.l.b16 %v402
      %v794 = vunpack.c.l.b16 %v403
      %v795 = vunpack.c.l.b16 %v404
      %v796 = vunpack.c.l.b16 %v405
      %v797 = vunpack.c.l.b16 %v406
      %v798 = vunpack.c.l.b16 %v407
      %v799 = vunpack.c.l.b16 %v408
      %v800 = vunpack.c.l.b16 %v409
      %v801 = vunpack.c.l.b16 %v410
      %v802 = vunpack.c.l.b16 %v411
      %v803 = vunpack.c.l.b16 %v412
      %v804 = vunpack.c.l.b16 %v413
      %v805 = vunpack.c.l.b16 %v414
      %v806 = vunpack.c.l.b16 %v415
      %v807 = vunpack.c.l.b16 %v416
      %v808 = vunpack.c.l.b16 %v417
      %v809 = vunpack.c.l.b16 %v418
      %v810 = vunpack.c.l.b16 %v419
      %v811 = vunpack.c.l.b16 %v420
      %v812 = vunpack.c.l.b16 %v421
      %v813 = vunpack.c.l.b16 %v422
      %v814 = vunpack.c.l.b16 %v423
      %v815 = vunpack.c.l.b16 %v424
      %v816 = vunpack.c.l.b16 %v425
      %v817 = vunpack.c.l.b16 %v426
      %v818 = vunpack.c.l.b16 %v427
      %v819 = vunpack.c.l.b16 %v428
      %v820 = vunpack.c.l.b16 %v429
      %v821 = vunpack.c.l.b16 %v430
      %v822 = vunpack.c.l.b16 %v431
      %v823 = vunpack.c.l.b16 %v432
      %v824 = vunpack.c.l.b16 %v433
      %v825 = vunpack.c.l.b16 %v434
      %v826 = vunpack.c.l.b16 %v435
      %v827 = vunpack.c.l.b16 %v436
      %v828 = vunpack.c.l.b16 %v437
      %v829 = vunpack.c.l.b16 %v438
      %v830 = vunpack.c.l.b16 %v439
      %v831 = vunpack.c.l.b16 %v440
      %v832 = vunpack.c.l.b16 %v441
      %v833 = vunpack.c.l.b16 %v442
      %v834 = vunpack.c.l.b16 %v443
      %v835 = vunpack.c.l.b16 %v444
      %v836 = vunpack.c.l.b16 %v445
      %v837 = vunpack.c.l.b16 %v446
      %v838 = vunpack.c.l.b16 %v447
      %v839 = vunpack.c.l.b16 %v448
      %v840 = vunpack.c.l.b16 %v449
      %v841 = vunpack.c.l.b16 %v450
      %v842 = vunpack.c.l.b16 %v451
      %v843 = vunpack.c.l.b16 %v452
      %v844 = vunpack.c.l.b16 %v453
      %v845 = vunpack.c.l.b16 %v454
      %v846 = vunpack.c.l.b16 %v455
      %v847 = vunpack.c.l.b16 %v456
      %v848 = vunpack.c.l.b16 %v457
      %v849 = vunpack.c.l.b16 %v458
      %v850 = vunpack.c.l.b16 %v459
      %v851 = vunpack.c.l.b16 %v460
      %v852 = vunpack.c.l.b16 %v461
      %v853 = vunpack.c.l.b16 %v462
      %v854 = vunpack.c.l.b16 %v463
      %v855 = vunpack.c.l.b16 %v464
      %v856 = vunpack.c.l.b16 %v465
      %v857 = vunpack.c.l.b16 %v466
      %v858 = vunpack.c.l.b16 %v467
      %v859 = vunpack.c.l.b16 %v468
      %v860 = vunpack.c.l.b16 %v469
      %v861 = vunpack.c.l.b16 %v470
      %v862 = vunpack.c.l.b16 %v471
      %v863 = vunpack.c.l.b16 %v472
      %v864 = vunpack.c.l.b16 %v473
      %v865 = vunpack.c.l.b16 %v474
      %v866 = vunpack.c.l.b16 %v475
      %v867 = vunpack.c.l.b16 %v476
      %v868 = vunpack.c.l.b16 %v477
      %v869 = vunpack.c.l.b16 %v478
      %v870 = vunpack.c.l.b16 %v479
      %v871 = vunpack.c.l.b16 %v480
      %v872 = vunpack.c.l.b16 %v481
      %v873 = vunpack.c.l.b16 %v482
      %v874 = vunpack.c.l.b16 %v483
      %v875 = vunpack.c.l.b16 %v484
      %v876 = vunpack.c.l.b16 %v485
      %v877 = vunpack.c.l.b16 %v486
      %v878 = vunpack.c.l.b16 %v487
      %v879 = vunpack.c.l.b16 %v488
      %v880 = vunpack.c.l.b16 %v489
      %v881 = vunpack.c.l.b16 %v490
      %v882 = vunpack.c.l.b16 %v491
      %v883 = vunpack.c.l.b16 %v492
      %v884 = vunpack.c.l.b16 %v493
      %v885 = vunpack.c.l.b16 %v494
      %v886 = vunpack.c.l.b16 %v495
      %v887 = vunpack.c.l.b16 %v496
      %v888 = vunpack.c.l.b16 %v497
      %v889 = vunpack.c.l.b16 %v498
      %v890 = vunpack.c.l.b16 %v499
      %v891 = vunpack.c.l.b16 %v500
      %v892 = vunpack.c.l.b16 %v501
      %v893 = vpack.c.b16 %v718, %v717
      %v894 = vpack.c.b16 %v720, %v719
      %v895 = vpack.c.b16 %v722, %v721
      %v896 = vpack.c.b16 %v724, %v723
      %v897 = vpack.c.b16 %v726, %v725
      %v898 = vpack.c.b16 %v728, %v727
      %v899 = vpack.c.b16 %v730, %v729
      %v900 = vpack.c.b16 %v732, %v731
      %v901 = vpack.c.b16 %v734, %v733
      %v902 = vpack.c.b16 %v736, %v735
      %v903 = vpack.c.b16 %v738, %v737
      %v904 = vpack.c.b16 %v740, %v739
      %v905 = vpack.c.b16 %v742, %v741
      %v906 = vpack.c.b16 %v744, %v743
      %v907 = vpack.c.b16 %v746, %v745
      %v908 = vpack.c.b16 %v748, %v747
      %v909 = vpack.c.b16 %v750, %v749
      %v910 = vpack.c.b16 %v752, %v751
      %v911 = vpack.c.b16 %v754, %v753
      %v912 = vpack.c.b16 %v756, %v755
      %v913 = vpack.c.b16 %v758, %v757
      %v914 = vpack.c.b16 %v760, %v759
      %v915 = vpack.c.b16 %v762, %v761
      %v916 = vpack.c.b16 %v764, %v763
      %v917 = vpack.c.b16 %v766, %v765
      %v918 = vpack.c.b16 %v768, %v767
      %v919 = vpack.c.b16 %v770, %v769
      %v920 = vpack.c.b16 %v772, %v771
      %v921 = vpack.c.b16 %v774, %v773
      %v922 = vpack.c.b16 %v776, %v775
      %v923 = vpack.c.b16 %v778, %v777
      %v924 = vpack.c.b16 %v780, %v779
      %v925 = vpack.c.b16 %v782, %v781
      %v926 = vpack.c.b16 %v784, %v783
      %v927 = vpack.c.b16 %v786, %v785
      %v928 = vpack.c.b16 %v788, %v787
      %v929 = vpack.c.b16 %v790, %v789
      %v930 = vpack.c.b16 %v792, %v791
      %v931 = vpack.c.b16 %v794, %v793
      %v932 = vpack.c.b16 %v796, %v795
      %v933 = vpack.c.b16 %v798, %v797
      %v934 = vpack.c.b16 %v800, %v799
      %v935 = vpack.c.b16 %v802, %v801
      %v936 = vpack.c.b16 %v804, %v803
      %v937 = vpack.c.b16 %v806, %v805
      %v938 = vpack.c.b16 %v808, %v807
      %v939 = vpack.c.b16 %v810, %v809
      %v940 = vpack.c.b16 %v812, %v811
      %v941 = vpack.c.b16 %v814, %v813
      %v942 = vpack.c.b16 %v816, %v815
      %v943 = vpack.c.b16 %v818, %v817
      %v944 = vpack.c.b16 %v820, %v819
      %v945 = vpack.c.b16 %v822, %v821
      %v946 = vpack.c.b16 %v824, %v823
      %v947 = vpack.c.b16 %v826, %v825
      %v948 = vpack.c.b16 %v828, %v827
      %v949 = vpack.c.b16 %v830, %v829
      %v950 = vpack.c.b16 %v832, %v831
      %v951 = vpack.c.b16 %v834, %v833
      %v952 = vpack.c.b16 %v836, %v835
      %v953 = vpack.c.b16 %v838, %v837
      %v954 = vpack.c.b16 %v840, %v839
      %v955 = vpack.c.b16 %v842, %v841
      %v956 = vpack.c.b16 %v844, %v843
      %v957 = vpack.c.b16 %v846, %v845
      %v958 = vpack.c.b16 %v848, %v847
      %v959 = vpack.c.b16 %v850, %v849
      %v960 = vpack.c.b16 %v852, %v851
      %v961 = vpack.c.b16 %v854, %v853
      %v962 = vpack.c.b16 %v856, %v855
      %v963 = vpack.c.b16 %v858, %v857
      %v964 = vpack.c.b16 %v860, %v859
      %v965 = vpack.c.b16 %v862, %v861
      %v966 = vpack.c.b16 %v864, %v863
      %v967 = vpack.c.b16 %v866, %v865
      %v968 = vpack.c.b16 %v868, %v867
      %v969 = vpack.c.b16 %v870, %v869
      %v970 = vpack.c.b16 %v872, %v871
      %v971 = vpack.c.b16 %v874, %v873
      %v972 = vpack.c.b16 %v876, %v875
      %v973 = vpack.c.b16 %v878, %v877
      %v974 = vpack.c.b16 %v880, %v879
      %v975 = vpack.c.b16 %v882, %v881
      %v976 = vpack.c.b16 %v884, %v883
      %v977 = vpack.c.b16 %v886, %v885
      %v978 = vpack.c.b16 %v888, %v887
      %v979 = vpack.c.b16 %v890, %v889
      %v980 = vpack.c.b16 %v892, %v891
      %1069 = vmatpush.bf16.msra.mxu0 %v900
      %1070 = vmatpush.bf16.msra.mxu0 %v899
      %1071 = vmatpush.bf16.msra.mxu0 %v898
      %1072 = vmatpush.bf16.msra.mxu0 %v897
      %1073 = vmatpush.bf16.msra.mxu0 %v896
      %1074 = vmatpush.bf16.msra.mxu0 %v895
      %1075 = vmatpush.bf16.msra.mxu0 %v894
      %1076 = vmatpush.bf16.msra.mxu0 %v893
      %1077 = vmatmul.bf16.gmra.mxu0 %v519
      %v1078 = vpop.f32.mrf.mxu0
      %v1079 = vadd.f32 0.0, %v1078
      %v1080 = vpop.f32.mrf.mxu0
      %1081 = vdwg.mxu0
      %1082 = vmatpush.bf16.msra.mxu0 %v908
      %1083 = vmatpush.bf16.msra.mxu0 %v907
      %1084 = vmatpush.bf16.msra.mxu0 %v906
      %1085 = vmatpush.bf16.msra.mxu0 %v905
      %1086 = vmatpush.bf16.msra.mxu0 %v904
      %1087 = vmatpush.bf16.msra.mxu0 %v903
      %1088 = vmatpush.bf16.msra.mxu0 %v902
      %1089 = vmatpush.bf16.msra.mxu0 %v901
      %1090 = vmatmul.bf16.gmra.mxu0 %v520
      %v1091 = vpop.f32.mrf.mxu0
      %v1092 = vadd.f32 %v1079, %v1091
      %v1093 = vpop.f32.mrf.mxu0
      %1094 = vdwg.mxu0
      %1095 = vmatpush.bf16.msra.mxu0 %v916
      %1096 = vmatpush.bf16.msra.mxu0 %v915
      %1097 = vmatpush.bf16.msra.mxu0 %v914
      %1098 = vmatpush.bf16.msra.mxu0 %v913
      %1099 = vmatpush.bf16.msra.mxu0 %v912
      %1100 = vmatpush.bf16.msra.mxu0 %v911
      %1101 = vmatpush.bf16.msra.mxu0 %v910
      %1102 = vmatpush.bf16.msra.mxu0 %v909
      %1103 = vmatmul.bf16.gmra.mxu0 %v521
      %v1104 = vpop.f32.mrf.mxu0
      %v1105 = vadd.f32 %v1092, %v1104
      %v1106 = vpop.f32.mrf.mxu0
      %1107 = vdwg.mxu0
      %1108 = vmatpush.bf16.msra.mxu0 %v924
      %1109 = vmatpush.bf16.msra.mxu0 %v923
      %1110 = vmatpush.bf16.msra.mxu0 %v922
      %1111 = vmatpush.bf16.msra.mxu0 %v921
      %1112 = vmatpush.bf16.msra.mxu0 %v920
      %1113 = vmatpush.bf16.msra.mxu0 %v919
      %1114 = vmatpush.bf16.msra.mxu0 %v918
      %1115 = vmatpush.bf16.msra.mxu0 %v917
      %1116 = vmatmul.bf16.gmra.mxu0 %v522
      %v1117 = vpop.f32.mrf.mxu0
      %v1118 = vadd.f32 %v1105, %v1117
      %v1119 = vpop.f32.mrf.mxu0
      %1120 = vdwg.mxu0
      %1121 = vmatpush.bf16.msra.mxu0 %v932
      %1122 = vmatpush.bf16.msra.mxu0 %v931
      %1123 = vmatpush.bf16.msra.mxu0 %v930
      %1124 = vmatpush.bf16.msra.mxu0 %v929
      %1125 = vmatpush.bf16.msra.mxu0 %v928
      %1126 = vmatpush.bf16.msra.mxu0 %v927
      %1127 = vmatpush.bf16.msra.mxu0 %v926
      %1128 = vmatpush.bf16.msra.mxu0 %v925
      %1129 = vmatmul.bf16.gmra.mxu0 %v523
      %v1130 = vpop.f32.mrf.mxu0
      %v1131 = vadd.f32 %v1118, %v1130
      %v1132 = vpop.f32.mrf.mxu0
      %1133 = vdwg.mxu0
      %1134 = vmatpush.bf16.msra.mxu0 %v940
      %1135 = vmatpush.bf16.msra.mxu0 %v939
      %1136 = vmatpush.bf16.msra.mxu0 %v938
      %1137 = vmatpush.bf16.msra.mxu0 %v937
      %1138 = vmatpush.bf16.msra.mxu0 %v936
      %1139 = vmatpush.bf16.msra.mxu0 %v935
      %1140 = vmatpush.bf16.msra.mxu0 %v934
      %1141 = vmatpush.bf16.msra.mxu0 %v933
      %1142 = vmatmul.bf16.gmra.mxu0 %v524
      %v1143 = vpop.f32.mrf.mxu0
      %v1144 = vadd.f32 %v1131, %v1143
      %v1145 = vpop.f32.mrf.mxu0
      %1146 = vdwg.mxu0
      %1147 = vmatpush.bf16.msra.mxu0 %v948
      %1148 = vmatpush.bf16.msra.mxu0 %v947
      %1149 = vmatpush.bf16.msra.mxu0 %v946
      %1150 = vmatpush.bf16.msra.mxu0 %v945
      %1151 = vmatpush.bf16.msra.mxu0 %v944
      %1152 = vmatpush.bf16.msra.mxu0 %v943
      %1153 = vmatpush.bf16.msra.mxu0 %v942
      %1154 = vmatpush.bf16.msra.mxu0 %v941
      %1155 = vmatmul.bf16.gmra.mxu0 %v525
      %v1156 = vpop.f32.mrf.mxu0
      %v1157 = vadd.f32 %v1144, %v1156
      %v1158 = vpop.f32.mrf.mxu0
      %1159 = vdwg.mxu0
      %1160 = vmatpush.bf16.msra.mxu0 %v956
      %1161 = vmatpush.bf16.msra.mxu0 %v955
      %1162 = vmatpush.bf16.msra.mxu0 %v954
      %1163 = vmatpush.bf16.msra.mxu0 %v953
      %1164 = vmatpush.bf16.msra.mxu0 %v952
      %1165 = vmatpush.bf16.msra.mxu0 %v951
      %1166 = vmatpush.bf16.msra.mxu0 %v950
      %1167 = vmatpush.bf16.msra.mxu0 %v949
      %1168 = vmatmul.bf16.gmra.mxu0 %v526
      %v1169 = vpop.f32.mrf.mxu0
      %v1170 = vadd.f32 %v1157, %v1169
      %v1171 = vpop.f32.mrf.mxu0
      %1172 = vdwg.mxu0
      %1173 = vmatpush.bf16.msra.mxu0 %v964
      %1174 = vmatpush.bf16.msra.mxu0 %v963
      %1175 = vmatpush.bf16.msra.mxu0 %v962
      %1176 = vmatpush.bf16.msra.mxu0 %v961
      %1177 = vmatpush.bf16.msra.mxu0 %v960
      %1178 = vmatpush.bf16.msra.mxu0 %v959
      %1179 = vmatpush.bf16.msra.mxu0 %v958
      %1180 = vmatpush.bf16.msra.mxu0 %v957
      %1181 = vmatmul.bf16.gmra.mxu0 %v527
      %v1182 = vpop.f32.mrf.mxu0
      %v1183 = vadd.f32 %v1170, %v1182
      %v1184 = vpop.f32.mrf.mxu0
      %1185 = vdwg.mxu0
      %1186 = vmatpush.bf16.msra.mxu0 %v972
      %1187 = vmatpush.bf16.msra.mxu0 %v971
      %1188 = vmatpush.bf16.msra.mxu0 %v970
      %1189 = vmatpush.bf16.msra.mxu0 %v969
      %1190 = vmatpush.bf16.msra.mxu0 %v968
      %1191 = vmatpush.bf16.msra.mxu0 %v967
      %1192 = vmatpush.bf16.msra.mxu0 %v966
      %1193 = vmatpush.bf16.msra.mxu0 %v965
      %1194 = vmatmul.bf16.gmra.mxu0 %v528
      %v1195 = vpop.f32.mrf.mxu0
      %v1196 = vadd.f32 %v1183, %v1195
      %v1197 = vpop.f32.mrf.mxu0
      %1198 = vdwg.mxu0
      %1199 = vmatpush.bf16.msra.mxu0 %v980
      %1200 = vmatpush.bf16.msra.mxu0 %v979
      %1201 = vmatpush.bf16.msra.mxu0 %v978
      %1202 = vmatpush.bf16.msra.mxu0 %v977
      %1203 = vmatpush.bf16.msra.mxu0 %v976
      %1204 = vmatpush.bf16.msra.mxu0 %v975
      %1205 = vmatpush.bf16.msra.mxu0 %v974
      %1206 = vmatpush.bf16.msra.mxu0 %v973
      %1207 = vmatmul.bf16.gmra.mxu0 %v529
      %v1208 = vpop.f32.mrf.mxu0
      %v1209 = vadd.f32 %v1196, %v1208
      %v1210 = vpop.f32.mrf.mxu0
      %1211 = vdwg.mxu0
      %v1212 = vadd.f32 %v319, %v1209
      %vm1213 = vcmask 523264
      %1214 = vst.msk [vmem:[#allocation2] sm:$0xff] %vm1213, %v1212
      // Predicated region
      $region37: #{scale_discriminator_forward.12} parent=31 // pred_check
        %p1215 = pneg %p313
      $region38: #{scale_discriminator_forward.12} parent=31 // pred_check_branch
        %1217 = sbr.rel (%p1215) target = $region40
      $region39: #{scale_discriminator_forward.12} parent=31 // pred_region
        %v1218 = vld [vmem:[#allocation2] sm:$0xff]
        %v1219 = vld [vmem:[%s302] sm:$0x1]
        %v1221 = vperm.slane %v1219, 0
        %v1223 = vadd.f32 %v1218, %v1221
        %vm1224 = vcmp.ge.f32.partialorder %v1223, 0.0
        %v1225 = vmul.f32 %v1223, 0.1
        %v1226 = vsel %vm1224, %v1223, %v1225
        %1227 = vst.msk [vmem:[%s312] sm:$0xff] %vm1213, %v1226
      $region40: #{scale_discriminator_forward.12} parent=31 // pred_fallthru
        _
      %p1228 = scmp.lt.s32.totalorder %s20, 15
      %s1229 = scalar_select %p1228, %s20, 15
      %p1230 = scmp.lt.s32.totalorder %s21, 0
      %s1231 = scalar_select %p1230, %s21, 0
      %p1232 = scmp.lt.s32.totalorder %s22, 0
      %s1233 = scalar_select %p1232, %s22, 0
      %s1234 = sadd.s32 %s1233, %s1231
      %s1235 = sadd.s32 %s1234, %s1229
      %s1236 = smul.addr %s1235, 8
      %s1237 = scalar_lea.vmem %s3, %s1236
      // Predicated region
      $region41: #{scale_discriminator_forward.12} parent=31 // pred_check
        %p1238 = pneg %p150
      $region42: #{scale_discriminator_forward.12} parent=31 // pred_check_branch
        %1240 = sbr.rel (%p1238) target = $region44
      $region43: #{scale_discriminator_forward.12} parent=31 // pred_region
        _
      $region44: #{scale_discriminator_forward.12} parent=31 // pred_fallthru
        _
    $region32: #{scale_discriminator_forward.12} parent=5 // pred_fallthru
      _
    %p1241 = scmp.le.s32.totalorder 2, %s9
    // Predicated region
    $region45: #{scale_discriminator_forward.12} parent=5 // pred_check
      %p1242 = pneg %p1241
    $region46: #{scale_discriminator_forward.12} parent=5 // pred_check_branch
      %1244 = sbr.rel (%p1242) target = $region48
    $region47: #{scale_discriminator_forward.12} parent=5 // pred_region
      %s1245 = ssub.s32 %s9, 2
      // Predicated region
      $region49: #{scale_discriminator_forward.12} parent=47 // pred_check
        %p1246 = pneg %p156
      $region50: #{scale_discriminator_forward.12} parent=47 // pred_check_branch
        %1248 = sbr.rel (%p1246) target = $region52
      $region51: #{scale_discriminator_forward.12} parent=47 // pred_region
        %p1249 = scmp.lt.s32.totalorder %s24, 15
        %s1250 = scalar_select %p1249, %s24, 15
        %p1251 = scmp.lt.s32.totalorder %s25, 0
        %s1252 = scalar_select %p1251, %s25, 0
        %p1253 = scmp.lt.s32.totalorder %s26, 0
        %s1254 = scalar_select %p1253, %s26, 0
        %s1255 = sadd.s32 %s1254, %s1252
        %s1256 = sadd.s32 %s1255, %s1250
        %s1257 = smul.addr %s1256, 8
        %s1258 = scalar_lea.vmem %s3, %s1257
      $region52: #{scale_discriminator_forward.12} parent=47 // pred_fallthru
        _
    $region48: #{scale_discriminator_forward.12} parent=5 // pred_fallthru
      _
  $region6: #{scale_discriminator_forward.12} parent=0 // loop_footer
    %s13 = sadd.s32 1, %s9
  $region7: #{scale_discriminator_forward.12} parent=0 // loop_footer_branch
    %8 = sbr.rel target = $region3
  $region8: #{scale_discriminator_forward.12} parent=0 // loop_exit
    _

// kernel: scale_discriminator_forward.13
$region0: #{scale_discriminator_forward.13}
  #allocation0 [shape = 'u32[]', space=smem, size = 0x4, offset = 0x4, fixed_abs, tag = 'smem constant byte address 0x4 - core index']
  #allocation1 [shape = 'u32[72,128]{1,0:T(1,128)}', space=vmem, size = 0x9000, scoped, tag = 'internal scratch']
  #allocation2 [shape = 'f32[8,64]{1,0:T(8,128)}', space=vmem, size = 0x1000, scoped, tag = 'scratch operand']
  %s0 = inlined_call_operand.vmem [shape: bf16[16,8,2688], index: 0, kind: input, shape index: {}]
  %s1 = inlined_call_operand.vmem [shape: bf16[16,2688,64], index: 1, kind: input, shape index: {}]
  %s2 = inlined_call_operand.vmem [shape: f32[16,1,64], index: 2, kind: input, shape index: {}]
  %s3 = inlined_call_operand.vmem [shape: f32[16,8,64], index: 3, kind: output, shape index: {}]
  %s4 = sld [smem:[#allocation0]]
  $region53: #{scale_discriminator_forward.13} parent=0
    _
  %s6 = ssub.s32 1, %s4
  %s7 = scalar_select 0, %s6, %s4
  loop: start=0, step=1, limit=114
  $region2: #{scale_discriminator_forward.13} parent=0 // loop_pre_header
    _
  $region3: #{scale_discriminator_forward.13} parent=0 // loop_header
    %s9 = sphi 0, %s13
    %p10 = scmp.ge.s32.totalorder %s9, 114
    %s16 = sphi 0, %s42
    %s17 = sphi 0, %s38
    %s18 = sphi 0, %s34
    %s19 = sphi 0, %s30
    %s20 = sphi 0, %s16
    %s21 = sphi 0, %s17
    %s22 = sphi 0, %s18
    %s23 = sphi 0, %s19
    %s24 = sphi 0, %s20
    %s25 = sphi 0, %s21
    %s26 = sphi 0, %s22
    %s27 = sphi 0, %s23
    %s49 = sphi 0, %s51
    %s52 = sphi 0, %s49
    %s53 = sphi 0, %s52
    %s69 = sphi 0, %s53
    %s79 = sphi 0, %s81
    %s82 = sphi 0, %s79
    %s83 = sphi 0, %s82
    %s99 = sphi 0, %s83
    %s107 = sphi 0, %s109
    %s110 = sphi 0, %s107
    %s111 = sphi 0, %s110
    %s127 = sphi 0, %s111
    %s137 = sphi 0, %s139
    %s140 = sphi 0, %s137
    %s141 = sphi 0, %s140
    %s157 = sphi 0, %s141
  $region4: #{scale_discriminator_forward.13} parent=0 // loop_header_branch
    %12 = sbr.rel (%p10) target = $region8
  $region5: #{scale_discriminator_forward.13} parent=0 // loop_body
    %s14 = ssub.s32 %s9, 1
    %s15 = ssub.s32 %s9, 2
    %s28 = sadd.s32 1, %s19
    %p29 = scmp.ge.s32.totalorder %s28, 7
    %s30 = scalar_select %p29, 0, %s28
    %s31 = sadd.s32 1, %s18
    %s32 = scalar_select %p29, %s31, %s18
    %p33 = scmp.ge.s32.totalorder %s32, 1
    %s34 = scalar_select %p33, 0, %s32
    %s35 = sadd.s32 1, %s17
    %s36 = scalar_select %p33, %s35, %s17
    %p37 = scmp.ge.s32.totalorder %s36, 1
    %s38 = scalar_select %p37, 0, %s36
    %s39 = sadd.s32 1, %s16
    %s40 = scalar_select %p37, %s39, %s16
    %p41 = scmp.ge.s32.totalorder %s40, 16
    %s42 = scalar_select %p41, 0, %s40
    %s43 = ssub.s32 %s16, %s42
    %s44 = ssub.s32 %s17, %s38
    %s45 = sor.u32 %s43, %s44
    %s46 = ssub.s32 %s19, %s30
    %s47 = sor.u32 %s45, %s46
    %p48 = scmp.eq.s32.totalorder %s47, 0
    %s50 = sadd.s32 %s49, 1
    %s51 = scalar_select %p48, %s49, %s50
    %p54 = pneg %p48
    %p55 = scmp.eq.s32.totalorder %s9, 111
    %p56 = por %p54, %p55
    %p57 = scmp.ne.s32.totalorder %s49, %s52
    %p58 = scmp.eq.s32.totalorder %s9, 0
    %p59 = por %p57, %p58
    %p60 = scmp.ne.s32.totalorder %s49, %s52
    %p61 = scmp.eq.s32.totalorder %s14, 111
    %p62 = por %p60, %p61
    %p63 = scmp.ne.s32.totalorder %s52, %s53
    %p64 = scmp.eq.s32.totalorder %s14, 0
    %p65 = por %p63, %p64
    %p66 = scmp.ne.s32.totalorder %s52, %s53
    %p67 = scmp.eq.s32.totalorder %s15, 111
    %p68 = por %p66, %p67
    %p70 = scmp.ne.s32.totalorder %s53, %s69
    %p71 = scmp.eq.s32.totalorder %s15, 0
    %p72 = por %p70, %p71
    %s73 = ssub.s32 %s16, %s42
    %s74 = ssub.s32 %s19, %s30
    %s75 = sor.u32 %s73, %s74
    %s76 = ssub.s32 %s18, %s34
    %s77 = sor.u32 %s75, %s76
    %p78 = scmp.eq.s32.totalorder %s77, 0
    %s80 = sadd.s32 %s79, 1
    %s81 = scalar_select %p78, %s79, %s80
    %p84 = pneg %p78
    %p85 = scmp.eq.s32.totalorder %s9, 111
    %p86 = por %p84, %p85
    %p87 = scmp.ne.s32.totalorder %s79, %s82
    %p88 = scmp.eq.s32.totalorder %s9, 0
    %p89 = por %p87, %p88
    %p90 = scmp.ne.s32.totalorder %s79, %s82
    %p91 = scmp.eq.s32.totalorder %s14, 111
    %p92 = por %p90, %p91
    %p93 = scmp.ne.s32.totalorder %s82, %s83
    %p94 = scmp.eq.s32.totalorder %s14, 0
    %p95 = por %p93, %p94
    %p96 = scmp.ne.s32.totalorder %s82, %s83
    %p97 = scmp.eq.s32.totalorder %s15, 111
    %p98 = por %p96, %p97
    %p100 = scmp.ne.s32.totalorder %s83, %s99
    %p101 = scmp.eq.s32.totalorder %s15, 0
    %p102 = por %p100, %p101
    %s103 = ssub.s32 %s16, %s42
    %s104 = ssub.s32 %s18, %s34
    %s105 = sor.u32 %s103, %s104
    %p106 = scmp.eq.s32.totalorder %s105, 0
    %s108 = sadd.s32 %s107, 1
    %s109 = scalar_select %p106, %s107, %s108
    %p112 = pneg %p106
    %p113 = scmp.eq.s32.totalorder %s9, 111
    %p114 = por %p112, %p113
    %p115 = scmp.ne.s32.totalorder %s107, %s110
    %p116 = scmp.eq.s32.totalorder %s9, 0
    %p117 = por %p115, %p116
    %p118 = scmp.ne.s32.totalorder %s107, %s110
    %p119 = scmp.eq.s32.totalorder %s14, 111
    %p120 = por %p118, %p119
    %p121 = scmp.ne.s32.totalorder %s110, %s111
    %p122 = scmp.eq.s32.totalorder %s14, 0
    %p123 = por %p121, %p122
    %p124 = scmp.ne.s32.totalorder %s110, %s111
    %p125 = scmp.eq.s32.totalorder %s15, 111
    %p126 = por %p124, %p125
    %p128 = scmp.ne.s32.totalorder %s111, %s127
    %p129 = scmp.eq.s32.totalorder %s15, 0
    %p130 = por %p128, %p129
    %s131 = ssub.s32 %s16, %s42
    %s132 = ssub.s32 %s17, %s38
    %s133 = sor.u32 %s131, %s132
    %s134 = ssub.s32 %s18, %s34
    %s135 = sor.u32 %s133, %s134
    %p136 = scmp.eq.s32.totalorder %s135, 0
    %s138 = sadd.s32 %s137, 1
    %s139 = scalar_select %p136, %s137, %s138
    %p142 = pneg %p136
    %p143 = scmp.eq.s32.totalorder %s9, 111
    %p144 = por %p142, %p143
    %p145 = scmp.ne.s32.totalorder %s137, %s140
    %p146 = scmp.eq.s32.totalorder %s9, 0
    %p147 = por %p145, %p146
    %p148 = scmp.ne.s32.totalorder %s137, %s140
    %p149 = scmp.eq.s32.totalorder %s14, 111
    %p150 = por %p148, %p149
    %p151 = scmp.ne.s32.totalorder %s140, %s141
    %p152 = scmp.eq.s32.totalorder %s14, 0
    %p153 = por %p151, %p152
    %p154 = scmp.ne.s32.totalorder %s140, %s141
    %p155 = scmp.eq.s32.totalorder %s15, 111
    %p156 = por %p154, %p155
    %p158 = scmp.ne.s32.totalorder %s141, %s157
    %p159 = scmp.eq.s32.totalorder %s15, 0
    %p160 = por %p158, %p159
    %p161 = scmp.le.s32.totalorder 1, %s9
    %p162 = scmp.lt.s32.totalorder %s9, 113
    %p163 = pnand %p161, %p162
    %p164 = pneg %p163
    // Predicated region
    $region9: #{scale_discriminator_forward.13} parent=5 // pred_check
      _
    $region10: #{scale_discriminator_forward.13} parent=5 // pred_check_branch
      %166 = sbr.rel (%p163) target = $region12
    $region11: #{scale_discriminator_forward.13} parent=5 // pred_region
      %s167 = ssub.s32 %s9, 1
    $region12: #{scale_discriminator_forward.13} parent=5 // pred_fallthru
      _
    %p168 = scmp.lt.s32.totalorder %s9, 112
    // Predicated region
    $region13: #{scale_discriminator_forward.13} parent=5 // pred_check
      %p169 = pneg %p168
    $region14: #{scale_discriminator_forward.13} parent=5 // pred_check_branch
      %171 = sbr.rel (%p169) target = $region16
    $region15: #{scale_discriminator_forward.13} parent=5 // pred_region
      // Predicated region
      $region17: #{scale_discriminator_forward.13} parent=15 // pred_check
        %p172 = pneg %p59
      $region18: #{scale_discriminator_forward.13} parent=15 // pred_check_branch
        %174 = sbr.rel (%p172) target = $region20
      $region19: #{scale_discriminator_forward.13} parent=15 // pred_region
        %s175 = smul.u32 3, %s19
        %p176 = scmp.lt.s32.totalorder %s16, 15
        %s177 = scalar_select %p176, %s16, 15
        %p178 = scmp.lt.s32.totalorder %s17, 0
        %s179 = scalar_select %p178, %s17, 0
        %p180 = scmp.lt.s32.totalorder %s175, 20
        %s181 = scalar_select %p180, %s175, 20
        %s182 = smul.addr %s179, 21
        %s183 = sadd.s32 %s181, %s182
        %s184 = smul.addr %s177, 21
        %s185 = sadd.s32 %s183, %s184
        %s186 = smul.addr %s185, 4
        %s187 = scalar_lea.vmem %s0, %s186
        %s188 = smul.u32 3, %s19
      $region20: #{scale_discriminator_forward.13} parent=15 // pred_fallthru
        _
      // Predicated region
      $region21: #{scale_discriminator_forward.13} parent=15 // pred_check
        %p189 = pneg %p89
      $region22: #{scale_discriminator_forward.13} parent=15 // pred_check_branch
        %191 = sbr.rel (%p189) target = $region24
      $region23: #{scale_discriminator_forward.13} parent=15 // pred_region
        %s192 = smul.u32 48, %s19
        %p193 = scmp.lt.s32.totalorder %s16, 15
        %s194 = scalar_select %p193, %s16, 15
        %p195 = scmp.lt.s32.totalorder %s192, 335
        %s196 = scalar_select %p195, %s192, 335
        %p197 = scmp.lt.s32.totalorder %s18, 0
        %s198 = scalar_select %p197, %s18, 0
        %s199 = sadd.s32 %s198, %s196
        %s200 = smul.addr %s194, 336
        %s201 = sadd.s32 %s199, %s200
        %s202 = smul.addr %s201, 4
        %s203 = scalar_lea.vmem %s1, %s202
        %s204 = smul.u32 48, %s19
      $region24: #{scale_discriminator_forward.13} parent=15 // pred_fallthru
        _
      // Predicated region
      $region25: #{scale_discriminator_forward.13} parent=15 // pred_check
        %p205 = pneg %p117
      $region26: #{scale_discriminator_forward.13} parent=15 // pred_check_branch
        %207 = sbr.rel (%p205) target = $region28
      $region27: #{scale_discriminator_forward.13} parent=15 // pred_region
        %p208 = scmp.lt.s32.totalorder %s16, 15
        %s209 = scalar_select %p208, %s16, 15
        %p210 = scmp.lt.s32.totalorder %s18, 0
        %s211 = scalar_select %p210, %s18, 0
        %s212 = sadd.s32 %s211, %s209
        %s213 = scalar_lea.vmem %s2, %s212
      $region28: #{scale_discriminator_forward.13} parent=15 // pred_fallthru
        _
    $region16: #{scale_discriminator_forward.13} parent=5 // pred_fallthru
      _
    %p214 = scmp.le.s32.totalorder 1, %s9
    %p215 = scmp.lt.s32.totalorder %s9, 113
    %p216 = pnand %p214, %p215
    %p217 = pneg %p216
    // Predicated region
    $region29: #{scale_discriminator_forward.13} parent=5 // pred_check
      _
    $region30: #{scale_discriminator_forward.13} parent=5 // pred_check_branch
      %219 = sbr.rel (%p216) target = $region32
    $region31: #{scale_discriminator_forward.13} parent=5 // pred_region
      %s220 = ssub.s32 %s9, 1
      %s221 = smul.u32 3, %s23
      %p222 = scmp.lt.s32.totalorder %s20, 15
      %s223 = scalar_select %p222, %s20, 15
      %p224 = scmp.lt.s32.totalorder %s21, 0
      %s225 = scalar_select %p224, %s21, 0
      %p226 = scmp.lt.s32.totalorder %s221, 20
      %s227 = scalar_select %p226, %s221, 20
      %s228 = smul.addr %s225, 21
      %s229 = sadd.s32 %s227, %s228
      %s230 = smul.addr %s223, 21
      %s231 = sadd.s32 %s229, %s230
      %s232 = smul.addr %s231, 4
      %s233 = scalar_lea.vmem %s0, %s232
      %p234 = pneg %p65
      %p235 = pneg %p62
      %s236 = smul.u32 48, %s23
      %p237 = scmp.lt.s32.totalorder %s20, 15
      %s238 = scalar_select %p237, %s20, 15
      %p239 = scmp.lt.s32.totalorder %s236, 335
      %s240 = scalar_select %p239, %s236, 335
      %p241 = scmp.lt.s32.totalorder %s22, 0
      %s242 = scalar_select %p241, %s22, 0
      %s243 = sadd.s32 %s242, %s240
      %s244 = smul.addr %s238, 336
      %s245 = sadd.s32 %s243, %s244
      %s246 = smul.addr %s245, 4
      %s247 = scalar_lea.vmem %s1, %s246
      %p248 = pneg %p95
      %p249 = pneg %p92
      %p250 = scmp.lt.s32.totalorder %s20, 15
      %s251 = scalar_select %p250, %s20, 15
      %p252 = scmp.lt.s32.totalorder %s22, 0
      %s253 = scalar_select %p252, %s22, 0
      %s254 = sadd.s32 %s253, %s251
      %s255 = scalar_lea.vmem %s2, %s254
      %p256 = pneg %p123
      %p257 = pneg %p120
      %p258 = pneg %p153
      %p259 = pneg %p150
      %p260 = scmp.lt.s32.totalorder %s20, 15
      %s261 = scalar_select %p260, %s20, 15
      %p262 = scmp.lt.s32.totalorder %s21, 0
      %s263 = scalar_select %p262, %s21, 0
      %p264 = scmp.lt.s32.totalorder %s22, 0
      %s265 = scalar_select %p264, %s22, 0
      %s266 = sadd.s32 %s265, %s263
      %s267 = sadd.s32 %s266, %s261
      %s268 = smul.addr %s267, 8
      %s269 = scalar_lea.vmem %s3, %s268
      %s270 = smul.u32 3, %s23
      %p271 = scmp.lt.s32.totalorder %s20, 15
      %s272 = scalar_select %p271, %s20, 15
      %p273 = scmp.lt.s32.totalorder %s21, 0
      %s274 = scalar_select %p273, %s21, 0
      %p275 = scmp.lt.s32.totalorder %s270, 20
      %s276 = scalar_select %p275, %s270, 20
      %s277 = smul.addr %s274, 21
      %s278 = sadd.s32 %s276, %s277
      %s279 = smul.addr %s272, 21
      %s280 = sadd.s32 %s278, %s279
      %s281 = smul.addr %s280, 4
      %s282 = scalar_lea.vmem %s0, %s281
      %s283 = smul.u32 3, %s23
      %s284 = smul.u32 48, %s23
      %p285 = scmp.lt.s32.totalorder %s20, 15
      %s286 = scalar_select %p285, %s20, 15
      %p287 = scmp.lt.s32.totalorder %s284, 335
      %s288 = scalar_select %p287, %s284, 335
      %p289 = scmp.lt.s32.totalorder %s22, 0
      %s290 = scalar_select %p289, %s22, 0
      %s291 = sadd.s32 %s290, %s288
      %s292 = smul.addr %s286, 336
      %s293 = sadd.s32 %s291, %s292
      %s294 = smul.addr %s293, 4
      %s295 = scalar_lea.vmem %s1, %s294
      %s296 = smul.u32 48, %s23
      %p297 = scmp.lt.s32.totalorder %s20, 15
      %s298 = scalar_select %p297, %s20, 15
      %p299 = scmp.lt.s32.totalorder %s22, 0
      %s300 = scalar_select %p299, %s22, 0
      %s301 = sadd.s32 %s300, %s298
      %s302 = scalar_lea.vmem %s2, %s301
      %p303 = scmp.lt.s32.totalorder %s20, 15
      %s304 = scalar_select %p303, %s20, 15
      %p305 = scmp.lt.s32.totalorder %s21, 0
      %s306 = scalar_select %p305, %s21, 0
      %p307 = scmp.lt.s32.totalorder %s22, 0
      %s308 = scalar_select %p307, %s22, 0
      %s309 = sadd.s32 %s308, %s306
      %s310 = sadd.s32 %s309, %s304
      %s311 = smul.addr %s310, 8
      %s312 = scalar_lea.vmem %s3, %s311
      %p313 = scmp.eq.s32.totalorder %s23, 0
      // Predicated region
      $region33: #{scale_discriminator_forward.13} parent=31 // pred_check
        %p314 = pneg %p313
      $region34: #{scale_discriminator_forward.13} parent=31 // pred_check_branch
        %316 = sbr.rel (%p314) target = $region36
      $region35: #{scale_discriminator_forward.13} parent=31 // pred_region
        %vm317 = vcmask 523264
        %318 = vst.msk [vmem:[#allocation2] sm:$0xff] %vm317, 0.0
      $region36: #{scale_discriminator_forward.13} parent=31 // pred_fallthru
        _
      %v319 = vld [vmem:[#allocation2] sm:$0xff]
      %v320 = vld [vmem:[%s282] sm:$0xff]
      %v321 = vld [vmem:[%s282 + $0x8] sm:$0xf]
      %v322 = vld [vmem:[%s295] sm:$0xf]
      %v323 = vld [vmem:[%s295 + $0x4] sm:$0xf]
      %v324 = vld [vmem:[%s295 + $0x8] sm:$0xf]
      %v325 = vld [vmem:[%s295 + $0xc] sm:$0xf]
      %v326 = vld [vmem:[%s295 + $0x10] sm:$0xf]
      %v327 = vld [vmem:[%s295 + $0x14] sm:$0xf]
      %v328 = vld [vmem:[%s295 + $0x18] sm:$0xf]
      %v329 = vld [vmem:[%s295 + $0x1c] sm:$0xf]
      %v330 = vld [vmem:[%s295 + $0x20] sm:$0xf]
      %v331 = vld [vmem:[%s295 + $0x24] sm:$0xf]
      %v332 = vld [vmem:[%s295 + $0x28] sm:$0xf]
      %v333 = vld [vmem:[%s295 + $0x2c] sm:$0xf]
      %v334 = vld [vmem:[%s295 + $0x30] sm:$0xf]
      %v335 = vld [vmem:[%s295 + $0x34] sm:$0xf]
      %v336 = vld [vmem:[%s295 + $0x38] sm:$0xf]
      %v337 = vld [vmem:[%s295 + $0x3c] sm:$0xf]
      %v338 = vld [vmem:[%s295 + $0x40] sm:$0xf]
      %v339 = vld [vmem:[%s295 + $0x44] sm:$0xf]
      %v340 = vld [vmem:[%s295 + $0x48] sm:$0xf]
      %v341 = vld [vmem:[%s295 + $0x4c] sm:$0xf]
      %v342 = vld [vmem:[%s295 + $0x50] sm:$0xf]
      %v343 = vld [vmem:[%s295 + $0x54] sm:$0xf]
      %v344 = vld [vmem:[%s295 + $0x58] sm:$0xf]
      %v345 = vld [vmem:[%s295 + $0x5c] sm:$0xf]
      %v346 = vld [vmem:[%s295 + $0x60] sm:$0xf]
      %v347 = vld [vmem:[%s295 + $0x64] sm:$0xf]
      %v348 = vld [vmem:[%s295 + $0x68] sm:$0xf]
      %v349 = vld [vmem:[%s295 + $0x6c] sm:$0xf]
      %v350 = vld [vmem:[%s295 + $0x70] sm:$0xf]
      %v351 = vld [vmem:[%s295 + $0x74] sm:$0xf]
      %v352 = vld [vmem:[%s295 + $0x78] sm:$0xf]
      %v353 = vld [vmem:[%s295 + $0x7c] sm:$0xf]
      %v354 = vld [vmem:[%s295 + $0x80] sm:$0xf]
      %v355 = vld [vmem:[%s295 + $0x84] sm:$0xf]
      %v356 = vld [vmem:[%s295 + $0x88] sm:$0xf]
      %v357 = vld [vmem:[%s295 + $0x8c] sm:$0xf]
      %v358 = vld [vmem:[%s295 + $0x90] sm:$0xf]
      %v359 = vld [vmem:[%s295 + $0x94] sm:$0xf]
      %v360 = vld [vmem:[%s295 + $0x98] sm:$0xf]
      %v361 = vld [vmem:[%s295 + $0x9c] sm:$0xf]
      %v362 = vld [vmem:[%s295 + $0xa0] sm:$0xf]
      %v363 = vld [vmem:[%s295 + $0xa4] sm:$0xf]
      %v364 = vld [vmem:[%s295 + $0xa8] sm:$0xf]
      %v365 = vld [vmem:[%s295 + $0xac] sm:$0xf]
      %v366 = vld [vmem:[%s295 + $0xb0] sm:$0xf]
      %v367 = vld [vmem:[%s295 + $0xb4] sm:$0xf]
      %v368 = vld [vmem:[%s295 + $0xb8] sm:$0xf]
      %v369 = vld [vmem:[%s295 + $0xbc] sm:$0xf]
      %v372 = vunpack.c.l.b16 %v320
      %v373 = vunpack.c.h.b16 %v320
      %v374 = vunpack.c.l.b16 %v321
      %v375 = vpack.c.b16 %v372, %v372
      %v376 = vpack.c.b16 %v373, %v373
      %v377 = vpack.c.b16 %v374, %v374
      %v429 = vunpack.c.l.b16 %v322
      %v430 = vunpack.c.l.b16 %v323
      %v431 = vunpack.c.l.b16 %v324
      %v432 = vunpack.c.l.b16 %v325
      %v433 = vunpack.c.l.b16 %v326
      %v434 = vunpack.c.l.b16 %v327
      %v435 = vunpack.c.l.b16 %v328
      %v436 = vunpack.c.l.b16 %v329
      %v437 = vunpack.c.l.b16 %v330
      %v438 = vunpack.c.l.b16 %v331
      %v439 = vunpack.c.l.b16 %v332
      %v440 = vunpack.c.l.b16 %v333
      %v441 = vunpack.c.l.b16 %v334
      %v442 = vunpack.c.l.b16 %v335
      %v443 = vunpack.c.l.b16 %v336
      %v444 = vunpack.c.l.b16 %v337
      %v445 = vunpack.c.l.b16 %v338
      %v446 = vunpack.c.l.b16 %v339
      %v447 = vunpack.c.l.b16 %v340
      %v448 = vunpack.c.l.b16 %v341
      %v449 = vunpack.c.l.b16 %v342
      %v450 = vunpack.c.l.b16 %v343
      %v451 = vunpack.c.l.b16 %v344
      %v452 = vunpack.c.l.b16 %v345
      %v453 = vunpack.c.l.b16 %v346
      %v454 = vunpack.c.l.b16 %v347
      %v455 = vunpack.c.l.b16 %v348
      %v456 = vunpack.c.l.b16 %v349
      %v457 = vunpack.c.l.b16 %v350
      %v458 = vunpack.c.l.b16 %v351
      %v459 = vunpack.c.l.b16 %v352
      %v460 = vunpack.c.l.b16 %v353
      %v461 = vunpack.c.l.b16 %v354
      %v462 = vunpack.c.l.b16 %v355
      %v463 = vunpack.c.l.b16 %v356
      %v464 = vunpack.c.l.b16 %v357
      %v465 = vunpack.c.l.b16 %v358
      %v466 = vunpack.c.l.b16 %v359
      %v467 = vunpack.c.l.b16 %v360
      %v468 = vunpack.c.l.b16 %v361
      %v469 = vunpack.c.l.b16 %v362
      %v470 = vunpack.c.l.b16 %v363
      %v471 = vunpack.c.l.b16 %v364
      %v472 = vunpack.c.l.b16 %v365
      %v473 = vunpack.c.l.b16 %v366
      %v474 = vunpack.c.l.b16 %v367
      %v475 = vunpack.c.l.b16 %v368
      %v476 = vunpack.c.l.b16 %v369
      %v477 = vpack.c.b16 %v430, %v429
      %v478 = vpack.c.b16 %v432, %v431
      %v479 = vpack.c.b16 %v434, %v433
      %v480 = vpack.c.b16 %v436, %v435
      %v481 = vpack.c.b16 %v438, %v437
      %v482 = vpack.c.b16 %v440, %v439
      %v483 = vpack.c.b16 %v442, %v441
      %v484 = vpack.c.b16 %v444, %v443
      %v485 = vpack.c.b16 %v446, %v445
      %v486 = vpack.c.b16 %v448, %v447
      %v487 = vpack.c.b16 %v450, %v449
      %v488 = vpack.c.b16 %v452, %v451
      %v489 = vpack.c.b16 %v454, %v453
      %v490 = vpack.c.b16 %v456, %v455
      %v491 = vpack.c.b16 %v458, %v457
      %v492 = vpack.c.b16 %v460, %v459
      %v493 = vpack.c.b16 %v462, %v461
      %v494 = vpack.c.b16 %v464, %v463
      %v495 = vpack.c.b16 %v466, %v465
      %v496 = vpack.c.b16 %v468, %v467
      %v497 = vpack.c.b16 %v470, %v469
      %v498 = vpack.c.b16 %v472, %v471
      %v499 = vpack.c.b16 %v474, %v473
      %v500 = vpack.c.b16 %v476, %v475
      %525 = vmatpush.bf16.msra.mxu0 %v484
      %526 = vmatpush.bf16.msra.mxu0 %v483
      %527 = vmatpush.bf16.msra.mxu0 %v482
      %528 = vmatpush.bf16.msra.mxu0 %v481
      %529 = vmatpush.bf16.msra.mxu0 %v480
      %530 = vmatpush.bf16.msra.mxu0 %v479
      %531 = vmatpush.bf16.msra.mxu0 %v478
      %532 = vmatpush.bf16.msra.mxu0 %v477
      %533 = vmatmul.bf16.gmra.mxu0 %v375
      %v534 = vpop.f32.mrf.mxu0
      %v535 = vadd.f32 0.0, %v534
      %v536 = vpop.f32.mrf.mxu0
      %537 = vdwg.mxu0
      %538 = vmatpush.bf16.msra.mxu0 %v492
      %539 = vmatpush.bf16.msra.mxu0 %v491
      %540 = vmatpush.bf16.msra.mxu0 %v490
      %541 = vmatpush.bf16.msra.mxu0 %v489
      %542 = vmatpush.bf16.msra.mxu0 %v488
      %543 = vmatpush.bf16.msra.mxu0 %v487
      %544 = vmatpush.bf16.msra.mxu0 %v486
      %545 = vmatpush.bf16.msra.mxu0 %v485
      %546 = vmatmul.bf16.gmra.mxu0 %v376
      %v547 = vpop.f32.mrf.mxu0
      %v548 = vadd.f32 %v535, %v547
      %v549 = vpop.f32.mrf.mxu0
      %550 = vdwg.mxu0
      %551 = vmatpush.bf16.msra.mxu0 %v500
      %552 = vmatpush.bf16.msra.mxu0 %v499
      %553 = vmatpush.bf16.msra.mxu0 %v498
      %554 = vmatpush.bf16.msra.mxu0 %v497
      %555 = vmatpush.bf16.msra.mxu0 %v496
      %556 = vmatpush.bf16.msra.mxu0 %v495
      %557 = vmatpush.bf16.msra.mxu0 %v494
      %558 = vmatpush.bf16.msra.mxu0 %v493
      %559 = vmatmul.bf16.gmra.mxu0 %v377
      %v560 = vpop.f32.mrf.mxu0
      %v561 = vadd.f32 %v548, %v560
      %v562 = vpop.f32.mrf.mxu0
      %563 = vdwg.mxu0
      %v564 = vadd.f32 %v319, %v561
      %vm565 = vcmask 523264
      %566 = vst.msk [vmem:[#allocation2] sm:$0xff] %vm565, %v564
      %p567 = scmp.eq.s32.totalorder %s23, 6
      // Predicated region
      $region37: #{scale_discriminator_forward.13} parent=31 // pred_check
        %p568 = pneg %p567
      $region38: #{scale_discriminator_forward.13} parent=31 // pred_check_branch
        %570 = sbr.rel (%p568) target = $region40
      $region39: #{scale_discriminator_forward.13} parent=31 // pred_region
        %v571 = vld [vmem:[#allocation2] sm:$0xff]
        %v572 = vld [vmem:[%s302] sm:$0x1]
        %v574 = vperm.slane %v572, 0
        %v576 = vadd.f32 %v571, %v574
        %vm577 = vcmp.ge.f32.partialorder %v576, 0.0
        %v578 = vmul.f32 %v576, 0.1
        %v579 = vsel %vm577, %v576, %v578
        %580 = vst.msk [vmem:[%s312] sm:$0xff] %vm565, %v579
      $region40: #{scale_discriminator_forward.13} parent=31 // pred_fallthru
        _
      %p581 = scmp.lt.s32.totalorder %s20, 15
      %s582 = scalar_select %p581, %s20, 15
      %p583 = scmp.lt.s32.totalorder %s21, 0
      %s584 = scalar_select %p583, %s21, 0
      %p585 = scmp.lt.s32.totalorder %s22, 0
      %s586 = scalar_select %p585, %s22, 0
      %s587 = sadd.s32 %s586, %s584
      %s588 = sadd.s32 %s587, %s582
      %s589 = smul.addr %s588, 8
      %s590 = scalar_lea.vmem %s3, %s589
      // Predicated region
      $region41: #{scale_discriminator_forward.13} parent=31 // pred_check
        %p591 = pneg %p150
      $region42: #{scale_discriminator_forward.13} parent=31 // pred_check_branch
        %593 = sbr.rel (%p591) target = $region44
      $region43: #{scale_discriminator_forward.13} parent=31 // pred_region
        _
      $region44: #{scale_discriminator_forward.13} parent=31 // pred_fallthru
        _
    $region32: #{scale_discriminator_forward.13} parent=5 // pred_fallthru
      _
    %p594 = scmp.le.s32.totalorder 2, %s9
    // Predicated region
    $region45: #{scale_discriminator_forward.13} parent=5 // pred_check
      %p595 = pneg %p594
    $region46: #{scale_discriminator_forward.13} parent=5 // pred_check_branch
      %597 = sbr.rel (%p595) target = $region48
    $region47: #{scale_discriminator_forward.13} parent=5 // pred_region
      %s598 = ssub.s32 %s9, 2
      // Predicated region
      $region49: #{scale_discriminator_forward.13} parent=47 // pred_check
        %p599 = pneg %p156
      $region50: #{scale_discriminator_forward.13} parent=47 // pred_check_branch
        %601 = sbr.rel (%p599) target = $region52
      $region51: #{scale_discriminator_forward.13} parent=47 // pred_region
        %p602 = scmp.lt.s32.totalorder %s24, 15
        %s603 = scalar_select %p602, %s24, 15
        %p604 = scmp.lt.s32.totalorder %s25, 0
        %s605 = scalar_select %p604, %s25, 0
        %p606 = scmp.lt.s32.totalorder %s26, 0
        %s607 = scalar_select %p606, %s26, 0
        %s608 = sadd.s32 %s607, %s605
        %s609 = sadd.s32 %s608, %s603
        %s610 = smul.addr %s609, 8
        %s611 = scalar_lea.vmem %s3, %s610
      $region52: #{scale_discriminator_forward.13} parent=47 // pred_fallthru
        _
    $region48: #{scale_discriminator_forward.13} parent=5 // pred_fallthru
      _
  $region6: #{scale_discriminator_forward.13} parent=0 // loop_footer
    %s13 = sadd.s32 1, %s9
  $region7: #{scale_discriminator_forward.13} parent=0 // loop_footer_branch
    %8 = sbr.rel target = $region3
  $region8: #{scale_discriminator_forward.13} parent=0 // loop_exit
    _

// kernel: scale_discriminator_forward.14
$region0: #{scale_discriminator_forward.14}
  #allocation0 [shape = 'u32[]', space=smem, size = 0x4, offset = 0x4, fixed_abs, tag = 'smem constant byte address 0x4 - core index']
  #allocation1 [shape = 'u32[72,128]{1,0:T(1,128)}', space=vmem, size = 0x9000, scoped, tag = 'internal scratch']
  #allocation2 [shape = 'f32[8,256]{1,0:T(8,128)}', space=vmem, size = 0x2000, scoped, tag = 'scratch operand']
  %s0 = inlined_call_operand.vmem [shape: bf16[1,8,5120], index: 0, kind: input, shape index: {}]
  %s1 = inlined_call_operand.vmem [shape: bf16[1,5120,1024], index: 1, kind: input, shape index: {}]
  %s2 = inlined_call_operand.vmem [shape: f32[1,1,1024], index: 2, kind: input, shape index: {}]
  %s3 = inlined_call_operand.vmem [shape: f32[1,8,1024], index: 3, kind: output, shape index: {}]
  %s4 = sld [smem:[#allocation0]]
  $region91: #{scale_discriminator_forward.14} parent=0
    _
  %s6 = ssub.s32 1, %s4
  %s7 = scalar_select 0, %s6, %s4
  $region1: #{scale_discriminator_forward.14} parent=0
    #allocation3 [shape = 'u8[1048576]{0}', space=vmem, size = 0x100000, scoped, tag = 'input window, operand 1']
    loop: start=0, step=1, limit=22
    $region2: #{scale_discriminator_forward.14} parent=1 // loop_pre_header
      _
    $region3: #{scale_discriminator_forward.14} parent=1 // loop_header
      %s9 = sphi 0, %s13
      %p10 = scmp.ge.s32.totalorder %s9, 22
      %s16 = sphi 0, %s42
      %s17 = sphi 0, %s38
      %s18 = sphi 0, %s34
      %s19 = sphi 0, %s30
      %s20 = sphi 0, %s16
      %s21 = sphi 0, %s17
      %s22 = sphi 0, %s18
      %s23 = sphi 0, %s19
      %s24 = sphi 0, %s20
      %s25 = sphi 0, %s21
      %s26 = sphi 0, %s22
      %s27 = sphi 0, %s23
      %s49 = sphi 0, %s51
      %s52 = sphi 0, %s49
      %s53 = sphi 0, %s52
      %s69 = sphi 0, %s53
      %s79 = sphi 0, %s81
      %s82 = sphi 0, %s79
      %s83 = sphi 0, %s82
      %s99 = sphi 0, %s83
      %s107 = sphi 0, %s109
      %s110 = sphi 0, %s107
      %s111 = sphi 0, %s110
      %s127 = sphi 0, %s111
      %s137 = sphi 0, %s139
      %s140 = sphi 0, %s137
      %s141 = sphi 0, %s140
      %s157 = sphi 0, %s141
    $region4: #{scale_discriminator_forward.14} parent=1 // loop_header_branch
      %12 = sbr.rel (%p10) target = $region8
    $region5: #{scale_discriminator_forward.14} parent=1 // loop_body
      %s14 = ssub.s32 %s9, 1
      %s15 = ssub.s32 %s9, 2
      %s28 = sadd.s32 1, %s19
      %p29 = scmp.ge.s32.totalorder %s28, 5
      %s30 = scalar_select %p29, 0, %s28
      %s31 = sadd.s32 1, %s18
      %s32 = scalar_select %p29, %s31, %s18
      %p33 = scmp.ge.s32.totalorder %s32, 4
      %s34 = scalar_select %p33, 0, %s32
      %s35 = sadd.s32 1, %s17
      %s36 = scalar_select %p33, %s35, %s17
      %p37 = scmp.ge.s32.totalorder %s36, 1
      %s38 = scalar_select %p37, 0, %s36
      %s39 = sadd.s32 1, %s16
      %s40 = scalar_select %p37, %s39, %s16
      %p41 = scmp.ge.s32.totalorder %s40, 1
      %s42 = scalar_select %p41, 0, %s40
      %s43 = ssub.s32 %s16, %s42
      %s44 = ssub.s32 %s17, %s38
      %s45 = sor.u32 %s43, %s44
      %s46 = ssub.s32 %s19, %s30
      %s47 = sor.u32 %s45, %s46
      %p48 = scmp.eq.s32.totalorder %s47, 0
      %s50 = sadd.s32 %s49, 1
      %s51 = scalar_select %p48, %s49, %s50
      %p54 = pneg %p48
      %p55 = scmp.eq.s32.totalorder %s9, 19
      %p56 = por %p54, %p55
      %p57 = scmp.ne.s32.totalorder %s49, %s52
      %p58 = scmp.eq.s32.totalorder %s9, 0
      %p59 = por %p57, %p58
      %p60 = scmp.ne.s32.totalorder %s49, %s52
      %p61 = scmp.eq.s32.totalorder %s14, 19
      %p62 = por %p60, %p61
      %p63 = scmp.ne.s32.totalorder %s52, %s53
      %p64 = scmp.eq.s32.totalorder %s14, 0
      %p65 = por %p63, %p64
      %p66 = scmp.ne.s32.totalorder %s52, %s53
      %p67 = scmp.eq.s32.totalorder %s15, 19
      %p68 = por %p66, %p67
      %p70 = scmp.ne.s32.totalorder %s53, %s69
      %p71 = scmp.eq.s32.totalorder %s15, 0
      %p72 = por %p70, %p71
      %s73 = ssub.s32 %s16, %s42
      %s74 = ssub.s32 %s19, %s30
      %s75 = sor.u32 %s73, %s74
      %s76 = ssub.s32 %s18, %s34
      %s77 = sor.u32 %s75, %s76
      %p78 = scmp.eq.s32.totalorder %s77, 0
      %s80 = sadd.s32 %s79, 1
      %s81 = scalar_select %p78, %s79, %s80
      %p84 = pneg %p78
      %p85 = scmp.eq.s32.totalorder %s9, 19
      %p86 = por %p84, %p85
      %p87 = scmp.ne.s32.totalorder %s79, %s82
      %p88 = scmp.eq.s32.totalorder %s9, 0
      %p89 = por %p87, %p88
      %p90 = scmp.ne.s32.totalorder %s79, %s82
      %p91 = scmp.eq.s32.totalorder %s14, 19
      %p92 = por %p90, %p91
      %p93 = scmp.ne.s32.totalorder %s82, %s83
      %p94 = scmp.eq.s32.totalorder %s14, 0
      %p95 = por %p93, %p94
      %p96 = scmp.ne.s32.totalorder %s82, %s83
      %p97 = scmp.eq.s32.totalorder %s15, 19
      %p98 = por %p96, %p97
      %p100 = scmp.ne.s32.totalorder %s83, %s99
      %p101 = scmp.eq.s32.totalorder %s15, 0
      %p102 = por %p100, %p101
      %s103 = ssub.s32 %s16, %s42
      %s104 = ssub.s32 %s18, %s34
      %s105 = sor.u32 %s103, %s104
      %p106 = scmp.eq.s32.totalorder %s105, 0
      %s108 = sadd.s32 %s107, 1
      %s109 = scalar_select %p106, %s107, %s108
      %p112 = pneg %p106
      %p113 = scmp.eq.s32.totalorder %s9, 19
      %p114 = por %p112, %p113
      %p115 = scmp.ne.s32.totalorder %s107, %s110
      %p116 = scmp.eq.s32.totalorder %s9, 0
      %p117 = por %p115, %p116
      %p118 = scmp.ne.s32.totalorder %s107, %s110
      %p119 = scmp.eq.s32.totalorder %s14, 19
      %p120 = por %p118, %p119
      %p121 = scmp.ne.s32.totalorder %s110, %s111
      %p122 = scmp.eq.s32.totalorder %s14, 0
      %p123 = por %p121, %p122
      %p124 = scmp.ne.s32.totalorder %s110, %s111
      %p125 = scmp.eq.s32.totalorder %s15, 19
      %p126 = por %p124, %p125
      %p128 = scmp.ne.s32.totalorder %s111, %s127
      %p129 = scmp.eq.s32.totalorder %s15, 0
      %p130 = por %p128, %p129
      %s131 = ssub.s32 %s16, %s42
      %s132 = ssub.s32 %s17, %s38
      %s133 = sor.u32 %s131, %s132
      %s134 = ssub.s32 %s18, %s34
      %s135 = sor.u32 %s133, %s134
      %p136 = scmp.eq.s32.totalorder %s135, 0
      %s138 = sadd.s32 %s137, 1
      %s139 = scalar_select %p136, %s137, %s138
      %p142 = pneg %p136
      %p143 = scmp.eq.s32.totalorder %s9, 19
      %p144 = por %p142, %p143
      %p145 = scmp.ne.s32.totalorder %s137, %s140
      %p146 = scmp.eq.s32.totalorder %s9, 0
      %p147 = por %p145, %p146
      %p148 = scmp.ne.s32.totalorder %s137, %s140
      %p149 = scmp.eq.s32.totalorder %s14, 19
      %p150 = por %p148, %p149
      %p151 = scmp.ne.s32.totalorder %s140, %s141
      %p152 = scmp.eq.s32.totalorder %s14, 0
      %p153 = por %p151, %p152
      %p154 = scmp.ne.s32.totalorder %s140, %s141
      %p155 = scmp.eq.s32.totalorder %s15, 19
      %p156 = por %p154, %p155
      %p158 = scmp.ne.s32.totalorder %s141, %s157
      %p159 = scmp.eq.s32.totalorder %s15, 0
      %p160 = por %p158, %p159
      %p161 = scmp.le.s32.totalorder 1, %s9
      %p162 = scmp.lt.s32.totalorder %s9, 21
      %p163 = pnand %p161, %p162
      %p164 = pneg %p163
      // Predicated region
      $region9: #{scale_discriminator_forward.14} parent=5 // pred_check
        _
      $region10: #{scale_discriminator_forward.14} parent=5 // pred_check_branch
        %166 = sbr.rel (%p163) target = $region12
      $region11: #{scale_discriminator_forward.14} parent=5 // pred_region
        %s167 = ssub.s32 %s9, 1
      $region12: #{scale_discriminator_forward.14} parent=5 // pred_fallthru
        _
      %p168 = scmp.lt.s32.totalorder %s9, 20
      // Predicated region
      $region13: #{scale_discriminator_forward.14} parent=5 // pred_check
        %p169 = pneg %p168
      $region14: #{scale_discriminator_forward.14} parent=5 // pred_check_branch
        %171 = sbr.rel (%p169) target = $region16
      $region15: #{scale_discriminator_forward.14} parent=5 // pred_region
        // Predicated region
        $region17: #{scale_discriminator_forward.14} parent=15 // pred_check
          %p172 = pneg %p59
        $region18: #{scale_discriminator_forward.14} parent=15 // pred_check_branch
          %174 = sbr.rel (%p172) target = $region20
        $region19: #{scale_discriminator_forward.14} parent=15 // pred_region
          %s175 = smul.u32 8, %s19
          %p176 = scmp.lt.s32.totalorder %s16, 0
          %s177 = scalar_select %p176, %s16, 0
          %p178 = scmp.lt.s32.totalorder %s17, 0
          %s179 = scalar_select %p178, %s17, 0
          %p180 = scmp.lt.s32.totalorder %s175, 39
          %s181 = scalar_select %p180, %s175, 39
          %s182 = smul.addr %s179, 40
          %s183 = sadd.s32 %s181, %s182
          %s184 = smul.addr %s177, 40
          %s185 = sadd.s32 %s183, %s184
          %s186 = smul.addr %s185, 4
          %s187 = scalar_lea.vmem %s0, %s186
          %s188 = smul.u32 8, %s19
        $region20: #{scale_discriminator_forward.14} parent=15 // pred_fallthru
          _
        // Predicated region
        $region21: #{scale_discriminator_forward.14} parent=15 // pred_check
          %p189 = pneg %p89
        $region22: #{scale_discriminator_forward.14} parent=15 // pred_check_branch
          %191 = sbr.rel (%p189) target = $region24
        $region23: #{scale_discriminator_forward.14} parent=15 // pred_region
          %s192 = sand.u32 %s79, 1
          %s193 = sand.u32 %s79, 1
          %s194 = smul.addr %s193, 1024
          %s195 = scalar_lea.vmem [#allocation3], %s194
          %s196 = smul.u32 128, %s19
          %s197 = smul.u32 2, %s18
          %s198 = smul.addr %s196, 8
          %s199 = sadd.s32 %s197, %s198
          %s200 = smul.addr %s16, 5120
          %s201 = sadd.s32 %s199, %s200
          %s202 = smul.addr %s201, 4
          %s203 = scalar_lea.vmem %s1, %s202
          // Predicated region
          $region25: #{scale_discriminator_forward.14} parent=23 // pred_check
            _
          $region26: #{scale_discriminator_forward.14} parent=23 // pred_check_branch
            %205 = sbr.rel (0) target = $region28
          $region27: #{scale_discriminator_forward.14} parent=23 // pred_region
            // Predicated region
            $region29: #{scale_discriminator_forward.14} parent=27 // pred_check
              _
            $region30: #{scale_discriminator_forward.14} parent=27 // pred_check_branch
              %207 = sbr.rel (0) target = $region32
            $region31: #{scale_discriminator_forward.14} parent=27 // pred_region
              // Predicated region
              $region44: #{scale_discriminator_forward.14} parent=31 // pred_check
                _
              $region45: #{scale_discriminator_forward.14} parent=31 // pred_check_branch
                %477 = sbr.rel (0) target = $region47
              $region46: #{scale_discriminator_forward.14} parent=31 // pred_region
                loop: start=0, step=1, limit=1
                $region48: #{scale_discriminator_forward.14} parent=46 // loop_pre_header
                  _
                $region49: #{scale_discriminator_forward.14} parent=46 // loop_header
                  %s479 = sphi 0, %s483
                  %p480 = scmp.ge.s32.totalorder %s479, 1
                  %s484 = sphi %s203, %s203
                  %s485 = sphi %s195, %s195
                $region50: #{scale_discriminator_forward.14} parent=46 // loop_header_branch
                  %482 = sbr.rel (%p480) target = $region54
                $region51: #{scale_discriminator_forward.14} parent=46 // loop_body
                  %v486 = vld [vmem:[%s484] sm:$0xff]
                  %487 = vst [vmem:[%s485] sm:$0xff] %v486
                  %v488 = vld [vmem:[%s484 + $0x20] sm:$0xff]
                  %489 = vst [vmem:[%s485 + $0x8] sm:$0xff] %v488
                  %v490 = vld [vmem:[%s484 + $0x40] sm:$0xff]
                  %491 = vst [vmem:[%s485 + $0x10] sm:$0xff] %v490
                  %v492 = vld [vmem:[%s484 + $0x60] sm:$0xff]
                  %493 = vst [vmem:[%s485 + $0x18] sm:$0xff] %v492
                  %v494 = vld [vmem:[%s484 + $0x80] sm:$0xff]
                  %495 = vst [vmem:[%s485 + $0x20] sm:$0xff] %v494
                  %v496 = vld [vmem:[%s484 + $0xa0] sm:$0xff]
                  %497 = vst [vmem:[%s485 + $0x28] sm:$0xff] %v496
                  %v498 = vld [vmem:[%s484 + $0xc0] sm:$0xff]
                  %499 = vst [vmem:[%s485 + $0x30] sm:$0xff] %v498
                  %v500 = vld [vmem:[%s484 + $0xe0] sm:$0xff]
                  %501 = vst [vmem:[%s485 + $0x38] sm:$0xff] %v500
                  %v502 = vld [vmem:[%s484 + $0x100] sm:$0xff]
                  %503 = vst [vmem:[%s485 + $0x40] sm:$0xff] %v502
                  %v504 = vld [vmem:[%s484 + $0x120] sm:$0xff]
                  %505 = vst [vmem:[%s485 + $0x48] sm:$0xff] %v504
                  %v506 = vld [vmem:[%s484 + $0x140] sm:$0xff]
                  %507 = vst [vmem:[%s485 + $0x50] sm:$0xff] %v506
                  %v508 = vld [vmem:[%s484 + $0x160] sm:$0xff]
                  %509 = vst [vmem:[%s485 + $0x58] sm:$0xff] %v508
                  %v510 = vld [vmem:[%s484 + $0x180] sm:$0xff]
                  %511 = vst [vmem:[%s485 + $0x60] sm:$0xff] %v510
                  %v512 = vld [vmem:[%s484 + $0x1a0] sm:$0xff]
                  %513 = vst [vmem:[%s485 + $0x68] sm:$0xff] %v512
                  %v514 = vld [vmem:[%s484 + $0x1c0] sm:$0xff]
                  %515 = vst [vmem:[%s485 + $0x70] sm:$0xff] %v514
                  %v516 = vld [vmem:[%s484 + $0x1e0] sm:$0xff]
                  %517 = vst [vmem:[%s485 + $0x78] sm:$0xff] %v516
                  %v518 = vld [vmem:[%s484 + $0x200] sm:$0xff]
                  %519 = vst [vmem:[%s485 + $0x80] sm:$0xff] %v518
                  %v520 = vld [vmem:[%s484 + $0x220] sm:$0xff]
                  %521 = vst [vmem:[%s485 + $0x88] sm:$0xff] %v520
                  %v522 = vld [vmem:[%s484 + $0x240] sm:$0xff]
                  %523 = vst [vmem:[%s485 + $0x90] sm:$0xff] %v522
                  %v524 = vld [vmem:[%s484 + $0x260] sm:$0xff]
                  %525 = vst [vmem:[%s485 + $0x98] sm:$0xff] %v524
                  %v526 = vld [vmem:[%s484 + $0x280] sm:$0xff]
                  %527 = vst [vmem:[%s485 + $0xa0] sm:$0xff] %v526
                  %v528 = vld [vmem:[%s484 + $0x2a0] sm:$0xff]
                  %529 = vst [vmem:[%s485 + $0xa8] sm:$0xff] %v528
                  %v530 = vld [vmem:[%s484 + $0x2c0] sm:$0xff]
                  %531 = vst [vmem:[%s485 + $0xb0] sm:$0xff] %v530
                  %v532 = vld [vmem:[%s484 + $0x2e0] sm:$0xff]
                  %533 = vst [vmem:[%s485 + $0xb8] sm:$0xff] %v532
                  %v534 = vld [vmem:[%s484 + $0x300] sm:$0xff]
                  %535 = vst [vmem:[%s485 + $0xc0] sm:$0xff] %v534
                  %v536 = vld [vmem:[%s484 + $0x320] sm:$0xff]
                  %537 = vst [vmem:[%s485 + $0xc8] sm:$0xff] %v536
                  %v538 = vld [vmem:[%s484 + $0x340] sm:$0xff]
                  %539 = vst [vmem:[%s485 + $0xd0] sm:$0xff] %v538
                  %v540 = vld [vmem:[%s484 + $0x360] sm:$0xff]
                  %541 = vst [vmem:[%s485 + $0xd8] sm:$0xff] %v540
                  %v542 = vld [vmem:[%s484 + $0x380] sm:$0xff]
                  %543 = vst [vmem:[%s485 + $0xe0] sm:$0xff] %v542
                  %v544 = vld [vmem:[%s484 + $0x3a0] sm:$0xff]
                  %545 = vst [vmem:[%s485 + $0xe8] sm:$0xff] %v544
                  %v546 = vld [vmem:[%s484 + $0x3c0] sm:$0xff]
                  %547 = vst [vmem:[%s485 + $0xf0] sm:$0xff] %v546
                  %v548 = vld [vmem:[%s484 + $0x3e0] sm:$0xff]
                  %549 = vst [vmem:[%s485 + $0xf8] sm:$0xff] %v548
                  %v550 = vld [vmem:[%s484 + $0x400] sm:$0xff]
                  %551 = vst [vmem:[%s485 + $0x100] sm:$0xff] %v550
                  %v552 = vld [vmem:[%s484 + $0x420] sm:$0xff]
                  %553 = vst [vmem:[%s485 + $0x108] sm:$0xff] %v552
                  %v554 = vld [vmem:[%s484 + $0x440] sm:$0xff]
                  %555 = vst [vmem:[%s485 + $0x110] sm:$0xff] %v554
                  %v556 = vld [vmem:[%s484 + $0x460] sm:$0xff]
                  %557 = vst [vmem:[%s485 + $0x118] sm:$0xff] %v556
                  %v558 = vld [vmem:[%s484 + $0x480] sm:$0xff]
                  %559 = vst [vmem:[%s485 + $0x120] sm:$0xff] %v558
                  %v560 = vld [vmem:[%s484 + $0x4a0] sm:$0xff]
                  %561 = vst [vmem:[%s485 + $0x128] sm:$0xff] %v560
                  %v562 = vld [vmem:[%s484 + $0x4c0] sm:$0xff]
                  %563 = vst [vmem:[%s485 + $0x130] sm:$0xff] %v562
                  %v564 = vld [vmem:[%s484 + $0x4e0] sm:$0xff]
                  %565 = vst [vmem:[%s485 + $0x138] sm:$0xff] %v564
                  %v566 = vld [vmem:[%s484 + $0x500] sm:$0xff]
                  %567 = vst [vmem:[%s485 + $0x140] sm:$0xff] %v566
                  %v568 = vld [vmem:[%s484 + $0x520] sm:$0xff]
                  %569 = vst [vmem:[%s485 + $0x148] sm:$0xff] %v568
                  %v570 = vld [vmem:[%s484 + $0x540] sm:$0xff]
                  %571 = vst [vmem:[%s485 + $0x150] sm:$0xff] %v570
                  %v572 = vld [vmem:[%s484 + $0x560] sm:$0xff]
                  %573 = vst [vmem:[%s485 + $0x158] sm:$0xff] %v572
                  %v574 = vld [vmem:[%s484 + $0x580] sm:$0xff]
                  %575 = vst [vmem:[%s485 + $0x160] sm:$0xff] %v574
                  %v576 = vld [vmem:[%s484 + $0x5a0] sm:$0xff]
                  %577 = vst [vmem:[%s485 + $0x168] sm:$0xff] %v576
                  %v578 = vld [vmem:[%s484 + $0x5c0] sm:$0xff]
                  %579 = vst [vmem:[%s485 + $0x170] sm:$0xff] %v578
                  %v580 = vld [vmem:[%s484 + $0x5e0] sm:$0xff]
                  %581 = vst [vmem:[%s485 + $0x178] sm:$0xff] %v580
                  %v582 = vld [vmem:[%s484 + $0x600] sm:$0xff]
                  %583 = vst [vmem:[%s485 + $0x180] sm:$0xff] %v582
                  %v584 = vld [vmem:[%s484 + $0x620] sm:$0xff]
                  %585 = vst [vmem:[%s485 + $0x188] sm:$0xff] %v584
                  %v586 = vld [vmem:[%s484 + $0x640] sm:$0xff]
                  %587 = vst [vmem:[%s485 + $0x190] sm:$0xff] %v586
                  %v588 = vld [vmem:[%s484 + $0x660] sm:$0xff]
                  %589 = vst [vmem:[%s485 + $0x198] sm:$0xff] %v588
                  %v590 = vld [vmem:[%s484 + $0x680] sm:$0xff]
                  %591 = vst [vmem:[%s485 + $0x1a0] sm:$0xff] %v590
                  %v592 = vld [vmem:[%s484 + $0x6a0] sm:$0xff]
                  %593 = vst [vmem:[%s485 + $0x1a8] sm:$0xff] %v592
                  %v594 = vld [vmem:[%s484 + $0x6c0] sm:$0xff]
                  %595 = vst [vmem:[%s485 + $0x1b0] sm:$0xff] %v594
                  %v596 = vld [vmem:[%s484 + $0x6e0] sm:$0xff]
                  %597 = vst [vmem:[%s485 + $0x1b8] sm:$0xff] %v596
                  %v598 = vld [vmem:[%s484 + $0x700] sm:$0xff]
                  %599 = vst [vmem:[%s485 + $0x1c0] sm:$0xff] %v598
                  %v600 = vld [vmem:[%s484 + $0x720] sm:$0xff]
                  %601 = vst [vmem:[%s485 + $0x1c8] sm:$0xff] %v600
                  %v602 = vld [vmem:[%s484 + $0x740] sm:$0xff]
                  %603 = vst [vmem:[%s485 + $0x1d0] sm:$0xff] %v602
                  %v604 = vld [vmem:[%s484 + $0x760] sm:$0xff]
                  %605 = vst [vmem:[%s485 + $0x1d8] sm:$0xff] %v604
                  %v606 = vld [vmem:[%s484 + $0x780] sm:$0xff]
                  %607 = vst [vmem:[%s485 + $0x1e0] sm:$0xff] %v606
                  %v608 = vld [vmem:[%s484 + $0x7a0] sm:$0xff]
                  %609 = vst [vmem:[%s485 + $0x1e8] sm:$0xff] %v608
                  %v610 = vld [vmem:[%s484 + $0x7c0] sm:$0xff]
                  %611 = vst [vmem:[%s485 + $0x1f0] sm:$0xff] %v610
                  %v612 = vld [vmem:[%s484 + $0x7e0] sm:$0xff]
                  %613 = vst [vmem:[%s485 + $0x1f8] sm:$0xff] %v612
                  %v614 = vld [vmem:[%s484 + $0x800] sm:$0xff]
                  %615 = vst [vmem:[%s485 + $0x200] sm:$0xff] %v614
                  %v616 = vld [vmem:[%s484 + $0x820] sm:$0xff]
                  %617 = vst [vmem:[%s485 + $0x208] sm:$0xff] %v616
                  %v618 = vld [vmem:[%s484 + $0x840] sm:$0xff]
                  %619 = vst [vmem:[%s485 + $0x210] sm:$0xff] %v618
                  %v620 = vld [vmem:[%s484 + $0x860] sm:$0xff]
                  %621 = vst [vmem:[%s485 + $0x218] sm:$0xff] %v620
                  %v622 = vld [vmem:[%s484 + $0x880] sm:$0xff]
                  %623 = vst [vmem:[%s485 + $0x220] sm:$0xff] %v622
                  %v624 = vld [vmem:[%s484 + $0x8a0] sm:$0xff]
                  %625 = vst [vmem:[%s485 + $0x228] sm:$0xff] %v624
                  %v626 = vld [vmem:[%s484 + $0x8c0] sm:$0xff]
                  %627 = vst [vmem:[%s485 + $0x230] sm:$0xff] %v626
                  %v628 = vld [vmem:[%s484 + $0x8e0] sm:$0xff]
                  %629 = vst [vmem:[%s485 + $0x238] sm:$0xff] %v628
                  %v630 = vld [vmem:[%s484 + $0x900] sm:$0xff]
                  %631 = vst [vmem:[%s485 + $0x240] sm:$0xff] %v630
                  %v632 = vld [vmem:[%s484 + $0x920] sm:$0xff]
                  %633 = vst [vmem:[%s485 + $0x248] sm:$0xff] %v632
                  %v634 = vld [vmem:[%s484 + $0x940] sm:$0xff]
                  %635 = vst [vmem:[%s485 + $0x250] sm:$0xff] %v634
                  %v636 = vld [vmem:[%s484 + $0x960] sm:$0xff]
                  %637 = vst [vmem:[%s485 + $0x258] sm:$0xff] %v636
                  %v638 = vld [vmem:[%s484 + $0x980] sm:$0xff]
                  %639 = vst [vmem:[%s485 + $0x260] sm:$0xff] %v638
                  %v640 = vld [vmem:[%s484 + $0x9a0] sm:$0xff]
                  %641 = vst [vmem:[%s485 + $0x268] sm:$0xff] %v640
                  %v642 = vld [vmem:[%s484 + $0x9c0] sm:$0xff]
                  %643 = vst [vmem:[%s485 + $0x270] sm:$0xff] %v642
                  %v644 = vld [vmem:[%s484 + $0x9e0] sm:$0xff]
                  %645 = vst [vmem:[%s485 + $0x278] sm:$0xff] %v644
                  %v646 = vld [vmem:[%s484 + $0xa00] sm:$0xff]
                  %647 = vst [vmem:[%s485 + $0x280] sm:$0xff] %v646
                  %v648 = vld [vmem:[%s484 + $0xa20] sm:$0xff]
                  %649 = vst [vmem:[%s485 + $0x288] sm:$0xff] %v648
                  %v650 = vld [vmem:[%s484 + $0xa40] sm:$0xff]
                  %651 = vst [vmem:[%s485 + $0x290] sm:$0xff] %v650
                  %v652 = vld [vmem:[%s484 + $0xa60] sm:$0xff]
                  %653 = vst [vmem:[%s485 + $0x298] sm:$0xff] %v652
                  %v654 = vld [vmem:[%s484 + $0xa80] sm:$0xff]
                  %655 = vst [vmem:[%s485 + $0x2a0] sm:$0xff] %v654
                  %v656 = vld [vmem:[%s484 + $0xaa0] sm:$0xff]
                  %657 = vst [vmem:[%s485 + $0x2a8] sm:$0xff] %v656
                  %v658 = vld [vmem:[%s484 + $0xac0] sm:$0xff]
                  %659 = vst [vmem:[%s485 + $0x2b0] sm:$0xff] %v658
                  %v660 = vld [vmem:[%s484 + $0xae0] sm:$0xff]
                  %661 = vst [vmem:[%s485 + $0x2b8] sm:$0xff] %v660
                  %v662 = vld [vmem:[%s484 + $0xb00] sm:$0xff]
                  %663 = vst [vmem:[%s485 + $0x2c0] sm:$0xff] %v662
                  %v664 = vld [vmem:[%s484 + $0xb20] sm:$0xff]
                  %665 = vst [vmem:[%s485 + $0x2c8] sm:$0xff] %v664
                  %v666 = vld [vmem:[%s484 + $0xb40] sm:$0xff]
                  %667 = vst [vmem:[%s485 + $0x2d0] sm:$0xff] %v666
                  %v668 = vld [vmem:[%s484 + $0xb60] sm:$0xff]
                  %669 = vst [vmem:[%s485 + $0x2d8] sm:$0xff] %v668
                  %v670 = vld [vmem:[%s484 + $0xb80] sm:$0xff]
                  %671 = vst [vmem:[%s485 + $0x2e0] sm:$0xff] %v670
                  %v672 = vld [vmem:[%s484 + $0xba0] sm:$0xff]
                  %673 = vst [vmem:[%s485 + $0x2e8] sm:$0xff] %v672
                  %v674 = vld [vmem:[%s484 + $0xbc0] sm:$0xff]
                  %675 = vst [vmem:[%s485 + $0x2f0] sm:$0xff] %v674
                  %v676 = vld [vmem:[%s484 + $0xbe0] sm:$0xff]
                  %677 = vst [vmem:[%s485 + $0x2f8] sm:$0xff] %v676
                  %v678 = vld [vmem:[%s484 + $0xc00] sm:$0xff]
                  %679 = vst [vmem:[%s485 + $0x300] sm:$0xff] %v678
                  %v680 = vld [vmem:[%s484 + $0xc20] sm:$0xff]
                  %681 = vst [vmem:[%s485 + $0x308] sm:$0xff] %v680
                  %v682 = vld [vmem:[%s484 + $0xc40] sm:$0xff]
                  %683 = vst [vmem:[%s485 + $0x310] sm:$0xff] %v682
                  %v684 = vld [vmem:[%s484 + $0xc60] sm:$0xff]
                  %685 = vst [vmem:[%s485 + $0x318] sm:$0xff] %v684
                  %v686 = vld [vmem:[%s484 + $0xc80] sm:$0xff]
                  %687 = vst [vmem:[%s485 + $0x320] sm:$0xff] %v686
                  %v688 = vld [vmem:[%s484 + $0xca0] sm:$0xff]
                  %689 = vst [vmem:[%s485 + $0x328] sm:$0xff] %v688
                  %v690 = vld [vmem:[%s484 + $0xcc0] sm:$0xff]
                  %691 = vst [vmem:[%s485 + $0x330] sm:$0xff] %v690
                  %v692 = vld [vmem:[%s484 + $0xce0] sm:$0xff]
                  %693 = vst [vmem:[%s485 + $0x338] sm:$0xff] %v692
                  %v694 = vld [vmem:[%s484 + $0xd00] sm:$0xff]
                  %695 = vst [vmem:[%s485 + $0x340] sm:$0xff] %v694
                  %v696 = vld [vmem:[%s484 + $0xd20] sm:$0xff]
                  %697 = vst [vmem:[%s485 + $0x348] sm:$0xff] %v696
                  %v698 = vld [vmem:[%s484 + $0xd40] sm:$0xff]
                  %699 = vst [vmem:[%s485 + $0x350] sm:$0xff] %v698
                  %v700 = vld [vmem:[%s484 + $0xd60] sm:$0xff]
                  %701 = vst [vmem:[%s485 + $0x358] sm:$0xff] %v700
                  %v702 = vld [vmem:[%s484 + $0xd80] sm:$0xff]
                  %703 = vst [vmem:[%s485 + $0x360] sm:$0xff] %v702
                  %v704 = vld [vmem:[%s484 + $0xda0] sm:$0xff]
                  %705 = vst [vmem:[%s485 + $0x368] sm:$0xff] %v704
                  %v706 = vld [vmem:[%s484 + $0xdc0] sm:$0xff]
                  %707 = vst [vmem:[%s485 + $0x370] sm:$0xff] %v706
                  %v708 = vld [vmem:[%s484 + $0xde0] sm:$0xff]
                  %709 = vst [vmem:[%s485 + $0x378] sm:$0xff] %v708
                  %v710 = vld [vmem:[%s484 + $0xe00] sm:$0xff]
                  %711 = vst [vmem:[%s485 + $0x380] sm:$0xff] %v710
                  %v712 = vld [vmem:[%s484 + $0xe20] sm:$0xff]
                  %713 = vst [vmem:[%s485 + $0x388] sm:$0xff] %v712
                  %v714 = vld [vmem:[%s484 + $0xe40] sm:$0xff]
                  %715 = vst [vmem:[%s485 + $0x390] sm:$0xff] %v714
                  %v716 = vld [vmem:[%s484 + $0xe60] sm:$0xff]
                  %717 = vst [vmem:[%s485 + $0x398] sm:$0xff] %v716
                  %v718 = vld [vmem:[%s484 + $0xe80] sm:$0xff]
                  %719 = vst [vmem:[%s485 + $0x3a0] sm:$0xff] %v718
                  %v720 = vld [vmem:[%s484 + $0xea0] sm:$0xff]
                  %721 = vst [vmem:[%s485 + $0x3a8] sm:$0xff] %v720
                  %v722 = vld [vmem:[%s484 + $0xec0] sm:$0xff]
                  %723 = vst [vmem:[%s485 + $0x3b0] sm:$0xff] %v722
                  %v724 = vld [vmem:[%s484 + $0xee0] sm:$0xff]
                  %725 = vst [vmem:[%s485 + $0x3b8] sm:$0xff] %v724
                  %v726 = vld [vmem:[%s484 + $0xf00] sm:$0xff]
                  %727 = vst [vmem:[%s485 + $0x3c0] sm:$0xff] %v726
                  %v728 = vld [vmem:[%s484 + $0xf20] sm:$0xff]
                  %729 = vst [vmem:[%s485 + $0x3c8] sm:$0xff] %v728
                  %v730 = vld [vmem:[%s484 + $0xf40] sm:$0xff]
                  %731 = vst [vmem:[%s485 + $0x3d0] sm:$0xff] %v730
                  %v732 = vld [vmem:[%s484 + $0xf60] sm:$0xff]
                  %733 = vst [vmem:[%s485 + $0x3d8] sm:$0xff] %v732
                  %v734 = vld [vmem:[%s484 + $0xf80] sm:$0xff]
                  %735 = vst [vmem:[%s485 + $0x3e0] sm:$0xff] %v734
                  %v736 = vld [vmem:[%s484 + $0xfa0] sm:$0xff]
                  %737 = vst [vmem:[%s485 + $0x3e8] sm:$0xff] %v736
                  %v738 = vld [vmem:[%s484 + $0xfc0] sm:$0xff]
                  %739 = vst [vmem:[%s485 + $0x3f0] sm:$0xff] %v738
                  %v740 = vld [vmem:[%s484 + $0xfe0] sm:$0xff]
                  %741 = vst [vmem:[%s485 + $0x3f8] sm:$0xff] %v740
                $region52: #{scale_discriminator_forward.14} parent=46 // loop_footer
                  %s483 = sadd.s32 1, %s479
                $region53: #{scale_discriminator_forward.14} parent=46 // loop_footer_branch
                  %478 = sbr.rel target = $region49
                $region54: #{scale_discriminator_forward.14} parent=46 // loop_exit
                  _
              $region47: #{scale_discriminator_forward.14} parent=31 // pred_fallthru
                _
              // Predicated region
              $region55: #{scale_discriminator_forward.14} parent=31 // pred_check
                _
              $region56: #{scale_discriminator_forward.14} parent=31 // pred_check_branch
                %743 = sbr.rel target = $region58
              $region57: #{scale_discriminator_forward.14} parent=31 // pred_region
                _
              $region58: #{scale_discriminator_forward.14} parent=31 // pred_fallthru
                _
            $region32: #{scale_discriminator_forward.14} parent=27 // pred_fallthru
              _
            // Predicated region
            $region33: #{scale_discriminator_forward.14} parent=27 // pred_check
              _
            $region34: #{scale_discriminator_forward.14} parent=27 // pred_check_branch
              %209 = sbr.rel target = $region36
            $region35: #{scale_discriminator_forward.14} parent=27 // pred_region
              %s211 = ssub.s32 256, 1
              loop: start=0, step=1, limit=1
              $region37: #{scale_discriminator_forward.14} parent=35 // loop_pre_header
                _
              $region38: #{scale_discriminator_forward.14} parent=35 // loop_header
                %s213 = sphi 0, %s217
                %p214 = scmp.ge.s32.totalorder %s213, 1
                %s218 = sphi %s203, %s203
                %s219 = sphi %s195, %s195
              $region39: #{scale_discriminator_forward.14} parent=35 // loop_header_branch
                %216 = sbr.rel (%p214) target = $region43
              $region40: #{scale_discriminator_forward.14} parent=35 // loop_body
                %v220 = vld [vmem:[%s218] sm:%s211]
                %221 = vst [vmem:[%s219] sm:%s211] %v220
                %v222 = vld [vmem:[%s218 + $0x20] sm:%s211]
                %223 = vst [vmem:[%s219 + $0x8] sm:%s211] %v222
                %v224 = vld [vmem:[%s218 + $0x40] sm:%s211]
                %225 = vst [vmem:[%s219 + $0x10] sm:%s211] %v224
                %v226 = vld [vmem:[%s218 + $0x60] sm:%s211]
                %227 = vst [vmem:[%s219 + $0x18] sm:%s211] %v226
                %v228 = vld [vmem:[%s218 + $0x80] sm:%s211]
                %229 = vst [vmem:[%s219 + $0x20] sm:%s211] %v228
                %v230 = vld [vmem:[%s218 + $0xa0] sm:%s211]
                %231 = vst [vmem:[%s219 + $0x28] sm:%s211] %v230
                %v232 = vld [vmem:[%s218 + $0xc0] sm:%s211]
                %233 = vst [vmem:[%s219 + $0x30] sm:%s211] %v232
                %v234 = vld [vmem:[%s218 + $0xe0] sm:%s211]
                %235 = vst [vmem:[%s219 + $0x38] sm:%s211] %v234
                %v236 = vld [vmem:[%s218 + $0x100] sm:%s211]
                %237 = vst [vmem:[%s219 + $0x40] sm:%s211] %v236
                %v238 = vld [vmem:[%s218 + $0x120] sm:%s211]
                %239 = vst [vmem:[%s219 + $0x48] sm:%s211] %v238
                %v240 = vld [vmem:[%s218 + $0x140] sm:%s211]
                %241 = vst [vmem:[%s219 + $0x50] sm:%s211] %v240
                %v242 = vld [vmem:[%s218 + $0x160] sm:%s211]
                %243 = vst [vmem:[%s219 + $0x58] sm:%s211] %v242
                %v244 = vld [vmem:[%s218 + $0x180] sm:%s211]
                %245 = vst [vmem:[%s219 + $0x60] sm:%s211] %v244
                %v246 = vld [vmem:[%s218 + $0x1a0] sm:%s211]
                %247 = vst [vmem:[%s219 + $0x68] sm:%s211] %v246
                %v248 = vld [vmem:[%s218 + $0x1c0] sm:%s211]
                %249 = vst [vmem:[%s219 + $0x70] sm:%s211] %v248
                %v250 = vld [vmem:[%s218 + $0x1e0] sm:%s211]
                %251 = vst [vmem:[%s219 + $0x78] sm:%s211] %v250
                %v252 = vld [vmem:[%s218 + $0x200] sm:%s211]
                %253 = vst [vmem:[%s219 + $0x80] sm:%s211] %v252
                %v254 = vld [vmem:[%s218 + $0x220] sm:%s211]
                %255 = vst [vmem:[%s219 + $0x88] sm:%s211] %v254
                %v256 = vld [vmem:[%s218 + $0x240] sm:%s211]
                %257 = vst [vmem:[%s219 + $0x90] sm:%s211] %v256
                %v258 = vld [vmem:[%s218 + $0x260] sm:%s211]
                %259 = vst [vmem:[%s219 + $0x98] sm:%s211] %v258
                %v260 = vld [vmem:[%s218 + $0x280] sm:%s211]
                %261 = vst [vmem:[%s219 + $0xa0] sm:%s211] %v260
                %v262 = vld [vmem:[%s218 + $0x2a0] sm:%s211]
                %263 = vst [vmem:[%s219 + $0xa8] sm:%s211] %v262
                %v264 = vld [vmem:[%s218 + $0x2c0] sm:%s211]
                %265 = vst [vmem:[%s219 + $0xb0] sm:%s211] %v264
                %v266 = vld [vmem:[%s218 + $0x2e0] sm:%s211]
                %267 = vst [vmem:[%s219 + $0xb8] sm:%s211] %v266
                %v268 = vld [vmem:[%s218 + $0x300] sm:%s211]
                %269 = vst [vmem:[%s219 + $0xc0] sm:%s211] %v268
                %v270 = vld [vmem:[%s218 + $0x320] sm:%s211]
                %271 = vst [vmem:[%s219 + $0xc8] sm:%s211] %v270
                %v272 = vld [vmem:[%s218 + $0x340] sm:%s211]
                %273 = vst [vmem:[%s219 + $0xd0] sm:%s211] %v272
                %v274 = vld [vmem:[%s218 + $0x360] sm:%s211]
                %275 = vst [vmem:[%s219 + $0xd8] sm:%s211] %v274
                %v276 = vld [vmem:[%s218 + $0x380] sm:%s211]
                %277 = vst [vmem:[%s219 + $0xe0] sm:%s211] %v276
                %v278 = vld [vmem:[%s218 + $0x3a0] sm:%s211]
                %279 = vst [vmem:[%s219 + $0xe8] sm:%s211] %v278
                %v280 = vld [vmem:[%s218 + $0x3c0] sm:%s211]
                %281 = vst [vmem:[%s219 + $0xf0] sm:%s211] %v280
                %v282 = vld [vmem:[%s218 + $0x3e0] sm:%s211]
                %283 = vst [vmem:[%s219 + $0xf8] sm:%s211] %v282
                %v284 = vld [vmem:[%s218 + $0x400] sm:%s211]
                %285 = vst [vmem:[%s219 + $0x100] sm:%s211] %v284
                %v286 = vld [vmem:[%s218 + $0x420] sm:%s211]
                %287 = vst [vmem:[%s219 + $0x108] sm:%s211] %v286
                %v288 = vld [vmem:[%s218 + $0x440] sm:%s211]
                %289 = vst [vmem:[%s219 + $0x110] sm:%s211] %v288
                %v290 = vld [vmem:[%s218 + $0x460] sm:%s211]
                %291 = vst [vmem:[%s219 + $0x118] sm:%s211] %v290
                %v292 = vld [vmem:[%s218 + $0x480] sm:%s211]
                %293 = vst [vmem:[%s219 + $0x120] sm:%s211] %v292
                %v294 = vld [vmem:[%s218 + $0x4a0] sm:%s211]
                %295 = vst [vmem:[%s219 + $0x128] sm:%s211] %v294
                %v296 = vld [vmem:[%s218 + $0x4c0] sm:%s211]
                %297 = vst [vmem:[%s219 + $0x130] sm:%s211] %v296
                %v298 = vld [vmem:[%s218 + $0x4e0] sm:%s211]
                %299 = vst [vmem:[%s219 + $0x138] sm:%s211] %v298
                %v300 = vld [vmem:[%s218 + $0x500] sm:%s211]
                %301 = vst [vmem:[%s219 + $0x140] sm:%s211] %v300
                %v302 = vld [vmem:[%s218 + $0x520] sm:%s211]
                %303 = vst [vmem:[%s219 + $0x148] sm:%s211] %v302
                %v304 = vld [vmem:[%s218 + $0x540] sm:%s211]
                %305 = vst [vmem:[%s219 + $0x150] sm:%s211] %v304
                %v306 = vld [vmem:[%s218 + $0x560] sm:%s211]
                %307 = vst [vmem:[%s219 + $0x158] sm:%s211] %v306
                %v308 = vld [vmem:[%s218 + $0x580] sm:%s211]
                %309 = vst [vmem:[%s219 + $0x160] sm:%s211] %v308
                %v310 = vld [vmem:[%s218 + $0x5a0] sm:%s211]
                %311 = vst [vmem:[%s219 + $0x168] sm:%s211] %v310
                %v312 = vld [vmem:[%s218 + $0x5c0] sm:%s211]
                %313 = vst [vmem:[%s219 + $0x170] sm:%s211] %v312
                %v314 = vld [vmem:[%s218 + $0x5e0] sm:%s211]
                %315 = vst [vmem:[%s219 + $0x178] sm:%s211] %v314
                %v316 = vld [vmem:[%s218 + $0x600] sm:%s211]
                %317 = vst [vmem:[%s219 + $0x180] sm:%s211] %v316
                %v318 = vld [vmem:[%s218 + $0x620] sm:%s211]
                %319 = vst [vmem:[%s219 + $0x188] sm:%s211] %v318
                %v320 = vld [vmem:[%s218 + $0x640] sm:%s211]
                %321 = vst [vmem:[%s219 + $0x190] sm:%s211] %v320
                %v322 = vld [vmem:[%s218 + $0x660] sm:%s211]
                %323 = vst [vmem:[%s219 + $0x198] sm:%s211] %v322
                %v324 = vld [vmem:[%s218 + $0x680] sm:%s211]
                %325 = vst [vmem:[%s219 + $0x1a0] sm:%s211] %v324
                %v326 = vld [vmem:[%s218 + $0x6a0] sm:%s211]
                %327 = vst [vmem:[%s219 + $0x1a8] sm:%s211] %v326
                %v328 = vld [vmem:[%s218 + $0x6c0] sm:%s211]
                %329 = vst [vmem:[%s219 + $0x1b0] sm:%s211] %v328
                %v330 = vld [vmem:[%s218 + $0x6e0] sm:%s211]
                %331 = vst [vmem:[%s219 + $0x1b8] sm:%s211] %v330
                %v332 = vld [vmem:[%s218 + $0x700] sm:%s211]
                %333 = vst [vmem:[%s219 + $0x1c0] sm:%s211] %v332
                %v334 = vld [vmem:[%s218 + $0x720] sm:%s211]
                %335 = vst [vmem:[%s219 + $0x1c8] sm:%s211] %v334
                %v336 = vld [vmem:[%s218 + $0x740] sm:%s211]
                %337 = vst [vmem:[%s219 + $0x1d0] sm:%s211] %v336
                %v338 = vld [vmem:[%s218 + $0x760] sm:%s211]
                %339 = vst [vmem:[%s219 + $0x1d8] sm:%s211] %v338
                %v340 = vld [vmem:[%s218 + $0x780] sm:%s211]
                %341 = vst [vmem:[%s219 + $0x1e0] sm:%s211] %v340
                %v342 = vld [vmem:[%s218 + $0x7a0] sm:%s211]
                %343 = vst [vmem:[%s219 + $0x1e8] sm:%s211] %v342
                %v344 = vld [vmem:[%s218 + $0x7c0] sm:%s211]
                %345 = vst [vmem:[%s219 + $0x1f0] sm:%s211] %v344
                %v346 = vld [vmem:[%s218 + $0x7e0] sm:%s211]
                %347 = vst [vmem:[%s219 + $0x1f8] sm:%s211] %v346
                %v348 = vld [vmem:[%s218 + $0x800] sm:%s211]
                %349 = vst [vmem:[%s219 + $0x200] sm:%s211] %v348
                %v350 = vld [vmem:[%s218 + $0x820] sm:%s211]
                %351 = vst [vmem:[%s219 + $0x208] sm:%s211] %v350
                %v352 = vld [vmem:[%s218 + $0x840] sm:%s211]
                %353 = vst [vmem:[%s219 + $0x210] sm:%s211] %v352
                %v354 = vld [vmem:[%s218 + $0x860] sm:%s211]
                %355 = vst [vmem:[%s219 + $0x218] sm:%s211] %v354
                %v356 = vld [vmem:[%s218 + $0x880] sm:%s211]
                %357 = vst [vmem:[%s219 + $0x220] sm:%s211] %v356
                %v358 = vld [vmem:[%s218 + $0x8a0] sm:%s211]
                %359 = vst [vmem:[%s219 + $0x228] sm:%s211] %v358
                %v360 = vld [vmem:[%s218 + $0x8c0] sm:%s211]
                %361 = vst [vmem:[%s219 + $0x230] sm:%s211] %v360
                %v362 = vld [vmem:[%s218 + $0x8e0] sm:%s211]
                %363 = vst [vmem:[%s219 + $0x238] sm:%s211] %v362
                %v364 = vld [vmem:[%s218 + $0x900] sm:%s211]
                %365 = vst [vmem:[%s219 + $0x240] sm:%s211] %v364
                %v366 = vld [vmem:[%s218 + $0x920] sm:%s211]
                %367 = vst [vmem:[%s219 + $0x248] sm:%s211] %v366
                %v368 = vld [vmem:[%s218 + $0x940] sm:%s211]
                %369 = vst [vmem:[%s219 + $0x250] sm:%s211] %v368
                %v370 = vld [vmem:[%s218 + $0x960] sm:%s211]
                %371 = vst [vmem:[%s219 + $0x258] sm:%s211] %v370
                %v372 = vld [vmem:[%s218 + $0x980] sm:%s211]
                %373 = vst [vmem:[%s219 + $0x260] sm:%s211] %v372
                %v374 = vld [vmem:[%s218 + $0x9a0] sm:%s211]
                %375 = vst [vmem:[%s219 + $0x268] sm:%s211] %v374
                %v376 = vld [vmem:[%s218 + $0x9c0] sm:%s211]
                %377 = vst [vmem:[%s219 + $0x270] sm:%s211] %v376
                %v378 = vld [vmem:[%s218 + $0x9e0] sm:%s211]
                %379 = vst [vmem:[%s219 + $0x278] sm:%s211] %v378
                %v380 = vld [vmem:[%s218 + $0xa00] sm:%s211]
                %381 = vst [vmem:[%s219 + $0x280] sm:%s211] %v380
                %v382 = vld [vmem:[%s218 + $0xa20] sm:%s211]
                %383 = vst [vmem:[%s219 + $0x288] sm:%s211] %v382
                %v384 = vld [vmem:[%s218 + $0xa40] sm:%s211]
                %385 = vst [vmem:[%s219 + $0x290] sm:%s211] %v384
                %v386 = vld [vmem:[%s218 + $0xa60] sm:%s211]
                %387 = vst [vmem:[%s219 + $0x298] sm:%s211] %v386
                %v388 = vld [vmem:[%s218 + $0xa80] sm:%s211]
                %389 = vst [vmem:[%s219 + $0x2a0] sm:%s211] %v388
                %v390 = vld [vmem:[%s218 + $0xaa0] sm:%s211]
                %391 = vst [vmem:[%s219 + $0x2a8] sm:%s211] %v390
                %v392 = vld [vmem:[%s218 + $0xac0] sm:%s211]
                %393 = vst [vmem:[%s219 + $0x2b0] sm:%s211] %v392
                %v394 = vld [vmem:[%s218 + $0xae0] sm:%s211]
                %395 = vst [vmem:[%s219 + $0x2b8] sm:%s211] %v394
                %v396 = vld [vmem:[%s218 + $0xb00] sm:%s211]
                %397 = vst [vmem:[%s219 + $0x2c0] sm:%s211] %v396
                %v398 = vld [vmem:[%s218 + $0xb20] sm:%s211]
                %399 = vst [vmem:[%s219 + $0x2c8] sm:%s211] %v398
                %v400 = vld [vmem:[%s218 + $0xb40] sm:%s211]
                %401 = vst [vmem:[%s219 + $0x2d0] sm:%s211] %v400
                %v402 = vld [vmem:[%s218 + $0xb60] sm:%s211]
                %403 = vst [vmem:[%s219 + $0x2d8] sm:%s211] %v402
                %v404 = vld [vmem:[%s218 + $0xb80] sm:%s211]
                %405 = vst [vmem:[%s219 + $0x2e0] sm:%s211] %v404
                %v406 = vld [vmem:[%s218 + $0xba0] sm:%s211]
                %407 = vst [vmem:[%s219 + $0x2e8] sm:%s211] %v406
                %v408 = vld [vmem:[%s218 + $0xbc0] sm:%s211]
                %409 = vst [vmem:[%s219 + $0x2f0] sm:%s211] %v408
                %v410 = vld [vmem:[%s218 + $0xbe0] sm:%s211]
                %411 = vst [vmem:[%s219 + $0x2f8] sm:%s211] %v410
                %v412 = vld [vmem:[%s218 + $0xc00] sm:%s211]
                %413 = vst [vmem:[%s219 + $0x300] sm:%s211] %v412
                %v414 = vld [vmem:[%s218 + $0xc20] sm:%s211]
                %415 = vst [vmem:[%s219 + $0x308] sm:%s211] %v414
                %v416 = vld [vmem:[%s218 + $0xc40] sm:%s211]
                %417 = vst [vmem:[%s219 + $0x310] sm:%s211] %v416
                %v418 = vld [vmem:[%s218 + $0xc60] sm:%s211]
                %419 = vst [vmem:[%s219 + $0x318] sm:%s211] %v418
                %v420 = vld [vmem:[%s218 + $0xc80] sm:%s211]
                %421 = vst [vmem:[%s219 + $0x320] sm:%s211] %v420
                %v422 = vld [vmem:[%s218 + $0xca0] sm:%s211]
                %423 = vst [vmem:[%s219 + $0x328] sm:%s211] %v422
                %v424 = vld [vmem:[%s218 + $0xcc0] sm:%s211]
                %425 = vst [vmem:[%s219 + $0x330] sm:%s211] %v424
                %v426 = vld [vmem:[%s218 + $0xce0] sm:%s211]
                %427 = vst [vmem:[%s219 + $0x338] sm:%s211] %v426
                %v428 = vld [vmem:[%s218 + $0xd00] sm:%s211]
                %429 = vst [vmem:[%s219 + $0x340] sm:%s211] %v428
                %v430 = vld [vmem:[%s218 + $0xd20] sm:%s211]
                %431 = vst [vmem:[%s219 + $0x348] sm:%s211] %v430
                %v432 = vld [vmem:[%s218 + $0xd40] sm:%s211]
                %433 = vst [vmem:[%s219 + $0x350] sm:%s211] %v432
                %v434 = vld [vmem:[%s218 + $0xd60] sm:%s211]
                %435 = vst [vmem:[%s219 + $0x358] sm:%s211] %v434
                %v436 = vld [vmem:[%s218 + $0xd80] sm:%s211]
                %437 = vst [vmem:[%s219 + $0x360] sm:%s211] %v436
                %v438 = vld [vmem:[%s218 + $0xda0] sm:%s211]
                %439 = vst [vmem:[%s219 + $0x368] sm:%s211] %v438
                %v440 = vld [vmem:[%s218 + $0xdc0] sm:%s211]
                %441 = vst [vmem:[%s219 + $0x370] sm:%s211] %v440
                %v442 = vld [vmem:[%s218 + $0xde0] sm:%s211]
                %443 = vst [vmem:[%s219 + $0x378] sm:%s211] %v442
                %v444 = vld [vmem:[%s218 + $0xe00] sm:%s211]
                %445 = vst [vmem:[%s219 + $0x380] sm:%s211] %v444
                %v446 = vld [vmem:[%s218 + $0xe20] sm:%s211]
                %447 = vst [vmem:[%s219 + $0x388] sm:%s211] %v446
                %v448 = vld [vmem:[%s218 + $0xe40] sm:%s211]
                %449 = vst [vmem:[%s219 + $0x390] sm:%s211] %v448
                %v450 = vld [vmem:[%s218 + $0xe60] sm:%s211]
                %451 = vst [vmem:[%s219 + $0x398] sm:%s211] %v450
                %v452 = vld [vmem:[%s218 + $0xe80] sm:%s211]
                %453 = vst [vmem:[%s219 + $0x3a0] sm:%s211] %v452
                %v454 = vld [vmem:[%s218 + $0xea0] sm:%s211]
                %455 = vst [vmem:[%s219 + $0x3a8] sm:%s211] %v454
                %v456 = vld [vmem:[%s218 + $0xec0] sm:%s211]
                %457 = vst [vmem:[%s219 + $0x3b0] sm:%s211] %v456
                %v458 = vld [vmem:[%s218 + $0xee0] sm:%s211]
                %459 = vst [vmem:[%s219 + $0x3b8] sm:%s211] %v458
                %v460 = vld [vmem:[%s218 + $0xf00] sm:%s211]
                %461 = vst [vmem:[%s219 + $0x3c0] sm:%s211] %v460
                %v462 = vld [vmem:[%s218 + $0xf20] sm:%s211]
                %463 = vst [vmem:[%s219 + $0x3c8] sm:%s211] %v462
                %v464 = vld [vmem:[%s218 + $0xf40] sm:%s211]
                %465 = vst [vmem:[%s219 + $0x3d0] sm:%s211] %v464
                %v466 = vld [vmem:[%s218 + $0xf60] sm:%s211]
                %467 = vst [vmem:[%s219 + $0x3d8] sm:%s211] %v466
                %v468 = vld [vmem:[%s218 + $0xf80] sm:%s211]
                %469 = vst [vmem:[%s219 + $0x3e0] sm:%s211] %v468
                %v470 = vld [vmem:[%s218 + $0xfa0] sm:%s211]
                %471 = vst [vmem:[%s219 + $0x3e8] sm:%s211] %v470
                %v472 = vld [vmem:[%s218 + $0xfc0] sm:%s211]
                %473 = vst [vmem:[%s219 + $0x3f0] sm:%s211] %v472
                %v474 = vld [vmem:[%s218 + $0xfe0] sm:%s211]
                %475 = vst [vmem:[%s219 + $0x3f8] sm:%s211] %v474
              $region41: #{scale_discriminator_forward.14} parent=35 // loop_footer
                %s217 = sadd.s32 1, %s213
              $region42: #{scale_discriminator_forward.14} parent=35 // loop_footer_branch
                %212 = sbr.rel target = $region38
              $region43: #{scale_discriminator_forward.14} parent=35 // loop_exit
                _
            $region36: #{scale_discriminator_forward.14} parent=27 // pred_fallthru
              _
          $region28: #{scale_discriminator_forward.14} parent=23 // pred_fallthru
            _
          %744 = vnop
        $region24: #{scale_discriminator_forward.14} parent=15 // pred_fallthru
          _
        // Predicated region
        $region59: #{scale_discriminator_forward.14} parent=15 // pred_check
          %p745 = pneg %p117
        $region60: #{scale_discriminator_forward.14} parent=15 // pred_check_branch
          %747 = sbr.rel (%p745) target = $region62
        $region61: #{scale_discriminator_forward.14} parent=15 // pred_region
          %s748 = smul.u32 2, %s18
          %p749 = scmp.lt.s32.totalorder %s16, 0
          %s750 = scalar_select %p749, %s16, 0
          %p751 = scmp.lt.s32.totalorder %s748, 7
          %s752 = scalar_select %p751, %s748, 7
          %s753 = smul.addr %s750, 8
          %s754 = sadd.s32 %s752, %s753
          %s755 = scalar_lea.vmem %s2, %s754
          %s756 = smul.u32 2, %s18
        $region62: #{scale_discriminator_forward.14} parent=15 // pred_fallthru
          _
      $region16: #{scale_discriminator_forward.14} parent=5 // pred_fallthru
        _
      %p757 = scmp.le.s32.totalorder 1, %s9
      %p758 = scmp.lt.s32.totalorder %s9, 21
      %p759 = pnand %p757, %p758
      %p760 = pneg %p759
      // Predicated region
      $region63: #{scale_discriminator_forward.14} parent=5 // pred_check
        _
      $region64: #{scale_discriminator_forward.14} parent=5 // pred_check_branch
        %762 = sbr.rel (%p759) target = $region66
      $region65: #{scale_discriminator_forward.14} parent=5 // pred_region
        %s763 = ssub.s32 %s9, 1
        %s764 = sand.u32 %s82, 1
        %s765 = sand.u32 %s82, 1
        %s766 = smul.addr %s765, 1024
        %s767 = scalar_lea.vmem [#allocation3], %s766
        // Predicated region
        $region67: #{scale_discriminator_forward.14} parent=65 // pred_check
          %p768 = pneg %p95
        $region68: #{scale_discriminator_forward.14} parent=65 // pred_check_branch
          %770 = sbr.rel (%p768) target = $region70
        $region69: #{scale_discriminator_forward.14} parent=65 // pred_region
          _
        $region70: #{scale_discriminator_forward.14} parent=65 // pred_fallthru
          _
        %s771 = smul.u32 8, %s23
        %p772 = scmp.lt.s32.totalorder %s20, 0
        %s773 = scalar_select %p772, %s20, 0
        %p774 = scmp.lt.s32.totalorder %s21, 0
        %s775 = scalar_select %p774, %s21, 0
        %p776 = scmp.lt.s32.totalorder %s771, 39
        %s777 = scalar_select %p776, %s771, 39
        %s778 = smul.addr %s775, 40
        %s779 = sadd.s32 %s777, %s778
        %s780 = smul.addr %s773, 40
        %s781 = sadd.s32 %s779, %s780
        %s782 = smul.addr %s781, 4
        %s783 = scalar_lea.vmem %s0, %s782
        %p784 = pneg %p65
        %p785 = pneg %p62
        %s786 = sand.u32 %s82, 1
        %s787 = sand.u32 %s82, 1
        %s788 = smul.addr %s787, 1024
        %s789 = scalar_lea.vmem [#allocation3], %s788
        %p790 = pneg %p95
        %p791 = pneg %p92
        %s792 = smul.u32 2, %s22
        %p793 = scmp.lt.s32.totalorder %s20, 0
        %s794 = scalar_select %p793, %s20, 0
        %p795 = scmp.lt.s32.totalorder %s792, 7
        %s796 = scalar_select %p795, %s792, 7
        %s797 = smul.addr %s794, 8
        %s798 = sadd.s32 %s796, %s797
        %s799 = scalar_lea.vmem %s2, %s798
        %p800 = pneg %p123
        %p801 = pneg %p120
        %p802 = pneg %p153
        %p803 = pneg %p150
        %s804 = smul.u32 2, %s22
        %p805 = scmp.lt.s32.totalorder %s20, 0
        %s806 = scalar_select %p805, %s20, 0
        %p807 = scmp.lt.s32.totalorder %s21, 0
        %s808 = scalar_select %p807, %s21, 0
        %p809 = scmp.lt.s32.totalorder %s804, 7
        %s810 = scalar_select %p809, %s804, 7
        %s811 = smul.addr %s808, 8
        %s812 = sadd.s32 %s810, %s811
        %s813 = smul.addr %s806, 8
        %s814 = sadd.s32 %s812, %s813
        %s815 = smul.addr %s814, 8
        %s816 = scalar_lea.vmem %s3, %s815
        %s817 = smul.u32 8, %s23
        %p818 = scmp.lt.s32.totalorder %s20, 0
        %s819 = scalar_select %p818, %s20, 0
        %p820 = scmp.lt.s32.totalorder %s21, 0
        %s821 = scalar_select %p820, %s21, 0
        %p822 = scmp.lt.s32.totalorder %s817, 39
        %s823 = scalar_select %p822, %s817, 39
        %s824 = smul.addr %s821, 40
        %s825 = sadd.s32 %s823, %s824
        %s826 = smul.addr %s819, 40
        %s827 = sadd.s32 %s825, %s826
        %s828 = smul.addr %s827, 4
        %s829 = scalar_lea.vmem %s0, %s828
        %s830 = smul.u32 8, %s23
        %s831 = smul.u32 128, %s23
        %s832 = smul.u32 2, %s22
        %s833 = smul.u32 2, %s22
        %p834 = scmp.lt.s32.totalorder %s20, 0
        %s835 = scalar_select %p834, %s20, 0
        %p836 = scmp.lt.s32.totalorder %s833, 7
        %s837 = scalar_select %p836, %s833, 7
        %s838 = smul.addr %s835, 8
        %s839 = sadd.s32 %s837, %s838
        %s840 = scalar_lea.vmem %s2, %s839
        %s841 = smul.u32 2, %s22
        %s842 = smul.u32 2, %s22
        %p843 = scmp.lt.s32.totalorder %s20, 0
        %s844 = scalar_select %p843, %s20, 0
        %p845 = scmp.lt.s32.totalorder %s21, 0
        %s846 = scalar_select %p845, %s21, 0
        %p847 = scmp.lt.s32.totalorder %s842, 7
        %s848 = scalar_select %p847, %s842, 7
        %s849 = smul.addr %s846, 8
        %s850 = sadd.s32 %s848, %s849
        %s851 = smul.addr %s844, 8
        %s852 = sadd.s32 %s850, %s851
        %s853 = smul.addr %s852, 8
        %s854 = scalar_lea.vmem %s3, %s853
        %s855 = smul.u32 2, %s22
        %p856 = scmp.eq.s32.totalorder %s23, 0
        // Predicated region
        $region71: #{scale_discriminator_forward.14} parent=65 // pred_check
          %p857 = pneg %p856
        $region72: #{scale_discriminator_forward.14} parent=65 // pred_check_branch
          %859 = sbr.rel (%p857) target = $region74
        $region73: #{scale_discriminator_forward.14} parent=65 // pred_region
          %860 = vst [vmem:[#allocation2] sm:$0xff] 0.0
          %861 = vst [vmem:[#allocation2 + $0x8] sm:$0xff] 0.0
        $region74: #{scale_discriminator_forward.14} parent=65 // pred_fallthru
          _
        %v862 = vld [vmem:[#allocation2] sm:$0xff]
        %v863 = vld [vmem:[#allocation2 + $0x8] sm:$0xff]
        %v864 = vld [vmem:[%s829] sm:$0xff]
        %v865 = vld [vmem:[%s829 + $0x8] sm:$0xff]
        %v866 = vld [vmem:[%s829 + $0x10] sm:$0xff]
        %v867 = vld [vmem:[%s829 + $0x18] sm:$0xff]
        %v868 = vld [vmem:[%s767] sm:$0xff]
        %v869 = vld [vmem:[%s767 + $0x8] sm:$0xff]
        %v870 = vld [vmem:[%s767 + $0x10] sm:$0xff]
        %v871 = vld [vmem:[%s767 + $0x18] sm:$0xff]
        %v872 = vld [vmem:[%s767 + $0x20] sm:$0xff]
        %v873 = vld [vmem:[%s767 + $0x28] sm:$0xff]
        %v874 = vld [vmem:[%s767 + $0x30] sm:$0xff]
        %v875 = vld [vmem:[%s767 + $0x38] sm:$0xff]
        %v876 = vld [vmem:[%s767 + $0x40] sm:$0xff]
        %v877 = vld [vmem:[%s767 + $0x48] sm:$0xff]
        %v878 = vld [vmem:[%s767 + $0x50] sm:$0xff]
        %v879 = vld [vmem:[%s767 + $0x58] sm:$0xff]
        %v880 = vld [vmem:[%s767 + $0x60] sm:$0xff]
        %v881 = vld [vmem:[%s767 + $0x68] sm:$0xff]
        %v882 = vld [vmem:[%s767 + $0x70] sm:$0xff]
        %v883 = vld [vmem:[%s767 + $0x78] sm:$0xff]
        %v884 = vld [vmem:[%s767 + $0x80] sm:$0xff]
        %v885 = vld [vmem:[%s767 + $0x88] sm:$0xff]
        %v886 = vld [vmem:[%s767 + $0x90] sm:$0xff]
        %v887 = vld [vmem:[%s767 + $0x98] sm:$0xff]
        %v888 = vld [vmem:[%s767 + $0xa0] sm:$0xff]
        %v889 = vld [vmem:[%s767 + $0xa8] sm:$0xff]
        %v890 = vld [vmem:[%s767 + $0xb0] sm:$0xff]
        %v891 = vld [vmem:[%s767 + $0xb8] sm:$0xff]
        %v892 = vld [vmem:[%s767 + $0xc0] sm:$0xff]
        %v893 = vld [vmem:[%s767 + $0xc8] sm:$0xff]
        %v894 = vld [vmem:[%s767 + $0xd0] sm:$0xff]
        %v895 = vld [vmem:[%s767 + $0xd8] sm:$0xff]
        %v896 = vld [vmem:[%s767 + $0xe0] sm:$0xff]
        %v897 = vld [vmem:[%s767 + $0xe8] sm:$0xff]
        %v898 = vld [vmem:[%s767 + $0xf0] sm:$0xff]
        %v899 = vld [vmem:[%s767 + $0xf8] sm:$0xff]
        %v900 = vld [vmem:[%s767 + $0x100] sm:$0xff]
        %v901 = vld [vmem:[%s767 + $0x108] sm:$0xff]
        %v902 = vld [vmem:[%s767 + $0x110] sm:$0xff]
        %v903 = vld [vmem:[%s767 + $0x118] sm:$0xff]
        %v904 = vld [vmem:[%s767 + $0x120] sm:$0xff]
        %v905 = vld [vmem:[%s767 + $0x128] sm:$0xff]
        %v906 = vld [vmem:[%s767 + $0x130] sm:$0xff]
        %v907 = vld [vmem:[%s767 + $0x138] sm:$0xff]
        %v908 = vld [vmem:[%s767 + $0x140] sm:$0xff]
        %v909 = vld [vmem:[%s767 + $0x148] sm:$0xff]
        %v910 = vld [vmem:[%s767 + $0x150] sm:$0xff]
        %v911 = vld [vmem:[%s767 + $0x158] sm:$0xff]
        %v912 = vld [vmem:[%s767 + $0x160] sm:$0xff]
        %v913 = vld [vmem:[%s767 + $0x168] sm:$0xff]
        %v914 = vld [vmem:[%s767 + $0x170] sm:$0xff]
        %v915 = vld [vmem:[%s767 + $0x178] sm:$0xff]
        %v916 = vld [vmem:[%s767 + $0x180] sm:$0xff]
        %v917 = vld [vmem:[%s767 + $0x188] sm:$0xff]
        %v918 = vld [vmem:[%s767 + $0x190] sm:$0xff]
        %v919 = vld [vmem:[%s767 + $0x198] sm:$0xff]
        %v920 = vld [vmem:[%s767 + $0x1a0] sm:$0xff]
        %v921 = vld [vmem:[%s767 + $0x1a8] sm:$0xff]
        %v922 = vld [vmem:[%s767 + $0x1b0] sm:$0xff]
        %v923 = vld [vmem:[%s767 + $0x1b8] sm:$0xff]
        %v924 = vld [vmem:[%s767 + $0x1c0] sm:$0xff]
        %v925 = vld [vmem:[%s767 + $0x1c8] sm:$0xff]
        %v926 = vld [vmem:[%s767 + $0x1d0] sm:$0xff]
        %v927 = vld [vmem:[%s767 + $0x1d8] sm:$0xff]
        %v928 = vld [vmem:[%s767 + $0x1e0] sm:$0xff]
        %v929 = vld [vmem:[%s767 + $0x1e8] sm:$0xff]
        %v930 = vld [vmem:[%s767 + $0x1f0] sm:$0xff]
        %v931 = vld [vmem:[%s767 + $0x1f8] sm:$0xff]
        %v932 = vld [vmem:[%s767 + $0x200] sm:$0xff]
        %v933 = vld [vmem:[%s767 + $0x208] sm:$0xff]
        %v934 = vld [vmem:[%s767 + $0x210] sm:$0xff]
        %v935 = vld [vmem:[%s767 + $0x218] sm:$0xff]
        %v936 = vld [vmem:[%s767 + $0x220] sm:$0xff]
        %v937 = vld [vmem:[%s767 + $0x228] sm:$0xff]
        %v938 = vld [vmem:[%s767 + $0x230] sm:$0xff]
        %v939 = vld [vmem:[%s767 + $0x238] sm:$0xff]
        %v940 = vld [vmem:[%s767 + $0x240] sm:$0xff]
        %v941 = vld [vmem:[%s767 + $0x248] sm:$0xff]
        %v942 = vld [vmem:[%s767 + $0x250] sm:$0xff]
        %v943 = vld [vmem:[%s767 + $0x258] sm:$0xff]
        %v944 = vld [vmem:[%s767 + $0x260] sm:$0xff]
        %v945 = vld [vmem:[%s767 + $0x268] sm:$0xff]
        %v946 = vld [vmem:[%s767 + $0x270] sm:$0xff]
        %v947 = vld [vmem:[%s767 + $0x278] sm:$0xff]
        %v948 = vld [vmem:[%s767 + $0x280] sm:$0xff]
        %v949 = vld [vmem:[%s767 + $0x288] sm:$0xff]
        %v950 = vld [vmem:[%s767 + $0x290] sm:$0xff]
        %v951 = vld [vmem:[%s767 + $0x298] sm:$0xff]
        %v952 = vld [vmem:[%s767 + $0x2a0] sm:$0xff]
        %v953 = vld [vmem:[%s767 + $0x2a8] sm:$0xff]
        %v954 = vld [vmem:[%s767 + $0x2b0] sm:$0xff]
        %v955 = vld [vmem:[%s767 + $0x2b8] sm:$0xff]
        %v956 = vld [vmem:[%s767 + $0x2c0] sm:$0xff]
        %v957 = vld [vmem:[%s767 + $0x2c8] sm:$0xff]
        %v958 = vld [vmem:[%s767 + $0x2d0] sm:$0xff]
        %v959 = vld [vmem:[%s767 + $0x2d8] sm:$0xff]
        %v960 = vld [vmem:[%s767 + $0x2e0] sm:$0xff]
        %v961 = vld [vmem:[%s767 + $0x2e8] sm:$0xff]
        %v962 = vld [vmem:[%s767 + $0x2f0] sm:$0xff]
        %v963 = vld [vmem:[%s767 + $0x2f8] sm:$0xff]
        %v964 = vld [vmem:[%s767 + $0x300] sm:$0xff]
        %v965 = vld [vmem:[%s767 + $0x308] sm:$0xff]
        %v966 = vld [vmem:[%s767 + $0x310] sm:$0xff]
        %v967 = vld [vmem:[%s767 + $0x318] sm:$0xff]
        %v968 = vld [vmem:[%s767 + $0x320] sm:$0xff]
        %v969 = vld [vmem:[%s767 + $0x328] sm:$0xff]
        %v970 = vld [vmem:[%s767 + $0x330] sm:$0xff]
        %v971 = vld [vmem:[%s767 + $0x338] sm:$0xff]
        %v972 = vld [vmem:[%s767 + $0x340] sm:$0xff]
        %v973 = vld [vmem:[%s767 + $0x348] sm:$0xff]
        %v974 = vld [vmem:[%s767 + $0x350] sm:$0xff]
        %v975 = vld [vmem:[%s767 + $0x358] sm:$0xff]
        %v976 = vld [vmem:[%s767 + $0x360] sm:$0xff]
        %v977 = vld [vmem:[%s767 + $0x368] sm:$0xff]
        %v978 = vld [vmem:[%s767 + $0x370] sm:$0xff]
        %v979 = vld [vmem:[%s767 + $0x378] sm:$0xff]
        %v980 = vld [vmem:[%s767 + $0x380] sm:$0xff]
        %v981 = vld [vmem:[%s767 + $0x388] sm:$0xff]
        %v982 = vld [vmem:[%s767 + $0x390] sm:$0xff]
        %v983 = vld [vmem:[%s767 + $0x398] sm:$0xff]
        %v984 = vld [vmem:[%s767 + $0x3a0] sm:$0xff]
        %v985 = vld [vmem:[%s767 + $0x3a8] sm:$0xff]
        %v986 = vld [vmem:[%s767 + $0x3b0] sm:$0xff]
        %v987 = vld [vmem:[%s767 + $0x3b8] sm:$0xff]
        %v988 = vld [vmem:[%s767 + $0x3c0] sm:$0xff]
        %v989 = vld [vmem:[%s767 + $0x3c8] sm:$0xff]
        %v990 = vld [vmem:[%s767 + $0x3d0] sm:$0xff]
        %v991 = vld [vmem:[%s767 + $0x3d8] sm:$0xff]
        %v992 = vld [vmem:[%s767 + $0x3e0] sm:$0xff]
        %v993 = vld [vmem:[%s767 + $0x3e8] sm:$0xff]
        %v994 = vld [vmem:[%s767 + $0x3f0] sm:$0xff]
        %v995 = vld [vmem:[%s767 + $0x3f8] sm:$0xff]
        %v1000 = vunpack.c.l.b16 %v864
        %v1001 = vunpack.c.h.b16 %v864
        %v1002 = vunpack.c.l.b16 %v865
        %v1003 = vunpack.c.h.b16 %v865
        %v1004 = vunpack.c.l.b16 %v866
        %v1005 = vunpack.c.h.b16 %v866
        %v1006 = vunpack.c.l.b16 %v867
        %v1007 = vunpack.c.h.b16 %v867
        %v1008 = vpack.c.b16 %v1000, %v1000
        %v1009 = vpack.c.b16 %v1001, %v1001
        %v1010 = vpack.c.b16 %v1002, %v1002
        %v1011 = vpack.c.b16 %v1003, %v1003
        %v1012 = vpack.c.b16 %v1004, %v1004
        %v1013 = vpack.c.b16 %v1005, %v1005
        %v1014 = vpack.c.b16 %v1006, %v1006
        %v1015 = vpack.c.b16 %v1007, %v1007
        %v1152 = vunpack.c.l.b16 %v868
        %v1153 = vunpack.c.h.b16 %v868
        %v1154 = vunpack.c.l.b16 %v869
        %v1155 = vunpack.c.h.b16 %v869
        %v1156 = vunpack.c.l.b16 %v870
        %v1157 = vunpack.c.h.b16 %v870
        %v1158 = vunpack.c.l.b16 %v871
        %v1159 = vunpack.c.h.b16 %v871
        %v1160 = vunpack.c.l.b16 %v872
        %v1161 = vunpack.c.h.b16 %v872
        %v1162 = vunpack.c.l.b16 %v873
        %v1163 = vunpack.c.h.b16 %v873
        %v1164 = vunpack.c.l.b16 %v874
        %v1165 = vunpack.c.h.b16 %v874
        %v1166 = vunpack.c.l.b16 %v875
        %v1167 = vunpack.c.h.b16 %v875
        %v1168 = vunpack.c.l.b16 %v876
        %v1169 = vunpack.c.h.b16 %v876
        %v1170 = vunpack.c.l.b16 %v877
        %v1171 = vunpack.c.h.b16 %v877
        %v1172 = vunpack.c.l.b16 %v878
        %v1173 = vunpack.c.h.b16 %v878
        %v1174 = vunpack.c.l.b16 %v879
        %v1175 = vunpack.c.h.b16 %v879
        %v1176 = vunpack.c.l.b16 %v880
        %v1177 = vunpack.c.h.b16 %v880
        %v1178 = vunpack.c.l.b16 %v881
        %v1179 = vunpack.c.h.b16 %v881
        %v1180 = vunpack.c.l.b16 %v882
        %v1181 = vunpack.c.h.b16 %v882
        %v1182 = vunpack.c.l.b16 %v883
        %v1183 = vunpack.c.h.b16 %v883
        %v1184 = vunpack.c.l.b16 %v884
        %v1185 = vunpack.c.h.b16 %v884
        %v1186 = vunpack.c.l.b16 %v885
        %v1187 = vunpack.c.h.b16 %v885
        %v1188 = vunpack.c.l.b16 %v886
        %v1189 = vunpack.c.h.b16 %v886
        %v1190 = vunpack.c.l.b16 %v887
        %v1191 = vunpack.c.h.b16 %v887
        %v1192 = vunpack.c.l.b16 %v888
        %v1193 = vunpack.c.h.b16 %v888
        %v1194 = vunpack.c.l.b16 %v889
        %v1195 = vunpack.c.h.b16 %v889
        %v1196 = vunpack.c.l.b16 %v890
        %v1197 = vunpack.c.h.b16 %v890
        %v1198 = vunpack.c.l.b16 %v891
        %v1199 = vunpack.c.h.b16 %v891
        %v1200 = vunpack.c.l.b16 %v892
        %v1201 = vunpack.c.h.b16 %v892
        %v1202 = vunpack.c.l.b16 %v893
        %v1203 = vunpack.c.h.b16 %v893
        %v1204 = vunpack.c.l.b16 %v894
        %v1205 = vunpack.c.h.b16 %v894
        %v1206 = vunpack.c.l.b16 %v895
        %v1207 = vunpack.c.h.b16 %v895
        %v1208 = vunpack.c.l.b16 %v896
        %v1209 = vunpack.c.h.b16 %v896
        %v1210 = vunpack.c.l.b16 %v897
        %v1211 = vunpack.c.h.b16 %v897
        %v1212 = vunpack.c.l.b16 %v898
        %v1213 = vunpack.c.h.b16 %v898
        %v1214 = vunpack.c.l.b16 %v899
        %v1215 = vunpack.c.h.b16 %v899
        %v1216 = vunpack.c.l.b16 %v900
        %v1217 = vunpack.c.h.b16 %v900
        %v1218 = vunpack.c.l.b16 %v901
        %v1219 = vunpack.c.h.b16 %v901
        %v1220 = vunpack.c.l.b16 %v902
        %v1221 = vunpack.c.h.b16 %v902
        %v1222 = vunpack.c.l.b16 %v903
        %v1223 = vunpack.c.h.b16 %v903
        %v1224 = vunpack.c.l.b16 %v904
        %v1225 = vunpack.c.h.b16 %v904
        %v1226 = vunpack.c.l.b16 %v905
        %v1227 = vunpack.c.h.b16 %v905
        %v1228 = vunpack.c.l.b16 %v906
        %v1229 = vunpack.c.h.b16 %v906
        %v1230 = vunpack.c.l.b16 %v907
        %v1231 = vunpack.c.h.b16 %v907
        %v1232 = vunpack.c.l.b16 %v908
        %v1233 = vunpack.c.h.b16 %v908
        %v1234 = vunpack.c.l.b16 %v909
        %v1235 = vunpack.c.h.b16 %v909
        %v1236 = vunpack.c.l.b16 %v910
        %v1237 = vunpack.c.h.b16 %v910
        %v1238 = vunpack.c.l.b16 %v911
        %v1239 = vunpack.c.h.b16 %v911
        %v1240 = vunpack.c.l.b16 %v912
        %v1241 = vunpack.c.h.b16 %v912
        %v1242 = vunpack.c.l.b16 %v913
        %v1243 = vunpack.c.h.b16 %v913
        %v1244 = vunpack.c.l.b16 %v914
        %v1245 = vunpack.c.h.b16 %v914
        %v1246 = vunpack.c.l.b16 %v915
        %v1247 = vunpack.c.h.b16 %v915
        %v1248 = vunpack.c.l.b16 %v916
        %v1249 = vunpack.c.h.b16 %v916
        %v1250 = vunpack.c.l.b16 %v917
        %v1251 = vunpack.c.h.b16 %v917
        %v1252 = vunpack.c.l.b16 %v918
        %v1253 = vunpack.c.h.b16 %v918
        %v1254 = vunpack.c.l.b16 %v919
        %v1255 = vunpack.c.h.b16 %v919
        %v1256 = vunpack.c.l.b16 %v920
        %v1257 = vunpack.c.h.b16 %v920
        %v1258 = vunpack.c.l.b16 %v921
        %v1259 = vunpack.c.h.b16 %v921
        %v1260 = vunpack.c.l.b16 %v922
        %v1261 = vunpack.c.h.b16 %v922
        %v1262 = vunpack.c.l.b16 %v923
        %v1263 = vunpack.c.h.b16 %v923
        %v1264 = vunpack.c.l.b16 %v924
        %v1265 = vunpack.c.h.b16 %v924
        %v1266 = vunpack.c.l.b16 %v925
        %v1267 = vunpack.c.h.b16 %v925
        %v1268 = vunpack.c.l.b16 %v926
        %v1269 = vunpack.c.h.b16 %v926
        %v1270 = vunpack.c.l.b16 %v927
        %v1271 = vunpack.c.h.b16 %v927
        %v1272 = vunpack.c.l.b16 %v928
        %v1273 = vunpack.c.h.b16 %v928
        %v1274 = vunpack.c.l.b16 %v929
        %v1275 = vunpack.c.h.b16 %v929
        %v1276 = vunpack.c.l.b16 %v930
        %v1277 = vunpack.c.h.b16 %v930
        %v1278 = vunpack.c.l.b16 %v931
        %v1279 = vunpack.c.h.b16 %v931
        %v1280 = vunpack.c.l.b16 %v932
        %v1281 = vunpack.c.h.b16 %v932
        %v1282 = vunpack.c.l.b16 %v933
        %v1283 = vunpack.c.h.b16 %v933
        %v1284 = vunpack.c.l.b16 %v934
        %v1285 = vunpack.c.h.b16 %v934
        %v1286 = vunpack.c.l.b16 %v935
        %v1287 = vunpack.c.h.b16 %v935
        %v1288 = vunpack.c.l.b16 %v936
        %v1289 = vunpack.c.h.b16 %v936
        %v1290 = vunpack.c.l.b16 %v937
        %v1291 = vunpack.c.h.b16 %v937
        %v1292 = vunpack.c.l.b16 %v938
        %v1293 = vunpack.c.h.b16 %v938
        %v1294 = vunpack.c.l.b16 %v939
        %v1295 = vunpack.c.h.b16 %v939
        %v1296 = vunpack.c.l.b16 %v940
        %v1297 = vunpack.c.h.b16 %v940
        %v1298 = vunpack.c.l.b16 %v941
        %v1299 = vunpack.c.h.b16 %v941
        %v1300 = vunpack.c.l.b16 %v942
        %v1301 = vunpack.c.h.b16 %v942
        %v1302 = vunpack.c.l.b16 %v943
        %v1303 = vunpack.c.h.b16 %v943
        %v1304 = vunpack.c.l.b16 %v944
        %v1305 = vunpack.c.h.b16 %v944
        %v1306 = vunpack.c.l.b16 %v945
        %v1307 = vunpack.c.h.b16 %v945
        %v1308 = vunpack.c.l.b16 %v946
        %v1309 = vunpack.c.h.b16 %v946
        %v1310 = vunpack.c.l.b16 %v947
        %v1311 = vunpack.c.h.b16 %v947
        %v1312 = vunpack.c.l.b16 %v948
        %v1313 = vunpack.c.h.b16 %v948
        %v1314 = vunpack.c.l.b16 %v949
        %v1315 = vunpack.c.h.b16 %v949
        %v1316 = vunpack.c.l.b16 %v950
        %v1317 = vunpack.c.h.b16 %v950
        %v1318 = vunpack.c.l.b16 %v951
        %v1319 = vunpack.c.h.b16 %v951
        %v1320 = vunpack.c.l.b16 %v952
        %v1321 = vunpack.c.h.b16 %v952
        %v1322 = vunpack.c.l.b16 %v953
        %v1323 = vunpack.c.h.b16 %v953
        %v1324 = vunpack.c.l.b16 %v954
        %v1325 = vunpack.c.h.b16 %v954
        %v1326 = vunpack.c.l.b16 %v955
        %v1327 = vunpack.c.h.b16 %v955
        %v1328 = vunpack.c.l.b16 %v956
        %v1329 = vunpack.c.h.b16 %v956
        %v1330 = vunpack.c.l.b16 %v957
        %v1331 = vunpack.c.h.b16 %v957
        %v1332 = vunpack.c.l.b16 %v958
        %v1333 = vunpack.c.h.b16 %v958
        %v1334 = vunpack.c.l.b16 %v959
        %v1335 = vunpack.c.h.b16 %v959
        %v1336 = vunpack.c.l.b16 %v960
        %v1337 = vunpack.c.h.b16 %v960
        %v1338 = vunpack.c.l.b16 %v961
        %v1339 = vunpack.c.h.b16 %v961
        %v1340 = vunpack.c.l.b16 %v962
        %v1341 = vunpack.c.h.b16 %v962
        %v1342 = vunpack.c.l.b16 %v963
        %v1343 = vunpack.c.h.b16 %v963
        %v1344 = vunpack.c.l.b16 %v964
        %v1345 = vunpack.c.h.b16 %v964
        %v1346 = vunpack.c.l.b16 %v965
        %v1347 = vunpack.c.h.b16 %v965
        %v1348 = vunpack.c.l.b16 %v966
        %v1349 = vunpack.c.h.b16 %v966
        %v1350 = vunpack.c.l.b16 %v967
        %v1351 = vunpack.c.h.b16 %v967
        %v1352 = vunpack.c.l.b16 %v968
        %v1353 = vunpack.c.h.b16 %v968
        %v1354 = vunpack.c.l.b16 %v969
        %v1355 = vunpack.c.h.b16 %v969
        %v1356 = vunpack.c.l.b16 %v970
        %v1357 = vunpack.c.h.b16 %v970
        %v1358 = vunpack.c.l.b16 %v971
        %v1359 = vunpack.c.h.b16 %v971
        %v1360 = vunpack.c.l.b16 %v972
        %v1361 = vunpack.c.h.b16 %v972
        %v1362 = vunpack.c.l.b16 %v973
        %v1363 = vunpack.c.h.b16 %v973
        %v1364 = vunpack.c.l.b16 %v974
        %v1365 = vunpack.c.h.b16 %v974
        %v1366 = vunpack.c.l.b16 %v975
        %v1367 = vunpack.c.h.b16 %v975
        %v1368 = vunpack.c.l.b16 %v976
        %v1369 = vunpack.c.h.b16 %v976
        %v1370 = vunpack.c.l.b16 %v977
        %v1371 = vunpack.c.h.b16 %v977
        %v1372 = vunpack.c.l.b16 %v978
        %v1373 = vunpack.c.h.b16 %v978
        %v1374 = vunpack.c.l.b16 %v979
        %v1375 = vunpack.c.h.b16 %v979
        %v1376 = vunpack.c.l.b16 %v980
        %v1377 = vunpack.c.h.b16 %v980
        %v1378 = vunpack.c.l.b16 %v981
        %v1379 = vunpack.c.h.b16 %v981
        %v1380 = vunpack.c.l.b16 %v982
        %v1381 = vunpack.c.h.b16 %v982
        %v1382 = vunpack.c.l.b16 %v983
        %v1383 = vunpack.c.h.b16 %v983
        %v1384 = vunpack.c.l.b16 %v984
        %v1385 = vunpack.c.h.b16 %v984
        %v1386 = vunpack.c.l.b16 %v985
        %v1387 = vunpack.c.h.b16 %v985
        %v1388 = vunpack.c.l.b16 %v986
        %v1389 = vunpack.c.h.b16 %v986
        %v1390 = vunpack.c.l.b16 %v987
        %v1391 = vunpack.c.h.b16 %v987
        %v1392 = vunpack.c.l.b16 %v988
        %v1393 = vunpack.c.h.b16 %v988
        %v1394 = vunpack.c.l.b16 %v989
        %v1395 = vunpack.c.h.b16 %v989
        %v1396 = vunpack.c.l.b16 %v990
        %v1397 = vunpack.c.h.b16 %v990
        %v1398 = vunpack.c.l.b16 %v991
        %v1399 = vunpack.c.h.b16 %v991
        %v1400 = vunpack.c.l.b16 %v992
        %v1401 = vunpack.c.h.b16 %v992
        %v1402 = vunpack.c.l.b16 %v993
        %v1403 = vunpack.c.h.b16 %v993
        %v1404 = vunpack.c.l.b16 %v994
        %v1405 = vunpack.c.h.b16 %v994
        %v1406 = vunpack.c.l.b16 %v995
        %v1407 = vunpack.c.h.b16 %v995
        %v1408 = vpack.c.b16 %v1154, %v1152
        %v1409 = vpack.c.b16 %v1155, %v1153
        %v1410 = vpack.c.b16 %v1158, %v1156
        %v1411 = vpack.c.b16 %v1159, %v1157
        %v1412 = vpack.c.b16 %v1162, %v1160
        %v1413 = vpack.c.b16 %v1163, %v1161
        %v1414 = vpack.c.b16 %v1166, %v1164
        %v1415 = vpack.c.b16 %v1167, %v1165
        %v1416 = vpack.c.b16 %v1170, %v1168
        %v1417 = vpack.c.b16 %v1171, %v1169
        %v1418 = vpack.c.b16 %v1174, %v1172
        %v1419 = vpack.c.b16 %v1175, %v1173
        %v1420 = vpack.c.b16 %v1178, %v1176
        %v1421 = vpack.c.b16 %v1179, %v1177
        %v1422 = vpack.c.b16 %v1182, %v1180
        %v1423 = vpack.c.b16 %v1183, %v1181
        %v1424 = vpack.c.b16 %v1186, %v1184
        %v1425 = vpack.c.b16 %v1187, %v1185
        %v1426 = vpack.c.b16 %v1190, %v1188
        %v1427 = vpack.c.b16 %v1191, %v1189
        %v1428 = vpack.c.b16 %v1194, %v1192
        %v1429 = vpack.c.b16 %v1195, %v1193
        %v1430 = vpack.c.b16 %v1198, %v1196
        %v1431 = vpack.c.b16 %v1199, %v1197
        %v1432 = vpack.c.b16 %v1202, %v1200
        %v1433 = vpack.c.b16 %v1203, %v1201
        %v1434 = vpack.c.b16 %v1206, %v1204
        %v1435 = vpack.c.b16 %v1207, %v1205
        %v1436 = vpack.c.b16 %v1210, %v1208
        %v1437 = vpack.c.b16 %v1211, %v1209
        %v1438 = vpack.c.b16 %v1214, %v1212
        %v1439 = vpack.c.b16 %v1215, %v1213
        %v1440 = vpack.c.b16 %v1218, %v1216
        %v1441 = vpack.c.b16 %v1219, %v1217
        %v1442 = vpack.c.b16 %v1222, %v1220
        %v1443 = vpack.c.b16 %v1223, %v1221
        %v1444 = vpack.c.b16 %v1226, %v1224
        %v1445 = vpack.c.b16 %v1227, %v1225
        %v1446 = vpack.c.b16 %v1230, %v1228
        %v1447 = vpack.c.b16 %v1231, %v1229
        %v1448 = vpack.c.b16 %v1234, %v1232
        %v1449 = vpack.c.b16 %v1235, %v1233
        %v1450 = vpack.c.b16 %v1238, %v1236
        %v1451 = vpack.c.b16 %v1239, %v1237
        %v1452 = vpack.c.b16 %v1242, %v1240
        %v1453 = vpack.c.b16 %v1243, %v1241
        %v1454 = vpack.c.b16 %v1246, %v1244
        %v1455 = vpack.c.b16 %v1247, %v1245
        %v1456 = vpack.c.b16 %v1250, %v1248
        %v1457 = vpack.c.b16 %v1251, %v1249
        %v1458 = vpack.c.b16 %v1254, %v1252
        %v1459 = vpack.c.b16 %v1255, %v1253
        %v1460 = vpack.c.b16 %v1258, %v1256
        %v1461 = vpack.c.b16 %v1259, %v1257
        %v1462 = vpack.c.b16 %v1262, %v1260
        %v1463 = vpack.c.b16 %v1263, %v1261
        %v1464 = vpack.c.b16 %v1266, %v1264
        %v1465 = vpack.c.b16 %v1267, %v1265
        %v1466 = vpack.c.b16 %v1270, %v1268
        %v1467 = vpack.c.b16 %v1271, %v1269
        %v1468 = vpack.c.b16 %v1274, %v1272
        %v1469 = vpack.c.b16 %v1275, %v1273
        %v1470 = vpack.c.b16 %v1278, %v1276
        %v1471 = vpack.c.b16 %v1279, %v1277
        %v1472 = vpack.c.b16 %v1282, %v1280
        %v1473 = vpack.c.b16 %v1283, %v1281
        %v1474 = vpack.c.b16 %v1286, %v1284
        %v1475 = vpack.c.b16 %v1287, %v1285
        %v1476 = vpack.c.b16 %v1290, %v1288
        %v1477 = vpack.c.b16 %v1291, %v1289
        %v1478 = vpack.c.b16 %v1294, %v1292
        %v1479 = vpack.c.b16 %v1295, %v1293
        %v1480 = vpack.c.b16 %v1298, %v1296
        %v1481 = vpack.c.b16 %v1299, %v1297
        %v1482 = vpack.c.b16 %v1302, %v1300
        %v1483 = vpack.c.b16 %v1303, %v1301
        %v1484 = vpack.c.b16 %v1306, %v1304
        %v1485 = vpack.c.b16 %v1307, %v1305
        %v1486 = vpack.c.b16 %v1310, %v1308
        %v1487 = vpack.c.b16 %v1311, %v1309
        %v1488 = vpack.c.b16 %v1314, %v1312
        %v1489 = vpack.c.b16 %v1315, %v1313
        %v1490 = vpack.c.b16 %v1318, %v1316
        %v1491 = vpack.c.b16 %v1319, %v1317
        %v1492 = vpack.c.b16 %v1322, %v1320
        %v1493 = vpack.c.b16 %v1323, %v1321
        %v1494 = vpack.c.b16 %v1326, %v1324
        %v1495 = vpack.c.b16 %v1327, %v1325
        %v1496 = vpack.c.b16 %v1330, %v1328
        %v1497 = vpack.c.b16 %v1331, %v1329
        %v1498 = vpack.c.b16 %v1334, %v1332
        %v1499 = vpack.c.b16 %v1335, %v1333
        %v1500 = vpack.c.b16 %v1338, %v1336
        %v1501 = vpack.c.b16 %v1339, %v1337
        %v1502 = vpack.c.b16 %v1342, %v1340
        %v1503 = vpack.c.b16 %v1343, %v1341
        %v1504 = vpack.c.b16 %v1346, %v1344
        %v1505 = vpack.c.b16 %v1347, %v1345
        %v1506 = vpack.c.b16 %v1350, %v1348
        %v1507 = vpack.c.b16 %v1351, %v1349
        %v1508 = vpack.c.b16 %v1354, %v1352
        %v1509 = vpack.c.b16 %v1355, %v1353
        %v1510 = vpack.c.b16 %v1358, %v1356
        %v1511 = vpack.c.b16 %v1359, %v1357
        %v1512 = vpack.c.b16 %v1362, %v1360
        %v1513 = vpack.c.b16 %v1363, %v1361
        %v1514 = vpack.c.b16 %v1366, %v1364
        %v1515 = vpack.c.b16 %v1367, %v1365
        %v1516 = vpack.c.b16 %v1370, %v1368
        %v1517 = vpack.c.b16 %v1371, %v1369
        %v1518 = vpack.c.b16 %v1374, %v1372
        %v1519 = vpack.c.b16 %v1375, %v1373
        %v1520 = vpack.c.b16 %v1378, %v1376
        %v1521 = vpack.c.b16 %v1379, %v1377
        %v1522 = vpack.c.b16 %v1382, %v1380
        %v1523 = vpack.c.b16 %v1383, %v1381
        %v1524 = vpack.c.b16 %v1386, %v1384
        %v1525 = vpack.c.b16 %v1387, %v1385
        %v1526 = vpack.c.b16 %v1390, %v1388
        %v1527 = vpack.c.b16 %v1391, %v1389
        %v1528 = vpack.c.b16 %v1394, %v1392
        %v1529 = vpack.c.b16 %v1395, %v1393
        %v1530 = vpack.c.b16 %v1398, %v1396
        %v1531 = vpack.c.b16 %v1399, %v1397
        %v1532 = vpack.c.b16 %v1402, %v1400
        %v1533 = vpack.c.b16 %v1403, %v1401
        %v1534 = vpack.c.b16 %v1406, %v1404
        %v1535 = vpack.c.b16 %v1407, %v1405
        %1664 = vmatpush.bf16.msra.mxu0 %v1422
        %1665 = vmatpush.bf16.msra.mxu0 %v1420
        %1666 = vmatpush.bf16.msra.mxu0 %v1418
        %1667 = vmatpush.bf16.msra.mxu0 %v1416
        %1668 = vmatpush.bf16.msra.mxu0 %v1414
        %1669 = vmatpush.bf16.msra.mxu0 %v1412
        %1670 = vmatpush.bf16.msra.mxu0 %v1410
        %1671 = vmatpush.bf16.msra.mxu0 %v1408
        %1672 = vmatmul.bf16.gmra.mxu0 %v1008
        %v1673 = vpop.f32.mrf.mxu0
        %v1674 = vadd.f32 0.0, %v1673
        %v1675 = vpop.f32.mrf.mxu0
        %1676 = vdwg.mxu0
        %1677 = vmatpush.bf16.msra.mxu0 %v1438
        %1678 = vmatpush.bf16.msra.mxu0 %v1436
        %1679 = vmatpush.bf16.msra.mxu0 %v1434
        %1680 = vmatpush.bf16.msra.mxu0 %v1432
        %1681 = vmatpush.bf16.msra.mxu0 %v1430
        %1682 = vmatpush.bf16.msra.mxu0 %v1428
        %1683 = vmatpush.bf16.msra.mxu0 %v1426
        %1684 = vmatpush.bf16.msra.mxu0 %v1424
        %1685 = vmatmul.bf16.gmra.mxu0 %v1009
        %v1686 = vpop.f32.mrf.mxu0
        %v1687 = vadd.f32 %v1674, %v1686
        %v1688 = vpop.f32.mrf.mxu0
        %1689 = vdwg.mxu0
        %1690 = vmatpush.bf16.msra.mxu0 %v1454
        %1691 = vmatpush.bf16.msra.mxu0 %v1452
        %1692 = vmatpush.bf16.msra.mxu0 %v1450
        %1693 = vmatpush.bf16.msra.mxu0 %v1448
        %1694 = vmatpush.bf16.msra.mxu0 %v1446
        %1695 = vmatpush.bf16.msra.mxu0 %v1444
        %1696 = vmatpush.bf16.msra.mxu0 %v1442
        %1697 = vmatpush.bf16.msra.mxu0 %v1440
        %1698 = vmatmul.bf16.gmra.mxu0 %v1010
        %v1699 = vpop.f32.mrf.mxu0
        %v1700 = vadd.f32 %v1687, %v1699
        %v1701 = vpop.f32.mrf.mxu0
        %1702 = vdwg.mxu0
        %1703 = vmatpush.bf16.msra.mxu0 %v1470
        %1704 = vmatpush.bf16.msra.mxu0 %v1468
        %1705 = vmatpush.bf16.msra.mxu0 %v1466
        %1706 = vmatpush.bf16.msra.mxu0 %v1464
        %1707 = vmatpush.bf16.msra.mxu0 %v1462
        %1708 = vmatpush.bf16.msra.mxu0 %v1460
        %1709 = vmatpush.bf16.msra.mxu0 %v1458
        %1710 = vmatpush.bf16.msra.mxu0 %v1456
        %1711 = vmatmul.bf16.gmra.mxu0 %v1011
        %v1712 = vpop.f32.mrf.mxu0
        %v1713 = vadd.f32 %v1700, %v1712
        %v1714 = vpop.f32.mrf.mxu0
        %1715 = vdwg.mxu0
        %1716 = vmatpush.bf16.msra.mxu0 %v1486
        %1717 = vmatpush.bf16.msra.mxu0 %v1484
        %1718 = vmatpush.bf16.msra.mxu0 %v1482
        %1719 = vmatpush.bf16.msra.mxu0 %v1480
        %1720 = vmatpush.bf16.msra.mxu0 %v1478
        %1721 = vmatpush.bf16.msra.mxu0 %v1476
        %1722 = vmatpush.bf16.msra.mxu0 %v1474
        %1723 = vmatpush.bf16.msra.mxu0 %v1472
        %1724 = vmatmul.bf16.gmra.mxu0 %v1012
        %v1725 = vpop.f32.mrf.mxu0
        %v1726 = vadd.f32 %v1713, %v1725
        %v1727 = vpop.f32.mrf.mxu0
        %1728 = vdwg.mxu0
        %1729 = vmatpush.bf16.msra.mxu0 %v1502
        %1730 = vmatpush.bf16.msra.mxu0 %v1500
        %1731 = vmatpush.bf16.msra.mxu0 %v1498
        %1732 = vmatpush.bf16.msra.mxu0 %v1496
        %1733 = vmatpush.bf16.msra.mxu0 %v1494
        %1734 = vmatpush.bf16.msra.mxu0 %v1492
        %1735 = vmatpush.bf16.msra.mxu0 %v1490
        %1736 = vmatpush.bf16.msra.mxu0 %v1488
        %1737 = vmatmul.bf16.gmra.mxu0 %v1013
        %v1738 = vpop.f32.mrf.mxu0
        %v1739 = vadd.f32 %v1726, %v1738
        %v1740 = vpop.f32.mrf.mxu0
        %1741 = vdwg.mxu0
        %1742 = vmatpush.bf16.msra.mxu0 %v1518
        %1743 = vmatpush.bf16.msra.mxu0 %v1516
        %1744 = vmatpush.bf16.msra.mxu0 %v1514
        %1745 = vmatpush.bf16.msra.mxu0 %v1512
        %1746 = vmatpush.bf16.msra.mxu0 %v1510
        %1747 = vmatpush.bf16.msra.mxu0 %v1508
        %1748 = vmatpush.bf16.msra.mxu0 %v1506
        %1749 = vmatpush.bf16.msra.mxu0 %v1504
        %1750 = vmatmul.bf16.gmra.mxu0 %v1014
        %v1751 = vpop.f32.mrf.mxu0
        %v1752 = vadd.f32 %v1739, %v1751
        %v1753 = vpop.f32.mrf.mxu0
        %1754 = vdwg.mxu0
        %1755 = vmatpush.bf16.msra.mxu0 %v1534
        %1756 = vmatpush.bf16.msra.mxu0 %v1532
        %1757 = vmatpush.bf16.msra.mxu0 %v1530
        %1758 = vmatpush.bf16.msra.mxu0 %v1528
        %1759 = vmatpush.bf16.msra.mxu0 %v1526
        %1760 = vmatpush.bf16.msra.mxu0 %v1524
        %1761 = vmatpush.bf16.msra.mxu0 %v1522
        %1762 = vmatpush.bf16.msra.mxu0 %v1520
        %1763 = vmatmul.bf16.gmra.mxu0 %v1015
        %v1764 = vpop.f32.mrf.mxu0
        %v1765 = vadd.f32 %v1752, %v1764
        %v1766 = vpop.f32.mrf.mxu0
        %1767 = vdwg.mxu0
        %1768 = vmatpush.bf16.msra.mxu0 %v1423
        %1769 = vmatpush.bf16.msra.mxu0 %v1421
        %1770 = vmatpush.bf16.msra.mxu0 %v1419
        %1771 = vmatpush.bf16.msra.mxu0 %v1417
        %1772 = vmatpush.bf16.msra.mxu0 %v1415
        %1773 = vmatpush.bf16.msra.mxu0 %v1413
        %1774 = vmatpush.bf16.msra.mxu0 %v1411
        %1775 = vmatpush.bf16.msra.mxu0 %v1409
        %1776 = vmatmul.bf16.gmra.mxu0 %v1008
        %v1777 = vpop.f32.mrf.mxu0
        %v1778 = vadd.f32 0.0, %v1777
        %v1779 = vpop.f32.mrf.mxu0
        %1780 = vdwg.mxu0
        %1781 = vmatpush.bf16.msra.mxu0 %v1439
        %1782 = vmatpush.bf16.msra.mxu0 %v1437
        %1783 = vmatpush.bf16.msra.mxu0 %v1435
        %1784 = vmatpush.bf16.msra.mxu0 %v1433
        %1785 = vmatpush.bf16.msra.mxu0 %v1431
        %1786 = vmatpush.bf16.msra.mxu0 %v1429
        %1787 = vmatpush.bf16.msra.mxu0 %v1427
        %1788 = vmatpush.bf16.msra.mxu0 %v1425
        %1789 = vmatmul.bf16.gmra.mxu0 %v1009
        %v1790 = vpop.f32.mrf.mxu0
        %v1791 = vadd.f32 %v1778, %v1790
        %v1792 = vpop.f32.mrf.mxu0
        %1793 = vdwg.mxu0
        %1794 = vmatpush.bf16.msra.mxu0 %v1455
        %1795 = vmatpush.bf16.msra.mxu0 %v1453
        %1796 = vmatpush.bf16.msra.mxu0 %v1451
        %1797 = vmatpush.bf16.msra.mxu0 %v1449
        %1798 = vmatpush.bf16.msra.mxu0 %v1447
        %1799 = vmatpush.bf16.msra.mxu0 %v1445
        %1800 = vmatpush.bf16.msra.mxu0 %v1443
        %1801 = vmatpush.bf16.msra.mxu0 %v1441
        %1802 = vmatmul.bf16.gmra.mxu0 %v1010
        %v1803 = vpop.f32.mrf.mxu0
        %v1804 = vadd.f32 %v1791, %v1803
        %v1805 = vpop.f32.mrf.mxu0
        %1806 = vdwg.mxu0
        %1807 = vmatpush.bf16.msra.mxu0 %v1471
        %1808 = vmatpush.bf16.msra.mxu0 %v1469
        %1809 = vmatpush.bf16.msra.mxu0 %v1467
        %1810 = vmatpush.bf16.msra.mxu0 %v1465
        %1811 = vmatpush.bf16.msra.mxu0 %v1463
        %1812 = vmatpush.bf16.msra.mxu0 %v1461
        %1813 = vmatpush.bf16.msra.mxu0 %v1459
        %1814 = vmatpush.bf16.msra.mxu0 %v1457
        %1815 = vmatmul.bf16.gmra.mxu0 %v1011
        %v1816 = vpop.f32.mrf.mxu0
        %v1817 = vadd.f32 %v1804, %v1816
        %v1818 = vpop.f32.mrf.mxu0
        %1819 = vdwg.mxu0
        %1820 = vmatpush.bf16.msra.mxu0 %v1487
        %1821 = vmatpush.bf16.msra.mxu0 %v1485
        %1822 = vmatpush.bf16.msra.mxu0 %v1483
        %1823 = vmatpush.bf16.msra.mxu0 %v1481
        %1824 = vmatpush.bf16.msra.mxu0 %v1479
        %1825 = vmatpush.bf16.msra.mxu0 %v1477
        %1826 = vmatpush.bf16.msra.mxu0 %v1475
        %1827 = vmatpush.bf16.msra.mxu0 %v1473
        %1828 = vmatmul.bf16.gmra.mxu0 %v1012
        %v1829 = vpop.f32.mrf.mxu0
        %v1830 = vadd.f32 %v1817, %v1829
        %v1831 = vpop.f32.mrf.mxu0
        %1832 = vdwg.mxu0
        %1833 = vmatpush.bf16.msra.mxu0 %v1503
        %1834 = vmatpush.bf16.msra.mxu0 %v1501
        %1835 = vmatpush.bf16.msra.mxu0 %v1499
        %1836 = vmatpush.bf16.msra.mxu0 %v1497
        %1837 = vmatpush.bf16.msra.mxu0 %v1495
        %1838 = vmatpush.bf16.msra.mxu0 %v1493
        %1839 = vmatpush.bf16.msra.mxu0 %v1491
        %1840 = vmatpush.bf16.msra.mxu0 %v1489
        %1841 = vmatmul.bf16.gmra.mxu0 %v1013
        %v1842 = vpop.f32.mrf.mxu0
        %v1843 = vadd.f32 %v1830, %v1842
        %v1844 = vpop.f32.mrf.mxu0
        %1845 = vdwg.mxu0
        %1846 = vmatpush.bf16.msra.mxu0 %v1519
        %1847 = vmatpush.bf16.msra.mxu0 %v1517
        %1848 = vmatpush.bf16.msra.mxu0 %v1515
        %1849 = vmatpush.bf16.msra.mxu0 %v1513
        %1850 = vmatpush.bf16.msra.mxu0 %v1511
        %1851 = vmatpush.bf16.msra.mxu0 %v1509
        %1852 = vmatpush.bf16.msra.mxu0 %v1507
        %1853 = vmatpush.bf16.msra.mxu0 %v1505
        %1854 = vmatmul.bf16.gmra.mxu0 %v1014
        %v1855 = vpop.f32.mrf.mxu0
        %v1856 = vadd.f32 %v1843, %v1855
        %v1857 = vpop.f32.mrf.mxu0
        %1858 = vdwg.mxu0
        %1859 = vmatpush.bf16.msra.mxu0 %v1535
        %1860 = vmatpush.bf16.msra.mxu0 %v1533
        %1861 = vmatpush.bf16.msra.mxu0 %v1531
        %1862 = vmatpush.bf16.msra.mxu0 %v1529
        %1863 = vmatpush.bf16.msra.mxu0 %v1527
        %1864 = vmatpush.bf16.msra.mxu0 %v1525
        %1865 = vmatpush.bf16.msra.mxu0 %v1523
        %1866 = vmatpush.bf16.msra.mxu0 %v1521
        %1867 = vmatmul.bf16.gmra.mxu0 %v1015
        %v1868 = vpop.f32.mrf.mxu0
        %v1869 = vadd.f32 %v1856, %v1868
        %v1870 = vpop.f32.mrf.mxu0
        %1871 = vdwg.mxu0
        %v1872 = vadd.f32 %v862, %v1765
        %v1873 = vadd.f32 %v863, %v1869
        %1874 = vst [vmem:[#allocation2] sm:$0xff] %v1872
        %1875 = vst [vmem:[#allocation2 + $0x8] sm:$0xff] %v1873
        %p1876 = scmp.eq.s32.totalorder %s23, 4
        // Predicated region
        $region75: #{scale_discriminator_forward.14} parent=65 // pred_check
          %p1877 = pneg %p1876
        $region76: #{scale_discriminator_forward.14} parent=65 // pred_check_branch
          %1879 = sbr.rel (%p1877) target = $region78
        $region77: #{scale_discriminator_forward.14} parent=65 // pred_region
          %v1880 = vld [vmem:[#allocation2] sm:$0xff]
          %v1881 = vld [vmem:[#allocation2 + $0x8] sm:$0xff]
          %v1882 = vld [vmem:[%s840] sm:$0x3]
          %v1884 = vperm.slane %v1882, 0
          %v1885 = vperm.slane %v1882, 1
          %v1888 = vadd.f32 %v1880, %v1884
          %v1889 = vadd.f32 %v1881, %v1885
          %vm1890 = vcmp.ge.f32.partialorder %v1888, 0.0
          %vm1891 = vcmp.ge.f32.partialorder %v1889, 0.0
          %v1892 = vmul.f32 %v1888, 0.1
          %v1893 = vmul.f32 %v1889, 0.1
          %v1894 = vsel %vm1890, %v1888, %v1892
          %v1895 = vsel %vm1891, %v1889, %v1893
          %1896 = vst [vmem:[%s854] sm:$0xff] %v1894
          %1897 = vst [vmem:[%s854 + $0x8] sm:$0xff] %v1895
        $region78: #{scale_discriminator_forward.14} parent=65 // pred_fallthru
          _
        %s1898 = smul.u32 2, %s22
        %p1899 = scmp.lt.s32.totalorder %s20, 0
        %s1900 = scalar_select %p1899, %s20, 0
        %p1901 = scmp.lt.s32.totalorder %s21, 0
        %s1902 = scalar_select %p1901, %s21, 0
        %p1903 = scmp.lt.s32.totalorder %s1898, 7
        %s1904 = scalar_select %p1903, %s1898, 7
        %s1905 = smul.addr %s1902, 8
        %s1906 = sadd.s32 %s1904, %s1905
        %s1907 = smul.addr %s1900, 8
        %s1908 = sadd.s32 %s1906, %s1907
        %s1909 = smul.addr %s1908, 8
        %s1910 = scalar_lea.vmem %s3, %s1909
        // Predicated region
        $region79: #{scale_discriminator_forward.14} parent=65 // pred_check
          %p1911 = pneg %p150
        $region80: #{scale_discriminator_forward.14} parent=65 // pred_check_branch
          %1913 = sbr.rel (%p1911) target = $region82
        $region81: #{scale_discriminator_forward.14} parent=65 // pred_region
          %s1914 = smul.u32 2, %s22
        $region82: #{scale_discriminator_forward.14} parent=65 // pred_fallthru
          _
      $region66: #{scale_discriminator_forward.14} parent=5 // pred_fallthru
        _
      %p1915 = scmp.le.s32.totalorder 2, %s9
      // Predicated region
      $region83: #{scale_discriminator_forward.14} parent=5 // pred_check
        %p1916 = pneg %p1915
      $region84: #{scale_discriminator_forward.14} parent=5 // pred_check_branch
        %1918 = sbr.rel (%p1916) target = $region86
      $region85: #{scale_discriminator_forward.14} parent=5 // pred_region
        %s1919 = ssub.s32 %s9, 2
        // Predicated region
        $region87: #{scale_discriminator_forward.14} parent=85 // pred_check
          %p1920 = pneg %p156
        $region88: #{scale_discriminator_forward.14} parent=85 // pred_check_branch
          %1922 = sbr.rel (%p1920) target = $region90
        $region89: #{scale_discriminator_forward.14} parent=85 // pred_region
          %s1923 = smul.u32 2, %s26
          %p1924 = scmp.lt.s32.totalorder %s24, 0
          %s1925 = scalar_select %p1924, %s24, 0
          %p1926 = scmp.lt.s32.totalorder %s25, 0
          %s1927 = scalar_select %p1926, %s25, 0
          %p1928 = scmp.lt.s32.totalorder %s1923, 7
          %s1929 = scalar_select %p1928, %s1923, 7
          %s1930 = smul.addr %s1927, 8
          %s1931 = sadd.s32 %s1929, %s1930
          %s1932 = smul.addr %s1925, 8
          %s1933 = sadd.s32 %s1931, %s1932
          %s1934 = smul.addr %s1933, 8
          %s1935 = scalar_lea.vmem %s3, %s1934
        $region90: #{scale_discriminator_forward.14} parent=85 // pred_fallthru
          _
      $region86: #{scale_discriminator_forward.14} parent=5 // pred_fallthru
        _
    $region6: #{scale_discriminator_forward.14} parent=1 // loop_footer
      %s13 = sadd.s32 1, %s9
    $region7: #{scale_discriminator_forward.14} parent=1 // loop_footer_branch
      %8 = sbr.rel target = $region3
    $region8: #{scale_discriminator_forward.14} parent=1 // loop_exit
      _

// kernel: scale_discriminator_forward.15
$region0: #{scale_discriminator_forward.15}
  #allocation0 [shape = 'u32[]', space=smem, size = 0x4, offset = 0x4, fixed_abs, tag = 'smem constant byte address 0x4 - core index']
  #allocation1 [shape = 'u32[72,128]{1,0:T(1,128)}', space=vmem, size = 0x9000, scoped, tag = 'internal scratch']
  #allocation2 [shape = 'f32[8,128]{1,0:T(8,128)}', space=vmem, size = 0x1000, scoped, tag = 'scratch operand']
  %s0 = inlined_call_operand.vmem [shape: bf16[1,8,3072], index: 0, kind: input, shape index: {}]
  %s1 = inlined_call_operand.vmem [shape: bf16[1,3072,128], index: 1, kind: input, shape index: {}]
  %s2 = inlined_call_operand.vmem [shape: f32[1,1,128], index: 2, kind: input, shape index: {}]
  %s3 = inlined_call_operand.vmem [shape: f32[1,8,128], index: 3, kind: output, shape index: {}]
  %s4 = sld [smem:[#allocation0]]
  $region53: #{scale_discriminator_forward.15} parent=0
    _
  %s6 = ssub.s32 1, %s4
  %s7 = scalar_select 0, %s6, %s4
  loop: start=0, step=1, limit=5
  $region2: #{scale_discriminator_forward.15} parent=0 // loop_pre_header
    _
  $region3: #{scale_discriminator_forward.15} parent=0 // loop_header
    %s9 = sphi 0, %s13
    %p10 = scmp.ge.s32.totalorder %s9, 5
    %s16 = sphi 0, %s42
    %s17 = sphi 0, %s38
    %s18 = sphi 0, %s34
    %s19 = sphi 0, %s30
    %s20 = sphi 0, %s16
    %s21 = sphi 0, %s17
    %s22 = sphi 0, %s18
    %s23 = sphi 0, %s19
    %s24 = sphi 0, %s20
    %s25 = sphi 0, %s21
    %s26 = sphi 0, %s22
    %s27 = sphi 0, %s23
    %s49 = sphi 0, %s51
    %s52 = sphi 0, %s49
    %s53 = sphi 0, %s52
    %s69 = sphi 0, %s53
    %s79 = sphi 0, %s81
    %s82 = sphi 0, %s79
    %s83 = sphi 0, %s82
    %s99 = sphi 0, %s83
    %s107 = sphi 0, %s109
    %s110 = sphi 0, %s107
    %s111 = sphi 0, %s110
    %s127 = sphi 0, %s111
    %s137 = sphi 0, %s139
    %s140 = sphi 0, %s137
    %s141 = sphi 0, %s140
    %s157 = sphi 0, %s141
  $region4: #{scale_discriminator_forward.15} parent=0 // loop_header_branch
    %12 = sbr.rel (%p10) target = $region8
  $region5: #{scale_discriminator_forward.15} parent=0 // loop_body
    %s14 = ssub.s32 %s9, 1
    %s15 = ssub.s32 %s9, 2
    %s28 = sadd.s32 1, %s19
    %p29 = scmp.ge.s32.totalorder %s28, 3
    %s30 = scalar_select %p29, 0, %s28
    %s31 = sadd.s32 1, %s18
    %s32 = scalar_select %p29, %s31, %s18
    %p33 = scmp.ge.s32.totalorder %s32, 1
    %s34 = scalar_select %p33, 0, %s32
    %s35 = sadd.s32 1, %s17
    %s36 = scalar_select %p33, %s35, %s17
    %p37 = scmp.ge.s32.totalorder %s36, 1
    %s38 = scalar_select %p37, 0, %s36
    %s39 = sadd.s32 1, %s16
    %s40 = scalar_select %p37, %s39, %s16
    %p41 = scmp.ge.s32.totalorder %s40, 1
    %s42 = scalar_select %p41, 0, %s40
    %s43 = ssub.s32 %s16, %s42
    %s44 = ssub.s32 %s17, %s38
    %s45 = sor.u32 %s43, %s44
    %s46 = ssub.s32 %s19, %s30
    %s47 = sor.u32 %s45, %s46
    %p48 = scmp.eq.s32.totalorder %s47, 0
    %s50 = sadd.s32 %s49, 1
    %s51 = scalar_select %p48, %s49, %s50
    %p54 = pneg %p48
    %p55 = scmp.eq.s32.totalorder %s9, 2
    %p56 = por %p54, %p55
    %p57 = scmp.ne.s32.totalorder %s49, %s52
    %p58 = scmp.eq.s32.totalorder %s9, 0
    %p59 = por %p57, %p58
    %p60 = scmp.ne.s32.totalorder %s49, %s52
    %p61 = scmp.eq.s32.totalorder %s14, 2
    %p62 = por %p60, %p61
    %p63 = scmp.ne.s32.totalorder %s52, %s53
    %p64 = scmp.eq.s32.totalorder %s14, 0
    %p65 = por %p63, %p64
    %p66 = scmp.ne.s32.totalorder %s52, %s53
    %p67 = scmp.eq.s32.totalorder %s15, 2
    %p68 = por %p66, %p67
    %p70 = scmp.ne.s32.totalorder %s53, %s69
    %p71 = scmp.eq.s32.totalorder %s15, 0
    %p72 = por %p70, %p71
    %s73 = ssub.s32 %s16, %s42
    %s74 = ssub.s32 %s19, %s30
    %s75 = sor.u32 %s73, %s74
    %s76 = ssub.s32 %s18, %s34
    %s77 = sor.u32 %s75, %s76
    %p78 = scmp.eq.s32.totalorder %s77, 0
    %s80 = sadd.s32 %s79, 1
    %s81 = scalar_select %p78, %s79, %s80
    %p84 = pneg %p78
    %p85 = scmp.eq.s32.totalorder %s9, 2
    %p86 = por %p84, %p85
    %p87 = scmp.ne.s32.totalorder %s79, %s82
    %p88 = scmp.eq.s32.totalorder %s9, 0
    %p89 = por %p87, %p88
    %p90 = scmp.ne.s32.totalorder %s79, %s82
    %p91 = scmp.eq.s32.totalorder %s14, 2
    %p92 = por %p90, %p91
    %p93 = scmp.ne.s32.totalorder %s82, %s83
    %p94 = scmp.eq.s32.totalorder %s14, 0
    %p95 = por %p93, %p94
    %p96 = scmp.ne.s32.totalorder %s82, %s83
    %p97 = scmp.eq.s32.totalorder %s15, 2
    %p98 = por %p96, %p97
    %p100 = scmp.ne.s32.totalorder %s83, %s99
    %p101 = scmp.eq.s32.totalorder %s15, 0
    %p102 = por %p100, %p101
    %s103 = ssub.s32 %s16, %s42
    %s104 = ssub.s32 %s18, %s34
    %s105 = sor.u32 %s103, %s104
    %p106 = scmp.eq.s32.totalorder %s105, 0
    %s108 = sadd.s32 %s107, 1
    %s109 = scalar_select %p106, %s107, %s108
    %p112 = pneg %p106
    %p113 = scmp.eq.s32.totalorder %s9, 2
    %p114 = por %p112, %p113
    %p115 = scmp.ne.s32.totalorder %s107, %s110
    %p116 = scmp.eq.s32.totalorder %s9, 0
    %p117 = por %p115, %p116
    %p118 = scmp.ne.s32.totalorder %s107, %s110
    %p119 = scmp.eq.s32.totalorder %s14, 2
    %p120 = por %p118, %p119
    %p121 = scmp.ne.s32.totalorder %s110, %s111
    %p122 = scmp.eq.s32.totalorder %s14, 0
    %p123 = por %p121, %p122
    %p124 = scmp.ne.s32.totalorder %s110, %s111
    %p125 = scmp.eq.s32.totalorder %s15, 2
    %p126 = por %p124, %p125
    %p128 = scmp.ne.s32.totalorder %s111, %s127
    %p129 = scmp.eq.s32.totalorder %s15, 0
    %p130 = por %p128, %p129
    %s131 = ssub.s32 %s16, %s42
    %s132 = ssub.s32 %s17, %s38
    %s133 = sor.u32 %s131, %s132
    %s134 = ssub.s32 %s18, %s34
    %s135 = sor.u32 %s133, %s134
    %p136 = scmp.eq.s32.totalorder %s135, 0
    %s138 = sadd.s32 %s137, 1
    %s139 = scalar_select %p136, %s137, %s138
    %p142 = pneg %p136
    %p143 = scmp.eq.s32.totalorder %s9, 2
    %p144 = por %p142, %p143
    %p145 = scmp.ne.s32.totalorder %s137, %s140
    %p146 = scmp.eq.s32.totalorder %s9, 0
    %p147 = por %p145, %p146
    %p148 = scmp.ne.s32.totalorder %s137, %s140
    %p149 = scmp.eq.s32.totalorder %s14, 2
    %p150 = por %p148, %p149
    %p151 = scmp.ne.s32.totalorder %s140, %s141
    %p152 = scmp.eq.s32.totalorder %s14, 0
    %p153 = por %p151, %p152
    %p154 = scmp.ne.s32.totalorder %s140, %s141
    %p155 = scmp.eq.s32.totalorder %s15, 2
    %p156 = por %p154, %p155
    %p158 = scmp.ne.s32.totalorder %s141, %s157
    %p159 = scmp.eq.s32.totalorder %s15, 0
    %p160 = por %p158, %p159
    %p161 = scmp.le.s32.totalorder 1, %s9
    %p162 = scmp.lt.s32.totalorder %s9, 4
    %p163 = pnand %p161, %p162
    %p164 = pneg %p163
    // Predicated region
    $region9: #{scale_discriminator_forward.15} parent=5 // pred_check
      _
    $region10: #{scale_discriminator_forward.15} parent=5 // pred_check_branch
      %166 = sbr.rel (%p163) target = $region12
    $region11: #{scale_discriminator_forward.15} parent=5 // pred_region
      %s167 = ssub.s32 %s9, 1
      // Predicated region
      $region13: #{scale_discriminator_forward.15} parent=11 // pred_check
        %p168 = pneg %p123
      $region14: #{scale_discriminator_forward.15} parent=11 // pred_check_branch
        %170 = sbr.rel (%p168) target = $region16
      $region15: #{scale_discriminator_forward.15} parent=11 // pred_region
        %p171 = scmp.lt.s32.totalorder %s20, 0
        %s172 = scalar_select %p171, %s20, 0
        %p173 = scmp.lt.s32.totalorder %s22, 0
        %s174 = scalar_select %p173, %s22, 0
        %s175 = sadd.s32 %s174, %s172
        %s176 = scalar_lea.vmem %s2, %s175
      $region16: #{scale_discriminator_forward.15} parent=11 // pred_fallthru
        _
    $region12: #{scale_discriminator_forward.15} parent=5 // pred_fallthru
      _
    %p177 = scmp.lt.s32.totalorder %s9, 3
    // Predicated region
    $region17: #{scale_discriminator_forward.15} parent=5 // pred_check
      %p178 = pneg %p177
    $region18: #{scale_discriminator_forward.15} parent=5 // pred_check_branch
      %180 = sbr.rel (%p178) target = $region20
    $region19: #{scale_discriminator_forward.15} parent=5 // pred_region
      // Predicated region
      $region21: #{scale_discriminator_forward.15} parent=19 // pred_check
        %p181 = pneg %p59
      $region22: #{scale_discriminator_forward.15} parent=19 // pred_check_branch
        %183 = sbr.rel (%p181) target = $region24
      $region23: #{scale_discriminator_forward.15} parent=19 // pred_region
        %s184 = smul.u32 8, %s19
        %p185 = scmp.lt.s32.totalorder %s16, 0
        %s186 = scalar_select %p185, %s16, 0
        %p187 = scmp.lt.s32.totalorder %s17, 0
        %s188 = scalar_select %p187, %s17, 0
        %p189 = scmp.lt.s32.totalorder %s184, 23
        %s190 = scalar_select %p189, %s184, 23
        %s191 = smul.addr %s188, 24
        %s192 = sadd.s32 %s190, %s191
        %s193 = smul.addr %s186, 24
        %s194 = sadd.s32 %s192, %s193
        %s195 = smul.addr %s194, 4
        %s196 = scalar_lea.vmem %s0, %s195
        %s197 = smul.u32 8, %s19
      $region24: #{scale_discriminator_forward.15} parent=19 // pred_fallthru
        _
      // Predicated region
      $region25: #{scale_discriminator_forward.15} parent=19 // pred_check
        %p198 = pneg %p89
      $region26: #{scale_discriminator_forward.15} parent=19 // pred_check_branch
        %200 = sbr.rel (%p198) target = $region28
      $region27: #{scale_discriminator_forward.15} parent=19 // pred_region
        %s201 = smul.u32 128, %s19
        %p202 = scmp.lt.s32.totalorder %s16, 0
        %s203 = scalar_select %p202, %s16, 0
        %p204 = scmp.lt.s32.totalorder %s201, 383
        %s205 = scalar_select %p204, %s201, 383
        %p206 = scmp.lt.s32.totalorder %s18, 0
        %s207 = scalar_select %p206, %s18, 0
        %s208 = sadd.s32 %s207, %s205
        %s209 = smul.addr %s203, 384
        %s210 = sadd.s32 %s208, %s209
        %s211 = smul.addr %s210, 4
        %s212 = scalar_lea.vmem %s1, %s211
        %s213 = smul.u32 128, %s19
      $region28: #{scale_discriminator_forward.15} parent=19 // pred_fallthru
        _
    $region20: #{scale_discriminator_forward.15} parent=5 // pred_fallthru
      _
    %p214 = scmp.le.s32.totalorder 1, %s9
    %p215 = scmp.lt.s32.totalorder %s9, 4
    %p216 = pnand %p214, %p215
    %p217 = pneg %p216
    // Predicated region
    $region29: #{scale_discriminator_forward.15} parent=5 // pred_check
      _
    $region30: #{scale_discriminator_forward.15} parent=5 // pred_check_branch
      %219 = sbr.rel (%p216) target = $region32
    $region31: #{scale_discriminator_forward.15} parent=5 // pred_region
      %s220 = ssub.s32 %s9, 1
      %s221 = smul.u32 8, %s23
      %p222 = scmp.lt.s32.totalorder %s20, 0
      %s223 = scalar_select %p222, %s20, 0
      %p224 = scmp.lt.s32.totalorder %s21, 0
      %s225 = scalar_select %p224, %s21, 0
      %p226 = scmp.lt.s32.totalorder %s221, 23
      %s227 = scalar_select %p226, %s221, 23
      %s228 = smul.addr %s225, 24
      %s229 = sadd.s32 %s227, %s228
      %s230 = smul.addr %s223, 24
      %s231 = sadd.s32 %s229, %s230
      %s232 = smul.addr %s231, 4
      %s233 = scalar_lea.vmem %s0, %s232
      %p234 = pneg %p65
      %p235 = pneg %p62
      %s236 = smul.u32 128, %s23
      %p237 = scmp.lt.s32.totalorder %s20, 0
      %s238 = scalar_select %p237, %s20, 0
      %p239 = scmp.lt.s32.totalorder %s236, 383
      %s240 = scalar_select %p239, %s236, 383
      %p241 = scmp.lt.s32.totalorder %s22, 0
      %s242 = scalar_select %p241, %s22, 0
      %s243 = sadd.s32 %s242, %s240
      %s244 = smul.addr %s238, 384
      %s245 = sadd.s32 %s243, %s244
      %s246 = smul.addr %s245, 4
      %s247 = scalar_lea.vmem %s1, %s246
      %p248 = pneg %p95
      %p249 = pneg %p92
      %p250 = scmp.lt.s32.totalorder %s20, 0
      %s251 = scalar_select %p250, %s20, 0
      %p252 = scmp.lt.s32.totalorder %s22, 0
      %s253 = scalar_select %p252, %s22, 0
      %s254 = sadd.s32 %s253, %s251
      %s255 = scalar_lea.vmem %s2, %s254
      %p256 = pneg %p123
      %p257 = pneg %p120
      %p258 = pneg %p153
      %p259 = pneg %p150
      %p260 = scmp.lt.s32.totalorder %s20, 0
      %s261 = scalar_select %p260, %s20, 0
      %p262 = scmp.lt.s32.totalorder %s21, 0
      %s263 = scalar_select %p262, %s21, 0
      %p264 = scmp.lt.s32.totalorder %s22, 0
      %s265 = scalar_select %p264, %s22, 0
      %s266 = sadd.s32 %s265, %s263
      %s267 = sadd.s32 %s266, %s261
      %s268 = smul.addr %s267, 8
      %s269 = scalar_lea.vmem %s3, %s268
      %s270 = smul.u32 8, %s23
      %p271 = scmp.lt.s32.totalorder %s20, 0
      %s272 = scalar_select %p271, %s20, 0
      %p273 = scmp.lt.s32.totalorder %s21, 0
      %s274 = scalar_select %p273, %s21, 0
      %p275 = scmp.lt.s32.totalorder %s270, 23
      %s276 = scalar_select %p275, %s270, 23
      %s277 = smul.addr %s274, 24
      %s278 = sadd.s32 %s276, %s277
      %s279 = smul.addr %s272, 24
      %s280 = sadd.s32 %s278, %s279
      %s281 = smul.addr %s280, 4
      %s282 = scalar_lea.vmem %s0, %s281
      %s283 = smul.u32 8, %s23
      %s284 = smul.u32 128, %s23
      %p285 = scmp.lt.s32.totalorder %s20, 0
      %s286 = scalar_select %p285, %s20, 0
      %p287 = scmp.lt.s32.totalorder %s284, 383
      %s288 = scalar_select %p287, %s284, 383
      %p289 = scmp.lt.s32.totalorder %s22, 0
      %s290 = scalar_select %p289, %s22, 0
      %s291 = sadd.s32 %s290, %s288
      %s292 = smul.addr %s286, 384
      %s293 = sadd.s32 %s291, %s292
      %s294 = smul.addr %s293, 4
      %s295 = scalar_lea.vmem %s1, %s294
      %s296 = smul.u32 128, %s23
      %p297 = scmp.lt.s32.totalorder %s20, 0
      %s298 = scalar_select %p297, %s20, 0
      %p299 = scmp.lt.s32.totalorder %s22, 0
      %s300 = scalar_select %p299, %s22, 0
      %s301 = sadd.s32 %s300, %s298
      %s302 = scalar_lea.vmem %s2, %s301
      %p303 = scmp.lt.s32.totalorder %s20, 0
      %s304 = scalar_select %p303, %s20, 0
      %p305 = scmp.lt.s32.totalorder %s21, 0
      %s306 = scalar_select %p305, %s21, 0
      %p307 = scmp.lt.s32.totalorder %s22, 0
      %s308 = scalar_select %p307, %s22, 0
      %s309 = sadd.s32 %s308, %s306
      %s310 = sadd.s32 %s309, %s304
      %s311 = smul.addr %s310, 8
      %s312 = scalar_lea.vmem %s3, %s311
      %p313 = scmp.eq.s32.totalorder %s23, 0
      // Predicated region
      $region33: #{scale_discriminator_forward.15} parent=31 // pred_check
        %p314 = pneg %p313
      $region34: #{scale_discriminator_forward.15} parent=31 // pred_check_branch
        %316 = sbr.rel (%p314) target = $region36
      $region35: #{scale_discriminator_forward.15} parent=31 // pred_region
        %317 = vst [vmem:[#allocation2] sm:$0xff] 0.0
      $region36: #{scale_discriminator_forward.15} parent=31 // pred_fallthru
        _
      %v318 = vld [vmem:[#allocation2] sm:$0xff]
      %v319 = vld [vmem:[%s282] sm:$0xff]
      %v320 = vld [vmem:[%s282 + $0x8] sm:$0xff]
      %v321 = vld [vmem:[%s282 + $0x10] sm:$0xff]
      %v322 = vld [vmem:[%s282 + $0x18] sm:$0xff]
      %v323 = vld [vmem:[%s295] sm:$0xf]
      %v324 = vld [vmem:[%s295 + $0x4] sm:$0xf]
      %v325 = vld [vmem:[%s295 + $0x8] sm:$0xf]
      %v326 = vld [vmem:[%s295 + $0xc] sm:$0xf]
      %v327 = vld [vmem:[%s295 + $0x10] sm:$0xf]
      %v328 = vld [vmem:[%s295 + $0x14] sm:$0xf]
      %v329 = vld [vmem:[%s295 + $0x18] sm:$0xf]
      %v330 = vld [vmem:[%s295 + $0x1c] sm:$0xf]
      %v331 = vld [vmem:[%s295 + $0x20] sm:$0xf]
      %v332 = vld [vmem:[%s295 + $0x24] sm:$0xf]
      %v333 = vld [vmem:[%s295 + $0x28] sm:$0xf]
      %v334 = vld [vmem:[%s295 + $0x2c] sm:$0xf]
      %v335 = vld [vmem:[%s295 + $0x30] sm:$0xf]
      %v336 = vld [vmem:[%s295 + $0x34] sm:$0xf]
      %v337 = vld [vmem:[%s295 + $0x38] sm:$0xf]
      %v338 = vld [vmem:[%s295 + $0x3c] sm:$0xf]
      %v339 = vld [vmem:[%s295 + $0x40] sm:$0xf]
      %v340 = vld [vmem:[%s295 + $0x44] sm:$0xf]
      %v341 = vld [vmem:[%s295 + $0x48] sm:$0xf]
      %v342 = vld [vmem:[%s295 + $0x4c] sm:$0xf]
      %v343 = vld [vmem:[%s295 + $0x50] sm:$0xf]
      %v344 = vld [vmem:[%s295 + $0x54] sm:$0xf]
      %v345 = vld [vmem:[%s295 + $0x58] sm:$0xf]
      %v346 = vld [vmem:[%s295 + $0x5c] sm:$0xf]
      %v347 = vld [vmem:[%s295 + $0x60] sm:$0xf]
      %v348 = vld [vmem:[%s295 + $0x64] sm:$0xf]
      %v349 = vld [vmem:[%s295 + $0x68] sm:$0xf]
      %v350 = vld [vmem:[%s295 + $0x6c] sm:$0xf]
      %v351 = vld [vmem:[%s295 + $0x70] sm:$0xf]
      %v352 = vld [vmem:[%s295 + $0x74] sm:$0xf]
      %v353 = vld [vmem:[%s295 + $0x78] sm:$0xf]
      %v354 = vld [vmem:[%s295 + $0x7c] sm:$0xf]
      %v355 = vld [vmem:[%s295 + $0x80] sm:$0xf]
      %v356 = vld [vmem:[%s295 + $0x84] sm:$0xf]
      %v357 = vld [vmem:[%s295 + $0x88] sm:$0xf]
      %v358 = vld [vmem:[%s295 + $0x8c] sm:$0xf]
      %v359 = vld [vmem:[%s295 + $0x90] sm:$0xf]
      %v360 = vld [vmem:[%s295 + $0x94] sm:$0xf]
      %v361 = vld [vmem:[%s295 + $0x98] sm:$0xf]
      %v362 = vld [vmem:[%s295 + $0x9c] sm:$0xf]
      %v363 = vld [vmem:[%s295 + $0xa0] sm:$0xf]
      %v364 = vld [vmem:[%s295 + $0xa4] sm:$0xf]
      %v365 = vld [vmem:[%s295 + $0xa8] sm:$0xf]
      %v366 = vld [vmem:[%s295 + $0xac] sm:$0xf]
      %v367 = vld [vmem:[%s295 + $0xb0] sm:$0xf]
      %v368 = vld [vmem:[%s295 + $0xb4] sm:$0xf]
      %v369 = vld [vmem:[%s295 + $0xb8] sm:$0xf]
      %v370 = vld [vmem:[%s295 + $0xbc] sm:$0xf]
      %v371 = vld [vmem:[%s295 + $0xc0] sm:$0xf]
      %v372 = vld [vmem:[%s295 + $0xc4] sm:$0xf]
      %v373 = vld [vmem:[%s295 + $0xc8] sm:$0xf]
      %v374 = vld [vmem:[%s295 + $0xcc] sm:$0xf]
      %v375 = vld [vmem:[%s295 + $0xd0] sm:$0xf]
      %v376 = vld [vmem:[%s295 + $0xd4] sm:$0xf]
      %v377 = vld [vmem:[%s295 + $0xd8] sm:$0xf]
      %v378 = vld [vmem:[%s295 + $0xdc] sm:$0xf]
      %v379 = vld [vmem:[%s295 + $0xe0] sm:$0xf]
      %v380 = vld [vmem:[%s295 + $0xe4] sm:$0xf]
      %v381 = vld [vmem:[%s295 + $0xe8] sm:$0xf]
      %v382 = vld [vmem:[%s295 + $0xec] sm:$0xf]
      %v383 = vld [vmem:[%s295 + $0xf0] sm:$0xf]
      %v384 = vld [vmem:[%s295 + $0xf4] sm:$0xf]
      %v385 = vld [vmem:[%s295 + $0xf8] sm:$0xf]
      %v386 = vld [vmem:[%s295 + $0xfc] sm:$0xf]
      %v387 = vld [vmem:[%s295 + $0x100] sm:$0xf]
      %v388 = vld [vmem:[%s295 + $0x104] sm:$0xf]
      %v389 = vld [vmem:[%s295 + $0x108] sm:$0xf]
      %v390 = vld [vmem:[%s295 + $0x10c] sm:$0xf]
      %v391 = vld [vmem:[%s295 + $0x110] sm:$0xf]
      %v392 = vld [vmem:[%s295 + $0x114] sm:$0xf]
      %v393 = vld [vmem:[%s295 + $0x118] sm:$0xf]
      %v394 = vld [vmem:[%s295 + $0x11c] sm:$0xf]
      %v395 = vld [vmem:[%s295 + $0x120] sm:$0xf]
      %v396 = vld [vmem:[%s295 + $0x124] sm:$0xf]
      %v397 = vld [vmem:[%s295 + $0x128] sm:$0xf]
      %v398 = vld [vmem:[%s295 + $0x12c] sm:$0xf]
      %v399 = vld [vmem:[%s295 + $0x130] sm:$0xf]
      %v400 = vld [vmem:[%s295 + $0x134] sm:$0xf]
      %v401 = vld [vmem:[%s295 + $0x138] sm:$0xf]
      %v402 = vld [vmem:[%s295 + $0x13c] sm:$0xf]
      %v403 = vld [vmem:[%s295 + $0x140] sm:$0xf]
      %v404 = vld [vmem:[%s295 + $0x144] sm:$0xf]
      %v405 = vld [vmem:[%s295 + $0x148] sm:$0xf]
      %v406 = vld [vmem:[%s295 + $0x14c] sm:$0xf]
      %v407 = vld [vmem:[%s295 + $0x150] sm:$0xf]
      %v408 = vld [vmem:[%s295 + $0x154] sm:$0xf]
      %v409 = vld [vmem:[%s295 + $0x158] sm:$0xf]
      %v410 = vld [vmem:[%s295 + $0x15c] sm:$0xf]
      %v411 = vld [vmem:[%s295 + $0x160] sm:$0xf]
      %v412 = vld [vmem:[%s295 + $0x164] sm:$0xf]
      %v413 = vld [vmem:[%s295 + $0x168] sm:$0xf]
      %v414 = vld [vmem:[%s295 + $0x16c] sm:$0xf]
      %v415 = vld [vmem:[%s295 + $0x170] sm:$0xf]
      %v416 = vld [vmem:[%s295 + $0x174] sm:$0xf]
      %v417 = vld [vmem:[%s295 + $0x178] sm:$0xf]
      %v418 = vld [vmem:[%s295 + $0x17c] sm:$0xf]
      %v419 = vld [vmem:[%s295 + $0x180] sm:$0xf]
      %v420 = vld [vmem:[%s295 + $0x184] sm:$0xf]
      %v421 = vld [vmem:[%s295 + $0x188] sm:$0xf]
      %v422 = vld [vmem:[%s295 + $0x18c] sm:$0xf]
      %v423 = vld [vmem:[%s295 + $0x190] sm:$0xf]
      %v424 = vld [vmem:[%s295 + $0x194] sm:$0xf]
      %v425 = vld [vmem:[%s295 + $0x198] sm:$0xf]
      %v426 = vld [vmem:[%s295 + $0x19c] sm:$0xf]
      %v427 = vld [vmem:[%s295 + $0x1a0] sm:$0xf]
      %v428 = vld [vmem:[%s295 + $0x1a4] sm:$0xf]
      %v429 = vld [vmem:[%s295 + $0x1a8] sm:$0xf]
      %v430 = vld [vmem:[%s295 + $0x1ac] sm:$0xf]
      %v431 = vld [vmem:[%s295 + $0x1b0] sm:$0xf]
      %v432 = vld [vmem:[%s295 + $0x1b4] sm:$0xf]
      %v433 = vld [vmem:[%s295 + $0x1b8] sm:$0xf]
      %v434 = vld [vmem:[%s295 + $0x1bc] sm:$0xf]
      %v435 = vld [vmem:[%s295 + $0x1c0] sm:$0xf]
      %v436 = vld [vmem:[%s295 + $0x1c4] sm:$0xf]
      %v437 = vld [vmem:[%s295 + $0x1c8] sm:$0xf]
      %v438 = vld [vmem:[%s295 + $0x1cc] sm:$0xf]
      %v439 = vld [vmem:[%s295 + $0x1d0] sm:$0xf]
      %v440 = vld [vmem:[%s295 + $0x1d4] sm:$0xf]
      %v441 = vld [vmem:[%s295 + $0x1d8] sm:$0xf]
      %v442 = vld [vmem:[%s295 + $0x1dc] sm:$0xf]
      %v443 = vld [vmem:[%s295 + $0x1e0] sm:$0xf]
      %v444 = vld [vmem:[%s295 + $0x1e4] sm:$0xf]
      %v445 = vld [vmem:[%s295 + $0x1e8] sm:$0xf]
      %v446 = vld [vmem:[%s295 + $0x1ec] sm:$0xf]
      %v447 = vld [vmem:[%s295 + $0x1f0] sm:$0xf]
      %v448 = vld [vmem:[%s295 + $0x1f4] sm:$0xf]
      %v449 = vld [vmem:[%s295 + $0x1f8] sm:$0xf]
      %v450 = vld [vmem:[%s295 + $0x1fc] sm:$0xf]
      %v455 = vunpack.c.l.b16 %v319
      %v456 = vunpack.c.h.b16 %v319
      %v457 = vunpack.c.l.b16 %v320
      %v458 = vunpack.c.h.b16 %v320
      %v459 = vunpack.c.l.b16 %v321
      %v460 = vunpack.c.h.b16 %v321
      %v461 = vunpack.c.l.b16 %v322
      %v462 = vunpack.c.h.b16 %v322
      %v463 = vpack.c.b16 %v455, %v455
      %v464 = vpack.c.b16 %v456, %v456
      %v465 = vpack.c.b16 %v457, %v457
      %v466 = vpack.c.b16 %v458, %v458
      %v467 = vpack.c.b16 %v459, %v459
      %v468 = vpack.c.b16 %v460, %v460
      %v469 = vpack.c.b16 %v461, %v461
      %v470 = vpack.c.b16 %v462, %v462
      %v607 = vunpack.c.l.b16 %v323
      %v608 = vunpack.c.l.b16 %v324
      %v609 = vunpack.c.l.b16 %v325
      %v610 = vunpack.c.l.b16 %v326
      %v611 = vunpack.c.l.b16 %v327
      %v612 = vunpack.c.l.b16 %v328
      %v613 = vunpack.c.l.b16 %v329
      %v614 = vunpack.c.l.b16 %v330
      %v615 = vunpack.c.l.b16 %v331
      %v616 = vunpack.c.l.b16 %v332
      %v617 = vunpack.c.l.b16 %v333
      %v618 = vunpack.c.l.b16 %v334
      %v619 = vunpack.c.l.b16 %v335
      %v620 = vunpack.c.l.b16 %v336
      %v621 = vunpack.c.l.b16 %v337
      %v622 = vunpack.c.l.b16 %v338
      %v623 = vunpack.c.l.b16 %v339
      %v624 = vunpack.c.l.b16 %v340
      %v625 = vunpack.c.l.b16 %v341
      %v626 = vunpack.c.l.b16 %v342
      %v627 = vunpack.c.l.b16 %v343
      %v628 = vunpack.c.l.b16 %v344
      %v629 = vunpack.c.l.b16 %v345
      %v630 = vunpack.c.l.b16 %v346
      %v631 = vunpack.c.l.b16 %v347
      %v632 = vunpack.c.l.b16 %v348
      %v633 = vunpack.c.l.b16 %v349
      %v634 = vunpack.c.l.b16 %v350
      %v635 = vunpack.c.l.b16 %v351
      %v636 = vunpack.c.l.b16 %v352
      %v637 = vunpack.c.l.b16 %v353
      %v638 = vunpack.c.l.b16 %v354
      %v639 = vunpack.c.l.b16 %v355
      %v640 = vunpack.c.l.b16 %v356
      %v641 = vunpack.c.l.b16 %v357
      %v642 = vunpack.c.l.b16 %v358
      %v643 = vunpack.c.l.b16 %v359
      %v644 = vunpack.c.l.b16 %v360
      %v645 = vunpack.c.l.b16 %v361
      %v646 = vunpack.c.l.b16 %v362
      %v647 = vunpack.c.l.b16 %v363
      %v648 = vunpack.c.l.b16 %v364
      %v649 = vunpack.c.l.b16 %v365
      %v650 = vunpack.c.l.b16 %v366
      %v651 = vunpack.c.l.b16 %v367
      %v652 = vunpack.c.l.b16 %v368
      %v653 = vunpack.c.l.b16 %v369
      %v654 = vunpack.c.l.b16 %v370
      %v655 = vunpack.c.l.b16 %v371
      %v656 = vunpack.c.l.b16 %v372
      %v657 = vunpack.c.l.b16 %v373
      %v658 = vunpack.c.l.b16 %v374
      %v659 = vunpack.c.l.b16 %v375
      %v660 = vunpack.c.l.b16 %v376
      %v661 = vunpack.c.l.b16 %v377
      %v662 = vunpack.c.l.b16 %v378
      %v663 = vunpack.c.l.b16 %v379
      %v664 = vunpack.c.l.b16 %v380
      %v665 = vunpack.c.l.b16 %v381
      %v666 = vunpack.c.l.b16 %v382
      %v667 = vunpack.c.l.b16 %v383
      %v668 = vunpack.c.l.b16 %v384
      %v669 = vunpack.c.l.b16 %v385
      %v670 = vunpack.c.l.b16 %v386
      %v671 = vunpack.c.l.b16 %v387
      %v672 = vunpack.c.l.b16 %v388
      %v673 = vunpack.c.l.b16 %v389
      %v674 = vunpack.c.l.b16 %v390
      %v675 = vunpack.c.l.b16 %v391
      %v676 = vunpack.c.l.b16 %v392
      %v677 = vunpack.c.l.b16 %v393
      %v678 = vunpack.c.l.b16 %v394
      %v679 = vunpack.c.l.b16 %v395
      %v680 = vunpack.c.l.b16 %v396
      %v681 = vunpack.c.l.b16 %v397
      %v682 = vunpack.c.l.b16 %v398
      %v683 = vunpack.c.l.b16 %v399
      %v684 = vunpack.c.l.b16 %v400
      %v685 = vunpack.c.l.b16 %v401
      %v686 = vunpack.c.l.b16 %v402
      %v687 = vunpack.c.l.b16 %v403
      %v688 = vunpack.c.l.b16 %v404
      %v689 = vunpack.c.l.b16 %v405
      %v690 = vunpack.c.l.b16 %v406
      %v691 = vunpack.c.l.b16 %v407
      %v692 = vunpack.c.l.b16 %v408
      %v693 = vunpack.c.l.b16 %v409
      %v694 = vunpack.c.l.b16 %v410
      %v695 = vunpack.c.l.b16 %v411
      %v696 = vunpack.c.l.b16 %v412
      %v697 = vunpack.c.l.b16 %v413
      %v698 = vunpack.c.l.b16 %v414
      %v699 = vunpack.c.l.b16 %v415
      %v700 = vunpack.c.l.b16 %v416
      %v701 = vunpack.c.l.b16 %v417
      %v702 = vunpack.c.l.b16 %v418
      %v703 = vunpack.c.l.b16 %v419
      %v704 = vunpack.c.l.b16 %v420
      %v705 = vunpack.c.l.b16 %v421
      %v706 = vunpack.c.l.b16 %v422
      %v707 = vunpack.c.l.b16 %v423
      %v708 = vunpack.c.l.b16 %v424
      %v709 = vunpack.c.l.b16 %v425
      %v710 = vunpack.c.l.b16 %v426
      %v711 = vunpack.c.l.b16 %v427
      %v712 = vunpack.c.l.b16 %v428
      %v713 = vunpack.c.l.b16 %v429
      %v714 = vunpack.c.l.b16 %v430
      %v715 = vunpack.c.l.b16 %v431
      %v716 = vunpack.c.l.b16 %v432
      %v717 = vunpack.c.l.b16 %v433
      %v718 = vunpack.c.l.b16 %v434
      %v719 = vunpack.c.l.b16 %v435
      %v720 = vunpack.c.l.b16 %v436
      %v721 = vunpack.c.l.b16 %v437
      %v722 = vunpack.c.l.b16 %v438
      %v723 = vunpack.c.l.b16 %v439
      %v724 = vunpack.c.l.b16 %v440
      %v725 = vunpack.c.l.b16 %v441
      %v726 = vunpack.c.l.b16 %v442
      %v727 = vunpack.c.l.b16 %v443
      %v728 = vunpack.c.l.b16 %v444
      %v729 = vunpack.c.l.b16 %v445
      %v730 = vunpack.c.l.b16 %v446
      %v731 = vunpack.c.l.b16 %v447
      %v732 = vunpack.c.l.b16 %v448
      %v733 = vunpack.c.l.b16 %v449
      %v734 = vunpack.c.l.b16 %v450
      %v735 = vpack.c.b16 %v608, %v607
      %v736 = vpack.c.b16 %v610, %v609
      %v737 = vpack.c.b16 %v612, %v611
      %v738 = vpack.c.b16 %v614, %v613
      %v739 = vpack.c.b16 %v616, %v615
      %v740 = vpack.c.b16 %v618, %v617
      %v741 = vpack.c.b16 %v620, %v619
      %v742 = vpack.c.b16 %v622, %v621
      %v743 = vpack.c.b16 %v624, %v623
      %v744 = vpack.c.b16 %v626, %v625
      %v745 = vpack.c.b16 %v628, %v627
      %v746 = vpack.c.b16 %v630, %v629
      %v747 = vpack.c.b16 %v632, %v631
      %v748 = vpack.c.b16 %v634, %v633
      %v749 = vpack.c.b16 %v636, %v635
      %v750 = vpack.c.b16 %v638, %v637
      %v751 = vpack.c.b16 %v640, %v639
      %v752 = vpack.c.b16 %v642, %v641
      %v753 = vpack.c.b16 %v644, %v643
      %v754 = vpack.c.b16 %v646, %v645
      %v755 = vpack.c.b16 %v648, %v647
      %v756 = vpack.c.b16 %v650, %v649
      %v757 = vpack.c.b16 %v652, %v651
      %v758 = vpack.c.b16 %v654, %v653
      %v759 = vpack.c.b16 %v656, %v655
      %v760 = vpack.c.b16 %v658, %v657
      %v761 = vpack.c.b16 %v660, %v659
      %v762 = vpack.c.b16 %v662, %v661
      %v763 = vpack.c.b16 %v664, %v663
      %v764 = vpack.c.b16 %v666, %v665
      %v765 = vpack.c.b16 %v668, %v667
      %v766 = vpack.c.b16 %v670, %v669
      %v767 = vpack.c.b16 %v672, %v671
      %v768 = vpack.c.b16 %v674, %v673
      %v769 = vpack.c.b16 %v676, %v675
      %v770 = vpack.c.b16 %v678, %v677
      %v771 = vpack.c.b16 %v680, %v679
      %v772 = vpack.c.b16 %v682, %v681
      %v773 = vpack.c.b16 %v684, %v683
      %v774 = vpack.c.b16 %v686, %v685
      %v775 = vpack.c.b16 %v688, %v687
      %v776 = vpack.c.b16 %v690, %v689
      %v777 = vpack.c.b16 %v692, %v691
      %v778 = vpack.c.b16 %v694, %v693
      %v779 = vpack.c.b16 %v696, %v695
      %v780 = vpack.c.b16 %v698, %v697
      %v781 = vpack.c.b16 %v700, %v699
      %v782 = vpack.c.b16 %v702, %v701
      %v783 = vpack.c.b16 %v704, %v703
      %v784 = vpack.c.b16 %v706, %v705
      %v785 = vpack.c.b16 %v708, %v707
      %v786 = vpack.c.b16 %v710, %v709
      %v787 = vpack.c.b16 %v712, %v711
      %v788 = vpack.c.b16 %v714, %v713
      %v789 = vpack.c.b16 %v716, %v715
      %v790 = vpack.c.b16 %v718, %v717
      %v791 = vpack.c.b16 %v720, %v719
      %v792 = vpack.c.b16 %v722, %v721
      %v793 = vpack.c.b16 %v724, %v723
      %v794 = vpack.c.b16 %v726, %v725
      %v795 = vpack.c.b16 %v728, %v727
      %v796 = vpack.c.b16 %v730, %v729
      %v797 = vpack.c.b16 %v732, %v731
      %v798 = vpack.c.b16 %v734, %v733
      %863 = vmatpush.bf16.msra.mxu0 %v742
      %864 = vmatpush.bf16.msra.mxu0 %v741
      %865 = vmatpush.bf16.msra.mxu0 %v740
      %866 = vmatpush.bf16.msra.mxu0 %v739
      %867 = vmatpush.bf16.msra.mxu0 %v738
      %868 = vmatpush.bf16.msra.mxu0 %v737
      %869 = vmatpush.bf16.msra.mxu0 %v736
      %870 = vmatpush.bf16.msra.mxu0 %v735
      %871 = vmatmul.bf16.gmra.mxu0 %v463
      %v872 = vpop.f32.mrf.mxu0
      %v873 = vadd.f32 0.0, %v872
      %v874 = vpop.f32.mrf.mxu0
      %875 = vdwg.mxu0
      %876 = vmatpush.bf16.msra.mxu0 %v750
      %877 = vmatpush.bf16.msra.mxu0 %v749
      %878 = vmatpush.bf16.msra.mxu0 %v748
      %879 = vmatpush.bf16.msra.mxu0 %v747
      %880 = vmatpush.bf16.msra.mxu0 %v746
      %881 = vmatpush.bf16.msra.mxu0 %v745
      %882 = vmatpush.bf16.msra.mxu0 %v744
      %883 = vmatpush.bf16.msra.mxu0 %v743
      %884 = vmatmul.bf16.gmra.mxu0 %v464
      %v885 = vpop.f32.mrf.mxu0
      %v886 = vadd.f32 %v873, %v885
      %v887 = vpop.f32.mrf.mxu0
      %888 = vdwg.mxu0
      %889 = vmatpush.bf16.msra.mxu0 %v758
      %890 = vmatpush.bf16.msra.mxu0 %v757
      %891 = vmatpush.bf16.msra.mxu0 %v756
      %892 = vmatpush.bf16.msra.mxu0 %v755
      %893 = vmatpush.bf16.msra.mxu0 %v754
      %894 = vmatpush.bf16.msra.mxu0 %v753
      %895 = vmatpush.bf16.msra.mxu0 %v752
      %896 = vmatpush.bf16.msra.mxu0 %v751
      %897 = vmatmul.bf16.gmra.mxu0 %v465
      %v898 = vpop.f32.mrf.mxu0
      %v899 = vadd.f32 %v886, %v898
      %v900 = vpop.f32.mrf.mxu0
      %901 = vdwg.mxu0
      %902 = vmatpush.bf16.msra.mxu0 %v766
      %903 = vmatpush.bf16.msra.mxu0 %v765
      %904 = vmatpush.bf16.msra.mxu0 %v764
      %905 = vmatpush.bf16.msra.mxu0 %v763
      %906 = vmatpush.bf16.msra.mxu0 %v762
      %907 = vmatpush.bf16.msra.mxu0 %v761
      %908 = vmatpush.bf16.msra.mxu0 %v760
      %909 = vmatpush.bf16.msra.mxu0 %v759
      %910 = vmatmul.bf16.gmra.mxu0 %v466
      %v911 = vpop.f32.mrf.mxu0
      %v912 = vadd.f32 %v899, %v911
      %v913 = vpop.f32.mrf.mxu0
      %914 = vdwg.mxu0
      %915 = vmatpush.bf16.msra.mxu0 %v774
      %916 = vmatpush.bf16.msra.mxu0 %v773
      %917 = vmatpush.bf16.msra.mxu0 %v772
      %918 = vmatpush.bf16.msra.mxu0 %v771
      %919 = vmatpush.bf16.msra.mxu0 %v770
      %920 = vmatpush.bf16.msra.mxu0 %v769
      %921 = vmatpush.bf16.msra.mxu0 %v768
      %922 = vmatpush.bf16.msra.mxu0 %v767
      %923 = vmatmul.bf16.gmra.mxu0 %v467
      %v924 = vpop.f32.mrf.mxu0
      %v925 = vadd.f32 %v912, %v924
      %v926 = vpop.f32.mrf.mxu0
      %927 = vdwg.mxu0
      %928 = vmatpush.bf16.msra.mxu0 %v782
      %929 = vmatpush.bf16.msra.mxu0 %v781
      %930 = vmatpush.bf16.msra.mxu0 %v780
      %931 = vmatpush.bf16.msra.mxu0 %v779
      %932 = vmatpush.bf16.msra.mxu0 %v778
      %933 = vmatpush.bf16.msra.mxu0 %v777
      %934 = vmatpush.bf16.msra.mxu0 %v776
      %935 = vmatpush.bf16.msra.mxu0 %v775
      %936 = vmatmul.bf16.gmra.mxu0 %v468
      %v937 = vpop.f32.mrf.mxu0
      %v938 = vadd.f32 %v925, %v937
      %v939 = vpop.f32.mrf.mxu0
      %940 = vdwg.mxu0
      %941 = vmatpush.bf16.msra.mxu0 %v790
      %942 = vmatpush.bf16.msra.mxu0 %v789
      %943 = vmatpush.bf16.msra.mxu0 %v788
      %944 = vmatpush.bf16.msra.mxu0 %v787
      %945 = vmatpush.bf16.msra.mxu0 %v786
      %946 = vmatpush.bf16.msra.mxu0 %v785
      %947 = vmatpush.bf16.msra.mxu0 %v784
      %948 = vmatpush.bf16.msra.mxu0 %v783
      %949 = vmatmul.bf16.gmra.mxu0 %v469
      %v950 = vpop.f32.mrf.mxu0
      %v951 = vadd.f32 %v938, %v950
      %v952 = vpop.f32.mrf.mxu0
      %953 = vdwg.mxu0
      %954 = vmatpush.bf16.msra.mxu0 %v798
      %955 = vmatpush.bf16.msra.mxu0 %v797
      %956 = vmatpush.bf16.msra.mxu0 %v796
      %957 = vmatpush.bf16.msra.mxu0 %v795
      %958 = vmatpush.bf16.msra.mxu0 %v794
      %959 = vmatpush.bf16.msra.mxu0 %v793
      %960 = vmatpush.bf16.msra.mxu0 %v792
      %961 = vmatpush.bf16.msra.mxu0 %v791
      %962 = vmatmul.bf16.gmra.mxu0 %v470
      %v963 = vpop.f32.mrf.mxu0
      %v964 = vadd.f32 %v951, %v963
      %v965 = vpop.f32.mrf.mxu0
      %966 = vdwg.mxu0
      %v967 = vadd.f32 %v318, %v964
      %968 = vst [vmem:[#allocation2] sm:$0xff] %v967
      %p969 = scmp.eq.s32.totalorder %s23, 2
      // Predicated region
      $region37: #{scale_discriminator_forward.15} parent=31 // pred_check
        %p970 = pneg %p969
      $region38: #{scale_discriminator_forward.15} parent=31 // pred_check_branch
        %972 = sbr.rel (%p970) target = $region40
      $region39: #{scale_discriminator_forward.15} parent=31 // pred_region
        %v973 = vld [vmem:[#allocation2] sm:$0xff]
        %v974 = vld [vmem:[%s302] sm:$0x1]
        %v976 = vperm.slane %v974, 0
        %v978 = vadd.f32 %v973, %v976
        %979 = vst [vmem:[%s312] sm:$0xff] %v978
      $region40: #{scale_discriminator_forward.15} parent=31 // pred_fallthru
        _
      %p980 = scmp.lt.s32.totalorder %s20, 0
      %s981 = scalar_select %p980, %s20, 0
      %p982 = scmp.lt.s32.totalorder %s21, 0
      %s983 = scalar_select %p982, %s21, 0
      %p984 = scmp.lt.s32.totalorder %s22, 0
      %s985 = scalar_select %p984, %s22, 0
      %s986 = sadd.s32 %s985, %s983
      %s987 = sadd.s32 %s986, %s981
      %s988 = smul.addr %s987, 8
      %s989 = scalar_lea.vmem %s3, %s988
      // Predicated region
      $region41: #{scale_discriminator_forward.15} parent=31 // pred_check
        %p990 = pneg %p150
      $region42: #{scale_discriminator_forward.15} parent=31 // pred_check_branch
        %992 = sbr.rel (%p990) target = $region44
      $region43: #{scale_discriminator_forward.15} parent=31 // pred_region
        _
      $region44: #{scale_discriminator_forward.15} parent=31 // pred_fallthru
        _
      // Predicated region
      $region45: #{scale_discriminator_forward.15} parent=31 // pred_check
        %p993 = pneg %p150
      $region46: #{scale_discriminator_forward.15} parent=31 // pred_check_branch
        %995 = sbr.rel (%p993) target = $region48
      $region47: #{scale_discriminator_forward.15} parent=31 // pred_region
        %p996 = scmp.lt.s32.totalorder %s20, 0
        %s997 = scalar_select %p996, %s20, 0
        %p998 = scmp.lt.s32.totalorder %s21, 0
        %s999 = scalar_select %p998, %s21, 0
        %p1000 = scmp.lt.s32.totalorder %s22, 0
        %s1001 = scalar_select %p1000, %s22, 0
        %s1002 = sadd.s32 %s1001, %s999
        %s1003 = sadd.s32 %s1002, %s997
        %s1004 = smul.addr %s1003, 8
        %s1005 = scalar_lea.vmem %s3, %s1004
      $region48: #{scale_discriminator_forward.15} parent=31 // pred_fallthru
        _
    $region32: #{scale_discriminator_forward.15} parent=5 // pred_fallthru
      _
    %p1006 = scmp.le.s32.totalorder 2, %s9
    // Predicated region
    $region49: #{scale_discriminator_forward.15} parent=5 // pred_check
      %p1007 = pneg %p1006
    $region50: #{scale_discriminator_forward.15} parent=5 // pred_check_branch
      %1009 = sbr.rel (%p1007) target = $region52
    $region51: #{scale_discriminator_forward.15} parent=5 // pred_region
      %s1010 = ssub.s32 %s9, 2
    $region52: #{scale_discriminator_forward.15} parent=5 // pred_fallthru
      _
  $region6: #{scale_discriminator_forward.15} parent=0 // loop_footer
    %s13 = sadd.s32 1, %s9
  $region7: #{scale_discriminator_forward.15} parent=0 // loop_footer_branch
    %8 = sbr.rel target = $region3
  $region8: #{scale_discriminator_forward.15} parent=0 // loop_exit
    _

</llo_original>
